<compile_context>
chip_gen: v6e
topology: v6e:2x2x1
jax: 0.10.0
libtpu: 0.0.40
codegen_flags: <defaults>
</compile_context>

<pallas_src>
import functools

import numpy as np

import jax
import jax.numpy as jnp
from jax import lax
from jax.experimental import pallas as pl
from jax.experimental.pallas import tpu as pltpu

_EPS = 1e-5          # nn.InstanceNorm2d default eps
_BLOB_WIDTH = 128    # fixed lane width of the packed-constant blob


# ---------------------------------------------------------------------------
# One-time weight / structure prep (numpy, outside the kernel)
# ---------------------------------------------------------------------------
def _round_up(v, m):
    return (v + m - 1) // m * m


def _out_size(size, stride, transposed):
    # conv: kernel 3, padding 1 ; conv-transpose: padding 1, output_padding s-1
    return size * stride if transposed else (size - 1) // stride + 1


def _row_gather_mats(h_in, h_out, stride, transposed, batch):
    """Per ky: (batch*h_out, batch*h_in) 0/1 matrix selecting the input row
    feeding each output row (zero rows == zero padding)."""
    mats = []
    for ky in range(3):
        m = np.zeros((h_out, h_in), np.float32)
        for oy in range(h_out):
            if transposed:
                t = oy + 1 - ky
                if t < 0 or t % stride != 0:
                    continue
                iy = t // stride
            else:
                iy = stride * oy + ky - 1
            if 0 <= iy < h_in:
                m[oy, iy] = 1.0
        mats.append(np.kron(np.eye(batch, dtype=np.float32), m))
    return mats


def _col_weight_mat(w_in, w_out, stride, transposed, wk):
    """wk: (cin_part, cout, 3) taps for one ky.
    Returns (cin_part*w_in, cout*w_out) matrix baking the kx taps, W-padding
    and W-stride/dilation."""
    cin_p, cout, _ = wk.shape
    r = np.zeros((cin_p, w_in, cout, w_out), np.float32)
    for ox in range(w_out):
        for kx in range(3):
            if transposed:
                t = ox + 1 - kx
                if t < 0 or t % stride != 0:
                    continue
                ix = t // stride
            else:
                ix = stride * ox + kx - 1
            if 0 <= ix < w_in:
                r[:, ix, :, ox] += wk[:, :, kx]
    return r.reshape(cin_p * w_in, cout * w_out)


class _Blob:
    """Packs f32 matrices (<=128 cols) into one (rows, 128) blob, 8-row
    aligned, grouped into contiguous per-layer bands for streaming DMA."""

    def __init__(self, width=_BLOB_WIDTH):
        self.width = width
        self._chunks = []
        self._off = 0
        self.handles = []       # (row_off, rows, cols) per matrix
        self.bands = []         # (row_off, rows) per layer band
        self._band_start = None

    def begin_band(self):
        self._band_start = self._off

    def end_band(self):
        self.bands.append((self._band_start, self._off - self._band_start))
        self._band_start = None

    def add(self, mat):
        mat = np.asarray(mat, np.float32)
        r, c = mat.shape
        assert c <= self.width, (r, c)
        rows = _round_up(r, 8)
        buf = np.zeros((rows, self.width), np.float32)
        buf[:r, :c] = mat
        self.handles.append((self._off, r, c))
        self._chunks.append(buf)
        self._off += rows
        return len(self.handles) - 1

    def finalize(self):
        return np.concatenate(self._chunks, axis=0)


def _layer_configs(in_ch, out_ch, channels, strides):
    c = channels
    return [
        dict(name="conv_0", transposed=False, stride=strides[0], inputs=("x",), splits=(in_ch,), cout=c[0], adn=True),
        dict(name="conv_1", transposed=False, stride=strides[1], inputs=("conv_0",), splits=(c[0],), cout=c[1], adn=True),
        dict(name="conv_2", transposed=False, stride=strides[2], inputs=("conv_1",), splits=(c[1],), cout=c[2], adn=True),
        dict(name="conv_3", transposed=False, stride=strides[3], inputs=("conv_2",), splits=(c[2],), cout=c[3], adn=True),
        dict(name="conv_4", transposed=False, stride=strides[4], inputs=("conv_3",), splits=(c[3],), cout=c[4], adn=True),
        dict(name="ct_1", transposed=True, stride=strides[-2], inputs=("conv_3", "conv_4"), splits=(c[3], c[4]), cout=c[2], adn=True),
        dict(name="ct_2", transposed=True, stride=strides[-3], inputs=("ct_1", "conv_2"), splits=(c[2], c[2]), cout=c[1], adn=True),
        dict(name="ct_3", transposed=True, stride=strides[-4], inputs=("ct_2", "conv_1"), splits=(c[1], c[1]), cout=c[0], adn=True),
        dict(name="ct_4", transposed=True, stride=strides[-5], inputs=("ct_3", "conv_0"), splits=(c[0], c[0]), cout=out_ch, adn=False),  # conv_only
    ]


def build_plan(params, in_ch, out_ch, channels, strides, batch, height, width):
    cfgs = _layer_configs(in_ch, out_ch, channels, strides)
    blob = _Blob()
    shapes = {"x": (height, width, in_ch)}
    plan = []
    flops, trans = 0, 0
    for cfg in cfgs:
        h_in, w_in, _ = shapes[cfg["inputs"][0]]
        for nm in cfg["inputs"]:
            assert shapes[nm][:2] == (h_in, w_in), (cfg["name"], nm)
        s, tr, cout = cfg["stride"], cfg["transposed"], cfg["cout"]
        h_out, w_out = _out_size(h_in, s, tr), _out_size(w_in, s, tr)
        w_t, b_t, a_t = params[cfg["name"]]
        w_np = np.asarray(jax.device_get(w_t), np.float32)
        b_np = np.asarray(jax.device_get(b_t), np.float32)
        # unify to (ci, co, ky, kx)
        w_cico = w_np if tr else np.transpose(w_np, (1, 0, 2, 3))
        cin_tot = int(sum(cfg["splits"]))
        rows_in, rows_out = batch * h_in, batch * h_out
        cols_in, cols_out = cin_tot * w_in, cout * w_out

        blob.begin_band()
        l_ids = tuple(blob.add(m)
                      for m in _row_gather_mats(h_in, h_out, s, tr, batch))
        # One stacked RHS per layer: rows ordered (ky, part, c_in, w_in) to
        # match the lane-concat [L_0 Xin | L_1 Xin | L_2 Xin] in the kernel.
        r_blocks = []
        for ky in range(3):
            c0 = 0
            for c_part in cfg["splits"]:
                r_blocks.append(
                    _col_weight_mat(w_in, w_out, s, tr,
                                    w_cico[c0:c0 + c_part, :, ky, :]))
                c0 += c_part
        r_id = blob.add(np.concatenate(r_blocks, axis=0))
        bias_id = blob.add(np.repeat(b_np, w_out)[None, :])

        entry = dict(name=cfg["name"], inputs=cfg["inputs"], adn=cfg["adn"],
                     l_ids=l_ids, r_id=r_id, bias_id=bias_id)
        flops += 3 * 2 * rows_out * rows_in * cols_in          # 3x L_ky @ Xin
        flops += 2 * rows_out * (3 * cols_in) * cols_out       # Ycat @ R_stack
        if cfg["adn"]:
            entry["mr_id"] = blob.add(
                np.kron(np.eye(batch, dtype=np.float32),
                        np.full((h_out, h_out), 1.0 / h_out, np.float32)))
            entry["mc_id"] = blob.add(
                np.kron(np.eye(cout, dtype=np.float32),
                        np.full((w_out, w_out), 1.0 / w_out, np.float32)))
            entry["alpha_id"] = blob.add(
                np.asarray(jax.device_get(a_t), np.float32).reshape(1, 1))
            flops += 2 * (2 * rows_out * rows_out * cols_out
                          + 2 * rows_out * cols_out * cols_out)
            trans += rows_out * cols_out
        blob.end_band()
        plan.append(entry)
        shapes[cfg["name"]] = (h_out, w_out, cout)

    blob_np = blob.finalize()
    out_h, out_w, out_c = shapes[cfgs[-1]["name"]]
    meta = dict(out_h=out_h, out_w=out_w, out_c=out_c,
                flops=int(flops), trans=int(trans))
    return tuple(plan), tuple(blob.handles), tuple(blob.bands), blob_np, meta


# ---------------------------------------------------------------------------
# The single fused Pallas kernel
# ---------------------------------------------------------------------------
def _unet_kernel(x_ref, blob_hbm, out_ref, blob_vmem, dma_sems,
                 *, plan, handles, bands):
    # Kick off every per-layer constant-band DMA immediately; each band is
    # waited on only right before its layer runs, so HBM->VMEM constant
    # traffic overlaps the preceding layers' compute instead of being exposed.
    copies = []
    for i, (off, rows) in enumerate(bands):
        cp = pltpu.make_async_copy(blob_hbm.at[pl.ds(off, rows)],
                                   blob_vmem.at[pl.ds(off, rows)],
                                   dma_sems.at[i])
        cp.start()
        copies.append(cp)

    def rd(idx):
        off, r, c = handles[idx]
        return blob_vmem[pl.ds(off, r), pl.ds(0, c)]

    acts = {"x": x_ref[...]}
    for li, layer in enumerate(plan):
        copies[li].wait()                              # this layer's constants
        parts = [acts[n] for n in layer["inputs"]]
        xin = parts[0] if len(parts) == 1 else jnp.concatenate(parts, axis=1)
        # 3x3 (transposed) conv as  sum_ky (L_ky @ Xin) @ R_ky  with the
        # (ky, skip-part) sum fused into a single RHS matmul against R_stack.
        ys = [jnp.dot(rd(layer["l_ids"][ky]), xin,
                      preferred_element_type=jnp.float32) for ky in range(3)]
        ycat = jnp.concatenate(ys, axis=1)
        acc = jnp.dot(ycat, rd(layer["r_id"]), preferred_element_type=jnp.float32)
        acc = acc + rd(layer["bias_id"])               # (1, Cout*Wo) broadcast
        if layer["adn"]:
            # InstanceNorm2d (affine=False, eps=1e-5), one-pass statistics:
            # mean and E[x^2] matmul chains are independent (depth 2, not 4).
            m_r, m_c = rd(layer["mr_id"]), rd(layer["mc_id"])
            mean = jnp.dot(jnp.dot(m_r, acc, preferred_element_type=jnp.float32),
                           m_c, preferred_element_type=jnp.float32)
            mean_sq = jnp.dot(jnp.dot(m_r, acc * acc,
                                      preferred_element_type=jnp.float32),
                              m_c, preferred_element_type=jnp.float32)
            var = mean_sq - mean * mean
            xn = (acc - mean) * lax.rsqrt(var + _EPS)
            # Dropout(p=0.0) is identity; PReLU with one learnable alpha (1,1).
            alpha = rd(layer["alpha_id"])
            acc = jnp.where(xn >= 0, xn, alpha * xn)
        acts[layer["name"]] = acc
    out_ref[...] = acts[plan[-1]["name"]]


def make_forward(plan, handles, bands, blob_shape, batch, height, width,
                 in_ch, meta):
    out_rows = batch * meta["out_h"]
    out_cols = meta["out_c"] * meta["out_w"]
    x_rows, x_cols = batch * height, in_ch * width
    kernel = functools.partial(_unet_kernel, plan=plan, handles=handles,
                               bands=bands)
    blob_bytes = int(np.prod(blob_shape)) * 4

    def forward(x_nchw, blob):
        # NCHW -> (batch*H, C*W): rows = (n, h), cols = (c, w)
        x2d = jnp.transpose(x_nchw.astype(jnp.float32), (0, 2, 1, 3)).reshape(
            x_rows, x_cols)
        # TODO(synk): on v7x, shard the batch across the 2 TensorCores with a
        # parallel leading grid axis plus per-core constant streaming.
        y2d = pl.pallas_call(
            kernel,
            out_shape=jax.ShapeDtypeStruct((out_rows, out_cols), jnp.float32),
            grid_spec=pltpu.PrefetchScalarGridSpec(
                num_scalar_prefetch=0,
                grid=(1,),
                in_specs=[
                    pl.BlockSpec((x_rows, x_cols), lambda i: (0, 0)),  # acts
                    pl.BlockSpec(memory_space=pl.ANY),                 # blob stays in HBM
                ],
                out_specs=pl.BlockSpec((out_rows, out_cols), lambda i: (0, 0)),
                scratch_shapes=[
                    pltpu.VMEM(blob_shape, jnp.float32),   # streamed blob mirror
                    pltpu.SemaphoreType.DMA((len(bands),)),
                ]),
            compiler_params=pltpu.CompilerParams(
                dimension_semantics=("arbitrary",)),
            cost_estimate=pl.CostEstimate(
                flops=meta["flops"], transcendentals=meta["trans"],
                bytes_accessed=int(blob_bytes
                                   + 4 * (x_rows * x_cols + out_rows * out_cols))),
        )(x2d, blob)
        # (batch*Ho, Cout*Wo) -> NCHW
        return y2d.reshape(batch, meta["out_h"], meta["out_c"], meta["out_w"]
                           ).transpose(0, 2, 1, 3)

    return jax.jit(forward)


# ---------------------------------------------------------------------------
# Parameter init (deterministic, PyTorch-like uniform bounds, PReLU alpha=0.25)
# ---------------------------------------------------------------------------
def _init_conv(key, cin, cout):
    kw, kb = jax.random.split(key)
    bound = float(1.0 / (cin * 9) ** 0.5)
    w = jax.random.uniform(kw, (cout, cin, 3, 3), jnp.float32, -bound, bound)
    b = jax.random.uniform(kb, (cout,), jnp.float32, -bound, bound)
    return w, b, jnp.asarray(0.25, jnp.float32)


def _init_convT(key, cin, cout):
    kw, kb = jax.random.split(key)
    bound = float(1.0 / (cin * 9) ** 0.5)
    w = jax.random.uniform(kw, (cin, cout, 3, 3), jnp.float32, -bound, bound)
    b = jax.random.uniform(kb, (cout,), jnp.float32, -bound, bound)
    return w, b, jnp.asarray(0.25, jnp.float32)


def init_params(key, in_ch, out_ch, ch):
    keys = jax.random.split(key, 9)
    return {
        "conv_0": _init_conv(keys[0], in_ch, ch[0]),
        "conv_1": _init_conv(keys[1], ch[0], ch[1]),
        "conv_2": _init_conv(keys[2], ch[1], ch[2]),
        "conv_3": _init_conv(keys[3], ch[2], ch[3]),
        "conv_4": _init_conv(keys[4], ch[3], ch[4]),
        "ct_1": _init_convT(keys[5], ch[3] + ch[4], ch[2]),
        "ct_2": _init_convT(keys[6], ch[2] * 2, ch[1]),
        "ct_3": _init_convT(keys[7], ch[1] * 2, ch[0]),
        "ct_4": _init_convT(keys[8], ch[0] * 2, out_ch),
    }


# ---------------------------------------------------------------------------
# Plain-JAX reference (mirrors the PyTorch module) -- validation only
# ---------------------------------------------------------------------------
def reference_forward(params, x, strides):
    hi = lax.Precision.HIGHEST

    def conv(x, w, b, s):
        y = lax.conv_general_dilated(x, w, (s, s), ((1, 1), (1, 1)),
                                     dimension_numbers=("NCHW", "OIHW", "NCHW"),
                                     precision=hi)
        return y + b[None, :, None, None]

    def convT(x, wt, b, s):
        w = jnp.transpose(wt[:, :, ::-1, ::-1], (1, 0, 2, 3))
        y = lax.conv_general_dilated(x, w, (1, 1), ((1, s), (1, s)),
                                     lhs_dilation=(s, s),
                                     dimension_numbers=("NCHW", "OIHW", "NCHW"),
                                     precision=hi)
        return y + b[None, :, None, None]

    def adn(x, alpha):
        mean = jnp.mean(x, axis=(2, 3), keepdims=True)
        var = jnp.mean((x - mean) ** 2, axis=(2, 3), keepdims=True)
        xn = (x - mean) * lax.rsqrt(var + _EPS)
        return jnp.where(xn >= 0, xn, alpha * xn)

    def enc(name, x, s):
        w, b, a = params[name]
        return adn(conv(x, w, b, s), a)

    def dec(name, x, s, last=False):
        w, b, a = params[name]
        y = convT(x, w, b, s)
        return y if last else adn(y, a)

    x0 = enc("conv_0", x, strides[0])
    x1 = enc("conv_1", x0, strides[1])
    x2 = enc("conv_2", x1, strides[2])
    x3 = enc("conv_3", x2, strides[3])
    x4 = enc("conv_4", x3, strides[4])
    y = dec("ct_1", jnp.concatenate([x3, x4], 1), strides[-2])
    y = dec("ct_2", jnp.concatenate([y, x2], 1), strides[-3])
    y = dec("ct_3", jnp.concatenate([y, x1], 1), strides[-4])
    y = dec("ct_4", jnp.concatenate([y, x0], 1), strides[-5], last=True)
    return y


if __name__ == "__main__":
    key = jax.random.PRNGKey(0)
    k_params, k_x = jax.random.split(key)

    channels = (4, 8, 16, 32, 64)
    strides = (2, 2, 2, 2, 1)
    in_channels, out_channels = 1, 1
    batch, spatial = 2, 32                 # spatial must be a multiple of 2**4
    assert spatial % 16 == 0

    params = init_params(k_params, in_channels, out_channels, channels)
    x = jax.random.normal(k_x, (batch, in_channels, spatial, spatial),
                          jnp.float32)

    plan, handles, bands, blob_np, meta = build_plan(
        params, in_channels, out_channels, channels, strides,
        batch, spatial, spatial)
    blob = jnp.asarray(blob_np)

    fwd = make_forward(plan, handles, bands, blob_np.shape,
                       batch, spatial, spatial, in_channels, meta)
    y = fwd(x, blob)
    jax.block_until_ready(y)

    assert y.shape == (batch, out_channels, spatial, spatial), y.shape
    assert bool(jnp.all(jnp.isfinite(y)))

    # Cross-check the fused Pallas kernel against the plain-JAX reference.
    y_ref = jax.jit(functools.partial(reference_forward, strides=strides))(
        params, x)
    err = float(jnp.max(jnp.abs(y - y_ref)))
    assert err < 1e-3, f"mismatch vs reference: max abs err = {err}"

    print("KERNEL_OK")
</pallas_src>

<mosaic_0001>
module attributes {stable_mosaic.version = 11 : i64} {
  func.func @_unet_kernel(%arg0: i32, %arg1: memref<64x32xf32, #tpu.memory_space<vmem>>, %arg2: memref<4008x128xf32, #tpu.memory_space<any>>, %arg3: memref<64x32xf32, #tpu.memory_space<vmem>>, %arg4: memref<4008x128xf32, #tpu.memory_space<vmem>>, %arg5: memref<9x!tpu.dma_semaphore, #tpu.memory_space<semaphore_mem>>) attributes {dimension_semantics = [#tpu.dimension_semantics<arbitrary>], iteration_bounds = array<i64: 1>, scalar_prefetch = 0 : i64, scratch_operands = 2 : i64, tpu.core_type = #tpu.core_type<tc>, window_params = [{pipeline_mode = #tpu.pipeline_mode<synchronous>, transform_indices = @transform_0, window_bounds = array<i64: 64, 32>}, {}, {pipeline_mode = #tpu.pipeline_mode<synchronous>, transform_indices = @transform_2, window_bounds = array<i64: 64, 32>}]} {
    %c0_i32 = arith.constant 0 : i32
    %c0_i32_0 = arith.constant 0 : i32
    %c0_i32_1 = arith.constant 0 : i32
    %0 = tpu.memref_slice %arg2[%c0_i32_0, %c0_i32_1] : memref<4008x128xf32, #tpu.memory_space<any>> -> memref<304x128xf32, #tpu.memory_space<any>>
    %c0_i32_2 = arith.constant 0 : i32
    %c0_i32_3 = arith.constant 0 : i32
    %1 = tpu.memref_slice %arg4[%c0_i32_2, %c0_i32_3] : memref<4008x128xf32, #tpu.memory_space<vmem>> -> memref<304x128xf32, #tpu.memory_space<vmem>>
    %2 = tpu.memref_slice %arg5[%c0_i32] : memref<9x!tpu.dma_semaphore, #tpu.memory_space<semaphore_mem>> -> memref<1x!tpu.dma_semaphore, #tpu.memory_space<semaphore_mem>>
    %3 = tpu.memref_squeeze %2 : memref<1x!tpu.dma_semaphore, #tpu.memory_space<semaphore_mem>> -> memref<!tpu.dma_semaphore, #tpu.memory_space<semaphore_mem>>
    tpu.enqueue_dma source(%0 : memref<304x128xf32, #tpu.memory_space<any>>) target(%1 : memref<304x128xf32, #tpu.memory_space<vmem>>) target_semaphore(%3 : memref<!tpu.dma_semaphore, #tpu.memory_space<semaphore_mem>>)
    %c1_i32 = arith.constant 1 : i32
    %c304_i32 = arith.constant 304 : i32
    %c0_i32_4 = arith.constant 0 : i32
    %4 = tpu.memref_slice %arg2[%c304_i32, %c0_i32_4] : memref<4008x128xf32, #tpu.memory_space<any>> -> memref<336x128xf32, #tpu.memory_space<any>>
    %c304_i32_5 = arith.constant 304 : i32
    %c0_i32_6 = arith.constant 0 : i32
    %5 = tpu.memref_slice %arg4[%c304_i32_5, %c0_i32_6] : memref<4008x128xf32, #tpu.memory_space<vmem>> -> memref<336x128xf32, #tpu.memory_space<vmem>>
    %6 = tpu.memref_slice %arg5[%c1_i32] : memref<9x!tpu.dma_semaphore, #tpu.memory_space<semaphore_mem>> -> memref<1x!tpu.dma_semaphore, #tpu.memory_space<semaphore_mem>>
    %7 = tpu.memref_squeeze %6 : memref<1x!tpu.dma_semaphore, #tpu.memory_space<semaphore_mem>> -> memref<!tpu.dma_semaphore, #tpu.memory_space<semaphore_mem>>
    tpu.enqueue_dma source(%4 : memref<336x128xf32, #tpu.memory_space<any>>) target(%5 : memref<336x128xf32, #tpu.memory_space<vmem>>) target_semaphore(%7 : memref<!tpu.dma_semaphore, #tpu.memory_space<semaphore_mem>>)
    %c2_i32 = arith.constant 2 : i32
    %c640_i32 = arith.constant 640 : i32
    %c0_i32_7 = arith.constant 0 : i32
    %8 = tpu.memref_slice %arg2[%c640_i32, %c0_i32_7] : memref<4008x128xf32, #tpu.memory_space<any>> -> memref<304x128xf32, #tpu.memory_space<any>>
    %c640_i32_8 = arith.constant 640 : i32
    %c0_i32_9 = arith.constant 0 : i32
    %9 = tpu.memref_slice %arg4[%c640_i32_8, %c0_i32_9] : memref<4008x128xf32, #tpu.memory_space<vmem>> -> memref<304x128xf32, #tpu.memory_space<vmem>>
    %10 = tpu.memref_slice %arg5[%c2_i32] : memref<9x!tpu.dma_semaphore, #tpu.memory_space<semaphore_mem>> -> memref<1x!tpu.dma_semaphore, #tpu.memory_space<semaphore_mem>>
    %11 = tpu.memref_squeeze %10 : memref<1x!tpu.dma_semaphore, #tpu.memory_space<semaphore_mem>> -> memref<!tpu.dma_semaphore, #tpu.memory_space<semaphore_mem>>
    tpu.enqueue_dma source(%8 : memref<304x128xf32, #tpu.memory_space<any>>) target(%9 : memref<304x128xf32, #tpu.memory_space<vmem>>) target_semaphore(%11 : memref<!tpu.dma_semaphore, #tpu.memory_space<semaphore_mem>>)
    %c3_i32 = arith.constant 3 : i32
    %c944_i32 = arith.constant 944 : i32
    %c0_i32_10 = arith.constant 0 : i32
    %12 = tpu.memref_slice %arg2[%c944_i32, %c0_i32_10] : memref<4008x128xf32, #tpu.memory_space<any>> -> memref<304x128xf32, #tpu.memory_space<any>>
    %c944_i32_11 = arith.constant 944 : i32
    %c0_i32_12 = arith.constant 0 : i32
    %13 = tpu.memref_slice %arg4[%c944_i32_11, %c0_i32_12] : memref<4008x128xf32, #tpu.memory_space<vmem>> -> memref<304x128xf32, #tpu.memory_space<vmem>>
    %14 = tpu.memref_slice %arg5[%c3_i32] : memref<9x!tpu.dma_semaphore, #tpu.memory_space<semaphore_mem>> -> memref<1x!tpu.dma_semaphore, #tpu.memory_space<semaphore_mem>>
    %15 = tpu.memref_squeeze %14 : memref<1x!tpu.dma_semaphore, #tpu.memory_space<semaphore_mem>> -> memref<!tpu.dma_semaphore, #tpu.memory_space<semaphore_mem>>
    tpu.enqueue_dma source(%12 : memref<304x128xf32, #tpu.memory_space<any>>) target(%13 : memref<304x128xf32, #tpu.memory_space<vmem>>) target_semaphore(%15 : memref<!tpu.dma_semaphore, #tpu.memory_space<semaphore_mem>>)
    %c4_i32 = arith.constant 4 : i32
    %c1248_i32 = arith.constant 1248 : i32
    %c0_i32_13 = arith.constant 0 : i32
    %16 = tpu.memref_slice %arg2[%c1248_i32, %c0_i32_13] : memref<4008x128xf32, #tpu.memory_space<any>> -> memref<368x128xf32, #tpu.memory_space<any>>
    %c1248_i32_14 = arith.constant 1248 : i32
    %c0_i32_15 = arith.constant 0 : i32
    %17 = tpu.memref_slice %arg4[%c1248_i32_14, %c0_i32_15] : memref<4008x128xf32, #tpu.memory_space<vmem>> -> memref<368x128xf32, #tpu.memory_space<vmem>>
    %18 = tpu.memref_slice %arg5[%c4_i32] : memref<9x!tpu.dma_semaphore, #tpu.memory_space<semaphore_mem>> -> memref<1x!tpu.dma_semaphore, #tpu.memory_space<semaphore_mem>>
    %19 = tpu.memref_squeeze %18 : memref<1x!tpu.dma_semaphore, #tpu.memory_space<semaphore_mem>> -> memref<!tpu.dma_semaphore, #tpu.memory_space<semaphore_mem>>
    tpu.enqueue_dma source(%16 : memref<368x128xf32, #tpu.memory_space<any>>) target(%17 : memref<368x128xf32, #tpu.memory_space<vmem>>) target_semaphore(%19 : memref<!tpu.dma_semaphore, #tpu.memory_space<semaphore_mem>>)
    %c5_i32 = arith.constant 5 : i32
    %c1616_i32 = arith.constant 1616 : i32
    %c0_i32_16 = arith.constant 0 : i32
    %20 = tpu.memref_slice %arg2[%c1616_i32, %c0_i32_16] : memref<4008x128xf32, #tpu.memory_space<any>> -> memref<688x128xf32, #tpu.memory_space<any>>
    %c1616_i32_17 = arith.constant 1616 : i32
    %c0_i32_18 = arith.constant 0 : i32
    %21 = tpu.memref_slice %arg4[%c1616_i32_17, %c0_i32_18] : memref<4008x128xf32, #tpu.memory_space<vmem>> -> memref<688x128xf32, #tpu.memory_space<vmem>>
    %22 = tpu.memref_slice %arg5[%c5_i32] : memref<9x!tpu.dma_semaphore, #tpu.memory_space<semaphore_mem>> -> memref<1x!tpu.dma_semaphore, #tpu.memory_space<semaphore_mem>>
    %23 = tpu.memref_squeeze %22 : memref<1x!tpu.dma_semaphore, #tpu.memory_space<semaphore_mem>> -> memref<!tpu.dma_semaphore, #tpu.memory_space<semaphore_mem>>
    tpu.enqueue_dma source(%20 : memref<688x128xf32, #tpu.memory_space<any>>) target(%21 : memref<688x128xf32, #tpu.memory_space<vmem>>) target_semaphore(%23 : memref<!tpu.dma_semaphore, #tpu.memory_space<semaphore_mem>>)
    %c6_i32 = arith.constant 6 : i32
    %c2304_i32 = arith.constant 2304 : i32
    %c0_i32_19 = arith.constant 0 : i32
    %24 = tpu.memref_slice %arg2[%c2304_i32, %c0_i32_19] : memref<4008x128xf32, #tpu.memory_space<any>> -> memref<528x128xf32, #tpu.memory_space<any>>
    %c2304_i32_20 = arith.constant 2304 : i32
    %c0_i32_21 = arith.constant 0 : i32
    %25 = tpu.memref_slice %arg4[%c2304_i32_20, %c0_i32_21] : memref<4008x128xf32, #tpu.memory_space<vmem>> -> memref<528x128xf32, #tpu.memory_space<vmem>>
    %26 = tpu.memref_slice %arg5[%c6_i32] : memref<9x!tpu.dma_semaphore, #tpu.memory_space<semaphore_mem>> -> memref<1x!tpu.dma_semaphore, #tpu.memory_space<semaphore_mem>>
    %27 = tpu.memref_squeeze %26 : memref<1x!tpu.dma_semaphore, #tpu.memory_space<semaphore_mem>> -> memref<!tpu.dma_semaphore, #tpu.memory_space<semaphore_mem>>
    tpu.enqueue_dma source(%24 : memref<528x128xf32, #tpu.memory_space<any>>) target(%25 : memref<528x128xf32, #tpu.memory_space<vmem>>) target_semaphore(%27 : memref<!tpu.dma_semaphore, #tpu.memory_space<semaphore_mem>>)
    %c7_i32 = arith.constant 7 : i32
    %c2832_i32 = arith.constant 2832 : i32
    %c0_i32_22 = arith.constant 0 : i32
    %28 = tpu.memref_slice %arg2[%c2832_i32, %c0_i32_22] : memref<4008x128xf32, #tpu.memory_space<any>> -> memref<592x128xf32, #tpu.memory_space<any>>
    %c2832_i32_23 = arith.constant 2832 : i32
    %c0_i32_24 = arith.constant 0 : i32
    %29 = tpu.memref_slice %arg4[%c2832_i32_23, %c0_i32_24] : memref<4008x128xf32, #tpu.memory_space<vmem>> -> memref<592x128xf32, #tpu.memory_space<vmem>>
    %30 = tpu.memref_slice %arg5[%c7_i32] : memref<9x!tpu.dma_semaphore, #tpu.memory_space<semaphore_mem>> -> memref<1x!tpu.dma_semaphore, #tpu.memory_space<semaphore_mem>>
    %31 = tpu.memref_squeeze %30 : memref<1x!tpu.dma_semaphore, #tpu.memory_space<semaphore_mem>> -> memref<!tpu.dma_semaphore, #tpu.memory_space<semaphore_mem>>
    tpu.enqueue_dma source(%28 : memref<592x128xf32, #tpu.memory_space<any>>) target(%29 : memref<592x128xf32, #tpu.memory_space<vmem>>) target_semaphore(%31 : memref<!tpu.dma_semaphore, #tpu.memory_space<semaphore_mem>>)
    %c8_i32 = arith.constant 8 : i32
    %c3424_i32 = arith.constant 3424 : i32
    %c0_i32_25 = arith.constant 0 : i32
    %32 = tpu.memref_slice %arg2[%c3424_i32, %c0_i32_25] : memref<4008x128xf32, #tpu.memory_space<any>> -> memref<584x128xf32, #tpu.memory_space<any>>
    %c3424_i32_26 = arith.constant 3424 : i32
    %c0_i32_27 = arith.constant 0 : i32
    %33 = tpu.memref_slice %arg4[%c3424_i32_26, %c0_i32_27] : memref<4008x128xf32, #tpu.memory_space<vmem>> -> memref<584x128xf32, #tpu.memory_space<vmem>>
    %34 = tpu.memref_slice %arg5[%c8_i32] : memref<9x!tpu.dma_semaphore, #tpu.memory_space<semaphore_mem>> -> memref<1x!tpu.dma_semaphore, #tpu.memory_space<semaphore_mem>>
    %35 = tpu.memref_squeeze %34 : memref<1x!tpu.dma_semaphore, #tpu.memory_space<semaphore_mem>> -> memref<!tpu.dma_semaphore, #tpu.memory_space<semaphore_mem>>
    tpu.enqueue_dma source(%32 : memref<584x128xf32, #tpu.memory_space<any>>) target(%33 : memref<584x128xf32, #tpu.memory_space<vmem>>) target_semaphore(%35 : memref<!tpu.dma_semaphore, #tpu.memory_space<semaphore_mem>>)
    %c0 = arith.constant 0 : index
    %c0_28 = arith.constant 0 : index
    %36 = vector.load %arg1[%c0, %c0_28] : memref<64x32xf32, #tpu.memory_space<vmem>>, vector<64x32xf32>
    %c0_i32_29 = arith.constant 0 : i32
    %c0_i32_30 = arith.constant 0 : i32
    %c0_i32_31 = arith.constant 0 : i32
    %37 = tpu.memref_slice %arg2[%c0_i32_30, %c0_i32_31] : memref<4008x128xf32, #tpu.memory_space<any>> -> memref<304x128xf32, #tpu.memory_space<any>>
    %c0_i32_32 = arith.constant 0 : i32
    %c0_i32_33 = arith.constant 0 : i32
    %38 = tpu.memref_slice %arg4[%c0_i32_32, %c0_i32_33] : memref<4008x128xf32, #tpu.memory_space<vmem>> -> memref<304x128xf32, #tpu.memory_space<vmem>>
    %39 = tpu.memref_slice %arg5[%c0_i32_29] : memref<9x!tpu.dma_semaphore, #tpu.memory_space<semaphore_mem>> -> memref<1x!tpu.dma_semaphore, #tpu.memory_space<semaphore_mem>>
    %40 = tpu.memref_squeeze %39 : memref<1x!tpu.dma_semaphore, #tpu.memory_space<semaphore_mem>> -> memref<!tpu.dma_semaphore, #tpu.memory_space<semaphore_mem>>
    tpu.wait_dma2 semaphore(%40 : memref<!tpu.dma_semaphore, #tpu.memory_space<semaphore_mem>>) src(%37 : memref<304x128xf32, #tpu.memory_space<any>>) dst(%38 : memref<304x128xf32, #tpu.memory_space<vmem>>)
    %c0_34 = arith.constant 0 : index
    %c0_35 = arith.constant 0 : index
    %41 = vector.load %arg4[%c0_34, %c0_35] : memref<4008x128xf32, #tpu.memory_space<vmem>>, vector<32x64xf32>
    %cst = arith.constant dense<0.000000e+00> : vector<32x32xf32>
    %42 = tpu.matmul %41, %36, %cst {dimension_numbers = #tpu.dot_dimension_numbers<[1], [0], [0], [1], [0, 0, 1, 1], [], []>} : vector<32x64xf32>, vector<64x32xf32>, vector<32x32xf32> -> vector<32x32xf32>
    %c32 = arith.constant 32 : index
    %c0_36 = arith.constant 0 : index
    %43 = vector.load %arg4[%c32, %c0_36] : memref<4008x128xf32, #tpu.memory_space<vmem>>, vector<32x64xf32>
    %cst_37 = arith.constant dense<0.000000e+00> : vector<32x32xf32>
    %44 = tpu.matmul %43, %36, %cst_37 {dimension_numbers = #tpu.dot_dimension_numbers<[1], [0], [0], [1], [0, 0, 1, 1], [], []>} : vector<32x64xf32>, vector<64x32xf32>, vector<32x32xf32> -> vector<32x32xf32>
    %c64 = arith.constant 64 : index
    %c0_38 = arith.constant 0 : index
    %45 = vector.load %arg4[%c64, %c0_38] : memref<4008x128xf32, #tpu.memory_space<vmem>>, vector<32x64xf32>
    %cst_39 = arith.constant dense<0.000000e+00> : vector<32x32xf32>
    %46 = tpu.matmul %45, %36, %cst_39 {dimension_numbers = #tpu.dot_dimension_numbers<[1], [0], [0], [1], [0, 0, 1, 1], [], []>} : vector<32x64xf32>, vector<64x32xf32>, vector<32x32xf32> -> vector<32x32xf32>
    %47 = tpu.concatenate %42, %44, %46 in 1 : vector<32x32xf32>, vector<32x32xf32>, vector<32x32xf32> -> vector<32x96xf32>
    %c96 = arith.constant 96 : index
    %c0_40 = arith.constant 0 : index
    %48 = vector.load %arg4[%c96, %c0_40] : memref<4008x128xf32, #tpu.memory_space<vmem>>, vector<96x64xf32>
    %cst_41 = arith.constant dense<0.000000e+00> : vector<32x64xf32>
    %49 = tpu.matmul %47, %48, %cst_41 {dimension_numbers = #tpu.dot_dimension_numbers<[1], [0], [0], [1], [0, 0, 1, 1], [], []>} : vector<32x96xf32>, vector<96x64xf32>, vector<32x64xf32> -> vector<32x64xf32>
    %c192 = arith.constant 192 : index
    %c0_42 = arith.constant 0 : index
    %50 = vector.load %arg4[%c192, %c0_42] : memref<4008x128xf32, #tpu.memory_space<vmem>>, vector<1x64xf32>
    %51 = vector.broadcast %50 : vector<1x64xf32> to vector<32x64xf32>
    %52 = arith.addf %49, %51 : vector<32x64xf32>
    %c200 = arith.constant 200 : index
    %c0_43 = arith.constant 0 : index
    %53 = vector.load %arg4[%c200, %c0_43] : memref<4008x128xf32, #tpu.memory_space<vmem>>, vector<32x32xf32>
    %c232 = arith.constant 232 : index
    %c0_44 = arith.constant 0 : index
    %54 = vector.load %arg4[%c232, %c0_44] : memref<4008x128xf32, #tpu.memory_space<vmem>>, vector<64x64xf32>
    %cst_45 = arith.constant dense<0.000000e+00> : vector<32x64xf32>
    %55 = tpu.matmul %53, %52, %cst_45 {dimension_numbers = #tpu.dot_dimension_numbers<[1], [0], [0], [1], [0, 0, 1, 1], [], []>} : vector<32x32xf32>, vector<32x64xf32>, vector<32x64xf32> -> vector<32x64xf32>
    %cst_46 = arith.constant dense<0.000000e+00> : vector<32x64xf32>
    %56 = tpu.matmul %55, %54, %cst_46 {dimension_numbers = #tpu.dot_dimension_numbers<[1], [0], [0], [1], [0, 0, 1, 1], [], []>} : vector<32x64xf32>, vector<64x64xf32>, vector<32x64xf32> -> vector<32x64xf32>
    %57 = arith.mulf %52, %52 : vector<32x64xf32>
    %cst_47 = arith.constant dense<0.000000e+00> : vector<32x64xf32>
    %58 = tpu.matmul %53, %57, %cst_47 {dimension_numbers = #tpu.dot_dimension_numbers<[1], [0], [0], [1], [0, 0, 1, 1], [], []>} : vector<32x32xf32>, vector<32x64xf32>, vector<32x64xf32> -> vector<32x64xf32>
    %cst_48 = arith.constant dense<0.000000e+00> : vector<32x64xf32>
    %59 = tpu.matmul %58, %54, %cst_48 {dimension_numbers = #tpu.dot_dimension_numbers<[1], [0], [0], [1], [0, 0, 1, 1], [], []>} : vector<32x64xf32>, vector<64x64xf32>, vector<32x64xf32> -> vector<32x64xf32>
    %60 = arith.mulf %56, %56 : vector<32x64xf32>
    %61 = arith.subf %59, %60 : vector<32x64xf32>
    %62 = arith.subf %52, %56 : vector<32x64xf32>
    %cst_49 = arith.constant 9.99999974E-6 : f32
    %63 = vector.broadcast %cst_49 : f32 to vector<32x64xf32>
    %64 = arith.addf %61, %63 : vector<32x64xf32>
    %65 = math.rsqrt %64 : vector<32x64xf32>
    %66 = arith.mulf %62, %65 : vector<32x64xf32>
    %c296 = arith.constant 296 : index
    %c0_50 = arith.constant 0 : index
    %67 = vector.load %arg4[%c296, %c0_50] : memref<4008x128xf32, #tpu.memory_space<vmem>>, vector<1x1xf32>
    %cst_51 = arith.constant 0.000000e+00 : f32
    %68 = vector.broadcast %cst_51 : f32 to vector<32x64xf32>
    %69 = arith.cmpf oge, %66, %68 : vector<32x64xf32>
    %70 = vector.broadcast %67 : vector<1x1xf32> to vector<32x64xf32>
    %71 = arith.mulf %70, %66 : vector<32x64xf32>
    %72 = arith.select %69, %66, %71 : vector<32x64xi1>, vector<32x64xf32>
    %c1_i32_52 = arith.constant 1 : i32
    %c304_i32_53 = arith.constant 304 : i32
    %c0_i32_54 = arith.constant 0 : i32
    %73 = tpu.memref_slice %arg2[%c304_i32_53, %c0_i32_54] : memref<4008x128xf32, #tpu.memory_space<any>> -> memref<336x128xf32, #tpu.memory_space<any>>
    %c304_i32_55 = arith.constant 304 : i32
    %c0_i32_56 = arith.constant 0 : i32
    %74 = tpu.memref_slice %arg4[%c304_i32_55, %c0_i32_56] : memref<4008x128xf32, #tpu.memory_space<vmem>> -> memref<336x128xf32, #tpu.memory_space<vmem>>
    %75 = tpu.memref_slice %arg5[%c1_i32_52] : memref<9x!tpu.dma_semaphore, #tpu.memory_space<semaphore_mem>> -> memref<1x!tpu.dma_semaphore, #tpu.memory_space<semaphore_mem>>
    %76 = tpu.memref_squeeze %75 : memref<1x!tpu.dma_semaphore, #tpu.memory_space<semaphore_mem>> -> memref<!tpu.dma_semaphore, #tpu.memory_space<semaphore_mem>>
    tpu.wait_dma2 semaphore(%76 : memref<!tpu.dma_semaphore, #tpu.memory_space<semaphore_mem>>) src(%73 : memref<336x128xf32, #tpu.memory_space<any>>) dst(%74 : memref<336x128xf32, #tpu.memory_space<vmem>>)
    %c304 = arith.constant 304 : index
    %c0_57 = arith.constant 0 : index
    %77 = vector.load %arg4[%c304, %c0_57] : memref<4008x128xf32, #tpu.memory_space<vmem>>, vector<16x32xf32>
    %cst_58 = arith.constant dense<0.000000e+00> : vector<16x64xf32>
    %78 = tpu.matmul %77, %72, %cst_58 {dimension_numbers = #tpu.dot_dimension_numbers<[1], [0], [0], [1], [0, 0, 1, 1], [], []>} : vector<16x32xf32>, vector<32x64xf32>, vector<16x64xf32> -> vector<16x64xf32>
    %c320 = arith.constant 320 : index
    %c0_59 = arith.constant 0 : index
    %79 = vector.load %arg4[%c320, %c0_59] : memref<4008x128xf32, #tpu.memory_space<vmem>>, vector<16x32xf32>
    %cst_60 = arith.constant dense<0.000000e+00> : vector<16x64xf32>
    %80 = tpu.matmul %79, %72, %cst_60 {dimension_numbers = #tpu.dot_dimension_numbers<[1], [0], [0], [1], [0, 0, 1, 1], [], []>} : vector<16x32xf32>, vector<32x64xf32>, vector<16x64xf32> -> vector<16x64xf32>
    %c336 = arith.constant 336 : index
    %c0_61 = arith.constant 0 : index
    %81 = vector.load %arg4[%c336, %c0_61] : memref<4008x128xf32, #tpu.memory_space<vmem>>, vector<16x32xf32>
    %cst_62 = arith.constant dense<0.000000e+00> : vector<16x64xf32>
    %82 = tpu.matmul %81, %72, %cst_62 {dimension_numbers = #tpu.dot_dimension_numbers<[1], [0], [0], [1], [0, 0, 1, 1], [], []>} : vector<16x32xf32>, vector<32x64xf32>, vector<16x64xf32> -> vector<16x64xf32>
    %83 = tpu.concatenate %78, %80, %82 in 1 : vector<16x64xf32>, vector<16x64xf32>, vector<16x64xf32> -> vector<16x192xf32>
    %c352 = arith.constant 352 : index
    %c0_63 = arith.constant 0 : index
    %84 = vector.load %arg4[%c352, %c0_63] : memref<4008x128xf32, #tpu.memory_space<vmem>>, vector<192x64xf32>
    %cst_64 = arith.constant dense<0.000000e+00> : vector<16x64xf32>
    %85 = tpu.matmul %83, %84, %cst_64 {dimension_numbers = #tpu.dot_dimension_numbers<[1], [0], [0], [1], [0, 0, 1, 1], [], []>} : vector<16x192xf32>, vector<192x64xf32>, vector<16x64xf32> -> vector<16x64xf32>
    %c544 = arith.constant 544 : index
    %c0_65 = arith.constant 0 : index
    %86 = vector.load %arg4[%c544, %c0_65] : memref<4008x128xf32, #tpu.memory_space<vmem>>, vector<1x64xf32>
    %87 = vector.broadcast %86 : vector<1x64xf32> to vector<16x64xf32>
    %88 = arith.addf %85, %87 : vector<16x64xf32>
    %c552 = arith.constant 552 : index
    %c0_66 = arith.constant 0 : index
    %89 = vector.load %arg4[%c552, %c0_66] : memref<4008x128xf32, #tpu.memory_space<vmem>>, vector<16x16xf32>
    %c568 = arith.constant 568 : index
    %c0_67 = arith.constant 0 : index
    %90 = vector.load %arg4[%c568, %c0_67] : memref<4008x128xf32, #tpu.memory_space<vmem>>, vector<64x64xf32>
    %cst_68 = arith.constant dense<0.000000e+00> : vector<16x64xf32>
    %91 = tpu.matmul %89, %88, %cst_68 {dimension_numbers = #tpu.dot_dimension_numbers<[1], [0], [0], [1], [0, 0, 1, 1], [], []>} : vector<16x16xf32>, vector<16x64xf32>, vector<16x64xf32> -> vector<16x64xf32>
    %cst_69 = arith.constant dense<0.000000e+00> : vector<16x64xf32>
    %92 = tpu.matmul %91, %90, %cst_69 {dimension_numbers = #tpu.dot_dimension_numbers<[1], [0], [0], [1], [0, 0, 1, 1], [], []>} : vector<16x64xf32>, vector<64x64xf32>, vector<16x64xf32> -> vector<16x64xf32>
    %93 = arith.mulf %88, %88 : vector<16x64xf32>
    %cst_70 = arith.constant dense<0.000000e+00> : vector<16x64xf32>
    %94 = tpu.matmul %89, %93, %cst_70 {dimension_numbers = #tpu.dot_dimension_numbers<[1], [0], [0], [1], [0, 0, 1, 1], [], []>} : vector<16x16xf32>, vector<16x64xf32>, vector<16x64xf32> -> vector<16x64xf32>
    %cst_71 = arith.constant dense<0.000000e+00> : vector<16x64xf32>
    %95 = tpu.matmul %94, %90, %cst_71 {dimension_numbers = #tpu.dot_dimension_numbers<[1], [0], [0], [1], [0, 0, 1, 1], [], []>} : vector<16x64xf32>, vector<64x64xf32>, vector<16x64xf32> -> vector<16x64xf32>
    %96 = arith.mulf %92, %92 : vector<16x64xf32>
    %97 = arith.subf %95, %96 : vector<16x64xf32>
    %98 = arith.subf %88, %92 : vector<16x64xf32>
    %cst_72 = arith.constant 9.99999974E-6 : f32
    %99 = vector.broadcast %cst_72 : f32 to vector<16x64xf32>
    %100 = arith.addf %97, %99 : vector<16x64xf32>
    %101 = math.rsqrt %100 : vector<16x64xf32>
    %102 = arith.mulf %98, %101 : vector<16x64xf32>
    %c632 = arith.constant 632 : index
    %c0_73 = arith.constant 0 : index
    %103 = vector.load %arg4[%c632, %c0_73] : memref<4008x128xf32, #tpu.memory_space<vmem>>, vector<1x1xf32>
    %cst_74 = arith.constant 0.000000e+00 : f32
    %104 = vector.broadcast %cst_74 : f32 to vector<16x64xf32>
    %105 = arith.cmpf oge, %102, %104 : vector<16x64xf32>
    %106 = vector.broadcast %103 : vector<1x1xf32> to vector<16x64xf32>
    %107 = arith.mulf %106, %102 : vector<16x64xf32>
    %108 = arith.select %105, %102, %107 : vector<16x64xi1>, vector<16x64xf32>
    %c2_i32_75 = arith.constant 2 : i32
    %c640_i32_76 = arith.constant 640 : i32
    %c0_i32_77 = arith.constant 0 : i32
    %109 = tpu.memref_slice %arg2[%c640_i32_76, %c0_i32_77] : memref<4008x128xf32, #tpu.memory_space<any>> -> memref<304x128xf32, #tpu.memory_space<any>>
    %c640_i32_78 = arith.constant 640 : i32
    %c0_i32_79 = arith.constant 0 : i32
    %110 = tpu.memref_slice %arg4[%c640_i32_78, %c0_i32_79] : memref<4008x128xf32, #tpu.memory_space<vmem>> -> memref<304x128xf32, #tpu.memory_space<vmem>>
    %111 = tpu.memref_slice %arg5[%c2_i32_75] : memref<9x!tpu.dma_semaphore, #tpu.memory_space<semaphore_mem>> -> memref<1x!tpu.dma_semaphore, #tpu.memory_space<semaphore_mem>>
    %112 = tpu.memref_squeeze %111 : memref<1x!tpu.dma_semaphore, #tpu.memory_space<semaphore_mem>> -> memref<!tpu.dma_semaphore, #tpu.memory_space<semaphore_mem>>
    tpu.wait_dma2 semaphore(%112 : memref<!tpu.dma_semaphore, #tpu.memory_space<semaphore_mem>>) src(%109 : memref<304x128xf32, #tpu.memory_space<any>>) dst(%110 : memref<304x128xf32, #tpu.memory_space<vmem>>)
    %c640 = arith.constant 640 : index
    %c0_80 = arith.constant 0 : index
    %113 = vector.load %arg4[%c640, %c0_80] : memref<4008x128xf32, #tpu.memory_space<vmem>>, vector<8x16xf32>
    %cst_81 = arith.constant dense<0.000000e+00> : vector<8x64xf32>
    %114 = tpu.matmul %113, %108, %cst_81 {dimension_numbers = #tpu.dot_dimension_numbers<[1], [0], [0], [1], [0, 0, 1, 1], [], []>} : vector<8x16xf32>, vector<16x64xf32>, vector<8x64xf32> -> vector<8x64xf32>
    %c648 = arith.constant 648 : index
    %c0_82 = arith.constant 0 : index
    %115 = vector.load %arg4[%c648, %c0_82] : memref<4008x128xf32, #tpu.memory_space<vmem>>, vector<8x16xf32>
    %cst_83 = arith.constant dense<0.000000e+00> : vector<8x64xf32>
    %116 = tpu.matmul %115, %108, %cst_83 {dimension_numbers = #tpu.dot_dimension_numbers<[1], [0], [0], [1], [0, 0, 1, 1], [], []>} : vector<8x16xf32>, vector<16x64xf32>, vector<8x64xf32> -> vector<8x64xf32>
    %c656 = arith.constant 656 : index
    %c0_84 = arith.constant 0 : index
    %117 = vector.load %arg4[%c656, %c0_84] : memref<4008x128xf32, #tpu.memory_space<vmem>>, vector<8x16xf32>
    %cst_85 = arith.constant dense<0.000000e+00> : vector<8x64xf32>
    %118 = tpu.matmul %117, %108, %cst_85 {dimension_numbers = #tpu.dot_dimension_numbers<[1], [0], [0], [1], [0, 0, 1, 1], [], []>} : vector<8x16xf32>, vector<16x64xf32>, vector<8x64xf32> -> vector<8x64xf32>
    %119 = tpu.concatenate %114, %116, %118 in 1 : vector<8x64xf32>, vector<8x64xf32>, vector<8x64xf32> -> vector<8x192xf32>
    %c664 = arith.constant 664 : index
    %c0_86 = arith.constant 0 : index
    %120 = vector.load %arg4[%c664, %c0_86] : memref<4008x128xf32, #tpu.memory_space<vmem>>, vector<192x64xf32>
    %cst_87 = arith.constant dense<0.000000e+00> : vector<8x64xf32>
    %121 = tpu.matmul %119, %120, %cst_87 {dimension_numbers = #tpu.dot_dimension_numbers<[1], [0], [0], [1], [0, 0, 1, 1], [], []>} : vector<8x192xf32>, vector<192x64xf32>, vector<8x64xf32> -> vector<8x64xf32>
    %c856 = arith.constant 856 : index
    %c0_88 = arith.constant 0 : index
    %122 = vector.load %arg4[%c856, %c0_88] : memref<4008x128xf32, #tpu.memory_space<vmem>>, vector<1x64xf32>
    %123 = vector.broadcast %122 : vector<1x64xf32> to vector<8x64xf32>
    %124 = arith.addf %121, %123 : vector<8x64xf32>
    %c864 = arith.constant 864 : index
    %c0_89 = arith.constant 0 : index
    %125 = vector.load %arg4[%c864, %c0_89] : memref<4008x128xf32, #tpu.memory_space<vmem>>, vector<8x8xf32>
    %c872 = arith.constant 872 : index
    %c0_90 = arith.constant 0 : index
    %126 = vector.load %arg4[%c872, %c0_90] : memref<4008x128xf32, #tpu.memory_space<vmem>>, vector<64x64xf32>
    %cst_91 = arith.constant dense<0.000000e+00> : vector<8x64xf32>
    %127 = tpu.matmul %125, %124, %cst_91 {dimension_numbers = #tpu.dot_dimension_numbers<[1], [0], [0], [1], [0, 0, 1, 1], [], []>} : vector<8x8xf32>, vector<8x64xf32>, vector<8x64xf32> -> vector<8x64xf32>
    %cst_92 = arith.constant dense<0.000000e+00> : vector<8x64xf32>
    %128 = tpu.matmul %127, %126, %cst_92 {dimension_numbers = #tpu.dot_dimension_numbers<[1], [0], [0], [1], [0, 0, 1, 1], [], []>} : vector<8x64xf32>, vector<64x64xf32>, vector<8x64xf32> -> vector<8x64xf32>
    %129 = arith.mulf %124, %124 : vector<8x64xf32>
    %cst_93 = arith.constant dense<0.000000e+00> : vector<8x64xf32>
    %130 = tpu.matmul %125, %129, %cst_93 {dimension_numbers = #tpu.dot_dimension_numbers<[1], [0], [0], [1], [0, 0, 1, 1], [], []>} : vector<8x8xf32>, vector<8x64xf32>, vector<8x64xf32> -> vector<8x64xf32>
    %cst_94 = arith.constant dense<0.000000e+00> : vector<8x64xf32>
    %131 = tpu.matmul %130, %126, %cst_94 {dimension_numbers = #tpu.dot_dimension_numbers<[1], [0], [0], [1], [0, 0, 1, 1], [], []>} : vector<8x64xf32>, vector<64x64xf32>, vector<8x64xf32> -> vector<8x64xf32>
    %132 = arith.mulf %128, %128 : vector<8x64xf32>
    %133 = arith.subf %131, %132 : vector<8x64xf32>
    %134 = arith.subf %124, %128 : vector<8x64xf32>
    %cst_95 = arith.constant 9.99999974E-6 : f32
    %135 = vector.broadcast %cst_95 : f32 to vector<8x64xf32>
    %136 = arith.addf %133, %135 : vector<8x64xf32>
    %137 = math.rsqrt %136 : vector<8x64xf32>
    %138 = arith.mulf %134, %137 : vector<8x64xf32>
    %c936 = arith.constant 936 : index
    %c0_96 = arith.constant 0 : index
    %139 = vector.load %arg4[%c936, %c0_96] : memref<4008x128xf32, #tpu.memory_space<vmem>>, vector<1x1xf32>
    %cst_97 = arith.constant 0.000000e+00 : f32
    %140 = vector.broadcast %cst_97 : f32 to vector<8x64xf32>
    %141 = arith.cmpf oge, %138, %140 : vector<8x64xf32>
    %142 = vector.broadcast %139 : vector<1x1xf32> to vector<8x64xf32>
    %143 = arith.mulf %142, %138 : vector<8x64xf32>
    %144 = arith.select %141, %138, %143 : vector<8x64xi1>, vector<8x64xf32>
    %c3_i32_98 = arith.constant 3 : i32
    %c944_i32_99 = arith.constant 944 : i32
    %c0_i32_100 = arith.constant 0 : i32
    %145 = tpu.memref_slice %arg2[%c944_i32_99, %c0_i32_100] : memref<4008x128xf32, #tpu.memory_space<any>> -> memref<304x128xf32, #tpu.memory_space<any>>
    %c944_i32_101 = arith.constant 944 : i32
    %c0_i32_102 = arith.constant 0 : i32
    %146 = tpu.memref_slice %arg4[%c944_i32_101, %c0_i32_102] : memref<4008x128xf32, #tpu.memory_space<vmem>> -> memref<304x128xf32, #tpu.memory_space<vmem>>
    %147 = tpu.memref_slice %arg5[%c3_i32_98] : memref<9x!tpu.dma_semaphore, #tpu.memory_space<semaphore_mem>> -> memref<1x!tpu.dma_semaphore, #tpu.memory_space<semaphore_mem>>
    %148 = tpu.memref_squeeze %147 : memref<1x!tpu.dma_semaphore, #tpu.memory_space<semaphore_mem>> -> memref<!tpu.dma_semaphore, #tpu.memory_space<semaphore_mem>>
    tpu.wait_dma2 semaphore(%148 : memref<!tpu.dma_semaphore, #tpu.memory_space<semaphore_mem>>) src(%145 : memref<304x128xf32, #tpu.memory_space<any>>) dst(%146 : memref<304x128xf32, #tpu.memory_space<vmem>>)
    %c944 = arith.constant 944 : index
    %c0_103 = arith.constant 0 : index
    %149 = vector.load %arg4[%c944, %c0_103] : memref<4008x128xf32, #tpu.memory_space<vmem>>, vector<4x8xf32>
    %cst_104 = arith.constant dense<0.000000e+00> : vector<4x64xf32>
    %150 = tpu.matmul %149, %144, %cst_104 {dimension_numbers = #tpu.dot_dimension_numbers<[1], [0], [0], [1], [0, 0, 1, 1], [], []>} : vector<4x8xf32>, vector<8x64xf32>, vector<4x64xf32> -> vector<4x64xf32>
    %c952 = arith.constant 952 : index
    %c0_105 = arith.constant 0 : index
    %151 = vector.load %arg4[%c952, %c0_105] : memref<4008x128xf32, #tpu.memory_space<vmem>>, vector<4x8xf32>
    %cst_106 = arith.constant dense<0.000000e+00> : vector<4x64xf32>
    %152 = tpu.matmul %151, %144, %cst_106 {dimension_numbers = #tpu.dot_dimension_numbers<[1], [0], [0], [1], [0, 0, 1, 1], [], []>} : vector<4x8xf32>, vector<8x64xf32>, vector<4x64xf32> -> vector<4x64xf32>
    %c960 = arith.constant 960 : index
    %c0_107 = arith.constant 0 : index
    %153 = vector.load %arg4[%c960, %c0_107] : memref<4008x128xf32, #tpu.memory_space<vmem>>, vector<4x8xf32>
    %cst_108 = arith.constant dense<0.000000e+00> : vector<4x64xf32>
    %154 = tpu.matmul %153, %144, %cst_108 {dimension_numbers = #tpu.dot_dimension_numbers<[1], [0], [0], [1], [0, 0, 1, 1], [], []>} : vector<4x8xf32>, vector<8x64xf32>, vector<4x64xf32> -> vector<4x64xf32>
    %155 = tpu.concatenate %150, %152, %154 in 1 : vector<4x64xf32>, vector<4x64xf32>, vector<4x64xf32> -> vector<4x192xf32>
    %c968 = arith.constant 968 : index
    %c0_109 = arith.constant 0 : index
    %156 = vector.load %arg4[%c968, %c0_109] : memref<4008x128xf32, #tpu.memory_space<vmem>>, vector<192x64xf32>
    %cst_110 = arith.constant dense<0.000000e+00> : vector<4x64xf32>
    %157 = tpu.matmul %155, %156, %cst_110 {dimension_numbers = #tpu.dot_dimension_numbers<[1], [0], [0], [1], [0, 0, 1, 1], [], []>} : vector<4x192xf32>, vector<192x64xf32>, vector<4x64xf32> -> vector<4x64xf32>
    %c1160 = arith.constant 1160 : index
    %c0_111 = arith.constant 0 : index
    %158 = vector.load %arg4[%c1160, %c0_111] : memref<4008x128xf32, #tpu.memory_space<vmem>>, vector<1x64xf32>
    %159 = vector.broadcast %158 : vector<1x64xf32> to vector<4x64xf32>
    %160 = arith.addf %157, %159 : vector<4x64xf32>
    %c1168 = arith.constant 1168 : index
    %c0_112 = arith.constant 0 : index
    %161 = vector.load %arg4[%c1168, %c0_112] : memref<4008x128xf32, #tpu.memory_space<vmem>>, vector<4x4xf32>
    %c1176 = arith.constant 1176 : index
    %c0_113 = arith.constant 0 : index
    %162 = vector.load %arg4[%c1176, %c0_113] : memref<4008x128xf32, #tpu.memory_space<vmem>>, vector<64x64xf32>
    %cst_114 = arith.constant dense<0.000000e+00> : vector<4x64xf32>
    %163 = tpu.matmul %161, %160, %cst_114 {dimension_numbers = #tpu.dot_dimension_numbers<[1], [0], [0], [1], [0, 0, 1, 1], [], []>} : vector<4x4xf32>, vector<4x64xf32>, vector<4x64xf32> -> vector<4x64xf32>
    %cst_115 = arith.constant dense<0.000000e+00> : vector<4x64xf32>
    %164 = tpu.matmul %163, %162, %cst_115 {dimension_numbers = #tpu.dot_dimension_numbers<[1], [0], [0], [1], [0, 0, 1, 1], [], []>} : vector<4x64xf32>, vector<64x64xf32>, vector<4x64xf32> -> vector<4x64xf32>
    %165 = arith.mulf %160, %160 : vector<4x64xf32>
    %cst_116 = arith.constant dense<0.000000e+00> : vector<4x64xf32>
    %166 = tpu.matmul %161, %165, %cst_116 {dimension_numbers = #tpu.dot_dimension_numbers<[1], [0], [0], [1], [0, 0, 1, 1], [], []>} : vector<4x4xf32>, vector<4x64xf32>, vector<4x64xf32> -> vector<4x64xf32>
    %cst_117 = arith.constant dense<0.000000e+00> : vector<4x64xf32>
    %167 = tpu.matmul %166, %162, %cst_117 {dimension_numbers = #tpu.dot_dimension_numbers<[1], [0], [0], [1], [0, 0, 1, 1], [], []>} : vector<4x64xf32>, vector<64x64xf32>, vector<4x64xf32> -> vector<4x64xf32>
    %168 = arith.mulf %164, %164 : vector<4x64xf32>
    %169 = arith.subf %167, %168 : vector<4x64xf32>
    %170 = arith.subf %160, %164 : vector<4x64xf32>
    %cst_118 = arith.constant 9.99999974E-6 : f32
    %171 = vector.broadcast %cst_118 : f32 to vector<4x64xf32>
    %172 = arith.addf %169, %171 : vector<4x64xf32>
    %173 = math.rsqrt %172 : vector<4x64xf32>
    %174 = arith.mulf %170, %173 : vector<4x64xf32>
    %c1240 = arith.constant 1240 : index
    %c0_119 = arith.constant 0 : index
    %175 = vector.load %arg4[%c1240, %c0_119] : memref<4008x128xf32, #tpu.memory_space<vmem>>, vector<1x1xf32>
    %cst_120 = arith.constant 0.000000e+00 : f32
    %176 = vector.broadcast %cst_120 : f32 to vector<4x64xf32>
    %177 = arith.cmpf oge, %174, %176 : vector<4x64xf32>
    %178 = vector.broadcast %175 : vector<1x1xf32> to vector<4x64xf32>
    %179 = arith.mulf %178, %174 : vector<4x64xf32>
    %180 = arith.select %177, %174, %179 : vector<4x64xi1>, vector<4x64xf32>
    %c4_i32_121 = arith.constant 4 : i32
    %c1248_i32_122 = arith.constant 1248 : i32
    %c0_i32_123 = arith.constant 0 : i32
    %181 = tpu.memref_slice %arg2[%c1248_i32_122, %c0_i32_123] : memref<4008x128xf32, #tpu.memory_space<any>> -> memref<368x128xf32, #tpu.memory_space<any>>
    %c1248_i32_124 = arith.constant 1248 : i32
    %c0_i32_125 = arith.constant 0 : i32
    %182 = tpu.memref_slice %arg4[%c1248_i32_124, %c0_i32_125] : memref<4008x128xf32, #tpu.memory_space<vmem>> -> memref<368x128xf32, #tpu.memory_space<vmem>>
    %183 = tpu.memref_slice %arg5[%c4_i32_121] : memref<9x!tpu.dma_semaphore, #tpu.memory_space<semaphore_mem>> -> memref<1x!tpu.dma_semaphore, #tpu.memory_space<semaphore_mem>>
    %184 = tpu.memref_squeeze %183 : memref<1x!tpu.dma_semaphore, #tpu.memory_space<semaphore_mem>> -> memref<!tpu.dma_semaphore, #tpu.memory_space<semaphore_mem>>
    tpu.wait_dma2 semaphore(%184 : memref<!tpu.dma_semaphore, #tpu.memory_space<semaphore_mem>>) src(%181 : memref<368x128xf32, #tpu.memory_space<any>>) dst(%182 : memref<368x128xf32, #tpu.memory_space<vmem>>)
    %c1248 = arith.constant 1248 : index
    %c0_126 = arith.constant 0 : index
    %185 = vector.load %arg4[%c1248, %c0_126] : memref<4008x128xf32, #tpu.memory_space<vmem>>, vector<4x4xf32>
    %cst_127 = arith.constant dense<0.000000e+00> : vector<4x64xf32>
    %186 = tpu.matmul %185, %180, %cst_127 {dimension_numbers = #tpu.dot_dimension_numbers<[1], [0], [0], [1], [0, 0, 1, 1], [], []>} : vector<4x4xf32>, vector<4x64xf32>, vector<4x64xf32> -> vector<4x64xf32>
    %c1256 = arith.constant 1256 : index
    %c0_128 = arith.constant 0 : index
    %187 = vector.load %arg4[%c1256, %c0_128] : memref<4008x128xf32, #tpu.memory_space<vmem>>, vector<4x4xf32>
    %cst_129 = arith.constant dense<0.000000e+00> : vector<4x64xf32>
    %188 = tpu.matmul %187, %180, %cst_129 {dimension_numbers = #tpu.dot_dimension_numbers<[1], [0], [0], [1], [0, 0, 1, 1], [], []>} : vector<4x4xf32>, vector<4x64xf32>, vector<4x64xf32> -> vector<4x64xf32>
    %c1264 = arith.constant 1264 : index
    %c0_130 = arith.constant 0 : index
    %189 = vector.load %arg4[%c1264, %c0_130] : memref<4008x128xf32, #tpu.memory_space<vmem>>, vector<4x4xf32>
    %cst_131 = arith.constant dense<0.000000e+00> : vector<4x64xf32>
    %190 = tpu.matmul %189, %180, %cst_131 {dimension_numbers = #tpu.dot_dimension_numbers<[1], [0], [0], [1], [0, 0, 1, 1], [], []>} : vector<4x4xf32>, vector<4x64xf32>, vector<4x64xf32> -> vector<4x64xf32>
    %191 = tpu.concatenate %186, %188, %190 in 1 : vector<4x64xf32>, vector<4x64xf32>, vector<4x64xf32> -> vector<4x192xf32>
    %c1272 = arith.constant 1272 : index
    %c0_132 = arith.constant 0 : index
    %192 = vector.load %arg4[%c1272, %c0_132] : memref<4008x128xf32, #tpu.memory_space<vmem>>, vector<192x128xf32>
    %cst_133 = arith.constant dense<0.000000e+00> : vector<4x128xf32>
    %193 = tpu.matmul %191, %192, %cst_133 {dimension_numbers = #tpu.dot_dimension_numbers<[1], [0], [0], [1], [0, 0, 1, 1], [], []>} : vector<4x192xf32>, vector<192x128xf32>, vector<4x128xf32> -> vector<4x128xf32>
    %c1464 = arith.constant 1464 : index
    %c0_134 = arith.constant 0 : index
    %194 = vector.load %arg4[%c1464, %c0_134] : memref<4008x128xf32, #tpu.memory_space<vmem>>, vector<1x128xf32>
    %195 = vector.broadcast %194 : vector<1x128xf32> to vector<4x128xf32>
    %196 = arith.addf %193, %195 : vector<4x128xf32>
    %c1472 = arith.constant 1472 : index
    %c0_135 = arith.constant 0 : index
    %197 = vector.load %arg4[%c1472, %c0_135] : memref<4008x128xf32, #tpu.memory_space<vmem>>, vector<4x4xf32>
    %c1480 = arith.constant 1480 : index
    %c0_136 = arith.constant 0 : index
    %198 = vector.load %arg4[%c1480, %c0_136] : memref<4008x128xf32, #tpu.memory_space<vmem>>, vector<128x128xf32>
    %cst_137 = arith.constant dense<0.000000e+00> : vector<4x128xf32>
    %199 = tpu.matmul %197, %196, %cst_137 {dimension_numbers = #tpu.dot_dimension_numbers<[1], [0], [0], [1], [0, 0, 1, 1], [], []>} : vector<4x4xf32>, vector<4x128xf32>, vector<4x128xf32> -> vector<4x128xf32>
    %cst_138 = arith.constant dense<0.000000e+00> : vector<4x128xf32>
    %200 = tpu.matmul %199, %198, %cst_138 {dimension_numbers = #tpu.dot_dimension_numbers<[1], [0], [0], [1], [0, 0, 1, 1], [], []>} : vector<4x128xf32>, vector<128x128xf32>, vector<4x128xf32> -> vector<4x128xf32>
    %201 = arith.mulf %196, %196 : vector<4x128xf32>
    %cst_139 = arith.constant dense<0.000000e+00> : vector<4x128xf32>
    %202 = tpu.matmul %197, %201, %cst_139 {dimension_numbers = #tpu.dot_dimension_numbers<[1], [0], [0], [1], [0, 0, 1, 1], [], []>} : vector<4x4xf32>, vector<4x128xf32>, vector<4x128xf32> -> vector<4x128xf32>
    %cst_140 = arith.constant dense<0.000000e+00> : vector<4x128xf32>
    %203 = tpu.matmul %202, %198, %cst_140 {dimension_numbers = #tpu.dot_dimension_numbers<[1], [0], [0], [1], [0, 0, 1, 1], [], []>} : vector<4x128xf32>, vector<128x128xf32>, vector<4x128xf32> -> vector<4x128xf32>
    %204 = arith.mulf %200, %200 : vector<4x128xf32>
    %205 = arith.subf %203, %204 : vector<4x128xf32>
    %206 = arith.subf %196, %200 : vector<4x128xf32>
    %cst_141 = arith.constant 9.99999974E-6 : f32
    %207 = vector.broadcast %cst_141 : f32 to vector<4x128xf32>
    %208 = arith.addf %205, %207 : vector<4x128xf32>
    %209 = math.rsqrt %208 : vector<4x128xf32>
    %210 = arith.mulf %206, %209 : vector<4x128xf32>
    %c1608 = arith.constant 1608 : index
    %c0_142 = arith.constant 0 : index
    %211 = vector.load %arg4[%c1608, %c0_142] : memref<4008x128xf32, #tpu.memory_space<vmem>>, vector<1x1xf32>
    %cst_143 = arith.constant 0.000000e+00 : f32
    %212 = vector.broadcast %cst_143 : f32 to vector<4x128xf32>
    %213 = arith.cmpf oge, %210, %212 : vector<4x128xf32>
    %214 = vector.broadcast %211 : vector<1x1xf32> to vector<4x128xf32>
    %215 = arith.mulf %214, %210 : vector<4x128xf32>
    %216 = arith.select %213, %210, %215 : vector<4x128xi1>, vector<4x128xf32>
    %c5_i32_144 = arith.constant 5 : i32
    %c1616_i32_145 = arith.constant 1616 : i32
    %c0_i32_146 = arith.constant 0 : i32
    %217 = tpu.memref_slice %arg2[%c1616_i32_145, %c0_i32_146] : memref<4008x128xf32, #tpu.memory_space<any>> -> memref<688x128xf32, #tpu.memory_space<any>>
    %c1616_i32_147 = arith.constant 1616 : i32
    %c0_i32_148 = arith.constant 0 : i32
    %218 = tpu.memref_slice %arg4[%c1616_i32_147, %c0_i32_148] : memref<4008x128xf32, #tpu.memory_space<vmem>> -> memref<688x128xf32, #tpu.memory_space<vmem>>
    %219 = tpu.memref_slice %arg5[%c5_i32_144] : memref<9x!tpu.dma_semaphore, #tpu.memory_space<semaphore_mem>> -> memref<1x!tpu.dma_semaphore, #tpu.memory_space<semaphore_mem>>
    %220 = tpu.memref_squeeze %219 : memref<1x!tpu.dma_semaphore, #tpu.memory_space<semaphore_mem>> -> memref<!tpu.dma_semaphore, #tpu.memory_space<semaphore_mem>>
    tpu.wait_dma2 semaphore(%220 : memref<!tpu.dma_semaphore, #tpu.memory_space<semaphore_mem>>) src(%217 : memref<688x128xf32, #tpu.memory_space<any>>) dst(%218 : memref<688x128xf32, #tpu.memory_space<vmem>>)
    %221 = tpu.concatenate %180, %216 in 1 : vector<4x64xf32>, vector<4x128xf32> -> vector<4x192xf32>
    %c1616 = arith.constant 1616 : index
    %c0_149 = arith.constant 0 : index
    %222 = vector.load %arg4[%c1616, %c0_149] : memref<4008x128xf32, #tpu.memory_space<vmem>>, vector<8x4xf32>
    %cst_150 = arith.constant dense<0.000000e+00> : vector<8x192xf32>
    %223 = tpu.matmul %222, %221, %cst_150 {dimension_numbers = #tpu.dot_dimension_numbers<[1], [0], [0], [1], [0, 0, 1, 1], [], []>} : vector<8x4xf32>, vector<4x192xf32>, vector<8x192xf32> -> vector<8x192xf32>
    %c1624 = arith.constant 1624 : index
    %c0_151 = arith.constant 0 : index
    %224 = vector.load %arg4[%c1624, %c0_151] : memref<4008x128xf32, #tpu.memory_space<vmem>>, vector<8x4xf32>
    %cst_152 = arith.constant dense<0.000000e+00> : vector<8x192xf32>
    %225 = tpu.matmul %224, %221, %cst_152 {dimension_numbers = #tpu.dot_dimension_numbers<[1], [0], [0], [1], [0, 0, 1, 1], [], []>} : vector<8x4xf32>, vector<4x192xf32>, vector<8x192xf32> -> vector<8x192xf32>
    %c1632 = arith.constant 1632 : index
    %c0_153 = arith.constant 0 : index
    %226 = vector.load %arg4[%c1632, %c0_153] : memref<4008x128xf32, #tpu.memory_space<vmem>>, vector<8x4xf32>
    %cst_154 = arith.constant dense<0.000000e+00> : vector<8x192xf32>
    %227 = tpu.matmul %226, %221, %cst_154 {dimension_numbers = #tpu.dot_dimension_numbers<[1], [0], [0], [1], [0, 0, 1, 1], [], []>} : vector<8x4xf32>, vector<4x192xf32>, vector<8x192xf32> -> vector<8x192xf32>
    %228 = tpu.concatenate %223, %225, %227 in 1 : vector<8x192xf32>, vector<8x192xf32>, vector<8x192xf32> -> vector<8x576xf32>
    %c1640 = arith.constant 1640 : index
    %c0_155 = arith.constant 0 : index
    %229 = vector.load %arg4[%c1640, %c0_155] : memref<4008x128xf32, #tpu.memory_space<vmem>>, vector<576x64xf32>
    %cst_156 = arith.constant dense<0.000000e+00> : vector<8x64xf32>
    %230 = tpu.matmul %228, %229, %cst_156 {dimension_numbers = #tpu.dot_dimension_numbers<[1], [0], [0], [1], [0, 0, 1, 1], [], []>} : vector<8x576xf32>, vector<576x64xf32>, vector<8x64xf32> -> vector<8x64xf32>
    %c2216 = arith.constant 2216 : index
    %c0_157 = arith.constant 0 : index
    %231 = vector.load %arg4[%c2216, %c0_157] : memref<4008x128xf32, #tpu.memory_space<vmem>>, vector<1x64xf32>
    %232 = vector.broadcast %231 : vector<1x64xf32> to vector<8x64xf32>
    %233 = arith.addf %230, %232 : vector<8x64xf32>
    %c2224 = arith.constant 2224 : index
    %c0_158 = arith.constant 0 : index
    %234 = vector.load %arg4[%c2224, %c0_158] : memref<4008x128xf32, #tpu.memory_space<vmem>>, vector<8x8xf32>
    %c2232 = arith.constant 2232 : index
    %c0_159 = arith.constant 0 : index
    %235 = vector.load %arg4[%c2232, %c0_159] : memref<4008x128xf32, #tpu.memory_space<vmem>>, vector<64x64xf32>
    %cst_160 = arith.constant dense<0.000000e+00> : vector<8x64xf32>
    %236 = tpu.matmul %234, %233, %cst_160 {dimension_numbers = #tpu.dot_dimension_numbers<[1], [0], [0], [1], [0, 0, 1, 1], [], []>} : vector<8x8xf32>, vector<8x64xf32>, vector<8x64xf32> -> vector<8x64xf32>
    %cst_161 = arith.constant dense<0.000000e+00> : vector<8x64xf32>
    %237 = tpu.matmul %236, %235, %cst_161 {dimension_numbers = #tpu.dot_dimension_numbers<[1], [0], [0], [1], [0, 0, 1, 1], [], []>} : vector<8x64xf32>, vector<64x64xf32>, vector<8x64xf32> -> vector<8x64xf32>
    %238 = arith.mulf %233, %233 : vector<8x64xf32>
    %cst_162 = arith.constant dense<0.000000e+00> : vector<8x64xf32>
    %239 = tpu.matmul %234, %238, %cst_162 {dimension_numbers = #tpu.dot_dimension_numbers<[1], [0], [0], [1], [0, 0, 1, 1], [], []>} : vector<8x8xf32>, vector<8x64xf32>, vector<8x64xf32> -> vector<8x64xf32>
    %cst_163 = arith.constant dense<0.000000e+00> : vector<8x64xf32>
    %240 = tpu.matmul %239, %235, %cst_163 {dimension_numbers = #tpu.dot_dimension_numbers<[1], [0], [0], [1], [0, 0, 1, 1], [], []>} : vector<8x64xf32>, vector<64x64xf32>, vector<8x64xf32> -> vector<8x64xf32>
    %241 = arith.mulf %237, %237 : vector<8x64xf32>
    %242 = arith.subf %240, %241 : vector<8x64xf32>
    %243 = arith.subf %233, %237 : vector<8x64xf32>
    %cst_164 = arith.constant 9.99999974E-6 : f32
    %244 = vector.broadcast %cst_164 : f32 to vector<8x64xf32>
    %245 = arith.addf %242, %244 : vector<8x64xf32>
    %246 = math.rsqrt %245 : vector<8x64xf32>
    %247 = arith.mulf %243, %246 : vector<8x64xf32>
    %c2296 = arith.constant 2296 : index
    %c0_165 = arith.constant 0 : index
    %248 = vector.load %arg4[%c2296, %c0_165] : memref<4008x128xf32, #tpu.memory_space<vmem>>, vector<1x1xf32>
    %cst_166 = arith.constant 0.000000e+00 : f32
    %249 = vector.broadcast %cst_166 : f32 to vector<8x64xf32>
    %250 = arith.cmpf oge, %247, %249 : vector<8x64xf32>
    %251 = vector.broadcast %248 : vector<1x1xf32> to vector<8x64xf32>
    %252 = arith.mulf %251, %247 : vector<8x64xf32>
    %253 = arith.select %250, %247, %252 : vector<8x64xi1>, vector<8x64xf32>
    %c6_i32_167 = arith.constant 6 : i32
    %c2304_i32_168 = arith.constant 2304 : i32
    %c0_i32_169 = arith.constant 0 : i32
    %254 = tpu.memref_slice %arg2[%c2304_i32_168, %c0_i32_169] : memref<4008x128xf32, #tpu.memory_space<any>> -> memref<528x128xf32, #tpu.memory_space<any>>
    %c2304_i32_170 = arith.constant 2304 : i32
    %c0_i32_171 = arith.constant 0 : i32
    %255 = tpu.memref_slice %arg4[%c2304_i32_170, %c0_i32_171] : memref<4008x128xf32, #tpu.memory_space<vmem>> -> memref<528x128xf32, #tpu.memory_space<vmem>>
    %256 = tpu.memref_slice %arg5[%c6_i32_167] : memref<9x!tpu.dma_semaphore, #tpu.memory_space<semaphore_mem>> -> memref<1x!tpu.dma_semaphore, #tpu.memory_space<semaphore_mem>>
    %257 = tpu.memref_squeeze %256 : memref<1x!tpu.dma_semaphore, #tpu.memory_space<semaphore_mem>> -> memref<!tpu.dma_semaphore, #tpu.memory_space<semaphore_mem>>
    tpu.wait_dma2 semaphore(%257 : memref<!tpu.dma_semaphore, #tpu.memory_space<semaphore_mem>>) src(%254 : memref<528x128xf32, #tpu.memory_space<any>>) dst(%255 : memref<528x128xf32, #tpu.memory_space<vmem>>)
    %258 = tpu.concatenate %253, %144 in 1 : vector<8x64xf32>, vector<8x64xf32> -> vector<8x128xf32>
    %c2304 = arith.constant 2304 : index
    %c0_172 = arith.constant 0 : index
    %259 = vector.load %arg4[%c2304, %c0_172] : memref<4008x128xf32, #tpu.memory_space<vmem>>, vector<16x8xf32>
    %cst_173 = arith.constant dense<0.000000e+00> : vector<16x128xf32>
    %260 = tpu.matmul %259, %258, %cst_173 {dimension_numbers = #tpu.dot_dimension_numbers<[1], [0], [0], [1], [0, 0, 1, 1], [], []>} : vector<16x8xf32>, vector<8x128xf32>, vector<16x128xf32> -> vector<16x128xf32>
    %c2320 = arith.constant 2320 : index
    %c0_174 = arith.constant 0 : index
    %261 = vector.load %arg4[%c2320, %c0_174] : memref<4008x128xf32, #tpu.memory_space<vmem>>, vector<16x8xf32>
    %cst_175 = arith.constant dense<0.000000e+00> : vector<16x128xf32>
    %262 = tpu.matmul %261, %258, %cst_175 {dimension_numbers = #tpu.dot_dimension_numbers<[1], [0], [0], [1], [0, 0, 1, 1], [], []>} : vector<16x8xf32>, vector<8x128xf32>, vector<16x128xf32> -> vector<16x128xf32>
    %c2336 = arith.constant 2336 : index
    %c0_176 = arith.constant 0 : index
    %263 = vector.load %arg4[%c2336, %c0_176] : memref<4008x128xf32, #tpu.memory_space<vmem>>, vector<16x8xf32>
    %cst_177 = arith.constant dense<0.000000e+00> : vector<16x128xf32>
    %264 = tpu.matmul %263, %258, %cst_177 {dimension_numbers = #tpu.dot_dimension_numbers<[1], [0], [0], [1], [0, 0, 1, 1], [], []>} : vector<16x8xf32>, vector<8x128xf32>, vector<16x128xf32> -> vector<16x128xf32>
    %265 = tpu.concatenate %260, %262, %264 in 1 : vector<16x128xf32>, vector<16x128xf32>, vector<16x128xf32> -> vector<16x384xf32>
    %c2352 = arith.constant 2352 : index
    %c0_178 = arith.constant 0 : index
    %266 = vector.load %arg4[%c2352, %c0_178] : memref<4008x128xf32, #tpu.memory_space<vmem>>, vector<384x64xf32>
    %cst_179 = arith.constant dense<0.000000e+00> : vector<16x64xf32>
    %267 = tpu.matmul %265, %266, %cst_179 {dimension_numbers = #tpu.dot_dimension_numbers<[1], [0], [0], [1], [0, 0, 1, 1], [], []>} : vector<16x384xf32>, vector<384x64xf32>, vector<16x64xf32> -> vector<16x64xf32>
    %c2736 = arith.constant 2736 : index
    %c0_180 = arith.constant 0 : index
    %268 = vector.load %arg4[%c2736, %c0_180] : memref<4008x128xf32, #tpu.memory_space<vmem>>, vector<1x64xf32>
    %269 = vector.broadcast %268 : vector<1x64xf32> to vector<16x64xf32>
    %270 = arith.addf %267, %269 : vector<16x64xf32>
    %c2744 = arith.constant 2744 : index
    %c0_181 = arith.constant 0 : index
    %271 = vector.load %arg4[%c2744, %c0_181] : memref<4008x128xf32, #tpu.memory_space<vmem>>, vector<16x16xf32>
    %c2760 = arith.constant 2760 : index
    %c0_182 = arith.constant 0 : index
    %272 = vector.load %arg4[%c2760, %c0_182] : memref<4008x128xf32, #tpu.memory_space<vmem>>, vector<64x64xf32>
    %cst_183 = arith.constant dense<0.000000e+00> : vector<16x64xf32>
    %273 = tpu.matmul %271, %270, %cst_183 {dimension_numbers = #tpu.dot_dimension_numbers<[1], [0], [0], [1], [0, 0, 1, 1], [], []>} : vector<16x16xf32>, vector<16x64xf32>, vector<16x64xf32> -> vector<16x64xf32>
    %cst_184 = arith.constant dense<0.000000e+00> : vector<16x64xf32>
    %274 = tpu.matmul %273, %272, %cst_184 {dimension_numbers = #tpu.dot_dimension_numbers<[1], [0], [0], [1], [0, 0, 1, 1], [], []>} : vector<16x64xf32>, vector<64x64xf32>, vector<16x64xf32> -> vector<16x64xf32>
    %275 = arith.mulf %270, %270 : vector<16x64xf32>
    %cst_185 = arith.constant dense<0.000000e+00> : vector<16x64xf32>
    %276 = tpu.matmul %271, %275, %cst_185 {dimension_numbers = #tpu.dot_dimension_numbers<[1], [0], [0], [1], [0, 0, 1, 1], [], []>} : vector<16x16xf32>, vector<16x64xf32>, vector<16x64xf32> -> vector<16x64xf32>
    %cst_186 = arith.constant dense<0.000000e+00> : vector<16x64xf32>
    %277 = tpu.matmul %276, %272, %cst_186 {dimension_numbers = #tpu.dot_dimension_numbers<[1], [0], [0], [1], [0, 0, 1, 1], [], []>} : vector<16x64xf32>, vector<64x64xf32>, vector<16x64xf32> -> vector<16x64xf32>
    %278 = arith.mulf %274, %274 : vector<16x64xf32>
    %279 = arith.subf %277, %278 : vector<16x64xf32>
    %280 = arith.subf %270, %274 : vector<16x64xf32>
    %cst_187 = arith.constant 9.99999974E-6 : f32
    %281 = vector.broadcast %cst_187 : f32 to vector<16x64xf32>
    %282 = arith.addf %279, %281 : vector<16x64xf32>
    %283 = math.rsqrt %282 : vector<16x64xf32>
    %284 = arith.mulf %280, %283 : vector<16x64xf32>
    %c2824 = arith.constant 2824 : index
    %c0_188 = arith.constant 0 : index
    %285 = vector.load %arg4[%c2824, %c0_188] : memref<4008x128xf32, #tpu.memory_space<vmem>>, vector<1x1xf32>
    %cst_189 = arith.constant 0.000000e+00 : f32
    %286 = vector.broadcast %cst_189 : f32 to vector<16x64xf32>
    %287 = arith.cmpf oge, %284, %286 : vector<16x64xf32>
    %288 = vector.broadcast %285 : vector<1x1xf32> to vector<16x64xf32>
    %289 = arith.mulf %288, %284 : vector<16x64xf32>
    %290 = arith.select %287, %284, %289 : vector<16x64xi1>, vector<16x64xf32>
    %c7_i32_190 = arith.constant 7 : i32
    %c2832_i32_191 = arith.constant 2832 : i32
    %c0_i32_192 = arith.constant 0 : i32
    %291 = tpu.memref_slice %arg2[%c2832_i32_191, %c0_i32_192] : memref<4008x128xf32, #tpu.memory_space<any>> -> memref<592x128xf32, #tpu.memory_space<any>>
    %c2832_i32_193 = arith.constant 2832 : i32
    %c0_i32_194 = arith.constant 0 : i32
    %292 = tpu.memref_slice %arg4[%c2832_i32_193, %c0_i32_194] : memref<4008x128xf32, #tpu.memory_space<vmem>> -> memref<592x128xf32, #tpu.memory_space<vmem>>
    %293 = tpu.memref_slice %arg5[%c7_i32_190] : memref<9x!tpu.dma_semaphore, #tpu.memory_space<semaphore_mem>> -> memref<1x!tpu.dma_semaphore, #tpu.memory_space<semaphore_mem>>
    %294 = tpu.memref_squeeze %293 : memref<1x!tpu.dma_semaphore, #tpu.memory_space<semaphore_mem>> -> memref<!tpu.dma_semaphore, #tpu.memory_space<semaphore_mem>>
    tpu.wait_dma2 semaphore(%294 : memref<!tpu.dma_semaphore, #tpu.memory_space<semaphore_mem>>) src(%291 : memref<592x128xf32, #tpu.memory_space<any>>) dst(%292 : memref<592x128xf32, #tpu.memory_space<vmem>>)
    %295 = tpu.concatenate %290, %108 in 1 : vector<16x64xf32>, vector<16x64xf32> -> vector<16x128xf32>
    %c2832 = arith.constant 2832 : index
    %c0_195 = arith.constant 0 : index
    %296 = vector.load %arg4[%c2832, %c0_195] : memref<4008x128xf32, #tpu.memory_space<vmem>>, vector<32x16xf32>
    %cst_196 = arith.constant dense<0.000000e+00> : vector<32x128xf32>
    %297 = tpu.matmul %296, %295, %cst_196 {dimension_numbers = #tpu.dot_dimension_numbers<[1], [0], [0], [1], [0, 0, 1, 1], [], []>} : vector<32x16xf32>, vector<16x128xf32>, vector<32x128xf32> -> vector<32x128xf32>
    %c2864 = arith.constant 2864 : index
    %c0_197 = arith.constant 0 : index
    %298 = vector.load %arg4[%c2864, %c0_197] : memref<4008x128xf32, #tpu.memory_space<vmem>>, vector<32x16xf32>
    %cst_198 = arith.constant dense<0.000000e+00> : vector<32x128xf32>
    %299 = tpu.matmul %298, %295, %cst_198 {dimension_numbers = #tpu.dot_dimension_numbers<[1], [0], [0], [1], [0, 0, 1, 1], [], []>} : vector<32x16xf32>, vector<16x128xf32>, vector<32x128xf32> -> vector<32x128xf32>
    %c2896 = arith.constant 2896 : index
    %c0_199 = arith.constant 0 : index
    %300 = vector.load %arg4[%c2896, %c0_199] : memref<4008x128xf32, #tpu.memory_space<vmem>>, vector<32x16xf32>
    %cst_200 = arith.constant dense<0.000000e+00> : vector<32x128xf32>
    %301 = tpu.matmul %300, %295, %cst_200 {dimension_numbers = #tpu.dot_dimension_numbers<[1], [0], [0], [1], [0, 0, 1, 1], [], []>} : vector<32x16xf32>, vector<16x128xf32>, vector<32x128xf32> -> vector<32x128xf32>
    %302 = tpu.concatenate %297, %299, %301 in 1 : vector<32x128xf32>, vector<32x128xf32>, vector<32x128xf32> -> vector<32x384xf32>
    %c2928 = arith.constant 2928 : index
    %c0_201 = arith.constant 0 : index
    %303 = vector.load %arg4[%c2928, %c0_201] : memref<4008x128xf32, #tpu.memory_space<vmem>>, vector<384x64xf32>
    %cst_202 = arith.constant dense<0.000000e+00> : vector<32x64xf32>
    %304 = tpu.matmul %302, %303, %cst_202 {dimension_numbers = #tpu.dot_dimension_numbers<[1], [0], [0], [1], [0, 0, 1, 1], [], []>} : vector<32x384xf32>, vector<384x64xf32>, vector<32x64xf32> -> vector<32x64xf32>
    %c3312 = arith.constant 3312 : index
    %c0_203 = arith.constant 0 : index
    %305 = vector.load %arg4[%c3312, %c0_203] : memref<4008x128xf32, #tpu.memory_space<vmem>>, vector<1x64xf32>
    %306 = vector.broadcast %305 : vector<1x64xf32> to vector<32x64xf32>
    %307 = arith.addf %304, %306 : vector<32x64xf32>
    %c3320 = arith.constant 3320 : index
    %c0_204 = arith.constant 0 : index
    %308 = vector.load %arg4[%c3320, %c0_204] : memref<4008x128xf32, #tpu.memory_space<vmem>>, vector<32x32xf32>
    %c3352 = arith.constant 3352 : index
    %c0_205 = arith.constant 0 : index
    %309 = vector.load %arg4[%c3352, %c0_205] : memref<4008x128xf32, #tpu.memory_space<vmem>>, vector<64x64xf32>
    %cst_206 = arith.constant dense<0.000000e+00> : vector<32x64xf32>
    %310 = tpu.matmul %308, %307, %cst_206 {dimension_numbers = #tpu.dot_dimension_numbers<[1], [0], [0], [1], [0, 0, 1, 1], [], []>} : vector<32x32xf32>, vector<32x64xf32>, vector<32x64xf32> -> vector<32x64xf32>
    %cst_207 = arith.constant dense<0.000000e+00> : vector<32x64xf32>
    %311 = tpu.matmul %310, %309, %cst_207 {dimension_numbers = #tpu.dot_dimension_numbers<[1], [0], [0], [1], [0, 0, 1, 1], [], []>} : vector<32x64xf32>, vector<64x64xf32>, vector<32x64xf32> -> vector<32x64xf32>
    %312 = arith.mulf %307, %307 : vector<32x64xf32>
    %cst_208 = arith.constant dense<0.000000e+00> : vector<32x64xf32>
    %313 = tpu.matmul %308, %312, %cst_208 {dimension_numbers = #tpu.dot_dimension_numbers<[1], [0], [0], [1], [0, 0, 1, 1], [], []>} : vector<32x32xf32>, vector<32x64xf32>, vector<32x64xf32> -> vector<32x64xf32>
    %cst_209 = arith.constant dense<0.000000e+00> : vector<32x64xf32>
    %314 = tpu.matmul %313, %309, %cst_209 {dimension_numbers = #tpu.dot_dimension_numbers<[1], [0], [0], [1], [0, 0, 1, 1], [], []>} : vector<32x64xf32>, vector<64x64xf32>, vector<32x64xf32> -> vector<32x64xf32>
    %315 = arith.mulf %311, %311 : vector<32x64xf32>
    %316 = arith.subf %314, %315 : vector<32x64xf32>
    %317 = arith.subf %307, %311 : vector<32x64xf32>
    %cst_210 = arith.constant 9.99999974E-6 : f32
    %318 = vector.broadcast %cst_210 : f32 to vector<32x64xf32>
    %319 = arith.addf %316, %318 : vector<32x64xf32>
    %320 = math.rsqrt %319 : vector<32x64xf32>
    %321 = arith.mulf %317, %320 : vector<32x64xf32>
    %c3416 = arith.constant 3416 : index
    %c0_211 = arith.constant 0 : index
    %322 = vector.load %arg4[%c3416, %c0_211] : memref<4008x128xf32, #tpu.memory_space<vmem>>, vector<1x1xf32>
    %cst_212 = arith.constant 0.000000e+00 : f32
    %323 = vector.broadcast %cst_212 : f32 to vector<32x64xf32>
    %324 = arith.cmpf oge, %321, %323 : vector<32x64xf32>
    %325 = vector.broadcast %322 : vector<1x1xf32> to vector<32x64xf32>
    %326 = arith.mulf %325, %321 : vector<32x64xf32>
    %327 = arith.select %324, %321, %326 : vector<32x64xi1>, vector<32x64xf32>
    %c8_i32_213 = arith.constant 8 : i32
    %c3424_i32_214 = arith.constant 3424 : i32
    %c0_i32_215 = arith.constant 0 : i32
    %328 = tpu.memref_slice %arg2[%c3424_i32_214, %c0_i32_215] : memref<4008x128xf32, #tpu.memory_space<any>> -> memref<584x128xf32, #tpu.memory_space<any>>
    %c3424_i32_216 = arith.constant 3424 : i32
    %c0_i32_217 = arith.constant 0 : i32
    %329 = tpu.memref_slice %arg4[%c3424_i32_216, %c0_i32_217] : memref<4008x128xf32, #tpu.memory_space<vmem>> -> memref<584x128xf32, #tpu.memory_space<vmem>>
    %330 = tpu.memref_slice %arg5[%c8_i32_213] : memref<9x!tpu.dma_semaphore, #tpu.memory_space<semaphore_mem>> -> memref<1x!tpu.dma_semaphore, #tpu.memory_space<semaphore_mem>>
    %331 = tpu.memref_squeeze %330 : memref<1x!tpu.dma_semaphore, #tpu.memory_space<semaphore_mem>> -> memref<!tpu.dma_semaphore, #tpu.memory_space<semaphore_mem>>
    tpu.wait_dma2 semaphore(%331 : memref<!tpu.dma_semaphore, #tpu.memory_space<semaphore_mem>>) src(%328 : memref<584x128xf32, #tpu.memory_space<any>>) dst(%329 : memref<584x128xf32, #tpu.memory_space<vmem>>)
    %332 = tpu.concatenate %327, %72 in 1 : vector<32x64xf32>, vector<32x64xf32> -> vector<32x128xf32>
    %c3424 = arith.constant 3424 : index
    %c0_218 = arith.constant 0 : index
    %333 = vector.load %arg4[%c3424, %c0_218] : memref<4008x128xf32, #tpu.memory_space<vmem>>, vector<64x32xf32>
    %cst_219 = arith.constant dense<0.000000e+00> : vector<64x128xf32>
    %334 = tpu.matmul %333, %332, %cst_219 {dimension_numbers = #tpu.dot_dimension_numbers<[1], [0], [0], [1], [0, 0, 1, 1], [], []>} : vector<64x32xf32>, vector<32x128xf32>, vector<64x128xf32> -> vector<64x128xf32>
    %c3488 = arith.constant 3488 : index
    %c0_220 = arith.constant 0 : index
    %335 = vector.load %arg4[%c3488, %c0_220] : memref<4008x128xf32, #tpu.memory_space<vmem>>, vector<64x32xf32>
    %cst_221 = arith.constant dense<0.000000e+00> : vector<64x128xf32>
    %336 = tpu.matmul %335, %332, %cst_221 {dimension_numbers = #tpu.dot_dimension_numbers<[1], [0], [0], [1], [0, 0, 1, 1], [], []>} : vector<64x32xf32>, vector<32x128xf32>, vector<64x128xf32> -> vector<64x128xf32>
    %c3552 = arith.constant 3552 : index
    %c0_222 = arith.constant 0 : index
    %337 = vector.load %arg4[%c3552, %c0_222] : memref<4008x128xf32, #tpu.memory_space<vmem>>, vector<64x32xf32>
    %cst_223 = arith.constant dense<0.000000e+00> : vector<64x128xf32>
    %338 = tpu.matmul %337, %332, %cst_223 {dimension_numbers = #tpu.dot_dimension_numbers<[1], [0], [0], [1], [0, 0, 1, 1], [], []>} : vector<64x32xf32>, vector<32x128xf32>, vector<64x128xf32> -> vector<64x128xf32>
    %339 = tpu.concatenate %334, %336, %338 in 1 : vector<64x128xf32>, vector<64x128xf32>, vector<64x128xf32> -> vector<64x384xf32>
    %c3616 = arith.constant 3616 : index
    %c0_224 = arith.constant 0 : index
    %340 = vector.load %arg4[%c3616, %c0_224] : memref<4008x128xf32, #tpu.memory_space<vmem>>, vector<384x32xf32>
    %cst_225 = arith.constant dense<0.000000e+00> : vector<64x32xf32>
    %341 = tpu.matmul %339, %340, %cst_225 {dimension_numbers = #tpu.dot_dimension_numbers<[1], [0], [0], [1], [0, 0, 1, 1], [], []>} : vector<64x384xf32>, vector<384x32xf32>, vector<64x32xf32> -> vector<64x32xf32>
    %c4000 = arith.constant 4000 : index
    %c0_226 = arith.constant 0 : index
    %342 = vector.load %arg4[%c4000, %c0_226] : memref<4008x128xf32, #tpu.memory_space<vmem>>, vector<1x32xf32>
    %343 = vector.broadcast %342 : vector<1x32xf32> to vector<64x32xf32>
    %344 = arith.addf %341, %343 : vector<64x32xf32>
    %c0_227 = arith.constant 0 : index
    %c0_228 = arith.constant 0 : index
    %345 = vector.load %arg3[%c0_227, %c0_228] : memref<64x32xf32, #tpu.memory_space<vmem>>, vector<64x32xf32>
    tpu.vector_store %arg3[%c0_227, %c0_228], %344 {strides = array<i32>} : memref<64x32xf32, #tpu.memory_space<vmem>>, vector<64x32xf32>,
    return
  }
  func.func @transform_0(%arg0: i32) -> (i32, i32) {
    %c0_i32 = arith.constant 0 : i32
    %c0_i32_0 = arith.constant 0 : i32
    %c0_i32_1 = arith.constant 0 : i32
    return %c0_i32, %c0_i32_0 : i32, i32
  }
  func.func @transform_2(%arg0: i32) -> (i32, i32) {
    %c0_i32 = arith.constant 0 : i32
    %c0_i32_0 = arith.constant 0 : i32
    %c0_i32_1 = arith.constant 0 : i32
    return %c0_i32, %c0_i32_0 : i32, i32
  }
}

</mosaic_0001>

<llo_original>
// kernel: forward.1
$region0: #{forward.1}
  #allocation0 [shape = 'u32[]', space=smem, size = 0x4, offset = 0x4, fixed_abs, tag = 'smem constant byte address 0x4 - core index']
  #allocation1 [shape = 'u32[144,128]{1,0:T(1,128)}', space=vmem, size = 0x12000, scoped, tag = 'internal scratch']
  #allocation2 [shape = 'f32[4008,128]{1,0:T(8,128)}', space=vmem, size = 0x1f5000, scoped, tag = 'scratch operand']
  #allocation3 [shape = 's32[9]{0}', space=sflag, size = 0x24, scoped, tag = 'scratch operand']
  #allocation8 [shape = 's32[]', space=sflag, size = 0x4, offset = 0, fixed_abs, tag = 'sflag constant byte address 0x0 - dummy sync flag']
  #allocation9 [shape = 's32[]', space=sflag, size = 0x4, offset = 0, fixed_abs, tag = 'sflag constant byte address 0x0 - dummy sync flag']
  #allocation10 [shape = 'u32[]', space=smem, size = 0x4, offset = 0x44, fixed_abs, tag = 'smem constant byte address 0x44 - assertion arg 0']
  #allocation11 [shape = 'u32[]', space=smem, size = 0x4, offset = 0x48, fixed_abs, tag = 'smem constant byte address 0x48 - assertion arg 1']
  #allocation12 [shape = 's32[]', space=sflag, size = 0x4, offset = 0, fixed_abs, tag = 'sflag constant byte address 0x0 - dummy sync flag']
  #allocation13 [shape = 's32[]', space=sflag, size = 0x4, offset = 0, fixed_abs, tag = 'sflag constant byte address 0x0 - dummy sync flag']
  #allocation14 [shape = 's32[]', space=sflag, size = 0x4, offset = 0, fixed_abs, tag = 'sflag constant byte address 0x0 - dummy sync flag']
  #allocation15 [shape = 's32[]', space=sflag, size = 0x4, offset = 0, fixed_abs, tag = 'sflag constant byte address 0x0 - dummy sync flag']
  #allocation16 [shape = 's32[]', space=sflag, size = 0x4, offset = 0, fixed_abs, tag = 'sflag constant byte address 0x0 - dummy sync flag']
  #allocation17 [shape = 's32[]', space=sflag, size = 0x4, offset = 0, fixed_abs, tag = 'sflag constant byte address 0x0 - dummy sync flag']
  #allocation18 [shape = 's32[]', space=sflag, size = 0x4, offset = 0, fixed_abs, tag = 'sflag constant byte address 0x0 - dummy sync flag']
  #allocation19 [shape = 's32[]', space=sflag, size = 0x4, offset = 0, fixed_abs, tag = 'sflag constant byte address 0x0 - dummy sync flag']
  #allocation20 [shape = 's32[]', space=sflag, size = 0x4, offset = 0, fixed_abs, tag = 'sflag constant byte address 0x0 - dummy sync flag']
  #allocation21 [shape = 's32[]', space=sflag, size = 0x4, offset = 0, fixed_abs, tag = 'sflag constant byte address 0x0 - dummy sync flag']
  #allocation22 [shape = 's32[]', space=sflag, size = 0x4, offset = 0, fixed_abs, tag = 'sflag constant byte address 0x0 - dummy sync flag']
  #allocation23 [shape = 's32[]', space=sflag, size = 0x4, offset = 0, fixed_abs, tag = 'sflag constant byte address 0x0 - dummy sync flag']
  #allocation24 [shape = 's32[]', space=sflag, size = 0x4, offset = 0, fixed_abs, tag = 'sflag constant byte address 0x0 - dummy sync flag']
  #allocation25 [shape = 's32[]', space=sflag, size = 0x4, offset = 0, fixed_abs, tag = 'sflag constant byte address 0x0 - dummy sync flag']
  #allocation26 [shape = 's32[]', space=sflag, size = 0x4, offset = 0, fixed_abs, tag = 'sflag constant byte address 0x0 - dummy sync flag']
  #allocation27 [shape = 's32[]', space=sflag, size = 0x4, offset = 0, fixed_abs, tag = 'sflag constant byte address 0x0 - dummy sync flag']
  %s0 = inlined_call_operand.hbm [shape: f32[64,32], index: 0, kind: input, shape index: {}]
  %s1 = inlined_call_operand.hbm [shape: f32[4008,128], index: 1, kind: input, shape index: {}]
  %s2 = inlined_call_operand.hbm [shape: f32[64,32], index: 2, kind: output, shape index: {}]
  %s3 = sld [smem:[#allocation0]]
  $region54: #{forward.1} parent=0
    _
  %s5 = ssub.s32 1, %s3
  %s6 = scalar_select 0, %s5, %s3
  $region1: #{forward.1} parent=0
    #allocation4 [shape = 'u8[32768]{0}', space=vmem, size = 0x8000, scoped, tag = 'input window, operand 0, single buffered']
    #allocation5 [shape = 's32[1]{0}', space=sflag, size = 0x4, scoped, tag = 'scoped memory for forward.1']
    #allocation6 [shape = 's32[1]{0}', space=sflag, size = 0x4, scoped, tag = 'scoped memory for forward.1']
    #allocation7 [shape = 'u8[32768]{0}', space=vmem, size = 0x8000, scoped, tag = 'output window, operand 0, single buffered']
    %7 = vsyncpa [#allocation5], 0
    %8 = vsyncpa [#allocation6], 0
    // Predicated region
    $region2: #{forward.1} parent=1 // pred_check
      _
    $region3: #{forward.1} parent=1 // pred_check_branch
      %10 = sbr.rel (0) target = $region5
    $region4: #{forward.1} parent=1 // pred_region
      %s12 = ssub.s32 1024, 1024
      %13 = vsyncadd [#allocation5], %s12
      %s14 = sshll.u32 [#allocation4], 4
      %s15 = int_to_ptr.vmem [resolvable:$true] %s14
      %20 = dma.hbm_to_vmem [thread:$0]  %s0, 1024, %s15, [#allocation5], 128, 128, 8
    $region5: #{forward.1} parent=1 // pred_fallthru
      _
    // Predicated region
    $region6: #{forward.1} parent=1 // pred_check
      _
    $region7: #{forward.1} parent=1 // pred_check_branch
      %22 = sbr.rel (0) target = $region9
    $region8: #{forward.1} parent=1 // pred_region
      %23 = dma.done [#allocation5], 1024
    $region9: #{forward.1} parent=1 // pred_fallthru
      _
    // Predicated region
    $region10: #{forward.1} parent=1 // pred_check
      _
    $region11: #{forward.1} parent=1 // pred_check_branch
      %25 = sbr.rel target = $region13
    $region12: #{forward.1} parent=1 // pred_region
      %26 = sst [smem:[#allocation10]] [#allocation9]
      %27 = sst [smem:[#allocation11]] [#allocation8]
    $region13: #{forward.1} parent=1 // pred_fallthru
      _
    %29 = shalt.err (0)
    %s31 = sshll.u32 [#allocation2], 4
    %s32 = int_to_ptr.vmem [resolvable:$true] %s31
    %34 = dma.hbm_to_vmem [thread:$0]  %s1, 4864, %s32, [#allocation3]
    %s35 = scalar_lea.hbm %s1, 4864
    %s36 = scalar_lea.vmem [#allocation2], 304
    %s37 = scalar_lea.sflag [#allocation3], 1
    // Predicated region
    $region14: #{forward.1} parent=1 // pred_check
      _
    $region15: #{forward.1} parent=1 // pred_check_branch
      %39 = sbr.rel target = $region17
    $region16: #{forward.1} parent=1 // pred_region
      %40 = sst [smem:[#allocation10]] [#allocation13]
      %41 = sst [smem:[#allocation11]] [#allocation12]
    $region17: #{forward.1} parent=1 // pred_fallthru
      _
    %43 = shalt.err (0)
    %s45 = sshll.u32 %s36, 4
    %s46 = int_to_ptr.vmem [resolvable:$true] %s45
    %48 = dma.hbm_to_vmem [thread:$0]  %s35, 5376, %s46, %s37
    %s49 = scalar_lea.hbm %s1, 10240
    %s50 = scalar_lea.vmem [#allocation2], 640
    %s51 = scalar_lea.sflag [#allocation3], 2
    // Predicated region
    $region18: #{forward.1} parent=1 // pred_check
      _
    $region19: #{forward.1} parent=1 // pred_check_branch
      %53 = sbr.rel target = $region21
    $region20: #{forward.1} parent=1 // pred_region
      %54 = sst [smem:[#allocation10]] [#allocation15]
      %55 = sst [smem:[#allocation11]] [#allocation14]
    $region21: #{forward.1} parent=1 // pred_fallthru
      _
    %57 = shalt.err (0)
    %s59 = sshll.u32 %s50, 4
    %s60 = int_to_ptr.vmem [resolvable:$true] %s59
    %62 = dma.hbm_to_vmem [thread:$0]  %s49, 4864, %s60, %s51
    %s63 = scalar_lea.hbm %s1, 15104
    %s64 = scalar_lea.vmem [#allocation2], 944
    %s65 = scalar_lea.sflag [#allocation3], 3
    // Predicated region
    $region22: #{forward.1} parent=1 // pred_check
      _
    $region23: #{forward.1} parent=1 // pred_check_branch
      %67 = sbr.rel target = $region25
    $region24: #{forward.1} parent=1 // pred_region
      %68 = sst [smem:[#allocation10]] [#allocation17]
      %69 = sst [smem:[#allocation11]] [#allocation16]
    $region25: #{forward.1} parent=1 // pred_fallthru
      _
    %71 = shalt.err (0)
    %s73 = sshll.u32 %s64, 4
    %s74 = int_to_ptr.vmem [resolvable:$true] %s73
    %76 = dma.hbm_to_vmem [thread:$0]  %s63, 4864, %s74, %s65
    %s77 = scalar_lea.hbm %s1, 19968
    %s78 = scalar_lea.vmem [#allocation2], 1248
    %s79 = scalar_lea.sflag [#allocation3], 4
    // Predicated region
    $region26: #{forward.1} parent=1 // pred_check
      _
    $region27: #{forward.1} parent=1 // pred_check_branch
      %81 = sbr.rel target = $region29
    $region28: #{forward.1} parent=1 // pred_region
      %82 = sst [smem:[#allocation10]] [#allocation19]
      %83 = sst [smem:[#allocation11]] [#allocation18]
    $region29: #{forward.1} parent=1 // pred_fallthru
      _
    %85 = shalt.err (0)
    %s87 = sshll.u32 %s78, 4
    %s88 = int_to_ptr.vmem [resolvable:$true] %s87
    %90 = dma.hbm_to_vmem [thread:$0]  %s77, 5888, %s88, %s79
    %s91 = scalar_lea.hbm %s1, 25856
    %s92 = scalar_lea.vmem [#allocation2], 1616
    %s93 = scalar_lea.sflag [#allocation3], 5
    // Predicated region
    $region30: #{forward.1} parent=1 // pred_check
      _
    $region31: #{forward.1} parent=1 // pred_check_branch
      %95 = sbr.rel target = $region33
    $region32: #{forward.1} parent=1 // pred_region
      %96 = sst [smem:[#allocation10]] [#allocation21]
      %97 = sst [smem:[#allocation11]] [#allocation20]
    $region33: #{forward.1} parent=1 // pred_fallthru
      _
    %99 = shalt.err (0)
    %s101 = sshll.u32 %s92, 4
    %s102 = int_to_ptr.vmem [resolvable:$true] %s101
    %104 = dma.hbm_to_vmem [thread:$0]  %s91, 11008, %s102, %s93
    %s105 = scalar_lea.hbm %s1, 36864
    %s106 = scalar_lea.vmem [#allocation2], 2304
    %s107 = scalar_lea.sflag [#allocation3], 6
    // Predicated region
    $region34: #{forward.1} parent=1 // pred_check
      _
    $region35: #{forward.1} parent=1 // pred_check_branch
      %109 = sbr.rel target = $region37
    $region36: #{forward.1} parent=1 // pred_region
      %110 = sst [smem:[#allocation10]] [#allocation23]
      %111 = sst [smem:[#allocation11]] [#allocation22]
    $region37: #{forward.1} parent=1 // pred_fallthru
      _
    %113 = shalt.err (0)
    %s115 = sshll.u32 %s106, 4
    %s116 = int_to_ptr.vmem [resolvable:$true] %s115
    %118 = dma.hbm_to_vmem [thread:$0]  %s105, 8448, %s116, %s107
    %s119 = scalar_lea.hbm %s1, 45312
    %s120 = scalar_lea.vmem [#allocation2], 2832
    %s121 = scalar_lea.sflag [#allocation3], 7
    // Predicated region
    $region38: #{forward.1} parent=1 // pred_check
      _
    $region39: #{forward.1} parent=1 // pred_check_branch
      %123 = sbr.rel target = $region41
    $region40: #{forward.1} parent=1 // pred_region
      %124 = sst [smem:[#allocation10]] [#allocation25]
      %125 = sst [smem:[#allocation11]] [#allocation24]
    $region41: #{forward.1} parent=1 // pred_fallthru
      _
    %127 = shalt.err (0)
    %s129 = sshll.u32 %s120, 4
    %s130 = int_to_ptr.vmem [resolvable:$true] %s129
    %132 = dma.hbm_to_vmem [thread:$0]  %s119, 9472, %s130, %s121
    %s133 = scalar_lea.hbm %s1, 54784
    %s134 = scalar_lea.vmem [#allocation2], 3424
    %s135 = scalar_lea.sflag [#allocation3], 8
    // Predicated region
    $region42: #{forward.1} parent=1 // pred_check
      _
    $region43: #{forward.1} parent=1 // pred_check_branch
      %137 = sbr.rel target = $region45
    $region44: #{forward.1} parent=1 // pred_region
      %138 = sst [smem:[#allocation10]] [#allocation27]
      %139 = sst [smem:[#allocation11]] [#allocation26]
    $region45: #{forward.1} parent=1 // pred_fallthru
      _
    %141 = shalt.err (0)
    %s143 = sshll.u32 %s134, 4
    %s144 = int_to_ptr.vmem [resolvable:$true] %s143
    %146 = dma.hbm_to_vmem [thread:$0]  %s133, 9344, %s144, %s135
    %v147 = vld [vmem:[#allocation4] sm:$0xff]
    %v148 = vld [vmem:[#allocation4 + $0x8] sm:$0xff]
    %v149 = vld [vmem:[#allocation4 + $0x10] sm:$0xff]
    %v150 = vld [vmem:[#allocation4 + $0x18] sm:$0xff]
    %v151 = vld [vmem:[#allocation4 + $0x20] sm:$0xff]
    %v152 = vld [vmem:[#allocation4 + $0x28] sm:$0xff]
    %v153 = vld [vmem:[#allocation4 + $0x30] sm:$0xff]
    %v154 = vld [vmem:[#allocation4 + $0x38] sm:$0xff]
    %s155 = smul.u32 304, 1
    %s156 = sshll.u32 %s155, 4
    %157 = dma.done [#allocation3], %s156
    %v158 = vld [vmem:[#allocation2] sm:$0xff]
    %v159 = vld [vmem:[#allocation2 + $0x8] sm:$0xff]
    %v160 = vld [vmem:[#allocation2 + $0x10] sm:$0xff]
    %v161 = vld [vmem:[#allocation2 + $0x18] sm:$0xff]
    %vm162 = vcmask 523264
    %v164 = vsel %vm162, %v158, 0
    %v167 = vsel %vm162, %v159, 0
    %v170 = vsel %vm162, %v160, 0
    %v173 = vsel %vm162, %v161, 0
    %175 = vmatprep.subr.mxu0 0.0
    %176 = vmatpush1.msra.mxu0 0.0
    %177 = vmatprep.subr.mxu0 0.0
    %178 = vmatpush1.msra.mxu0 0.0
    %179 = vmatprep.subr.mxu0 0.0
    %180 = vmatpush1.msra.mxu0 0.0
    %181 = vmatprep.subr.mxu0 0.0
    %182 = vmatpush1.msra.mxu0 0.0
    %183 = vmatprep.subr.mxu0 0.0
    %184 = vmatpush1.msra.mxu0 0.0
    %185 = vmatprep.subr.mxu0 0.0
    %186 = vmatpush1.msra.mxu0 0.0
    %187 = vmatprep.subr.mxu0 0.0
    %188 = vmatpush1.msra.mxu0 0.0
    %189 = vmatprep.subr.mxu0 0.0
    %190 = vmatpush1.msra.mxu0 0.0
    %191 = vmatprep.subr.mxu0 0.0
    %192 = vmatpush1.msra.mxu0 %v154
    %193 = vmatprep.subr.mxu0 0.0
    %194 = vmatpush1.msra.mxu0 %v153
    %195 = vmatprep.subr.mxu0 0.0
    %196 = vmatpush1.msra.mxu0 %v152
    %197 = vmatprep.subr.mxu0 0.0
    %198 = vmatpush1.msra.mxu0 %v151
    %199 = vmatprep.subr.mxu0 0.0
    %200 = vmatpush1.msra.mxu0 %v150
    %201 = vmatprep.subr.mxu0 0.0
    %202 = vmatpush1.msra.mxu0 %v149
    %203 = vmatprep.subr.mxu0 0.0
    %204 = vmatpush1.msra.mxu0 %v148
    %205 = vmatprep.subr.mxu0 0.0
    %206 = vmatpush1.msra.mxu0 %v147
    %207 = vmatprep.subr.mxu0 0.0
    %208 = vmatpush2.msra.mxu0 0.0
    %209 = vmatprep.subr.mxu0 0.0
    %210 = vmatpush2.msra.mxu0 0.0
    %211 = vmatprep.subr.mxu0 0.0
    %212 = vmatpush2.msra.mxu0 0.0
    %213 = vmatprep.subr.mxu0 0.0
    %214 = vmatpush2.msra.mxu0 0.0
    %215 = vmatprep.subr.mxu0 0.0
    %216 = vmatpush2.msra.mxu0 0.0
    %217 = vmatprep.subr.mxu0 0.0
    %218 = vmatpush2.msra.mxu0 0.0
    %219 = vmatprep.subr.mxu0 0.0
    %220 = vmatpush2.msra.mxu0 0.0
    %221 = vmatprep.subr.mxu0 0.0
    %222 = vmatpush2.msra.mxu0 0.0
    %223 = vmatprep.subr.mxu0 0.0
    %224 = vmatpush2.msra.mxu0 0.0
    %225 = vmatprep.subr.mxu0 0.0
    %226 = vmatpush2.msra.mxu0 0.0
    %227 = vmatprep.subr.mxu0 0.0
    %228 = vmatpush2.msra.mxu0 0.0
    %229 = vmatprep.subr.mxu0 0.0
    %230 = vmatpush2.msra.mxu0 0.0
    %231 = vmatprep.subr.mxu0 0.0
    %232 = vmatpush2.msra.mxu0 0.0
    %233 = vmatprep.subr.mxu0 0.0
    %234 = vmatpush2.msra.mxu0 0.0
    %235 = vmatprep.subr.mxu0 0.0
    %236 = vmatpush2.msra.mxu0 0.0
    %237 = vmatprep.subr.mxu0 0.0
    %238 = vmatpush2.msra.mxu0 0.0
    %239 = vmatprep.mubr.f32.mxu0 0.0
    %240 = vmatmul.mubr.f32.gmra.mxu0 %v164
    %v241 = vpop.f32.mrf.mxu0
    %v242 = vadd.f32 0.0, %v241
    %v243 = vpop.f32.mrf.mxu0
    %244 = vmatprep.mubr.f32.mxu0 0.0
    %245 = vmatmul.mubr.f32.gmra.mxu0 %v167
    %v246 = vpop.f32.mrf.mxu0
    %v247 = vadd.f32 0.0, %v246
    %v248 = vpop.f32.mrf.mxu0
    %249 = vmatprep.mubr.f32.mxu0 0.0
    %250 = vmatmul.mubr.f32.gmra.mxu0 %v170
    %v251 = vpop.f32.mrf.mxu0
    %v252 = vadd.f32 0.0, %v251
    %v253 = vpop.f32.mrf.mxu0
    %254 = vmatprep.mubr.f32.mxu0 0.0
    %255 = vmatmul.mubr.f32.gmra.mxu0 %v173
    %v256 = vpop.f32.mrf.mxu0
    %v257 = vadd.f32 0.0, %v256
    %v258 = vpop.f32.mrf.mxu0
    %259 = vdwg.mxu0
    %v260 = vld [vmem:[#allocation2 + $0x20] sm:$0xff]
    %v261 = vld [vmem:[#allocation2 + $0x28] sm:$0xff]
    %v262 = vld [vmem:[#allocation2 + $0x30] sm:$0xff]
    %v263 = vld [vmem:[#allocation2 + $0x38] sm:$0xff]
    %v265 = vsel %vm162, %v260, 0
    %v268 = vsel %vm162, %v261, 0
    %v271 = vsel %vm162, %v262, 0
    %v274 = vsel %vm162, %v263, 0
    %276 = vmatprep.subr.mxu0 0.0
    %277 = vmatpush1.msra.mxu0 0.0
    %278 = vmatprep.subr.mxu0 0.0
    %279 = vmatpush1.msra.mxu0 0.0
    %280 = vmatprep.subr.mxu0 0.0
    %281 = vmatpush1.msra.mxu0 0.0
    %282 = vmatprep.subr.mxu0 0.0
    %283 = vmatpush1.msra.mxu0 0.0
    %284 = vmatprep.subr.mxu0 0.0
    %285 = vmatpush1.msra.mxu0 0.0
    %286 = vmatprep.subr.mxu0 0.0
    %287 = vmatpush1.msra.mxu0 0.0
    %288 = vmatprep.subr.mxu0 0.0
    %289 = vmatpush1.msra.mxu0 0.0
    %290 = vmatprep.subr.mxu0 0.0
    %291 = vmatpush1.msra.mxu0 0.0
    %292 = vmatprep.subr.mxu0 0.0
    %293 = vmatpush1.msra.mxu0 %v154
    %294 = vmatprep.subr.mxu0 0.0
    %295 = vmatpush1.msra.mxu0 %v153
    %296 = vmatprep.subr.mxu0 0.0
    %297 = vmatpush1.msra.mxu0 %v152
    %298 = vmatprep.subr.mxu0 0.0
    %299 = vmatpush1.msra.mxu0 %v151
    %300 = vmatprep.subr.mxu0 0.0
    %301 = vmatpush1.msra.mxu0 %v150
    %302 = vmatprep.subr.mxu0 0.0
    %303 = vmatpush1.msra.mxu0 %v149
    %304 = vmatprep.subr.mxu0 0.0
    %305 = vmatpush1.msra.mxu0 %v148
    %306 = vmatprep.subr.mxu0 0.0
    %307 = vmatpush1.msra.mxu0 %v147
    %308 = vmatprep.subr.mxu0 0.0
    %309 = vmatpush2.msra.mxu0 0.0
    %310 = vmatprep.subr.mxu0 0.0
    %311 = vmatpush2.msra.mxu0 0.0
    %312 = vmatprep.subr.mxu0 0.0
    %313 = vmatpush2.msra.mxu0 0.0
    %314 = vmatprep.subr.mxu0 0.0
    %315 = vmatpush2.msra.mxu0 0.0
    %316 = vmatprep.subr.mxu0 0.0
    %317 = vmatpush2.msra.mxu0 0.0
    %318 = vmatprep.subr.mxu0 0.0
    %319 = vmatpush2.msra.mxu0 0.0
    %320 = vmatprep.subr.mxu0 0.0
    %321 = vmatpush2.msra.mxu0 0.0
    %322 = vmatprep.subr.mxu0 0.0
    %323 = vmatpush2.msra.mxu0 0.0
    %324 = vmatprep.subr.mxu0 0.0
    %325 = vmatpush2.msra.mxu0 0.0
    %326 = vmatprep.subr.mxu0 0.0
    %327 = vmatpush2.msra.mxu0 0.0
    %328 = vmatprep.subr.mxu0 0.0
    %329 = vmatpush2.msra.mxu0 0.0
    %330 = vmatprep.subr.mxu0 0.0
    %331 = vmatpush2.msra.mxu0 0.0
    %332 = vmatprep.subr.mxu0 0.0
    %333 = vmatpush2.msra.mxu0 0.0
    %334 = vmatprep.subr.mxu0 0.0
    %335 = vmatpush2.msra.mxu0 0.0
    %336 = vmatprep.subr.mxu0 0.0
    %337 = vmatpush2.msra.mxu0 0.0
    %338 = vmatprep.subr.mxu0 0.0
    %339 = vmatpush2.msra.mxu0 0.0
    %340 = vmatprep.mubr.f32.mxu0 0.0
    %341 = vmatmul.mubr.f32.gmra.mxu0 %v265
    %v342 = vpop.f32.mrf.mxu0
    %v343 = vadd.f32 0.0, %v342
    %v344 = vpop.f32.mrf.mxu0
    %345 = vmatprep.mubr.f32.mxu0 0.0
    %346 = vmatmul.mubr.f32.gmra.mxu0 %v268
    %v347 = vpop.f32.mrf.mxu0
    %v348 = vadd.f32 0.0, %v347
    %v349 = vpop.f32.mrf.mxu0
    %350 = vmatprep.mubr.f32.mxu0 0.0
    %351 = vmatmul.mubr.f32.gmra.mxu0 %v271
    %v352 = vpop.f32.mrf.mxu0
    %v353 = vadd.f32 0.0, %v352
    %v354 = vpop.f32.mrf.mxu0
    %355 = vmatprep.mubr.f32.mxu0 0.0
    %356 = vmatmul.mubr.f32.gmra.mxu0 %v274
    %v357 = vpop.f32.mrf.mxu0
    %v358 = vadd.f32 0.0, %v357
    %v359 = vpop.f32.mrf.mxu0
    %360 = vdwg.mxu0
    %v361 = vld [vmem:[#allocation2 + $0x40] sm:$0xff]
    %v362 = vld [vmem:[#allocation2 + $0x48] sm:$0xff]
    %v363 = vld [vmem:[#allocation2 + $0x50] sm:$0xff]
    %v364 = vld [vmem:[#allocation2 + $0x58] sm:$0xff]
    %v366 = vsel %vm162, %v361, 0
    %v369 = vsel %vm162, %v362, 0
    %v372 = vsel %vm162, %v363, 0
    %v375 = vsel %vm162, %v364, 0
    %377 = vmatprep.subr.mxu0 0.0
    %378 = vmatpush1.msra.mxu0 0.0
    %379 = vmatprep.subr.mxu0 0.0
    %380 = vmatpush1.msra.mxu0 0.0
    %381 = vmatprep.subr.mxu0 0.0
    %382 = vmatpush1.msra.mxu0 0.0
    %383 = vmatprep.subr.mxu0 0.0
    %384 = vmatpush1.msra.mxu0 0.0
    %385 = vmatprep.subr.mxu0 0.0
    %386 = vmatpush1.msra.mxu0 0.0
    %387 = vmatprep.subr.mxu0 0.0
    %388 = vmatpush1.msra.mxu0 0.0
    %389 = vmatprep.subr.mxu0 0.0
    %390 = vmatpush1.msra.mxu0 0.0
    %391 = vmatprep.subr.mxu0 0.0
    %392 = vmatpush1.msra.mxu0 0.0
    %393 = vmatprep.subr.mxu0 0.0
    %394 = vmatpush1.msra.mxu0 %v154
    %395 = vmatprep.subr.mxu0 0.0
    %396 = vmatpush1.msra.mxu0 %v153
    %397 = vmatprep.subr.mxu0 0.0
    %398 = vmatpush1.msra.mxu0 %v152
    %399 = vmatprep.subr.mxu0 0.0
    %400 = vmatpush1.msra.mxu0 %v151
    %401 = vmatprep.subr.mxu0 0.0
    %402 = vmatpush1.msra.mxu0 %v150
    %403 = vmatprep.subr.mxu0 0.0
    %404 = vmatpush1.msra.mxu0 %v149
    %405 = vmatprep.subr.mxu0 0.0
    %406 = vmatpush1.msra.mxu0 %v148
    %407 = vmatprep.subr.mxu0 0.0
    %408 = vmatpush1.msra.mxu0 %v147
    %409 = vmatprep.subr.mxu0 0.0
    %410 = vmatpush2.msra.mxu0 0.0
    %411 = vmatprep.subr.mxu0 0.0
    %412 = vmatpush2.msra.mxu0 0.0
    %413 = vmatprep.subr.mxu0 0.0
    %414 = vmatpush2.msra.mxu0 0.0
    %415 = vmatprep.subr.mxu0 0.0
    %416 = vmatpush2.msra.mxu0 0.0
    %417 = vmatprep.subr.mxu0 0.0
    %418 = vmatpush2.msra.mxu0 0.0
    %419 = vmatprep.subr.mxu0 0.0
    %420 = vmatpush2.msra.mxu0 0.0
    %421 = vmatprep.subr.mxu0 0.0
    %422 = vmatpush2.msra.mxu0 0.0
    %423 = vmatprep.subr.mxu0 0.0
    %424 = vmatpush2.msra.mxu0 0.0
    %425 = vmatprep.subr.mxu0 0.0
    %426 = vmatpush2.msra.mxu0 0.0
    %427 = vmatprep.subr.mxu0 0.0
    %428 = vmatpush2.msra.mxu0 0.0
    %429 = vmatprep.subr.mxu0 0.0
    %430 = vmatpush2.msra.mxu0 0.0
    %431 = vmatprep.subr.mxu0 0.0
    %432 = vmatpush2.msra.mxu0 0.0
    %433 = vmatprep.subr.mxu0 0.0
    %434 = vmatpush2.msra.mxu0 0.0
    %435 = vmatprep.subr.mxu0 0.0
    %436 = vmatpush2.msra.mxu0 0.0
    %437 = vmatprep.subr.mxu0 0.0
    %438 = vmatpush2.msra.mxu0 0.0
    %439 = vmatprep.subr.mxu0 0.0
    %440 = vmatpush2.msra.mxu0 0.0
    %441 = vmatprep.mubr.f32.mxu0 0.0
    %442 = vmatmul.mubr.f32.gmra.mxu0 %v366
    %v443 = vpop.f32.mrf.mxu0
    %v444 = vadd.f32 0.0, %v443
    %v445 = vpop.f32.mrf.mxu0
    %446 = vmatprep.mubr.f32.mxu0 0.0
    %447 = vmatmul.mubr.f32.gmra.mxu0 %v369
    %v448 = vpop.f32.mrf.mxu0
    %v449 = vadd.f32 0.0, %v448
    %v450 = vpop.f32.mrf.mxu0
    %451 = vmatprep.mubr.f32.mxu0 0.0
    %452 = vmatmul.mubr.f32.gmra.mxu0 %v372
    %v453 = vpop.f32.mrf.mxu0
    %v454 = vadd.f32 0.0, %v453
    %v455 = vpop.f32.mrf.mxu0
    %456 = vmatprep.mubr.f32.mxu0 0.0
    %457 = vmatmul.mubr.f32.gmra.mxu0 %v375
    %v458 = vpop.f32.mrf.mxu0
    %v459 = vadd.f32 0.0, %v458
    %v460 = vpop.f32.mrf.mxu0
    %461 = vdwg.mxu0
    %466 = vrot.lane.b32.xlu0 %v343, 32
    %v467 = vpop.permute.xlu0 %466
    %468 = vrot.lane.b32.xlu0 %v348, 32
    %v469 = vpop.permute.xlu0 %468
    %470 = vrot.lane.b32.xlu0 %v353, 32
    %v471 = vpop.permute.xlu0 %470
    %472 = vrot.lane.b32.xlu0 %v358, 32
    %v473 = vpop.permute.xlu0 %472
    %482 = vrot.lane.b32.xlu0 %v444, 64
    %v483 = vpop.permute.xlu0 %482
    %484 = vrot.lane.b32.xlu0 %v449, 64
    %v485 = vpop.permute.xlu0 %484
    %486 = vrot.lane.b32.xlu0 %v454, 64
    %v487 = vpop.permute.xlu0 %486
    %488 = vrot.lane.b32.xlu0 %v459, 64
    %v489 = vpop.permute.xlu0 %488
    %vm494 = vcmask 261120
    %v495 = vsel %vm494, %v242, %v467
    %v496 = vsel %vm494, %v247, %v469
    %v497 = vsel %vm494, %v252, %v471
    %v498 = vsel %vm494, %v257, %v473
    %v499 = vsel %vm162, %v495, %v483
    %v500 = vsel %vm162, %v496, %v485
    %v501 = vsel %vm162, %v497, %v487
    %v502 = vsel %vm162, %v498, %v489
    %v503 = vld [vmem:[#allocation2 + $0x60] sm:$0xff]
    %v504 = vld [vmem:[#allocation2 + $0x68] sm:$0xff]
    %v505 = vld [vmem:[#allocation2 + $0x70] sm:$0xff]
    %v506 = vld [vmem:[#allocation2 + $0x78] sm:$0xff]
    %v507 = vld [vmem:[#allocation2 + $0x80] sm:$0xff]
    %v508 = vld [vmem:[#allocation2 + $0x88] sm:$0xff]
    %v509 = vld [vmem:[#allocation2 + $0x90] sm:$0xff]
    %v510 = vld [vmem:[#allocation2 + $0x98] sm:$0xff]
    %v511 = vld [vmem:[#allocation2 + $0xa0] sm:$0xff]
    %v512 = vld [vmem:[#allocation2 + $0xa8] sm:$0xff]
    %v513 = vld [vmem:[#allocation2 + $0xb0] sm:$0xff]
    %v514 = vld [vmem:[#allocation2 + $0xb8] sm:$0xff]
    %v515 = vld [vmem:[#allocation2 + $0xc0] sm:$0x1]
    %v516 = vlaneseq
    %v517 = vshrl.u32 %v516, 7
    %v518 = vsub.s32 0, %v517
    %v519 = vrot.slane %v515, %v518
    %vm520 = vcmask 785408
    %v522 = vsel %vm520, %v499, 0
    %v525 = vsel %vm520, %v500, 0
    %v528 = vsel %vm520, %v501, 0
    %v531 = vsel %vm520, %v502, 0
    %533 = vmatprep.subr.mxu0 0.0
    %534 = vmatpush1.msra.mxu0 0.0
    %535 = vmatprep.subr.mxu0 0.0
    %536 = vmatpush1.msra.mxu0 0.0
    %537 = vmatprep.subr.mxu0 0.0
    %538 = vmatpush1.msra.mxu0 0.0
    %539 = vmatprep.subr.mxu0 0.0
    %540 = vmatpush1.msra.mxu0 0.0
    %541 = vmatprep.subr.mxu0 0.0
    %542 = vmatpush1.msra.mxu0 %v514
    %543 = vmatprep.subr.mxu0 0.0
    %544 = vmatpush1.msra.mxu0 %v513
    %545 = vmatprep.subr.mxu0 0.0
    %546 = vmatpush1.msra.mxu0 %v512
    %547 = vmatprep.subr.mxu0 0.0
    %548 = vmatpush1.msra.mxu0 %v511
    %549 = vmatprep.subr.mxu0 0.0
    %550 = vmatpush1.msra.mxu0 %v510
    %551 = vmatprep.subr.mxu0 0.0
    %552 = vmatpush1.msra.mxu0 %v509
    %553 = vmatprep.subr.mxu0 0.0
    %554 = vmatpush1.msra.mxu0 %v508
    %555 = vmatprep.subr.mxu0 0.0
    %556 = vmatpush1.msra.mxu0 %v507
    %557 = vmatprep.subr.mxu0 0.0
    %558 = vmatpush1.msra.mxu0 %v506
    %559 = vmatprep.subr.mxu0 0.0
    %560 = vmatpush1.msra.mxu0 %v505
    %561 = vmatprep.subr.mxu0 0.0
    %562 = vmatpush1.msra.mxu0 %v504
    %563 = vmatprep.subr.mxu0 0.0
    %564 = vmatpush1.msra.mxu0 %v503
    %565 = vmatprep.subr.mxu0 0.0
    %566 = vmatpush2.msra.mxu0 0.0
    %567 = vmatprep.subr.mxu0 0.0
    %568 = vmatpush2.msra.mxu0 0.0
    %569 = vmatprep.subr.mxu0 0.0
    %570 = vmatpush2.msra.mxu0 0.0
    %571 = vmatprep.subr.mxu0 0.0
    %572 = vmatpush2.msra.mxu0 0.0
    %573 = vmatprep.subr.mxu0 0.0
    %574 = vmatpush2.msra.mxu0 0.0
    %575 = vmatprep.subr.mxu0 0.0
    %576 = vmatpush2.msra.mxu0 0.0
    %577 = vmatprep.subr.mxu0 0.0
    %578 = vmatpush2.msra.mxu0 0.0
    %579 = vmatprep.subr.mxu0 0.0
    %580 = vmatpush2.msra.mxu0 0.0
    %581 = vmatprep.subr.mxu0 0.0
    %582 = vmatpush2.msra.mxu0 0.0
    %583 = vmatprep.subr.mxu0 0.0
    %584 = vmatpush2.msra.mxu0 0.0
    %585 = vmatprep.subr.mxu0 0.0
    %586 = vmatpush2.msra.mxu0 0.0
    %587 = vmatprep.subr.mxu0 0.0
    %588 = vmatpush2.msra.mxu0 0.0
    %589 = vmatprep.subr.mxu0 0.0
    %590 = vmatpush2.msra.mxu0 0.0
    %591 = vmatprep.subr.mxu0 0.0
    %592 = vmatpush2.msra.mxu0 0.0
    %593 = vmatprep.subr.mxu0 0.0
    %594 = vmatpush2.msra.mxu0 0.0
    %595 = vmatprep.subr.mxu0 0.0
    %596 = vmatpush2.msra.mxu0 0.0
    %597 = vmatprep.mubr.f32.mxu0 0.0
    %598 = vmatmul.mubr.f32.gmra.mxu0 %v522
    %v599 = vpop.f32.mrf.mxu0
    %v600 = vadd.f32 %v519, %v599
    %v601 = vpop.f32.mrf.mxu0
    %602 = vmatprep.mubr.f32.mxu0 0.0
    %603 = vmatmul.mubr.f32.gmra.mxu0 %v525
    %v604 = vpop.f32.mrf.mxu0
    %v605 = vadd.f32 %v519, %v604
    %v606 = vpop.f32.mrf.mxu0
    %607 = vmatprep.mubr.f32.mxu0 0.0
    %608 = vmatmul.mubr.f32.gmra.mxu0 %v528
    %v609 = vpop.f32.mrf.mxu0
    %v610 = vadd.f32 %v519, %v609
    %v611 = vpop.f32.mrf.mxu0
    %612 = vmatprep.mubr.f32.mxu0 0.0
    %613 = vmatmul.mubr.f32.gmra.mxu0 %v531
    %v614 = vpop.f32.mrf.mxu0
    %v615 = vadd.f32 %v519, %v614
    %v616 = vpop.f32.mrf.mxu0
    %617 = vdwg.mxu0
    %v618 = vld [vmem:[#allocation2 + $0xc8] sm:$0xff]
    %v619 = vld [vmem:[#allocation2 + $0xd0] sm:$0xff]
    %v620 = vld [vmem:[#allocation2 + $0xd8] sm:$0xff]
    %v621 = vld [vmem:[#allocation2 + $0xe0] sm:$0xff]
    %v622 = vld [vmem:[#allocation2 + $0xe8] sm:$0xff]
    %v623 = vld [vmem:[#allocation2 + $0xf0] sm:$0xff]
    %v624 = vld [vmem:[#allocation2 + $0xf8] sm:$0xff]
    %v625 = vld [vmem:[#allocation2 + $0x100] sm:$0xff]
    %v626 = vld [vmem:[#allocation2 + $0x108] sm:$0xff]
    %v627 = vld [vmem:[#allocation2 + $0x110] sm:$0xff]
    %v628 = vld [vmem:[#allocation2 + $0x118] sm:$0xff]
    %v629 = vld [vmem:[#allocation2 + $0x120] sm:$0xff]
    %v631 = vsel %vm494, %v618, 0
    %v634 = vsel %vm494, %v619, 0
    %v637 = vsel %vm494, %v620, 0
    %v640 = vsel %vm494, %v621, 0
    %642 = vmatprep.subr.mxu0 0.0
    %643 = vmatpush1.msra.mxu0 0.0
    %644 = vmatprep.subr.mxu0 0.0
    %645 = vmatpush1.msra.mxu0 0.0
    %646 = vmatprep.subr.mxu0 0.0
    %647 = vmatpush1.msra.mxu0 0.0
    %648 = vmatprep.subr.mxu0 0.0
    %649 = vmatpush1.msra.mxu0 0.0
    %650 = vmatprep.subr.mxu0 0.0
    %651 = vmatpush1.msra.mxu0 0.0
    %652 = vmatprep.subr.mxu0 0.0
    %653 = vmatpush1.msra.mxu0 0.0
    %654 = vmatprep.subr.mxu0 0.0
    %655 = vmatpush1.msra.mxu0 0.0
    %656 = vmatprep.subr.mxu0 0.0
    %657 = vmatpush1.msra.mxu0 0.0
    %658 = vmatprep.subr.mxu0 0.0
    %659 = vmatpush1.msra.mxu0 0.0
    %660 = vmatprep.subr.mxu0 0.0
    %661 = vmatpush1.msra.mxu0 0.0
    %662 = vmatprep.subr.mxu0 0.0
    %663 = vmatpush1.msra.mxu0 0.0
    %664 = vmatprep.subr.mxu0 0.0
    %665 = vmatpush1.msra.mxu0 0.0
    %666 = vmatprep.subr.mxu0 0.0
    %667 = vmatpush1.msra.mxu0 %v615
    %668 = vmatprep.subr.mxu0 0.0
    %669 = vmatpush1.msra.mxu0 %v610
    %670 = vmatprep.subr.mxu0 0.0
    %671 = vmatpush1.msra.mxu0 %v605
    %672 = vmatprep.subr.mxu0 0.0
    %673 = vmatpush1.msra.mxu0 %v600
    %674 = vmatprep.subr.mxu0 0.0
    %675 = vmatpush2.msra.mxu0 0.0
    %676 = vmatprep.subr.mxu0 0.0
    %677 = vmatpush2.msra.mxu0 0.0
    %678 = vmatprep.subr.mxu0 0.0
    %679 = vmatpush2.msra.mxu0 0.0
    %680 = vmatprep.subr.mxu0 0.0
    %681 = vmatpush2.msra.mxu0 0.0
    %682 = vmatprep.subr.mxu0 0.0
    %683 = vmatpush2.msra.mxu0 0.0
    %684 = vmatprep.subr.mxu0 0.0
    %685 = vmatpush2.msra.mxu0 0.0
    %686 = vmatprep.subr.mxu0 0.0
    %687 = vmatpush2.msra.mxu0 0.0
    %688 = vmatprep.subr.mxu0 0.0
    %689 = vmatpush2.msra.mxu0 0.0
    %690 = vmatprep.subr.mxu0 0.0
    %691 = vmatpush2.msra.mxu0 0.0
    %692 = vmatprep.subr.mxu0 0.0
    %693 = vmatpush2.msra.mxu0 0.0
    %694 = vmatprep.subr.mxu0 0.0
    %695 = vmatpush2.msra.mxu0 0.0
    %696 = vmatprep.subr.mxu0 0.0
    %697 = vmatpush2.msra.mxu0 0.0
    %698 = vmatprep.subr.mxu0 0.0
    %699 = vmatpush2.msra.mxu0 0.0
    %700 = vmatprep.subr.mxu0 0.0
    %701 = vmatpush2.msra.mxu0 0.0
    %702 = vmatprep.subr.mxu0 0.0
    %703 = vmatpush2.msra.mxu0 0.0
    %704 = vmatprep.subr.mxu0 0.0
    %705 = vmatpush2.msra.mxu0 0.0
    %706 = vmatprep.mubr.f32.mxu0 0.0
    %707 = vmatmul.mubr.f32.gmra.mxu0 %v631
    %v708 = vpop.f32.mrf.mxu0
    %v709 = vadd.f32 0.0, %v708
    %v710 = vpop.f32.mrf.mxu0
    %711 = vmatprep.mubr.f32.mxu0 0.0
    %712 = vmatmul.mubr.f32.gmra.mxu0 %v634
    %v713 = vpop.f32.mrf.mxu0
    %v714 = vadd.f32 0.0, %v713
    %v715 = vpop.f32.mrf.mxu0
    %716 = vmatprep.mubr.f32.mxu0 0.0
    %717 = vmatmul.mubr.f32.gmra.mxu0 %v637
    %v718 = vpop.f32.mrf.mxu0
    %v719 = vadd.f32 0.0, %v718
    %v720 = vpop.f32.mrf.mxu0
    %721 = vmatprep.mubr.f32.mxu0 0.0
    %722 = vmatmul.mubr.f32.gmra.mxu0 %v640
    %v723 = vpop.f32.mrf.mxu0
    %v724 = vadd.f32 0.0, %v723
    %v725 = vpop.f32.mrf.mxu0
    %726 = vdwg.mxu0
    %v728 = vsel %vm162, %v709, 0
    %v731 = vsel %vm162, %v714, 0
    %v734 = vsel %vm162, %v719, 0
    %v737 = vsel %vm162, %v724, 0
    %739 = vmatprep.subr.mxu0 0.0
    %740 = vmatpush1.msra.mxu0 0.0
    %741 = vmatprep.subr.mxu0 0.0
    %742 = vmatpush1.msra.mxu0 0.0
    %743 = vmatprep.subr.mxu0 0.0
    %744 = vmatpush1.msra.mxu0 0.0
    %745 = vmatprep.subr.mxu0 0.0
    %746 = vmatpush1.msra.mxu0 0.0
    %747 = vmatprep.subr.mxu0 0.0
    %748 = vmatpush1.msra.mxu0 0.0
    %749 = vmatprep.subr.mxu0 0.0
    %750 = vmatpush1.msra.mxu0 0.0
    %751 = vmatprep.subr.mxu0 0.0
    %752 = vmatpush1.msra.mxu0 0.0
    %753 = vmatprep.subr.mxu0 0.0
    %754 = vmatpush1.msra.mxu0 0.0
    %755 = vmatprep.subr.mxu0 0.0
    %756 = vmatpush1.msra.mxu0 %v629
    %757 = vmatprep.subr.mxu0 0.0
    %758 = vmatpush1.msra.mxu0 %v628
    %759 = vmatprep.subr.mxu0 0.0
    %760 = vmatpush1.msra.mxu0 %v627
    %761 = vmatprep.subr.mxu0 0.0
    %762 = vmatpush1.msra.mxu0 %v626
    %763 = vmatprep.subr.mxu0 0.0
    %764 = vmatpush1.msra.mxu0 %v625
    %765 = vmatprep.subr.mxu0 0.0
    %766 = vmatpush1.msra.mxu0 %v624
    %767 = vmatprep.subr.mxu0 0.0
    %768 = vmatpush1.msra.mxu0 %v623
    %769 = vmatprep.subr.mxu0 0.0
    %770 = vmatpush1.msra.mxu0 %v622
    %771 = vmatprep.subr.mxu0 0.0
    %772 = vmatpush2.msra.mxu0 0.0
    %773 = vmatprep.subr.mxu0 0.0
    %774 = vmatpush2.msra.mxu0 0.0
    %775 = vmatprep.subr.mxu0 0.0
    %776 = vmatpush2.msra.mxu0 0.0
    %777 = vmatprep.subr.mxu0 0.0
    %778 = vmatpush2.msra.mxu0 0.0
    %779 = vmatprep.subr.mxu0 0.0
    %780 = vmatpush2.msra.mxu0 0.0
    %781 = vmatprep.subr.mxu0 0.0
    %782 = vmatpush2.msra.mxu0 0.0
    %783 = vmatprep.subr.mxu0 0.0
    %784 = vmatpush2.msra.mxu0 0.0
    %785 = vmatprep.subr.mxu0 0.0
    %786 = vmatpush2.msra.mxu0 0.0
    %787 = vmatprep.subr.mxu0 0.0
    %788 = vmatpush2.msra.mxu0 0.0
    %789 = vmatprep.subr.mxu0 0.0
    %790 = vmatpush2.msra.mxu0 0.0
    %791 = vmatprep.subr.mxu0 0.0
    %792 = vmatpush2.msra.mxu0 0.0
    %793 = vmatprep.subr.mxu0 0.0
    %794 = vmatpush2.msra.mxu0 0.0
    %795 = vmatprep.subr.mxu0 0.0
    %796 = vmatpush2.msra.mxu0 0.0
    %797 = vmatprep.subr.mxu0 0.0
    %798 = vmatpush2.msra.mxu0 0.0
    %799 = vmatprep.subr.mxu0 0.0
    %800 = vmatpush2.msra.mxu0 0.0
    %801 = vmatprep.subr.mxu0 0.0
    %802 = vmatpush2.msra.mxu0 0.0
    %803 = vmatprep.mubr.f32.mxu0 0.0
    %804 = vmatmul.mubr.f32.gmra.mxu0 %v728
    %v805 = vpop.f32.mrf.mxu0
    %v806 = vadd.f32 0.0, %v805
    %v807 = vpop.f32.mrf.mxu0
    %808 = vmatprep.mubr.f32.mxu0 0.0
    %809 = vmatmul.mubr.f32.gmra.mxu0 %v731
    %v810 = vpop.f32.mrf.mxu0
    %v811 = vadd.f32 0.0, %v810
    %v812 = vpop.f32.mrf.mxu0
    %813 = vmatprep.mubr.f32.mxu0 0.0
    %814 = vmatmul.mubr.f32.gmra.mxu0 %v734
    %v815 = vpop.f32.mrf.mxu0
    %v816 = vadd.f32 0.0, %v815
    %v817 = vpop.f32.mrf.mxu0
    %818 = vmatprep.mubr.f32.mxu0 0.0
    %819 = vmatmul.mubr.f32.gmra.mxu0 %v737
    %v820 = vpop.f32.mrf.mxu0
    %v821 = vadd.f32 0.0, %v820
    %v822 = vpop.f32.mrf.mxu0
    %823 = vdwg.mxu0
    %v824 = vmul.f32 %v600, %v600
    %v825 = vmul.f32 %v605, %v605
    %v826 = vmul.f32 %v610, %v610
    %v827 = vmul.f32 %v615, %v615
    %828 = vmatprep.subr.mxu0 0.0
    %829 = vmatpush1.msra.mxu0 0.0
    %830 = vmatprep.subr.mxu0 0.0
    %831 = vmatpush1.msra.mxu0 0.0
    %832 = vmatprep.subr.mxu0 0.0
    %833 = vmatpush1.msra.mxu0 0.0
    %834 = vmatprep.subr.mxu0 0.0
    %835 = vmatpush1.msra.mxu0 0.0
    %836 = vmatprep.subr.mxu0 0.0
    %837 = vmatpush1.msra.mxu0 0.0
    %838 = vmatprep.subr.mxu0 0.0
    %839 = vmatpush1.msra.mxu0 0.0
    %840 = vmatprep.subr.mxu0 0.0
    %841 = vmatpush1.msra.mxu0 0.0
    %842 = vmatprep.subr.mxu0 0.0
    %843 = vmatpush1.msra.mxu0 0.0
    %844 = vmatprep.subr.mxu0 0.0
    %845 = vmatpush1.msra.mxu0 0.0
    %846 = vmatprep.subr.mxu0 0.0
    %847 = vmatpush1.msra.mxu0 0.0
    %848 = vmatprep.subr.mxu0 0.0
    %849 = vmatpush1.msra.mxu0 0.0
    %850 = vmatprep.subr.mxu0 0.0
    %851 = vmatpush1.msra.mxu0 0.0
    %852 = vmatprep.subr.mxu0 0.0
    %853 = vmatpush1.msra.mxu0 %v827
    %854 = vmatprep.subr.mxu0 0.0
    %855 = vmatpush1.msra.mxu0 %v826
    %856 = vmatprep.subr.mxu0 0.0
    %857 = vmatpush1.msra.mxu0 %v825
    %858 = vmatprep.subr.mxu0 0.0
    %859 = vmatpush1.msra.mxu0 %v824
    %860 = vmatprep.subr.mxu0 0.0
    %861 = vmatpush2.msra.mxu0 0.0
    %862 = vmatprep.subr.mxu0 0.0
    %863 = vmatpush2.msra.mxu0 0.0
    %864 = vmatprep.subr.mxu0 0.0
    %865 = vmatpush2.msra.mxu0 0.0
    %866 = vmatprep.subr.mxu0 0.0
    %867 = vmatpush2.msra.mxu0 0.0
    %868 = vmatprep.subr.mxu0 0.0
    %869 = vmatpush2.msra.mxu0 0.0
    %870 = vmatprep.subr.mxu0 0.0
    %871 = vmatpush2.msra.mxu0 0.0
    %872 = vmatprep.subr.mxu0 0.0
    %873 = vmatpush2.msra.mxu0 0.0
    %874 = vmatprep.subr.mxu0 0.0
    %875 = vmatpush2.msra.mxu0 0.0
    %876 = vmatprep.subr.mxu0 0.0
    %877 = vmatpush2.msra.mxu0 0.0
    %878 = vmatprep.subr.mxu0 0.0
    %879 = vmatpush2.msra.mxu0 0.0
    %880 = vmatprep.subr.mxu0 0.0
    %881 = vmatpush2.msra.mxu0 0.0
    %882 = vmatprep.subr.mxu0 0.0
    %883 = vmatpush2.msra.mxu0 0.0
    %884 = vmatprep.subr.mxu0 0.0
    %885 = vmatpush2.msra.mxu0 0.0
    %886 = vmatprep.subr.mxu0 0.0
    %887 = vmatpush2.msra.mxu0 0.0
    %888 = vmatprep.subr.mxu0 0.0
    %889 = vmatpush2.msra.mxu0 0.0
    %890 = vmatprep.subr.mxu0 0.0
    %891 = vmatpush2.msra.mxu0 0.0
    %892 = vmatprep.mubr.f32.mxu0 0.0
    %893 = vmatmul.mubr.f32.gmra.mxu0 %v631
    %v894 = vpop.f32.mrf.mxu0
    %v895 = vadd.f32 0.0, %v894
    %v896 = vpop.f32.mrf.mxu0
    %897 = vmatprep.mubr.f32.mxu0 0.0
    %898 = vmatmul.mubr.f32.gmra.mxu0 %v634
    %v899 = vpop.f32.mrf.mxu0
    %v900 = vadd.f32 0.0, %v899
    %v901 = vpop.f32.mrf.mxu0
    %902 = vmatprep.mubr.f32.mxu0 0.0
    %903 = vmatmul.mubr.f32.gmra.mxu0 %v637
    %v904 = vpop.f32.mrf.mxu0
    %v905 = vadd.f32 0.0, %v904
    %v906 = vpop.f32.mrf.mxu0
    %907 = vmatprep.mubr.f32.mxu0 0.0
    %908 = vmatmul.mubr.f32.gmra.mxu0 %v640
    %v909 = vpop.f32.mrf.mxu0
    %v910 = vadd.f32 0.0, %v909
    %v911 = vpop.f32.mrf.mxu0
    %912 = vdwg.mxu0
    %v914 = vsel %vm162, %v895, 0
    %v917 = vsel %vm162, %v900, 0
    %v920 = vsel %vm162, %v905, 0
    %v923 = vsel %vm162, %v910, 0
    %925 = vmatprep.subr.mxu0 0.0
    %926 = vmatpush1.msra.mxu0 0.0
    %927 = vmatprep.subr.mxu0 0.0
    %928 = vmatpush1.msra.mxu0 0.0
    %929 = vmatprep.subr.mxu0 0.0
    %930 = vmatpush1.msra.mxu0 0.0
    %931 = vmatprep.subr.mxu0 0.0
    %932 = vmatpush1.msra.mxu0 0.0
    %933 = vmatprep.subr.mxu0 0.0
    %934 = vmatpush1.msra.mxu0 0.0
    %935 = vmatprep.subr.mxu0 0.0
    %936 = vmatpush1.msra.mxu0 0.0
    %937 = vmatprep.subr.mxu0 0.0
    %938 = vmatpush1.msra.mxu0 0.0
    %939 = vmatprep.subr.mxu0 0.0
    %940 = vmatpush1.msra.mxu0 0.0
    %941 = vmatprep.subr.mxu0 0.0
    %942 = vmatpush1.msra.mxu0 %v629
    %943 = vmatprep.subr.mxu0 0.0
    %944 = vmatpush1.msra.mxu0 %v628
    %945 = vmatprep.subr.mxu0 0.0
    %946 = vmatpush1.msra.mxu0 %v627
    %947 = vmatprep.subr.mxu0 0.0
    %948 = vmatpush1.msra.mxu0 %v626
    %949 = vmatprep.subr.mxu0 0.0
    %950 = vmatpush1.msra.mxu0 %v625
    %951 = vmatprep.subr.mxu0 0.0
    %952 = vmatpush1.msra.mxu0 %v624
    %953 = vmatprep.subr.mxu0 0.0
    %954 = vmatpush1.msra.mxu0 %v623
    %955 = vmatprep.subr.mxu0 0.0
    %956 = vmatpush1.msra.mxu0 %v622
    %957 = vmatprep.subr.mxu0 0.0
    %958 = vmatpush2.msra.mxu0 0.0
    %959 = vmatprep.subr.mxu0 0.0
    %960 = vmatpush2.msra.mxu0 0.0
    %961 = vmatprep.subr.mxu0 0.0
    %962 = vmatpush2.msra.mxu0 0.0
    %963 = vmatprep.subr.mxu0 0.0
    %964 = vmatpush2.msra.mxu0 0.0
    %965 = vmatprep.subr.mxu0 0.0
    %966 = vmatpush2.msra.mxu0 0.0
    %967 = vmatprep.subr.mxu0 0.0
    %968 = vmatpush2.msra.mxu0 0.0
    %969 = vmatprep.subr.mxu0 0.0
    %970 = vmatpush2.msra.mxu0 0.0
    %971 = vmatprep.subr.mxu0 0.0
    %972 = vmatpush2.msra.mxu0 0.0
    %973 = vmatprep.subr.mxu0 0.0
    %974 = vmatpush2.msra.mxu0 0.0
    %975 = vmatprep.subr.mxu0 0.0
    %976 = vmatpush2.msra.mxu0 0.0
    %977 = vmatprep.subr.mxu0 0.0
    %978 = vmatpush2.msra.mxu0 0.0
    %979 = vmatprep.subr.mxu0 0.0
    %980 = vmatpush2.msra.mxu0 0.0
    %981 = vmatprep.subr.mxu0 0.0
    %982 = vmatpush2.msra.mxu0 0.0
    %983 = vmatprep.subr.mxu0 0.0
    %984 = vmatpush2.msra.mxu0 0.0
    %985 = vmatprep.subr.mxu0 0.0
    %986 = vmatpush2.msra.mxu0 0.0
    %987 = vmatprep.subr.mxu0 0.0
    %988 = vmatpush2.msra.mxu0 0.0
    %989 = vmatprep.mubr.f32.mxu0 0.0
    %990 = vmatmul.mubr.f32.gmra.mxu0 %v914
    %v991 = vpop.f32.mrf.mxu0
    %v992 = vadd.f32 0.0, %v991
    %v993 = vpop.f32.mrf.mxu0
    %994 = vmatprep.mubr.f32.mxu0 0.0
    %995 = vmatmul.mubr.f32.gmra.mxu0 %v917
    %v996 = vpop.f32.mrf.mxu0
    %v997 = vadd.f32 0.0, %v996
    %v998 = vpop.f32.mrf.mxu0
    %999 = vmatprep.mubr.f32.mxu0 0.0
    %1000 = vmatmul.mubr.f32.gmra.mxu0 %v920
    %v1001 = vpop.f32.mrf.mxu0
    %v1002 = vadd.f32 0.0, %v1001
    %v1003 = vpop.f32.mrf.mxu0
    %1004 = vmatprep.mubr.f32.mxu0 0.0
    %1005 = vmatmul.mubr.f32.gmra.mxu0 %v923
    %v1006 = vpop.f32.mrf.mxu0
    %v1007 = vadd.f32 0.0, %v1006
    %v1008 = vpop.f32.mrf.mxu0
    %1009 = vdwg.mxu0
    %v1010 = vmul.f32 %v806, %v806
    %v1011 = vmul.f32 %v811, %v811
    %v1012 = vmul.f32 %v816, %v816
    %v1013 = vmul.f32 %v821, %v821
    %v1014 = vsub.f32 %v992, %v1010
    %v1015 = vsub.f32 %v997, %v1011
    %v1016 = vsub.f32 %v1002, %v1012
    %v1017 = vsub.f32 %v1007, %v1013
    %v1018 = vsub.f32 %v600, %v806
    %v1019 = vsub.f32 %v605, %v811
    %v1020 = vsub.f32 %v610, %v816
    %v1021 = vsub.f32 %v615, %v821
    %v1022 = vadd.f32 %v1014, 1e-05
    %v1023 = vadd.f32 %v1015, 1e-05
    %v1024 = vadd.f32 %v1016, 1e-05
    %v1025 = vadd.f32 %v1017, 1e-05
    %v1026 = vrsqrt.pop %v1022
    %v1027 = vrsqrt.pop %v1023
    %v1028 = vrsqrt.pop %v1024
    %v1029 = vrsqrt.pop %v1025
    %v1030 = vmul.f32 %v1018, %v1026
    %v1031 = vmul.f32 %v1019, %v1027
    %v1032 = vmul.f32 %v1020, %v1028
    %v1033 = vmul.f32 %v1021, %v1029
    %v1034 = vld [vmem:[#allocation2 + $0x128] sm:$0x1]
    %vm1035 = vcmp.ge.f32.partialorder %v1030, 0.0
    %vm1036 = vcmp.ge.f32.partialorder %v1031, 0.0
    %vm1037 = vcmp.ge.f32.partialorder %v1032, 0.0
    %vm1038 = vcmp.ge.f32.partialorder %v1033, 0.0
    %s1040 = vtos %v1034
    %v1041 = vstv %s1040
    %v1043 = vmul.f32 %v1041, %v1030
    %v1044 = vmul.f32 %v1041, %v1031
    %v1045 = vmul.f32 %v1041, %v1032
    %v1046 = vmul.f32 %v1041, %v1033
    %v1047 = vsel %vm1035, %v1030, %v1043
    %v1048 = vsel %vm1036, %v1031, %v1044
    %v1049 = vsel %vm1037, %v1032, %v1045
    %v1050 = vsel %vm1038, %v1033, %v1046
    %s1051 = smul.u32 336, 1
    %s1052 = sshll.u32 %s1051, 4
    %1053 = dma.done %s37, %s1052
    %v1054 = vld [vmem:[#allocation2 + $0x130] sm:$0xff]
    %v1055 = vld [vmem:[#allocation2 + $0x138] sm:$0xff]
    %v1057 = vsel %vm494, %v1054, 0
    %v1060 = vsel %vm494, %v1055, 0
    %1062 = vmatprep.subr.mxu0 0.0
    %1063 = vmatpush1.msra.mxu0 0.0
    %1064 = vmatprep.subr.mxu0 0.0
    %1065 = vmatpush1.msra.mxu0 0.0
    %1066 = vmatprep.subr.mxu0 0.0
    %1067 = vmatpush1.msra.mxu0 0.0
    %1068 = vmatprep.subr.mxu0 0.0
    %1069 = vmatpush1.msra.mxu0 0.0
    %1070 = vmatprep.subr.mxu0 0.0
    %1071 = vmatpush1.msra.mxu0 0.0
    %1072 = vmatprep.subr.mxu0 0.0
    %1073 = vmatpush1.msra.mxu0 0.0
    %1074 = vmatprep.subr.mxu0 0.0
    %1075 = vmatpush1.msra.mxu0 0.0
    %1076 = vmatprep.subr.mxu0 0.0
    %1077 = vmatpush1.msra.mxu0 0.0
    %1078 = vmatprep.subr.mxu0 0.0
    %1079 = vmatpush1.msra.mxu0 0.0
    %1080 = vmatprep.subr.mxu0 0.0
    %1081 = vmatpush1.msra.mxu0 0.0
    %1082 = vmatprep.subr.mxu0 0.0
    %1083 = vmatpush1.msra.mxu0 0.0
    %1084 = vmatprep.subr.mxu0 0.0
    %1085 = vmatpush1.msra.mxu0 0.0
    %1086 = vmatprep.subr.mxu0 0.0
    %1087 = vmatpush1.msra.mxu0 %v1050
    %1088 = vmatprep.subr.mxu0 0.0
    %1089 = vmatpush1.msra.mxu0 %v1049
    %1090 = vmatprep.subr.mxu0 0.0
    %1091 = vmatpush1.msra.mxu0 %v1048
    %1092 = vmatprep.subr.mxu0 0.0
    %1093 = vmatpush1.msra.mxu0 %v1047
    %1094 = vmatprep.subr.mxu0 0.0
    %1095 = vmatpush2.msra.mxu0 0.0
    %1096 = vmatprep.subr.mxu0 0.0
    %1097 = vmatpush2.msra.mxu0 0.0
    %1098 = vmatprep.subr.mxu0 0.0
    %1099 = vmatpush2.msra.mxu0 0.0
    %1100 = vmatprep.subr.mxu0 0.0
    %1101 = vmatpush2.msra.mxu0 0.0
    %1102 = vmatprep.subr.mxu0 0.0
    %1103 = vmatpush2.msra.mxu0 0.0
    %1104 = vmatprep.subr.mxu0 0.0
    %1105 = vmatpush2.msra.mxu0 0.0
    %1106 = vmatprep.subr.mxu0 0.0
    %1107 = vmatpush2.msra.mxu0 0.0
    %1108 = vmatprep.subr.mxu0 0.0
    %1109 = vmatpush2.msra.mxu0 0.0
    %1110 = vmatprep.subr.mxu0 0.0
    %1111 = vmatpush2.msra.mxu0 0.0
    %1112 = vmatprep.subr.mxu0 0.0
    %1113 = vmatpush2.msra.mxu0 0.0
    %1114 = vmatprep.subr.mxu0 0.0
    %1115 = vmatpush2.msra.mxu0 0.0
    %1116 = vmatprep.subr.mxu0 0.0
    %1117 = vmatpush2.msra.mxu0 0.0
    %1118 = vmatprep.subr.mxu0 0.0
    %1119 = vmatpush2.msra.mxu0 0.0
    %1120 = vmatprep.subr.mxu0 0.0
    %1121 = vmatpush2.msra.mxu0 0.0
    %1122 = vmatprep.subr.mxu0 0.0
    %1123 = vmatpush2.msra.mxu0 0.0
    %1124 = vmatprep.subr.mxu0 0.0
    %1125 = vmatpush2.msra.mxu0 0.0
    %1126 = vmatprep.mubr.f32.mxu0 0.0
    %1127 = vmatmul.mubr.f32.gmra.mxu0 %v1057
    %v1128 = vpop.f32.mrf.mxu0
    %v1129 = vadd.f32 0.0, %v1128
    %v1130 = vpop.f32.mrf.mxu0
    %1131 = vmatprep.mubr.f32.mxu0 0.0
    %1132 = vmatmul.mubr.f32.gmra.mxu0 %v1060
    %v1133 = vpop.f32.mrf.mxu0
    %v1134 = vadd.f32 0.0, %v1133
    %v1135 = vpop.f32.mrf.mxu0
    %1136 = vdwg.mxu0
    %v1137 = vld [vmem:[#allocation2 + $0x140] sm:$0xff]
    %v1138 = vld [vmem:[#allocation2 + $0x148] sm:$0xff]
    %v1140 = vsel %vm494, %v1137, 0
    %v1143 = vsel %vm494, %v1138, 0
    %1145 = vmatprep.subr.mxu0 0.0
    %1146 = vmatpush1.msra.mxu0 0.0
    %1147 = vmatprep.subr.mxu0 0.0
    %1148 = vmatpush1.msra.mxu0 0.0
    %1149 = vmatprep.subr.mxu0 0.0
    %1150 = vmatpush1.msra.mxu0 0.0
    %1151 = vmatprep.subr.mxu0 0.0
    %1152 = vmatpush1.msra.mxu0 0.0
    %1153 = vmatprep.subr.mxu0 0.0
    %1154 = vmatpush1.msra.mxu0 0.0
    %1155 = vmatprep.subr.mxu0 0.0
    %1156 = vmatpush1.msra.mxu0 0.0
    %1157 = vmatprep.subr.mxu0 0.0
    %1158 = vmatpush1.msra.mxu0 0.0
    %1159 = vmatprep.subr.mxu0 0.0
    %1160 = vmatpush1.msra.mxu0 0.0
    %1161 = vmatprep.subr.mxu0 0.0
    %1162 = vmatpush1.msra.mxu0 0.0
    %1163 = vmatprep.subr.mxu0 0.0
    %1164 = vmatpush1.msra.mxu0 0.0
    %1165 = vmatprep.subr.mxu0 0.0
    %1166 = vmatpush1.msra.mxu0 0.0
    %1167 = vmatprep.subr.mxu0 0.0
    %1168 = vmatpush1.msra.mxu0 0.0
    %1169 = vmatprep.subr.mxu0 0.0
    %1170 = vmatpush1.msra.mxu0 %v1050
    %1171 = vmatprep.subr.mxu0 0.0
    %1172 = vmatpush1.msra.mxu0 %v1049
    %1173 = vmatprep.subr.mxu0 0.0
    %1174 = vmatpush1.msra.mxu0 %v1048
    %1175 = vmatprep.subr.mxu0 0.0
    %1176 = vmatpush1.msra.mxu0 %v1047
    %1177 = vmatprep.subr.mxu0 0.0
    %1178 = vmatpush2.msra.mxu0 0.0
    %1179 = vmatprep.subr.mxu0 0.0
    %1180 = vmatpush2.msra.mxu0 0.0
    %1181 = vmatprep.subr.mxu0 0.0
    %1182 = vmatpush2.msra.mxu0 0.0
    %1183 = vmatprep.subr.mxu0 0.0
    %1184 = vmatpush2.msra.mxu0 0.0
    %1185 = vmatprep.subr.mxu0 0.0
    %1186 = vmatpush2.msra.mxu0 0.0
    %1187 = vmatprep.subr.mxu0 0.0
    %1188 = vmatpush2.msra.mxu0 0.0
    %1189 = vmatprep.subr.mxu0 0.0
    %1190 = vmatpush2.msra.mxu0 0.0
    %1191 = vmatprep.subr.mxu0 0.0
    %1192 = vmatpush2.msra.mxu0 0.0
    %1193 = vmatprep.subr.mxu0 0.0
    %1194 = vmatpush2.msra.mxu0 0.0
    %1195 = vmatprep.subr.mxu0 0.0
    %1196 = vmatpush2.msra.mxu0 0.0
    %1197 = vmatprep.subr.mxu0 0.0
    %1198 = vmatpush2.msra.mxu0 0.0
    %1199 = vmatprep.subr.mxu0 0.0
    %1200 = vmatpush2.msra.mxu0 0.0
    %1201 = vmatprep.subr.mxu0 0.0
    %1202 = vmatpush2.msra.mxu0 0.0
    %1203 = vmatprep.subr.mxu0 0.0
    %1204 = vmatpush2.msra.mxu0 0.0
    %1205 = vmatprep.subr.mxu0 0.0
    %1206 = vmatpush2.msra.mxu0 0.0
    %1207 = vmatprep.subr.mxu0 0.0
    %1208 = vmatpush2.msra.mxu0 0.0
    %1209 = vmatprep.mubr.f32.mxu0 0.0
    %1210 = vmatmul.mubr.f32.gmra.mxu0 %v1140
    %v1211 = vpop.f32.mrf.mxu0
    %v1212 = vadd.f32 0.0, %v1211
    %v1213 = vpop.f32.mrf.mxu0
    %1214 = vmatprep.mubr.f32.mxu0 0.0
    %1215 = vmatmul.mubr.f32.gmra.mxu0 %v1143
    %v1216 = vpop.f32.mrf.mxu0
    %v1217 = vadd.f32 0.0, %v1216
    %v1218 = vpop.f32.mrf.mxu0
    %1219 = vdwg.mxu0
    %v1220 = vld [vmem:[#allocation2 + $0x150] sm:$0xff]
    %v1221 = vld [vmem:[#allocation2 + $0x158] sm:$0xff]
    %v1223 = vsel %vm494, %v1220, 0
    %v1226 = vsel %vm494, %v1221, 0
    %1228 = vmatprep.subr.mxu0 0.0
    %1229 = vmatpush1.msra.mxu0 0.0
    %1230 = vmatprep.subr.mxu0 0.0
    %1231 = vmatpush1.msra.mxu0 0.0
    %1232 = vmatprep.subr.mxu0 0.0
    %1233 = vmatpush1.msra.mxu0 0.0
    %1234 = vmatprep.subr.mxu0 0.0
    %1235 = vmatpush1.msra.mxu0 0.0
    %1236 = vmatprep.subr.mxu0 0.0
    %1237 = vmatpush1.msra.mxu0 0.0
    %1238 = vmatprep.subr.mxu0 0.0
    %1239 = vmatpush1.msra.mxu0 0.0
    %1240 = vmatprep.subr.mxu0 0.0
    %1241 = vmatpush1.msra.mxu0 0.0
    %1242 = vmatprep.subr.mxu0 0.0
    %1243 = vmatpush1.msra.mxu0 0.0
    %1244 = vmatprep.subr.mxu0 0.0
    %1245 = vmatpush1.msra.mxu0 0.0
    %1246 = vmatprep.subr.mxu0 0.0
    %1247 = vmatpush1.msra.mxu0 0.0
    %1248 = vmatprep.subr.mxu0 0.0
    %1249 = vmatpush1.msra.mxu0 0.0
    %1250 = vmatprep.subr.mxu0 0.0
    %1251 = vmatpush1.msra.mxu0 0.0
    %1252 = vmatprep.subr.mxu0 0.0
    %1253 = vmatpush1.msra.mxu0 %v1050
    %1254 = vmatprep.subr.mxu0 0.0
    %1255 = vmatpush1.msra.mxu0 %v1049
    %1256 = vmatprep.subr.mxu0 0.0
    %1257 = vmatpush1.msra.mxu0 %v1048
    %1258 = vmatprep.subr.mxu0 0.0
    %1259 = vmatpush1.msra.mxu0 %v1047
    %1260 = vmatprep.subr.mxu0 0.0
    %1261 = vmatpush2.msra.mxu0 0.0
    %1262 = vmatprep.subr.mxu0 0.0
    %1263 = vmatpush2.msra.mxu0 0.0
    %1264 = vmatprep.subr.mxu0 0.0
    %1265 = vmatpush2.msra.mxu0 0.0
    %1266 = vmatprep.subr.mxu0 0.0
    %1267 = vmatpush2.msra.mxu0 0.0
    %1268 = vmatprep.subr.mxu0 0.0
    %1269 = vmatpush2.msra.mxu0 0.0
    %1270 = vmatprep.subr.mxu0 0.0
    %1271 = vmatpush2.msra.mxu0 0.0
    %1272 = vmatprep.subr.mxu0 0.0
    %1273 = vmatpush2.msra.mxu0 0.0
    %1274 = vmatprep.subr.mxu0 0.0
    %1275 = vmatpush2.msra.mxu0 0.0
    %1276 = vmatprep.subr.mxu0 0.0
    %1277 = vmatpush2.msra.mxu0 0.0
    %1278 = vmatprep.subr.mxu0 0.0
    %1279 = vmatpush2.msra.mxu0 0.0
    %1280 = vmatprep.subr.mxu0 0.0
    %1281 = vmatpush2.msra.mxu0 0.0
    %1282 = vmatprep.subr.mxu0 0.0
    %1283 = vmatpush2.msra.mxu0 0.0
    %1284 = vmatprep.subr.mxu0 0.0
    %1285 = vmatpush2.msra.mxu0 0.0
    %1286 = vmatprep.subr.mxu0 0.0
    %1287 = vmatpush2.msra.mxu0 0.0
    %1288 = vmatprep.subr.mxu0 0.0
    %1289 = vmatpush2.msra.mxu0 0.0
    %1290 = vmatprep.subr.mxu0 0.0
    %1291 = vmatpush2.msra.mxu0 0.0
    %1292 = vmatprep.mubr.f32.mxu0 0.0
    %1293 = vmatmul.mubr.f32.gmra.mxu0 %v1223
    %v1294 = vpop.f32.mrf.mxu0
    %v1295 = vadd.f32 0.0, %v1294
    %v1296 = vpop.f32.mrf.mxu0
    %1297 = vmatprep.mubr.f32.mxu0 0.0
    %1298 = vmatmul.mubr.f32.gmra.mxu0 %v1226
    %v1299 = vpop.f32.mrf.mxu0
    %v1300 = vadd.f32 0.0, %v1299
    %v1301 = vpop.f32.mrf.mxu0
    %1302 = vdwg.mxu0
    %1305 = vrot.lane.b32.xlu0 %v1212, 64
    %v1306 = vpop.permute.xlu0 %1305
    %1307 = vrot.lane.b32.xlu0 %v1217, 64
    %v1308 = vpop.permute.xlu0 %1307
    %v1311 = vsel %vm162, %v1129, %v1306
    %v1312 = vsel %vm162, %v1134, %v1308
    %v1313 = vld [vmem:[#allocation2 + $0x160] sm:$0xff]
    %v1314 = vld [vmem:[#allocation2 + $0x168] sm:$0xff]
    %v1315 = vld [vmem:[#allocation2 + $0x170] sm:$0xff]
    %v1316 = vld [vmem:[#allocation2 + $0x178] sm:$0xff]
    %v1317 = vld [vmem:[#allocation2 + $0x180] sm:$0xff]
    %v1318 = vld [vmem:[#allocation2 + $0x188] sm:$0xff]
    %v1319 = vld [vmem:[#allocation2 + $0x190] sm:$0xff]
    %v1320 = vld [vmem:[#allocation2 + $0x198] sm:$0xff]
    %v1321 = vld [vmem:[#allocation2 + $0x1a0] sm:$0xff]
    %v1322 = vld [vmem:[#allocation2 + $0x1a8] sm:$0xff]
    %v1323 = vld [vmem:[#allocation2 + $0x1b0] sm:$0xff]
    %v1324 = vld [vmem:[#allocation2 + $0x1b8] sm:$0xff]
    %v1325 = vld [vmem:[#allocation2 + $0x1c0] sm:$0xff]
    %v1326 = vld [vmem:[#allocation2 + $0x1c8] sm:$0xff]
    %v1327 = vld [vmem:[#allocation2 + $0x1d0] sm:$0xff]
    %v1328 = vld [vmem:[#allocation2 + $0x1d8] sm:$0xff]
    %v1329 = vld [vmem:[#allocation2 + $0x1e0] sm:$0xff]
    %v1330 = vld [vmem:[#allocation2 + $0x1e8] sm:$0xff]
    %v1331 = vld [vmem:[#allocation2 + $0x1f0] sm:$0xff]
    %v1332 = vld [vmem:[#allocation2 + $0x1f8] sm:$0xff]
    %v1333 = vld [vmem:[#allocation2 + $0x200] sm:$0xff]
    %v1334 = vld [vmem:[#allocation2 + $0x208] sm:$0xff]
    %v1335 = vld [vmem:[#allocation2 + $0x210] sm:$0xff]
    %v1336 = vld [vmem:[#allocation2 + $0x218] sm:$0xff]
    %v1337 = vld [vmem:[#allocation2 + $0x220] sm:$0x1]
    %v1338 = vlaneseq
    %v1339 = vshrl.u32 %v1338, 7
    %v1340 = vsub.s32 0, %v1339
    %v1341 = vrot.slane %v1337, %v1340
    %v1343 = vsel %vm162, %v1295, 0
    %v1346 = vsel %vm162, %v1300, 0
    %1348 = vmatprep.subr.mxu0 0.0
    %1349 = vmatpush1.msra.mxu0 %v1328
    %1350 = vmatprep.subr.mxu0 0.0
    %1351 = vmatpush1.msra.mxu0 %v1327
    %1352 = vmatprep.subr.mxu0 0.0
    %1353 = vmatpush1.msra.mxu0 %v1326
    %1354 = vmatprep.subr.mxu0 0.0
    %1355 = vmatpush1.msra.mxu0 %v1325
    %1356 = vmatprep.subr.mxu0 0.0
    %1357 = vmatpush1.msra.mxu0 %v1324
    %1358 = vmatprep.subr.mxu0 0.0
    %1359 = vmatpush1.msra.mxu0 %v1323
    %1360 = vmatprep.subr.mxu0 0.0
    %1361 = vmatpush1.msra.mxu0 %v1322
    %1362 = vmatprep.subr.mxu0 0.0
    %1363 = vmatpush1.msra.mxu0 %v1321
    %1364 = vmatprep.subr.mxu0 0.0
    %1365 = vmatpush1.msra.mxu0 %v1320
    %1366 = vmatprep.subr.mxu0 0.0
    %1367 = vmatpush1.msra.mxu0 %v1319
    %1368 = vmatprep.subr.mxu0 0.0
    %1369 = vmatpush1.msra.mxu0 %v1318
    %1370 = vmatprep.subr.mxu0 0.0
    %1371 = vmatpush1.msra.mxu0 %v1317
    %1372 = vmatprep.subr.mxu0 0.0
    %1373 = vmatpush1.msra.mxu0 %v1316
    %1374 = vmatprep.subr.mxu0 0.0
    %1375 = vmatpush1.msra.mxu0 %v1315
    %1376 = vmatprep.subr.mxu0 0.0
    %1377 = vmatpush1.msra.mxu0 %v1314
    %1378 = vmatprep.subr.mxu0 0.0
    %1379 = vmatpush1.msra.mxu0 %v1313
    %1380 = vmatprep.subr.mxu0 0.0
    %1381 = vmatpush2.msra.mxu0 0.0
    %1382 = vmatprep.subr.mxu0 0.0
    %1383 = vmatpush2.msra.mxu0 0.0
    %1384 = vmatprep.subr.mxu0 0.0
    %1385 = vmatpush2.msra.mxu0 0.0
    %1386 = vmatprep.subr.mxu0 0.0
    %1387 = vmatpush2.msra.mxu0 0.0
    %1388 = vmatprep.subr.mxu0 0.0
    %1389 = vmatpush2.msra.mxu0 0.0
    %1390 = vmatprep.subr.mxu0 0.0
    %1391 = vmatpush2.msra.mxu0 0.0
    %1392 = vmatprep.subr.mxu0 0.0
    %1393 = vmatpush2.msra.mxu0 0.0
    %1394 = vmatprep.subr.mxu0 0.0
    %1395 = vmatpush2.msra.mxu0 0.0
    %1396 = vmatprep.subr.mxu0 0.0
    %1397 = vmatpush2.msra.mxu0 %v1336
    %1398 = vmatprep.subr.mxu0 0.0
    %1399 = vmatpush2.msra.mxu0 %v1335
    %1400 = vmatprep.subr.mxu0 0.0
    %1401 = vmatpush2.msra.mxu0 %v1334
    %1402 = vmatprep.subr.mxu0 0.0
    %1403 = vmatpush2.msra.mxu0 %v1333
    %1404 = vmatprep.subr.mxu0 0.0
    %1405 = vmatpush2.msra.mxu0 %v1332
    %1406 = vmatprep.subr.mxu0 0.0
    %1407 = vmatpush2.msra.mxu0 %v1331
    %1408 = vmatprep.subr.mxu0 0.0
    %1409 = vmatpush2.msra.mxu0 %v1330
    %1410 = vmatprep.subr.mxu0 0.0
    %1411 = vmatpush2.msra.mxu0 %v1329
    %1412 = vmatprep.mubr.f32.mxu0 %v1343
    %1413 = vmatmul.mubr.f32.gmra.mxu0 %v1311
    %v1414 = vpop.f32.mrf.mxu0
    %v1415 = vadd.f32 %v1341, %v1414
    %v1416 = vpop.f32.mrf.mxu0
    %1417 = vmatprep.mubr.f32.mxu0 %v1346
    %1418 = vmatmul.mubr.f32.gmra.mxu0 %v1312
    %v1419 = vpop.f32.mrf.mxu0
    %v1420 = vadd.f32 %v1341, %v1419
    %v1421 = vpop.f32.mrf.mxu0
    %1422 = vdwg.mxu0
    %v1423 = vld [vmem:[#allocation2 + $0x228] sm:$0xff]
    %v1424 = vld [vmem:[#allocation2 + $0x230] sm:$0xff]
    %v1425 = vld [vmem:[#allocation2 + $0x238] sm:$0xff]
    %v1426 = vld [vmem:[#allocation2 + $0x240] sm:$0xff]
    %v1427 = vld [vmem:[#allocation2 + $0x248] sm:$0xff]
    %v1428 = vld [vmem:[#allocation2 + $0x250] sm:$0xff]
    %v1429 = vld [vmem:[#allocation2 + $0x258] sm:$0xff]
    %v1430 = vld [vmem:[#allocation2 + $0x260] sm:$0xff]
    %v1431 = vld [vmem:[#allocation2 + $0x268] sm:$0xff]
    %v1432 = vld [vmem:[#allocation2 + $0x270] sm:$0xff]
    %vm1433 = vcmask 130048
    %v1435 = vsel %vm1433, %v1423, 0
    %v1438 = vsel %vm1433, %v1424, 0
    %1440 = vmatprep.subr.mxu0 0.0
    %1441 = vmatpush1.msra.mxu0 0.0
    %1442 = vmatprep.subr.mxu0 0.0
    %1443 = vmatpush1.msra.mxu0 0.0
    %1444 = vmatprep.subr.mxu0 0.0
    %1445 = vmatpush1.msra.mxu0 0.0
    %1446 = vmatprep.subr.mxu0 0.0
    %1447 = vmatpush1.msra.mxu0 0.0
    %1448 = vmatprep.subr.mxu0 0.0
    %1449 = vmatpush1.msra.mxu0 0.0
    %1450 = vmatprep.subr.mxu0 0.0
    %1451 = vmatpush1.msra.mxu0 0.0
    %1452 = vmatprep.subr.mxu0 0.0
    %1453 = vmatpush1.msra.mxu0 0.0
    %1454 = vmatprep.subr.mxu0 0.0
    %1455 = vmatpush1.msra.mxu0 0.0
    %1456 = vmatprep.subr.mxu0 0.0
    %1457 = vmatpush1.msra.mxu0 0.0
    %1458 = vmatprep.subr.mxu0 0.0
    %1459 = vmatpush1.msra.mxu0 0.0
    %1460 = vmatprep.subr.mxu0 0.0
    %1461 = vmatpush1.msra.mxu0 0.0
    %1462 = vmatprep.subr.mxu0 0.0
    %1463 = vmatpush1.msra.mxu0 0.0
    %1464 = vmatprep.subr.mxu0 0.0
    %1465 = vmatpush1.msra.mxu0 0.0
    %1466 = vmatprep.subr.mxu0 0.0
    %1467 = vmatpush1.msra.mxu0 0.0
    %1468 = vmatprep.subr.mxu0 0.0
    %1469 = vmatpush1.msra.mxu0 %v1420
    %1470 = vmatprep.subr.mxu0 0.0
    %1471 = vmatpush1.msra.mxu0 %v1415
    %1472 = vmatprep.subr.mxu0 0.0
    %1473 = vmatpush2.msra.mxu0 0.0
    %1474 = vmatprep.subr.mxu0 0.0
    %1475 = vmatpush2.msra.mxu0 0.0
    %1476 = vmatprep.subr.mxu0 0.0
    %1477 = vmatpush2.msra.mxu0 0.0
    %1478 = vmatprep.subr.mxu0 0.0
    %1479 = vmatpush2.msra.mxu0 0.0
    %1480 = vmatprep.subr.mxu0 0.0
    %1481 = vmatpush2.msra.mxu0 0.0
    %1482 = vmatprep.subr.mxu0 0.0
    %1483 = vmatpush2.msra.mxu0 0.0
    %1484 = vmatprep.subr.mxu0 0.0
    %1485 = vmatpush2.msra.mxu0 0.0
    %1486 = vmatprep.subr.mxu0 0.0
    %1487 = vmatpush2.msra.mxu0 0.0
    %1488 = vmatprep.subr.mxu0 0.0
    %1489 = vmatpush2.msra.mxu0 0.0
    %1490 = vmatprep.subr.mxu0 0.0
    %1491 = vmatpush2.msra.mxu0 0.0
    %1492 = vmatprep.subr.mxu0 0.0
    %1493 = vmatpush2.msra.mxu0 0.0
    %1494 = vmatprep.subr.mxu0 0.0
    %1495 = vmatpush2.msra.mxu0 0.0
    %1496 = vmatprep.subr.mxu0 0.0
    %1497 = vmatpush2.msra.mxu0 0.0
    %1498 = vmatprep.subr.mxu0 0.0
    %1499 = vmatpush2.msra.mxu0 0.0
    %1500 = vmatprep.subr.mxu0 0.0
    %1501 = vmatpush2.msra.mxu0 0.0
    %1502 = vmatprep.subr.mxu0 0.0
    %1503 = vmatpush2.msra.mxu0 0.0
    %1504 = vmatprep.mubr.f32.mxu0 0.0
    %1505 = vmatmul.mubr.f32.gmra.mxu0 %v1435
    %v1506 = vpop.f32.mrf.mxu0
    %v1507 = vadd.f32 0.0, %v1506
    %v1508 = vpop.f32.mrf.mxu0
    %1509 = vmatprep.mubr.f32.mxu0 0.0
    %1510 = vmatmul.mubr.f32.gmra.mxu0 %v1438
    %v1511 = vpop.f32.mrf.mxu0
    %v1512 = vadd.f32 0.0, %v1511
    %v1513 = vpop.f32.mrf.mxu0
    %1514 = vdwg.mxu0
    %v1516 = vsel %vm162, %v1507, 0
    %v1519 = vsel %vm162, %v1512, 0
    %1521 = vmatprep.subr.mxu0 0.0
    %1522 = vmatpush1.msra.mxu0 0.0
    %1523 = vmatprep.subr.mxu0 0.0
    %1524 = vmatpush1.msra.mxu0 0.0
    %1525 = vmatprep.subr.mxu0 0.0
    %1526 = vmatpush1.msra.mxu0 0.0
    %1527 = vmatprep.subr.mxu0 0.0
    %1528 = vmatpush1.msra.mxu0 0.0
    %1529 = vmatprep.subr.mxu0 0.0
    %1530 = vmatpush1.msra.mxu0 0.0
    %1531 = vmatprep.subr.mxu0 0.0
    %1532 = vmatpush1.msra.mxu0 0.0
    %1533 = vmatprep.subr.mxu0 0.0
    %1534 = vmatpush1.msra.mxu0 0.0
    %1535 = vmatprep.subr.mxu0 0.0
    %1536 = vmatpush1.msra.mxu0 0.0
    %1537 = vmatprep.subr.mxu0 0.0
    %1538 = vmatpush1.msra.mxu0 %v1432
    %1539 = vmatprep.subr.mxu0 0.0
    %1540 = vmatpush1.msra.mxu0 %v1431
    %1541 = vmatprep.subr.mxu0 0.0
    %1542 = vmatpush1.msra.mxu0 %v1430
    %1543 = vmatprep.subr.mxu0 0.0
    %1544 = vmatpush1.msra.mxu0 %v1429
    %1545 = vmatprep.subr.mxu0 0.0
    %1546 = vmatpush1.msra.mxu0 %v1428
    %1547 = vmatprep.subr.mxu0 0.0
    %1548 = vmatpush1.msra.mxu0 %v1427
    %1549 = vmatprep.subr.mxu0 0.0
    %1550 = vmatpush1.msra.mxu0 %v1426
    %1551 = vmatprep.subr.mxu0 0.0
    %1552 = vmatpush1.msra.mxu0 %v1425
    %1553 = vmatprep.subr.mxu0 0.0
    %1554 = vmatpush2.msra.mxu0 0.0
    %1555 = vmatprep.subr.mxu0 0.0
    %1556 = vmatpush2.msra.mxu0 0.0
    %1557 = vmatprep.subr.mxu0 0.0
    %1558 = vmatpush2.msra.mxu0 0.0
    %1559 = vmatprep.subr.mxu0 0.0
    %1560 = vmatpush2.msra.mxu0 0.0
    %1561 = vmatprep.subr.mxu0 0.0
    %1562 = vmatpush2.msra.mxu0 0.0
    %1563 = vmatprep.subr.mxu0 0.0
    %1564 = vmatpush2.msra.mxu0 0.0
    %1565 = vmatprep.subr.mxu0 0.0
    %1566 = vmatpush2.msra.mxu0 0.0
    %1567 = vmatprep.subr.mxu0 0.0
    %1568 = vmatpush2.msra.mxu0 0.0
    %1569 = vmatprep.subr.mxu0 0.0
    %1570 = vmatpush2.msra.mxu0 0.0
    %1571 = vmatprep.subr.mxu0 0.0
    %1572 = vmatpush2.msra.mxu0 0.0
    %1573 = vmatprep.subr.mxu0 0.0
    %1574 = vmatpush2.msra.mxu0 0.0
    %1575 = vmatprep.subr.mxu0 0.0
    %1576 = vmatpush2.msra.mxu0 0.0
    %1577 = vmatprep.subr.mxu0 0.0
    %1578 = vmatpush2.msra.mxu0 0.0
    %1579 = vmatprep.subr.mxu0 0.0
    %1580 = vmatpush2.msra.mxu0 0.0
    %1581 = vmatprep.subr.mxu0 0.0
    %1582 = vmatpush2.msra.mxu0 0.0
    %1583 = vmatprep.subr.mxu0 0.0
    %1584 = vmatpush2.msra.mxu0 0.0
    %1585 = vmatprep.mubr.f32.mxu0 0.0
    %1586 = vmatmul.mubr.f32.gmra.mxu0 %v1516
    %v1587 = vpop.f32.mrf.mxu0
    %v1588 = vadd.f32 0.0, %v1587
    %v1589 = vpop.f32.mrf.mxu0
    %1590 = vmatprep.mubr.f32.mxu0 0.0
    %1591 = vmatmul.mubr.f32.gmra.mxu0 %v1519
    %v1592 = vpop.f32.mrf.mxu0
    %v1593 = vadd.f32 0.0, %v1592
    %v1594 = vpop.f32.mrf.mxu0
    %1595 = vdwg.mxu0
    %v1596 = vmul.f32 %v1415, %v1415
    %v1597 = vmul.f32 %v1420, %v1420
    %1598 = vmatprep.subr.mxu0 0.0
    %1599 = vmatpush1.msra.mxu0 0.0
    %1600 = vmatprep.subr.mxu0 0.0
    %1601 = vmatpush1.msra.mxu0 0.0
    %1602 = vmatprep.subr.mxu0 0.0
    %1603 = vmatpush1.msra.mxu0 0.0
    %1604 = vmatprep.subr.mxu0 0.0
    %1605 = vmatpush1.msra.mxu0 0.0
    %1606 = vmatprep.subr.mxu0 0.0
    %1607 = vmatpush1.msra.mxu0 0.0
    %1608 = vmatprep.subr.mxu0 0.0
    %1609 = vmatpush1.msra.mxu0 0.0
    %1610 = vmatprep.subr.mxu0 0.0
    %1611 = vmatpush1.msra.mxu0 0.0
    %1612 = vmatprep.subr.mxu0 0.0
    %1613 = vmatpush1.msra.mxu0 0.0
    %1614 = vmatprep.subr.mxu0 0.0
    %1615 = vmatpush1.msra.mxu0 0.0
    %1616 = vmatprep.subr.mxu0 0.0
    %1617 = vmatpush1.msra.mxu0 0.0
    %1618 = vmatprep.subr.mxu0 0.0
    %1619 = vmatpush1.msra.mxu0 0.0
    %1620 = vmatprep.subr.mxu0 0.0
    %1621 = vmatpush1.msra.mxu0 0.0
    %1622 = vmatprep.subr.mxu0 0.0
    %1623 = vmatpush1.msra.mxu0 0.0
    %1624 = vmatprep.subr.mxu0 0.0
    %1625 = vmatpush1.msra.mxu0 0.0
    %1626 = vmatprep.subr.mxu0 0.0
    %1627 = vmatpush1.msra.mxu0 %v1597
    %1628 = vmatprep.subr.mxu0 0.0
    %1629 = vmatpush1.msra.mxu0 %v1596
    %1630 = vmatprep.subr.mxu0 0.0
    %1631 = vmatpush2.msra.mxu0 0.0
    %1632 = vmatprep.subr.mxu0 0.0
    %1633 = vmatpush2.msra.mxu0 0.0
    %1634 = vmatprep.subr.mxu0 0.0
    %1635 = vmatpush2.msra.mxu0 0.0
    %1636 = vmatprep.subr.mxu0 0.0
    %1637 = vmatpush2.msra.mxu0 0.0
    %1638 = vmatprep.subr.mxu0 0.0
    %1639 = vmatpush2.msra.mxu0 0.0
    %1640 = vmatprep.subr.mxu0 0.0
    %1641 = vmatpush2.msra.mxu0 0.0
    %1642 = vmatprep.subr.mxu0 0.0
    %1643 = vmatpush2.msra.mxu0 0.0
    %1644 = vmatprep.subr.mxu0 0.0
    %1645 = vmatpush2.msra.mxu0 0.0
    %1646 = vmatprep.subr.mxu0 0.0
    %1647 = vmatpush2.msra.mxu0 0.0
    %1648 = vmatprep.subr.mxu0 0.0
    %1649 = vmatpush2.msra.mxu0 0.0
    %1650 = vmatprep.subr.mxu0 0.0
    %1651 = vmatpush2.msra.mxu0 0.0
    %1652 = vmatprep.subr.mxu0 0.0
    %1653 = vmatpush2.msra.mxu0 0.0
    %1654 = vmatprep.subr.mxu0 0.0
    %1655 = vmatpush2.msra.mxu0 0.0
    %1656 = vmatprep.subr.mxu0 0.0
    %1657 = vmatpush2.msra.mxu0 0.0
    %1658 = vmatprep.subr.mxu0 0.0
    %1659 = vmatpush2.msra.mxu0 0.0
    %1660 = vmatprep.subr.mxu0 0.0
    %1661 = vmatpush2.msra.mxu0 0.0
    %1662 = vmatprep.mubr.f32.mxu0 0.0
    %1663 = vmatmul.mubr.f32.gmra.mxu0 %v1435
    %v1664 = vpop.f32.mrf.mxu0
    %v1665 = vadd.f32 0.0, %v1664
    %v1666 = vpop.f32.mrf.mxu0
    %1667 = vmatprep.mubr.f32.mxu0 0.0
    %1668 = vmatmul.mubr.f32.gmra.mxu0 %v1438
    %v1669 = vpop.f32.mrf.mxu0
    %v1670 = vadd.f32 0.0, %v1669
    %v1671 = vpop.f32.mrf.mxu0
    %1672 = vdwg.mxu0
    %v1674 = vsel %vm162, %v1665, 0
    %v1677 = vsel %vm162, %v1670, 0
    %1679 = vmatprep.subr.mxu0 0.0
    %1680 = vmatpush1.msra.mxu0 0.0
    %1681 = vmatprep.subr.mxu0 0.0
    %1682 = vmatpush1.msra.mxu0 0.0
    %1683 = vmatprep.subr.mxu0 0.0
    %1684 = vmatpush1.msra.mxu0 0.0
    %1685 = vmatprep.subr.mxu0 0.0
    %1686 = vmatpush1.msra.mxu0 0.0
    %1687 = vmatprep.subr.mxu0 0.0
    %1688 = vmatpush1.msra.mxu0 0.0
    %1689 = vmatprep.subr.mxu0 0.0
    %1690 = vmatpush1.msra.mxu0 0.0
    %1691 = vmatprep.subr.mxu0 0.0
    %1692 = vmatpush1.msra.mxu0 0.0
    %1693 = vmatprep.subr.mxu0 0.0
    %1694 = vmatpush1.msra.mxu0 0.0
    %1695 = vmatprep.subr.mxu0 0.0
    %1696 = vmatpush1.msra.mxu0 %v1432
    %1697 = vmatprep.subr.mxu0 0.0
    %1698 = vmatpush1.msra.mxu0 %v1431
    %1699 = vmatprep.subr.mxu0 0.0
    %1700 = vmatpush1.msra.mxu0 %v1430
    %1701 = vmatprep.subr.mxu0 0.0
    %1702 = vmatpush1.msra.mxu0 %v1429
    %1703 = vmatprep.subr.mxu0 0.0
    %1704 = vmatpush1.msra.mxu0 %v1428
    %1705 = vmatprep.subr.mxu0 0.0
    %1706 = vmatpush1.msra.mxu0 %v1427
    %1707 = vmatprep.subr.mxu0 0.0
    %1708 = vmatpush1.msra.mxu0 %v1426
    %1709 = vmatprep.subr.mxu0 0.0
    %1710 = vmatpush1.msra.mxu0 %v1425
    %1711 = vmatprep.subr.mxu0 0.0
    %1712 = vmatpush2.msra.mxu0 0.0
    %1713 = vmatprep.subr.mxu0 0.0
    %1714 = vmatpush2.msra.mxu0 0.0
    %1715 = vmatprep.subr.mxu0 0.0
    %1716 = vmatpush2.msra.mxu0 0.0
    %1717 = vmatprep.subr.mxu0 0.0
    %1718 = vmatpush2.msra.mxu0 0.0
    %1719 = vmatprep.subr.mxu0 0.0
    %1720 = vmatpush2.msra.mxu0 0.0
    %1721 = vmatprep.subr.mxu0 0.0
    %1722 = vmatpush2.msra.mxu0 0.0
    %1723 = vmatprep.subr.mxu0 0.0
    %1724 = vmatpush2.msra.mxu0 0.0
    %1725 = vmatprep.subr.mxu0 0.0
    %1726 = vmatpush2.msra.mxu0 0.0
    %1727 = vmatprep.subr.mxu0 0.0
    %1728 = vmatpush2.msra.mxu0 0.0
    %1729 = vmatprep.subr.mxu0 0.0
    %1730 = vmatpush2.msra.mxu0 0.0
    %1731 = vmatprep.subr.mxu0 0.0
    %1732 = vmatpush2.msra.mxu0 0.0
    %1733 = vmatprep.subr.mxu0 0.0
    %1734 = vmatpush2.msra.mxu0 0.0
    %1735 = vmatprep.subr.mxu0 0.0
    %1736 = vmatpush2.msra.mxu0 0.0
    %1737 = vmatprep.subr.mxu0 0.0
    %1738 = vmatpush2.msra.mxu0 0.0
    %1739 = vmatprep.subr.mxu0 0.0
    %1740 = vmatpush2.msra.mxu0 0.0
    %1741 = vmatprep.subr.mxu0 0.0
    %1742 = vmatpush2.msra.mxu0 0.0
    %1743 = vmatprep.mubr.f32.mxu0 0.0
    %1744 = vmatmul.mubr.f32.gmra.mxu0 %v1674
    %v1745 = vpop.f32.mrf.mxu0
    %v1746 = vadd.f32 0.0, %v1745
    %v1747 = vpop.f32.mrf.mxu0
    %1748 = vmatprep.mubr.f32.mxu0 0.0
    %1749 = vmatmul.mubr.f32.gmra.mxu0 %v1677
    %v1750 = vpop.f32.mrf.mxu0
    %v1751 = vadd.f32 0.0, %v1750
    %v1752 = vpop.f32.mrf.mxu0
    %1753 = vdwg.mxu0
    %v1754 = vmul.f32 %v1588, %v1588
    %v1755 = vmul.f32 %v1593, %v1593
    %v1756 = vsub.f32 %v1746, %v1754
    %v1757 = vsub.f32 %v1751, %v1755
    %v1758 = vsub.f32 %v1415, %v1588
    %v1759 = vsub.f32 %v1420, %v1593
    %v1760 = vadd.f32 %v1756, 1e-05
    %v1761 = vadd.f32 %v1757, 1e-05
    %v1762 = vrsqrt.pop %v1760
    %v1763 = vrsqrt.pop %v1761
    %v1764 = vmul.f32 %v1758, %v1762
    %v1765 = vmul.f32 %v1759, %v1763
    %v1766 = vld [vmem:[#allocation2 + $0x278] sm:$0x1]
    %vm1767 = vcmp.ge.f32.partialorder %v1764, 0.0
    %vm1768 = vcmp.ge.f32.partialorder %v1765, 0.0
    %s1770 = vtos %v1766
    %v1771 = vstv %s1770
    %v1773 = vmul.f32 %v1771, %v1764
    %v1774 = vmul.f32 %v1771, %v1765
    %v1775 = vsel %vm1767, %v1764, %v1773
    %v1776 = vsel %vm1768, %v1765, %v1774
    %s1777 = sshll.u32 %s155, 4
    %1778 = dma.done %s51, %s1777
    %v1779 = vld [vmem:[#allocation2 + $0x280] sm:$0xff]
    %v1781 = vsel %vm1433, %v1779, 0
    %1783 = vmatprep.subr.mxu0 0.0
    %1784 = vmatpush1.msra.mxu0 0.0
    %1785 = vmatprep.subr.mxu0 0.0
    %1786 = vmatpush1.msra.mxu0 0.0
    %1787 = vmatprep.subr.mxu0 0.0
    %1788 = vmatpush1.msra.mxu0 0.0
    %1789 = vmatprep.subr.mxu0 0.0
    %1790 = vmatpush1.msra.mxu0 0.0
    %1791 = vmatprep.subr.mxu0 0.0
    %1792 = vmatpush1.msra.mxu0 0.0
    %1793 = vmatprep.subr.mxu0 0.0
    %1794 = vmatpush1.msra.mxu0 0.0
    %1795 = vmatprep.subr.mxu0 0.0
    %1796 = vmatpush1.msra.mxu0 0.0
    %1797 = vmatprep.subr.mxu0 0.0
    %1798 = vmatpush1.msra.mxu0 0.0
    %1799 = vmatprep.subr.mxu0 0.0
    %1800 = vmatpush1.msra.mxu0 0.0
    %1801 = vmatprep.subr.mxu0 0.0
    %1802 = vmatpush1.msra.mxu0 0.0
    %1803 = vmatprep.subr.mxu0 0.0
    %1804 = vmatpush1.msra.mxu0 0.0
    %1805 = vmatprep.subr.mxu0 0.0
    %1806 = vmatpush1.msra.mxu0 0.0
    %1807 = vmatprep.subr.mxu0 0.0
    %1808 = vmatpush1.msra.mxu0 0.0
    %1809 = vmatprep.subr.mxu0 0.0
    %1810 = vmatpush1.msra.mxu0 0.0
    %1811 = vmatprep.subr.mxu0 0.0
    %1812 = vmatpush1.msra.mxu0 %v1776
    %1813 = vmatprep.subr.mxu0 0.0
    %1814 = vmatpush1.msra.mxu0 %v1775
    %1815 = vmatprep.subr.mxu0 0.0
    %1816 = vmatpush2.msra.mxu0 0.0
    %1817 = vmatprep.subr.mxu0 0.0
    %1818 = vmatpush2.msra.mxu0 0.0
    %1819 = vmatprep.subr.mxu0 0.0
    %1820 = vmatpush2.msra.mxu0 0.0
    %1821 = vmatprep.subr.mxu0 0.0
    %1822 = vmatpush2.msra.mxu0 0.0
    %1823 = vmatprep.subr.mxu0 0.0
    %1824 = vmatpush2.msra.mxu0 0.0
    %1825 = vmatprep.subr.mxu0 0.0
    %1826 = vmatpush2.msra.mxu0 0.0
    %1827 = vmatprep.subr.mxu0 0.0
    %1828 = vmatpush2.msra.mxu0 0.0
    %1829 = vmatprep.subr.mxu0 0.0
    %1830 = vmatpush2.msra.mxu0 0.0
    %1831 = vmatprep.subr.mxu0 0.0
    %1832 = vmatpush2.msra.mxu0 0.0
    %1833 = vmatprep.subr.mxu0 0.0
    %1834 = vmatpush2.msra.mxu0 0.0
    %1835 = vmatprep.subr.mxu0 0.0
    %1836 = vmatpush2.msra.mxu0 0.0
    %1837 = vmatprep.subr.mxu0 0.0
    %1838 = vmatpush2.msra.mxu0 0.0
    %1839 = vmatprep.subr.mxu0 0.0
    %1840 = vmatpush2.msra.mxu0 0.0
    %1841 = vmatprep.subr.mxu0 0.0
    %1842 = vmatpush2.msra.mxu0 0.0
    %1843 = vmatprep.subr.mxu0 0.0
    %1844 = vmatpush2.msra.mxu0 0.0
    %1845 = vmatprep.subr.mxu0 0.0
    %1846 = vmatpush2.msra.mxu0 0.0
    %1847 = vmatprep.mubr.f32.mxu0 0.0
    %1848 = vmatmul.mubr.f32.gmra.mxu0 %v1781
    %v1849 = vpop.f32.mrf.mxu0
    %v1850 = vadd.f32 0.0, %v1849
    %v1851 = vpop.f32.mrf.mxu0
    %1852 = vdwg.mxu0
    %v1853 = vld [vmem:[#allocation2 + $0x288] sm:$0xff]
    %v1855 = vsel %vm1433, %v1853, 0
    %1857 = vmatprep.subr.mxu0 0.0
    %1858 = vmatpush1.msra.mxu0 0.0
    %1859 = vmatprep.subr.mxu0 0.0
    %1860 = vmatpush1.msra.mxu0 0.0
    %1861 = vmatprep.subr.mxu0 0.0
    %1862 = vmatpush1.msra.mxu0 0.0
    %1863 = vmatprep.subr.mxu0 0.0
    %1864 = vmatpush1.msra.mxu0 0.0
    %1865 = vmatprep.subr.mxu0 0.0
    %1866 = vmatpush1.msra.mxu0 0.0
    %1867 = vmatprep.subr.mxu0 0.0
    %1868 = vmatpush1.msra.mxu0 0.0
    %1869 = vmatprep.subr.mxu0 0.0
    %1870 = vmatpush1.msra.mxu0 0.0
    %1871 = vmatprep.subr.mxu0 0.0
    %1872 = vmatpush1.msra.mxu0 0.0
    %1873 = vmatprep.subr.mxu0 0.0
    %1874 = vmatpush1.msra.mxu0 0.0
    %1875 = vmatprep.subr.mxu0 0.0
    %1876 = vmatpush1.msra.mxu0 0.0
    %1877 = vmatprep.subr.mxu0 0.0
    %1878 = vmatpush1.msra.mxu0 0.0
    %1879 = vmatprep.subr.mxu0 0.0
    %1880 = vmatpush1.msra.mxu0 0.0
    %1881 = vmatprep.subr.mxu0 0.0
    %1882 = vmatpush1.msra.mxu0 0.0
    %1883 = vmatprep.subr.mxu0 0.0
    %1884 = vmatpush1.msra.mxu0 0.0
    %1885 = vmatprep.subr.mxu0 0.0
    %1886 = vmatpush1.msra.mxu0 %v1776
    %1887 = vmatprep.subr.mxu0 0.0
    %1888 = vmatpush1.msra.mxu0 %v1775
    %1889 = vmatprep.subr.mxu0 0.0
    %1890 = vmatpush2.msra.mxu0 0.0
    %1891 = vmatprep.subr.mxu0 0.0
    %1892 = vmatpush2.msra.mxu0 0.0
    %1893 = vmatprep.subr.mxu0 0.0
    %1894 = vmatpush2.msra.mxu0 0.0
    %1895 = vmatprep.subr.mxu0 0.0
    %1896 = vmatpush2.msra.mxu0 0.0
    %1897 = vmatprep.subr.mxu0 0.0
    %1898 = vmatpush2.msra.mxu0 0.0
    %1899 = vmatprep.subr.mxu0 0.0
    %1900 = vmatpush2.msra.mxu0 0.0
    %1901 = vmatprep.subr.mxu0 0.0
    %1902 = vmatpush2.msra.mxu0 0.0
    %1903 = vmatprep.subr.mxu0 0.0
    %1904 = vmatpush2.msra.mxu0 0.0
    %1905 = vmatprep.subr.mxu0 0.0
    %1906 = vmatpush2.msra.mxu0 0.0
    %1907 = vmatprep.subr.mxu0 0.0
    %1908 = vmatpush2.msra.mxu0 0.0
    %1909 = vmatprep.subr.mxu0 0.0
    %1910 = vmatpush2.msra.mxu0 0.0
    %1911 = vmatprep.subr.mxu0 0.0
    %1912 = vmatpush2.msra.mxu0 0.0
    %1913 = vmatprep.subr.mxu0 0.0
    %1914 = vmatpush2.msra.mxu0 0.0
    %1915 = vmatprep.subr.mxu0 0.0
    %1916 = vmatpush2.msra.mxu0 0.0
    %1917 = vmatprep.subr.mxu0 0.0
    %1918 = vmatpush2.msra.mxu0 0.0
    %1919 = vmatprep.subr.mxu0 0.0
    %1920 = vmatpush2.msra.mxu0 0.0
    %1921 = vmatprep.mubr.f32.mxu0 0.0
    %1922 = vmatmul.mubr.f32.gmra.mxu0 %v1855
    %v1923 = vpop.f32.mrf.mxu0
    %v1924 = vadd.f32 0.0, %v1923
    %v1925 = vpop.f32.mrf.mxu0
    %1926 = vdwg.mxu0
    %v1927 = vld [vmem:[#allocation2 + $0x290] sm:$0xff]
    %v1929 = vsel %vm1433, %v1927, 0
    %1931 = vmatprep.subr.mxu0 0.0
    %1932 = vmatpush1.msra.mxu0 0.0
    %1933 = vmatprep.subr.mxu0 0.0
    %1934 = vmatpush1.msra.mxu0 0.0
    %1935 = vmatprep.subr.mxu0 0.0
    %1936 = vmatpush1.msra.mxu0 0.0
    %1937 = vmatprep.subr.mxu0 0.0
    %1938 = vmatpush1.msra.mxu0 0.0
    %1939 = vmatprep.subr.mxu0 0.0
    %1940 = vmatpush1.msra.mxu0 0.0
    %1941 = vmatprep.subr.mxu0 0.0
    %1942 = vmatpush1.msra.mxu0 0.0
    %1943 = vmatprep.subr.mxu0 0.0
    %1944 = vmatpush1.msra.mxu0 0.0
    %1945 = vmatprep.subr.mxu0 0.0
    %1946 = vmatpush1.msra.mxu0 0.0
    %1947 = vmatprep.subr.mxu0 0.0
    %1948 = vmatpush1.msra.mxu0 0.0
    %1949 = vmatprep.subr.mxu0 0.0
    %1950 = vmatpush1.msra.mxu0 0.0
    %1951 = vmatprep.subr.mxu0 0.0
    %1952 = vmatpush1.msra.mxu0 0.0
    %1953 = vmatprep.subr.mxu0 0.0
    %1954 = vmatpush1.msra.mxu0 0.0
    %1955 = vmatprep.subr.mxu0 0.0
    %1956 = vmatpush1.msra.mxu0 0.0
    %1957 = vmatprep.subr.mxu0 0.0
    %1958 = vmatpush1.msra.mxu0 0.0
    %1959 = vmatprep.subr.mxu0 0.0
    %1960 = vmatpush1.msra.mxu0 %v1776
    %1961 = vmatprep.subr.mxu0 0.0
    %1962 = vmatpush1.msra.mxu0 %v1775
    %1963 = vmatprep.subr.mxu0 0.0
    %1964 = vmatpush2.msra.mxu0 0.0
    %1965 = vmatprep.subr.mxu0 0.0
    %1966 = vmatpush2.msra.mxu0 0.0
    %1967 = vmatprep.subr.mxu0 0.0
    %1968 = vmatpush2.msra.mxu0 0.0
    %1969 = vmatprep.subr.mxu0 0.0
    %1970 = vmatpush2.msra.mxu0 0.0
    %1971 = vmatprep.subr.mxu0 0.0
    %1972 = vmatpush2.msra.mxu0 0.0
    %1973 = vmatprep.subr.mxu0 0.0
    %1974 = vmatpush2.msra.mxu0 0.0
    %1975 = vmatprep.subr.mxu0 0.0
    %1976 = vmatpush2.msra.mxu0 0.0
    %1977 = vmatprep.subr.mxu0 0.0
    %1978 = vmatpush2.msra.mxu0 0.0
    %1979 = vmatprep.subr.mxu0 0.0
    %1980 = vmatpush2.msra.mxu0 0.0
    %1981 = vmatprep.subr.mxu0 0.0
    %1982 = vmatpush2.msra.mxu0 0.0
    %1983 = vmatprep.subr.mxu0 0.0
    %1984 = vmatpush2.msra.mxu0 0.0
    %1985 = vmatprep.subr.mxu0 0.0
    %1986 = vmatpush2.msra.mxu0 0.0
    %1987 = vmatprep.subr.mxu0 0.0
    %1988 = vmatpush2.msra.mxu0 0.0
    %1989 = vmatprep.subr.mxu0 0.0
    %1990 = vmatpush2.msra.mxu0 0.0
    %1991 = vmatprep.subr.mxu0 0.0
    %1992 = vmatpush2.msra.mxu0 0.0
    %1993 = vmatprep.subr.mxu0 0.0
    %1994 = vmatpush2.msra.mxu0 0.0
    %1995 = vmatprep.mubr.f32.mxu0 0.0
    %1996 = vmatmul.mubr.f32.gmra.mxu0 %v1929
    %v1997 = vpop.f32.mrf.mxu0
    %v1998 = vadd.f32 0.0, %v1997
    %v1999 = vpop.f32.mrf.mxu0
    %2000 = vdwg.mxu0
    %2002 = vrot.lane.b32.xlu0 %v1924, 64
    %v2003 = vpop.permute.xlu0 %2002
    %v2005 = vsel %vm162, %v1850, %v2003
    %v2006 = vld [vmem:[#allocation2 + $0x298] sm:$0xff]
    %v2007 = vld [vmem:[#allocation2 + $0x2a0] sm:$0xff]
    %v2008 = vld [vmem:[#allocation2 + $0x2a8] sm:$0xff]
    %v2009 = vld [vmem:[#allocation2 + $0x2b0] sm:$0xff]
    %v2010 = vld [vmem:[#allocation2 + $0x2b8] sm:$0xff]
    %v2011 = vld [vmem:[#allocation2 + $0x2c0] sm:$0xff]
    %v2012 = vld [vmem:[#allocation2 + $0x2c8] sm:$0xff]
    %v2013 = vld [vmem:[#allocation2 + $0x2d0] sm:$0xff]
    %v2014 = vld [vmem:[#allocation2 + $0x2d8] sm:$0xff]
    %v2015 = vld [vmem:[#allocation2 + $0x2e0] sm:$0xff]
    %v2016 = vld [vmem:[#allocation2 + $0x2e8] sm:$0xff]
    %v2017 = vld [vmem:[#allocation2 + $0x2f0] sm:$0xff]
    %v2018 = vld [vmem:[#allocation2 + $0x2f8] sm:$0xff]
    %v2019 = vld [vmem:[#allocation2 + $0x300] sm:$0xff]
    %v2020 = vld [vmem:[#allocation2 + $0x308] sm:$0xff]
    %v2021 = vld [vmem:[#allocation2 + $0x310] sm:$0xff]
    %v2022 = vld [vmem:[#allocation2 + $0x318] sm:$0xff]
    %v2023 = vld [vmem:[#allocation2 + $0x320] sm:$0xff]
    %v2024 = vld [vmem:[#allocation2 + $0x328] sm:$0xff]
    %v2025 = vld [vmem:[#allocation2 + $0x330] sm:$0xff]
    %v2026 = vld [vmem:[#allocation2 + $0x338] sm:$0xff]
    %v2027 = vld [vmem:[#allocation2 + $0x340] sm:$0xff]
    %v2028 = vld [vmem:[#allocation2 + $0x348] sm:$0xff]
    %v2029 = vld [vmem:[#allocation2 + $0x350] sm:$0xff]
    %v2030 = vld [vmem:[#allocation2 + $0x358] sm:$0x1]
    %v2031 = vlaneseq
    %v2032 = vshrl.u32 %v2031, 7
    %v2033 = vsub.s32 0, %v2032
    %v2034 = vrot.slane %v2030, %v2033
    %v2036 = vsel %vm162, %v1998, 0
    %2038 = vmatprep.subr.mxu0 0.0
    %2039 = vmatpush1.msra.mxu0 %v2021
    %2040 = vmatprep.subr.mxu0 0.0
    %2041 = vmatpush1.msra.mxu0 %v2020
    %2042 = vmatprep.subr.mxu0 0.0
    %2043 = vmatpush1.msra.mxu0 %v2019
    %2044 = vmatprep.subr.mxu0 0.0
    %2045 = vmatpush1.msra.mxu0 %v2018
    %2046 = vmatprep.subr.mxu0 0.0
    %2047 = vmatpush1.msra.mxu0 %v2017
    %2048 = vmatprep.subr.mxu0 0.0
    %2049 = vmatpush1.msra.mxu0 %v2016
    %2050 = vmatprep.subr.mxu0 0.0
    %2051 = vmatpush1.msra.mxu0 %v2015
    %2052 = vmatprep.subr.mxu0 0.0
    %2053 = vmatpush1.msra.mxu0 %v2014
    %2054 = vmatprep.subr.mxu0 0.0
    %2055 = vmatpush1.msra.mxu0 %v2013
    %2056 = vmatprep.subr.mxu0 0.0
    %2057 = vmatpush1.msra.mxu0 %v2012
    %2058 = vmatprep.subr.mxu0 0.0
    %2059 = vmatpush1.msra.mxu0 %v2011
    %2060 = vmatprep.subr.mxu0 0.0
    %2061 = vmatpush1.msra.mxu0 %v2010
    %2062 = vmatprep.subr.mxu0 0.0
    %2063 = vmatpush1.msra.mxu0 %v2009
    %2064 = vmatprep.subr.mxu0 0.0
    %2065 = vmatpush1.msra.mxu0 %v2008
    %2066 = vmatprep.subr.mxu0 0.0
    %2067 = vmatpush1.msra.mxu0 %v2007
    %2068 = vmatprep.subr.mxu0 0.0
    %2069 = vmatpush1.msra.mxu0 %v2006
    %2070 = vmatprep.subr.mxu0 0.0
    %2071 = vmatpush2.msra.mxu0 0.0
    %2072 = vmatprep.subr.mxu0 0.0
    %2073 = vmatpush2.msra.mxu0 0.0
    %2074 = vmatprep.subr.mxu0 0.0
    %2075 = vmatpush2.msra.mxu0 0.0
    %2076 = vmatprep.subr.mxu0 0.0
    %2077 = vmatpush2.msra.mxu0 0.0
    %2078 = vmatprep.subr.mxu0 0.0
    %2079 = vmatpush2.msra.mxu0 0.0
    %2080 = vmatprep.subr.mxu0 0.0
    %2081 = vmatpush2.msra.mxu0 0.0
    %2082 = vmatprep.subr.mxu0 0.0
    %2083 = vmatpush2.msra.mxu0 0.0
    %2084 = vmatprep.subr.mxu0 0.0
    %2085 = vmatpush2.msra.mxu0 0.0
    %2086 = vmatprep.subr.mxu0 0.0
    %2087 = vmatpush2.msra.mxu0 %v2029
    %2088 = vmatprep.subr.mxu0 0.0
    %2089 = vmatpush2.msra.mxu0 %v2028
    %2090 = vmatprep.subr.mxu0 0.0
    %2091 = vmatpush2.msra.mxu0 %v2027
    %2092 = vmatprep.subr.mxu0 0.0
    %2093 = vmatpush2.msra.mxu0 %v2026
    %2094 = vmatprep.subr.mxu0 0.0
    %2095 = vmatpush2.msra.mxu0 %v2025
    %2096 = vmatprep.subr.mxu0 0.0
    %2097 = vmatpush2.msra.mxu0 %v2024
    %2098 = vmatprep.subr.mxu0 0.0
    %2099 = vmatpush2.msra.mxu0 %v2023
    %2100 = vmatprep.subr.mxu0 0.0
    %2101 = vmatpush2.msra.mxu0 %v2022
    %2102 = vmatprep.mubr.f32.mxu0 %v2036
    %2103 = vmatmul.mubr.f32.gmra.mxu0 %v2005
    %v2104 = vpop.f32.mrf.mxu0
    %v2105 = vadd.f32 %v2034, %v2104
    %v2106 = vpop.f32.mrf.mxu0
    %2107 = vdwg.mxu0
    %v2108 = vld [vmem:[#allocation2 + $0x360] sm:$0xff]
    %v2109 = vld [vmem:[#allocation2 + $0x368] sm:$0xff]
    %v2110 = vld [vmem:[#allocation2 + $0x370] sm:$0xff]
    %v2111 = vld [vmem:[#allocation2 + $0x378] sm:$0xff]
    %v2112 = vld [vmem:[#allocation2 + $0x380] sm:$0xff]
    %v2113 = vld [vmem:[#allocation2 + $0x388] sm:$0xff]
    %v2114 = vld [vmem:[#allocation2 + $0x390] sm:$0xff]
    %v2115 = vld [vmem:[#allocation2 + $0x398] sm:$0xff]
    %v2116 = vld [vmem:[#allocation2 + $0x3a0] sm:$0xff]
    %vm2117 = vcmask 64512
    %v2119 = vsel %vm2117, %v2108, 0
    %2121 = vmatprep.subr.mxu0 0.0
    %2122 = vmatpush1.msra.mxu0 0.0
    %2123 = vmatprep.subr.mxu0 0.0
    %2124 = vmatpush1.msra.mxu0 0.0
    %2125 = vmatprep.subr.mxu0 0.0
    %2126 = vmatpush1.msra.mxu0 0.0
    %2127 = vmatprep.subr.mxu0 0.0
    %2128 = vmatpush1.msra.mxu0 0.0
    %2129 = vmatprep.subr.mxu0 0.0
    %2130 = vmatpush1.msra.mxu0 0.0
    %2131 = vmatprep.subr.mxu0 0.0
    %2132 = vmatpush1.msra.mxu0 0.0
    %2133 = vmatprep.subr.mxu0 0.0
    %2134 = vmatpush1.msra.mxu0 0.0
    %2135 = vmatprep.subr.mxu0 0.0
    %2136 = vmatpush1.msra.mxu0 0.0
    %2137 = vmatprep.subr.mxu0 0.0
    %2138 = vmatpush1.msra.mxu0 0.0
    %2139 = vmatprep.subr.mxu0 0.0
    %2140 = vmatpush1.msra.mxu0 0.0
    %2141 = vmatprep.subr.mxu0 0.0
    %2142 = vmatpush1.msra.mxu0 0.0
    %2143 = vmatprep.subr.mxu0 0.0
    %2144 = vmatpush1.msra.mxu0 0.0
    %2145 = vmatprep.subr.mxu0 0.0
    %2146 = vmatpush1.msra.mxu0 0.0
    %2147 = vmatprep.subr.mxu0 0.0
    %2148 = vmatpush1.msra.mxu0 0.0
    %2149 = vmatprep.subr.mxu0 0.0
    %2150 = vmatpush1.msra.mxu0 0.0
    %2151 = vmatprep.subr.mxu0 0.0
    %2152 = vmatpush1.msra.mxu0 %v2105
    %2153 = vmatprep.subr.mxu0 0.0
    %2154 = vmatpush2.msra.mxu0 0.0
    %2155 = vmatprep.subr.mxu0 0.0
    %2156 = vmatpush2.msra.mxu0 0.0
    %2157 = vmatprep.subr.mxu0 0.0
    %2158 = vmatpush2.msra.mxu0 0.0
    %2159 = vmatprep.subr.mxu0 0.0
    %2160 = vmatpush2.msra.mxu0 0.0
    %2161 = vmatprep.subr.mxu0 0.0
    %2162 = vmatpush2.msra.mxu0 0.0
    %2163 = vmatprep.subr.mxu0 0.0
    %2164 = vmatpush2.msra.mxu0 0.0
    %2165 = vmatprep.subr.mxu0 0.0
    %2166 = vmatpush2.msra.mxu0 0.0
    %2167 = vmatprep.subr.mxu0 0.0
    %2168 = vmatpush2.msra.mxu0 0.0
    %2169 = vmatprep.subr.mxu0 0.0
    %2170 = vmatpush2.msra.mxu0 0.0
    %2171 = vmatprep.subr.mxu0 0.0
    %2172 = vmatpush2.msra.mxu0 0.0
    %2173 = vmatprep.subr.mxu0 0.0
    %2174 = vmatpush2.msra.mxu0 0.0
    %2175 = vmatprep.subr.mxu0 0.0
    %2176 = vmatpush2.msra.mxu0 0.0
    %2177 = vmatprep.subr.mxu0 0.0
    %2178 = vmatpush2.msra.mxu0 0.0
    %2179 = vmatprep.subr.mxu0 0.0
    %2180 = vmatpush2.msra.mxu0 0.0
    %2181 = vmatprep.subr.mxu0 0.0
    %2182 = vmatpush2.msra.mxu0 0.0
    %2183 = vmatprep.subr.mxu0 0.0
    %2184 = vmatpush2.msra.mxu0 0.0
    %2185 = vmatprep.mubr.f32.mxu0 0.0
    %2186 = vmatmul.mubr.f32.gmra.mxu0 %v2119
    %v2187 = vpop.f32.mrf.mxu0
    %v2188 = vadd.f32 0.0, %v2187
    %v2189 = vpop.f32.mrf.mxu0
    %2190 = vdwg.mxu0
    %v2192 = vsel %vm162, %v2188, 0
    %2194 = vmatprep.subr.mxu0 0.0
    %2195 = vmatpush1.msra.mxu0 0.0
    %2196 = vmatprep.subr.mxu0 0.0
    %2197 = vmatpush1.msra.mxu0 0.0
    %2198 = vmatprep.subr.mxu0 0.0
    %2199 = vmatpush1.msra.mxu0 0.0
    %2200 = vmatprep.subr.mxu0 0.0
    %2201 = vmatpush1.msra.mxu0 0.0
    %2202 = vmatprep.subr.mxu0 0.0
    %2203 = vmatpush1.msra.mxu0 0.0
    %2204 = vmatprep.subr.mxu0 0.0
    %2205 = vmatpush1.msra.mxu0 0.0
    %2206 = vmatprep.subr.mxu0 0.0
    %2207 = vmatpush1.msra.mxu0 0.0
    %2208 = vmatprep.subr.mxu0 0.0
    %2209 = vmatpush1.msra.mxu0 0.0
    %2210 = vmatprep.subr.mxu0 0.0
    %2211 = vmatpush1.msra.mxu0 %v2116
    %2212 = vmatprep.subr.mxu0 0.0
    %2213 = vmatpush1.msra.mxu0 %v2115
    %2214 = vmatprep.subr.mxu0 0.0
    %2215 = vmatpush1.msra.mxu0 %v2114
    %2216 = vmatprep.subr.mxu0 0.0
    %2217 = vmatpush1.msra.mxu0 %v2113
    %2218 = vmatprep.subr.mxu0 0.0
    %2219 = vmatpush1.msra.mxu0 %v2112
    %2220 = vmatprep.subr.mxu0 0.0
    %2221 = vmatpush1.msra.mxu0 %v2111
    %2222 = vmatprep.subr.mxu0 0.0
    %2223 = vmatpush1.msra.mxu0 %v2110
    %2224 = vmatprep.subr.mxu0 0.0
    %2225 = vmatpush1.msra.mxu0 %v2109
    %2226 = vmatprep.subr.mxu0 0.0
    %2227 = vmatpush2.msra.mxu0 0.0
    %2228 = vmatprep.subr.mxu0 0.0
    %2229 = vmatpush2.msra.mxu0 0.0
    %2230 = vmatprep.subr.mxu0 0.0
    %2231 = vmatpush2.msra.mxu0 0.0
    %2232 = vmatprep.subr.mxu0 0.0
    %2233 = vmatpush2.msra.mxu0 0.0
    %2234 = vmatprep.subr.mxu0 0.0
    %2235 = vmatpush2.msra.mxu0 0.0
    %2236 = vmatprep.subr.mxu0 0.0
    %2237 = vmatpush2.msra.mxu0 0.0
    %2238 = vmatprep.subr.mxu0 0.0
    %2239 = vmatpush2.msra.mxu0 0.0
    %2240 = vmatprep.subr.mxu0 0.0
    %2241 = vmatpush2.msra.mxu0 0.0
    %2242 = vmatprep.subr.mxu0 0.0
    %2243 = vmatpush2.msra.mxu0 0.0
    %2244 = vmatprep.subr.mxu0 0.0
    %2245 = vmatpush2.msra.mxu0 0.0
    %2246 = vmatprep.subr.mxu0 0.0
    %2247 = vmatpush2.msra.mxu0 0.0
    %2248 = vmatprep.subr.mxu0 0.0
    %2249 = vmatpush2.msra.mxu0 0.0
    %2250 = vmatprep.subr.mxu0 0.0
    %2251 = vmatpush2.msra.mxu0 0.0
    %2252 = vmatprep.subr.mxu0 0.0
    %2253 = vmatpush2.msra.mxu0 0.0
    %2254 = vmatprep.subr.mxu0 0.0
    %2255 = vmatpush2.msra.mxu0 0.0
    %2256 = vmatprep.subr.mxu0 0.0
    %2257 = vmatpush2.msra.mxu0 0.0
    %2258 = vmatprep.mubr.f32.mxu0 0.0
    %2259 = vmatmul.mubr.f32.gmra.mxu0 %v2192
    %v2260 = vpop.f32.mrf.mxu0
    %v2261 = vadd.f32 0.0, %v2260
    %v2262 = vpop.f32.mrf.mxu0
    %2263 = vdwg.mxu0
    %v2264 = vmul.f32 %v2105, %v2105
    %2265 = vmatprep.subr.mxu0 0.0
    %2266 = vmatpush1.msra.mxu0 0.0
    %2267 = vmatprep.subr.mxu0 0.0
    %2268 = vmatpush1.msra.mxu0 0.0
    %2269 = vmatprep.subr.mxu0 0.0
    %2270 = vmatpush1.msra.mxu0 0.0
    %2271 = vmatprep.subr.mxu0 0.0
    %2272 = vmatpush1.msra.mxu0 0.0
    %2273 = vmatprep.subr.mxu0 0.0
    %2274 = vmatpush1.msra.mxu0 0.0
    %2275 = vmatprep.subr.mxu0 0.0
    %2276 = vmatpush1.msra.mxu0 0.0
    %2277 = vmatprep.subr.mxu0 0.0
    %2278 = vmatpush1.msra.mxu0 0.0
    %2279 = vmatprep.subr.mxu0 0.0
    %2280 = vmatpush1.msra.mxu0 0.0
    %2281 = vmatprep.subr.mxu0 0.0
    %2282 = vmatpush1.msra.mxu0 0.0
    %2283 = vmatprep.subr.mxu0 0.0
    %2284 = vmatpush1.msra.mxu0 0.0
    %2285 = vmatprep.subr.mxu0 0.0
    %2286 = vmatpush1.msra.mxu0 0.0
    %2287 = vmatprep.subr.mxu0 0.0
    %2288 = vmatpush1.msra.mxu0 0.0
    %2289 = vmatprep.subr.mxu0 0.0
    %2290 = vmatpush1.msra.mxu0 0.0
    %2291 = vmatprep.subr.mxu0 0.0
    %2292 = vmatpush1.msra.mxu0 0.0
    %2293 = vmatprep.subr.mxu0 0.0
    %2294 = vmatpush1.msra.mxu0 0.0
    %2295 = vmatprep.subr.mxu0 0.0
    %2296 = vmatpush1.msra.mxu0 %v2264
    %2297 = vmatprep.subr.mxu0 0.0
    %2298 = vmatpush2.msra.mxu0 0.0
    %2299 = vmatprep.subr.mxu0 0.0
    %2300 = vmatpush2.msra.mxu0 0.0
    %2301 = vmatprep.subr.mxu0 0.0
    %2302 = vmatpush2.msra.mxu0 0.0
    %2303 = vmatprep.subr.mxu0 0.0
    %2304 = vmatpush2.msra.mxu0 0.0
    %2305 = vmatprep.subr.mxu0 0.0
    %2306 = vmatpush2.msra.mxu0 0.0
    %2307 = vmatprep.subr.mxu0 0.0
    %2308 = vmatpush2.msra.mxu0 0.0
    %2309 = vmatprep.subr.mxu0 0.0
    %2310 = vmatpush2.msra.mxu0 0.0
    %2311 = vmatprep.subr.mxu0 0.0
    %2312 = vmatpush2.msra.mxu0 0.0
    %2313 = vmatprep.subr.mxu0 0.0
    %2314 = vmatpush2.msra.mxu0 0.0
    %2315 = vmatprep.subr.mxu0 0.0
    %2316 = vmatpush2.msra.mxu0 0.0
    %2317 = vmatprep.subr.mxu0 0.0
    %2318 = vmatpush2.msra.mxu0 0.0
    %2319 = vmatprep.subr.mxu0 0.0
    %2320 = vmatpush2.msra.mxu0 0.0
    %2321 = vmatprep.subr.mxu0 0.0
    %2322 = vmatpush2.msra.mxu0 0.0
    %2323 = vmatprep.subr.mxu0 0.0
    %2324 = vmatpush2.msra.mxu0 0.0
    %2325 = vmatprep.subr.mxu0 0.0
    %2326 = vmatpush2.msra.mxu0 0.0
    %2327 = vmatprep.subr.mxu0 0.0
    %2328 = vmatpush2.msra.mxu0 0.0
    %2329 = vmatprep.mubr.f32.mxu0 0.0
    %2330 = vmatmul.mubr.f32.gmra.mxu0 %v2119
    %v2331 = vpop.f32.mrf.mxu0
    %v2332 = vadd.f32 0.0, %v2331
    %v2333 = vpop.f32.mrf.mxu0
    %2334 = vdwg.mxu0
    %v2336 = vsel %vm162, %v2332, 0
    %2338 = vmatprep.subr.mxu0 0.0
    %2339 = vmatpush1.msra.mxu0 0.0
    %2340 = vmatprep.subr.mxu0 0.0
    %2341 = vmatpush1.msra.mxu0 0.0
    %2342 = vmatprep.subr.mxu0 0.0
    %2343 = vmatpush1.msra.mxu0 0.0
    %2344 = vmatprep.subr.mxu0 0.0
    %2345 = vmatpush1.msra.mxu0 0.0
    %2346 = vmatprep.subr.mxu0 0.0
    %2347 = vmatpush1.msra.mxu0 0.0
    %2348 = vmatprep.subr.mxu0 0.0
    %2349 = vmatpush1.msra.mxu0 0.0
    %2350 = vmatprep.subr.mxu0 0.0
    %2351 = vmatpush1.msra.mxu0 0.0
    %2352 = vmatprep.subr.mxu0 0.0
    %2353 = vmatpush1.msra.mxu0 0.0
    %2354 = vmatprep.subr.mxu0 0.0
    %2355 = vmatpush1.msra.mxu0 %v2116
    %2356 = vmatprep.subr.mxu0 0.0
    %2357 = vmatpush1.msra.mxu0 %v2115
    %2358 = vmatprep.subr.mxu0 0.0
    %2359 = vmatpush1.msra.mxu0 %v2114
    %2360 = vmatprep.subr.mxu0 0.0
    %2361 = vmatpush1.msra.mxu0 %v2113
    %2362 = vmatprep.subr.mxu0 0.0
    %2363 = vmatpush1.msra.mxu0 %v2112
    %2364 = vmatprep.subr.mxu0 0.0
    %2365 = vmatpush1.msra.mxu0 %v2111
    %2366 = vmatprep.subr.mxu0 0.0
    %2367 = vmatpush1.msra.mxu0 %v2110
    %2368 = vmatprep.subr.mxu0 0.0
    %2369 = vmatpush1.msra.mxu0 %v2109
    %2370 = vmatprep.subr.mxu0 0.0
    %2371 = vmatpush2.msra.mxu0 0.0
    %2372 = vmatprep.subr.mxu0 0.0
    %2373 = vmatpush2.msra.mxu0 0.0
    %2374 = vmatprep.subr.mxu0 0.0
    %2375 = vmatpush2.msra.mxu0 0.0
    %2376 = vmatprep.subr.mxu0 0.0
    %2377 = vmatpush2.msra.mxu0 0.0
    %2378 = vmatprep.subr.mxu0 0.0
    %2379 = vmatpush2.msra.mxu0 0.0
    %2380 = vmatprep.subr.mxu0 0.0
    %2381 = vmatpush2.msra.mxu0 0.0
    %2382 = vmatprep.subr.mxu0 0.0
    %2383 = vmatpush2.msra.mxu0 0.0
    %2384 = vmatprep.subr.mxu0 0.0
    %2385 = vmatpush2.msra.mxu0 0.0
    %2386 = vmatprep.subr.mxu0 0.0
    %2387 = vmatpush2.msra.mxu0 0.0
    %2388 = vmatprep.subr.mxu0 0.0
    %2389 = vmatpush2.msra.mxu0 0.0
    %2390 = vmatprep.subr.mxu0 0.0
    %2391 = vmatpush2.msra.mxu0 0.0
    %2392 = vmatprep.subr.mxu0 0.0
    %2393 = vmatpush2.msra.mxu0 0.0
    %2394 = vmatprep.subr.mxu0 0.0
    %2395 = vmatpush2.msra.mxu0 0.0
    %2396 = vmatprep.subr.mxu0 0.0
    %2397 = vmatpush2.msra.mxu0 0.0
    %2398 = vmatprep.subr.mxu0 0.0
    %2399 = vmatpush2.msra.mxu0 0.0
    %2400 = vmatprep.subr.mxu0 0.0
    %2401 = vmatpush2.msra.mxu0 0.0
    %2402 = vmatprep.mubr.f32.mxu0 0.0
    %2403 = vmatmul.mubr.f32.gmra.mxu0 %v2336
    %v2404 = vpop.f32.mrf.mxu0
    %v2405 = vadd.f32 0.0, %v2404
    %v2406 = vpop.f32.mrf.mxu0
    %2407 = vdwg.mxu0
    %v2408 = vmul.f32 %v2261, %v2261
    %v2409 = vsub.f32 %v2405, %v2408
    %v2410 = vsub.f32 %v2105, %v2261
    %v2411 = vadd.f32 %v2409, 1e-05
    %v2412 = vrsqrt.pop %v2411
    %v2413 = vmul.f32 %v2410, %v2412
    %v2414 = vld [vmem:[#allocation2 + $0x3a8] sm:$0x1]
    %vm2415 = vcmp.ge.f32.partialorder %v2413, 0.0
    %s2417 = vtos %v2414
    %v2418 = vstv %s2417
    %v2420 = vmul.f32 %v2418, %v2413
    %v2421 = vsel %vm2415, %v2413, %v2420
    %s2422 = sshll.u32 %s155, 4
    %2423 = dma.done %s65, %s2422
    %v2424 = vld [vmem:[#allocation2 + $0x3b0] sm:$0xf]
    %v2426 = vsel %vm2117, %v2424, 0
    %2428 = vmatprep.subr.mxu0 0.0
    %2429 = vmatpush1.msra.mxu0 0.0
    %2430 = vmatprep.subr.mxu0 0.0
    %2431 = vmatpush1.msra.mxu0 0.0
    %2432 = vmatprep.subr.mxu0 0.0
    %2433 = vmatpush1.msra.mxu0 0.0
    %2434 = vmatprep.subr.mxu0 0.0
    %2435 = vmatpush1.msra.mxu0 0.0
    %2436 = vmatprep.subr.mxu0 0.0
    %2437 = vmatpush1.msra.mxu0 0.0
    %2438 = vmatprep.subr.mxu0 0.0
    %2439 = vmatpush1.msra.mxu0 0.0
    %2440 = vmatprep.subr.mxu0 0.0
    %2441 = vmatpush1.msra.mxu0 0.0
    %2442 = vmatprep.subr.mxu0 0.0
    %2443 = vmatpush1.msra.mxu0 0.0
    %2444 = vmatprep.subr.mxu0 0.0
    %2445 = vmatpush1.msra.mxu0 0.0
    %2446 = vmatprep.subr.mxu0 0.0
    %2447 = vmatpush1.msra.mxu0 0.0
    %2448 = vmatprep.subr.mxu0 0.0
    %2449 = vmatpush1.msra.mxu0 0.0
    %2450 = vmatprep.subr.mxu0 0.0
    %2451 = vmatpush1.msra.mxu0 0.0
    %2452 = vmatprep.subr.mxu0 0.0
    %2453 = vmatpush1.msra.mxu0 0.0
    %2454 = vmatprep.subr.mxu0 0.0
    %2455 = vmatpush1.msra.mxu0 0.0
    %2456 = vmatprep.subr.mxu0 0.0
    %2457 = vmatpush1.msra.mxu0 0.0
    %2458 = vmatprep.subr.mxu0 0.0
    %2459 = vmatpush1.msra.mxu0 %v2421
    %2460 = vmatprep.subr.mxu0 0.0
    %2461 = vmatpush2.msra.mxu0 0.0
    %2462 = vmatprep.subr.mxu0 0.0
    %2463 = vmatpush2.msra.mxu0 0.0
    %2464 = vmatprep.subr.mxu0 0.0
    %2465 = vmatpush2.msra.mxu0 0.0
    %2466 = vmatprep.subr.mxu0 0.0
    %2467 = vmatpush2.msra.mxu0 0.0
    %2468 = vmatprep.subr.mxu0 0.0
    %2469 = vmatpush2.msra.mxu0 0.0
    %2470 = vmatprep.subr.mxu0 0.0
    %2471 = vmatpush2.msra.mxu0 0.0
    %2472 = vmatprep.subr.mxu0 0.0
    %2473 = vmatpush2.msra.mxu0 0.0
    %2474 = vmatprep.subr.mxu0 0.0
    %2475 = vmatpush2.msra.mxu0 0.0
    %2476 = vmatprep.subr.mxu0 0.0
    %2477 = vmatpush2.msra.mxu0 0.0
    %2478 = vmatprep.subr.mxu0 0.0
    %2479 = vmatpush2.msra.mxu0 0.0
    %2480 = vmatprep.subr.mxu0 0.0
    %2481 = vmatpush2.msra.mxu0 0.0
    %2482 = vmatprep.subr.mxu0 0.0
    %2483 = vmatpush2.msra.mxu0 0.0
    %2484 = vmatprep.subr.mxu0 0.0
    %2485 = vmatpush2.msra.mxu0 0.0
    %2486 = vmatprep.subr.mxu0 0.0
    %2487 = vmatpush2.msra.mxu0 0.0
    %2488 = vmatprep.subr.mxu0 0.0
    %2489 = vmatpush2.msra.mxu0 0.0
    %2490 = vmatprep.subr.mxu0 0.0
    %2491 = vmatpush2.msra.mxu0 0.0
    %2492 = vmatprep.mubr.f32.mxu0 0.0
    %2493 = vmatmul.mubr.f32.gmra.mxu0 %v2426
    %v2494 = vpop.f32.mrf.mxu0
    %v2495 = vadd.f32 0.0, %v2494
    %v2496 = vpop.f32.mrf.mxu0
    %2497 = vdwg.mxu0
    %v2498 = vld [vmem:[#allocation2 + $0x3b8] sm:$0xf]
    %v2500 = vsel %vm2117, %v2498, 0
    %2502 = vmatprep.subr.mxu0 0.0
    %2503 = vmatpush1.msra.mxu0 0.0
    %2504 = vmatprep.subr.mxu0 0.0
    %2505 = vmatpush1.msra.mxu0 0.0
    %2506 = vmatprep.subr.mxu0 0.0
    %2507 = vmatpush1.msra.mxu0 0.0
    %2508 = vmatprep.subr.mxu0 0.0
    %2509 = vmatpush1.msra.mxu0 0.0
    %2510 = vmatprep.subr.mxu0 0.0
    %2511 = vmatpush1.msra.mxu0 0.0
    %2512 = vmatprep.subr.mxu0 0.0
    %2513 = vmatpush1.msra.mxu0 0.0
    %2514 = vmatprep.subr.mxu0 0.0
    %2515 = vmatpush1.msra.mxu0 0.0
    %2516 = vmatprep.subr.mxu0 0.0
    %2517 = vmatpush1.msra.mxu0 0.0
    %2518 = vmatprep.subr.mxu0 0.0
    %2519 = vmatpush1.msra.mxu0 0.0
    %2520 = vmatprep.subr.mxu0 0.0
    %2521 = vmatpush1.msra.mxu0 0.0
    %2522 = vmatprep.subr.mxu0 0.0
    %2523 = vmatpush1.msra.mxu0 0.0
    %2524 = vmatprep.subr.mxu0 0.0
    %2525 = vmatpush1.msra.mxu0 0.0
    %2526 = vmatprep.subr.mxu0 0.0
    %2527 = vmatpush1.msra.mxu0 0.0
    %2528 = vmatprep.subr.mxu0 0.0
    %2529 = vmatpush1.msra.mxu0 0.0
    %2530 = vmatprep.subr.mxu0 0.0
    %2531 = vmatpush1.msra.mxu0 0.0
    %2532 = vmatprep.subr.mxu0 0.0
    %2533 = vmatpush1.msra.mxu0 %v2421
    %2534 = vmatprep.subr.mxu0 0.0
    %2535 = vmatpush2.msra.mxu0 0.0
    %2536 = vmatprep.subr.mxu0 0.0
    %2537 = vmatpush2.msra.mxu0 0.0
    %2538 = vmatprep.subr.mxu0 0.0
    %2539 = vmatpush2.msra.mxu0 0.0
    %2540 = vmatprep.subr.mxu0 0.0
    %2541 = vmatpush2.msra.mxu0 0.0
    %2542 = vmatprep.subr.mxu0 0.0
    %2543 = vmatpush2.msra.mxu0 0.0
    %2544 = vmatprep.subr.mxu0 0.0
    %2545 = vmatpush2.msra.mxu0 0.0
    %2546 = vmatprep.subr.mxu0 0.0
    %2547 = vmatpush2.msra.mxu0 0.0
    %2548 = vmatprep.subr.mxu0 0.0
    %2549 = vmatpush2.msra.mxu0 0.0
    %2550 = vmatprep.subr.mxu0 0.0
    %2551 = vmatpush2.msra.mxu0 0.0
    %2552 = vmatprep.subr.mxu0 0.0
    %2553 = vmatpush2.msra.mxu0 0.0
    %2554 = vmatprep.subr.mxu0 0.0
    %2555 = vmatpush2.msra.mxu0 0.0
    %2556 = vmatprep.subr.mxu0 0.0
    %2557 = vmatpush2.msra.mxu0 0.0
    %2558 = vmatprep.subr.mxu0 0.0
    %2559 = vmatpush2.msra.mxu0 0.0
    %2560 = vmatprep.subr.mxu0 0.0
    %2561 = vmatpush2.msra.mxu0 0.0
    %2562 = vmatprep.subr.mxu0 0.0
    %2563 = vmatpush2.msra.mxu0 0.0
    %2564 = vmatprep.subr.mxu0 0.0
    %2565 = vmatpush2.msra.mxu0 0.0
    %2566 = vmatprep.mubr.f32.mxu0 0.0
    %2567 = vmatmul.mubr.f32.gmra.mxu0 %v2500
    %v2568 = vpop.f32.mrf.mxu0
    %v2569 = vadd.f32 0.0, %v2568
    %v2570 = vpop.f32.mrf.mxu0
    %2571 = vdwg.mxu0
    %v2572 = vld [vmem:[#allocation2 + $0x3c0] sm:$0xf]
    %v2574 = vsel %vm2117, %v2572, 0
    %2576 = vmatprep.subr.mxu0 0.0
    %2577 = vmatpush1.msra.mxu0 0.0
    %2578 = vmatprep.subr.mxu0 0.0
    %2579 = vmatpush1.msra.mxu0 0.0
    %2580 = vmatprep.subr.mxu0 0.0
    %2581 = vmatpush1.msra.mxu0 0.0
    %2582 = vmatprep.subr.mxu0 0.0
    %2583 = vmatpush1.msra.mxu0 0.0
    %2584 = vmatprep.subr.mxu0 0.0
    %2585 = vmatpush1.msra.mxu0 0.0
    %2586 = vmatprep.subr.mxu0 0.0
    %2587 = vmatpush1.msra.mxu0 0.0
    %2588 = vmatprep.subr.mxu0 0.0
    %2589 = vmatpush1.msra.mxu0 0.0
    %2590 = vmatprep.subr.mxu0 0.0
    %2591 = vmatpush1.msra.mxu0 0.0
    %2592 = vmatprep.subr.mxu0 0.0
    %2593 = vmatpush1.msra.mxu0 0.0
    %2594 = vmatprep.subr.mxu0 0.0
    %2595 = vmatpush1.msra.mxu0 0.0
    %2596 = vmatprep.subr.mxu0 0.0
    %2597 = vmatpush1.msra.mxu0 0.0
    %2598 = vmatprep.subr.mxu0 0.0
    %2599 = vmatpush1.msra.mxu0 0.0
    %2600 = vmatprep.subr.mxu0 0.0
    %2601 = vmatpush1.msra.mxu0 0.0
    %2602 = vmatprep.subr.mxu0 0.0
    %2603 = vmatpush1.msra.mxu0 0.0
    %2604 = vmatprep.subr.mxu0 0.0
    %2605 = vmatpush1.msra.mxu0 0.0
    %2606 = vmatprep.subr.mxu0 0.0
    %2607 = vmatpush1.msra.mxu0 %v2421
    %2608 = vmatprep.subr.mxu0 0.0
    %2609 = vmatpush2.msra.mxu0 0.0
    %2610 = vmatprep.subr.mxu0 0.0
    %2611 = vmatpush2.msra.mxu0 0.0
    %2612 = vmatprep.subr.mxu0 0.0
    %2613 = vmatpush2.msra.mxu0 0.0
    %2614 = vmatprep.subr.mxu0 0.0
    %2615 = vmatpush2.msra.mxu0 0.0
    %2616 = vmatprep.subr.mxu0 0.0
    %2617 = vmatpush2.msra.mxu0 0.0
    %2618 = vmatprep.subr.mxu0 0.0
    %2619 = vmatpush2.msra.mxu0 0.0
    %2620 = vmatprep.subr.mxu0 0.0
    %2621 = vmatpush2.msra.mxu0 0.0
    %2622 = vmatprep.subr.mxu0 0.0
    %2623 = vmatpush2.msra.mxu0 0.0
    %2624 = vmatprep.subr.mxu0 0.0
    %2625 = vmatpush2.msra.mxu0 0.0
    %2626 = vmatprep.subr.mxu0 0.0
    %2627 = vmatpush2.msra.mxu0 0.0
    %2628 = vmatprep.subr.mxu0 0.0
    %2629 = vmatpush2.msra.mxu0 0.0
    %2630 = vmatprep.subr.mxu0 0.0
    %2631 = vmatpush2.msra.mxu0 0.0
    %2632 = vmatprep.subr.mxu0 0.0
    %2633 = vmatpush2.msra.mxu0 0.0
    %2634 = vmatprep.subr.mxu0 0.0
    %2635 = vmatpush2.msra.mxu0 0.0
    %2636 = vmatprep.subr.mxu0 0.0
    %2637 = vmatpush2.msra.mxu0 0.0
    %2638 = vmatprep.subr.mxu0 0.0
    %2639 = vmatpush2.msra.mxu0 0.0
    %2640 = vmatprep.mubr.f32.mxu0 0.0
    %2641 = vmatmul.mubr.f32.gmra.mxu0 %v2574
    %v2642 = vpop.f32.mrf.mxu0
    %v2643 = vadd.f32 0.0, %v2642
    %v2644 = vpop.f32.mrf.mxu0
    %2645 = vdwg.mxu0
    %2647 = vrot.lane.b32.xlu0 %v2569, 64
    %v2648 = vpop.permute.xlu0 %2647
    %v2650 = vsel %vm162, %v2495, %v2648
    %v2651 = vld [vmem:[#allocation2 + $0x3c8] sm:$0xff]
    %v2652 = vld [vmem:[#allocation2 + $0x3d0] sm:$0xff]
    %v2653 = vld [vmem:[#allocation2 + $0x3d8] sm:$0xff]
    %v2654 = vld [vmem:[#allocation2 + $0x3e0] sm:$0xff]
    %v2655 = vld [vmem:[#allocation2 + $0x3e8] sm:$0xff]
    %v2656 = vld [vmem:[#allocation2 + $0x3f0] sm:$0xff]
    %v2657 = vld [vmem:[#allocation2 + $0x3f8] sm:$0xff]
    %v2658 = vld [vmem:[#allocation2 + $0x400] sm:$0xff]
    %v2659 = vld [vmem:[#allocation2 + $0x408] sm:$0xff]
    %v2660 = vld [vmem:[#allocation2 + $0x410] sm:$0xff]
    %v2661 = vld [vmem:[#allocation2 + $0x418] sm:$0xff]
    %v2662 = vld [vmem:[#allocation2 + $0x420] sm:$0xff]
    %v2663 = vld [vmem:[#allocation2 + $0x428] sm:$0xff]
    %v2664 = vld [vmem:[#allocation2 + $0x430] sm:$0xff]
    %v2665 = vld [vmem:[#allocation2 + $0x438] sm:$0xff]
    %v2666 = vld [vmem:[#allocation2 + $0x440] sm:$0xff]
    %v2667 = vld [vmem:[#allocation2 + $0x448] sm:$0xff]
    %v2668 = vld [vmem:[#allocation2 + $0x450] sm:$0xff]
    %v2669 = vld [vmem:[#allocation2 + $0x458] sm:$0xff]
    %v2670 = vld [vmem:[#allocation2 + $0x460] sm:$0xff]
    %v2671 = vld [vmem:[#allocation2 + $0x468] sm:$0xff]
    %v2672 = vld [vmem:[#allocation2 + $0x470] sm:$0xff]
    %v2673 = vld [vmem:[#allocation2 + $0x478] sm:$0xff]
    %v2674 = vld [vmem:[#allocation2 + $0x480] sm:$0xff]
    %v2675 = vld [vmem:[#allocation2 + $0x488] sm:$0x1]
    %v2676 = vlaneseq
    %v2677 = vshrl.u32 %v2676, 7
    %v2678 = vsub.s32 0, %v2677
    %v2679 = vrot.slane %v2675, %v2678
    %v2681 = vsel %vm162, %v2643, 0
    %2683 = vmatprep.subr.mxu0 0.0
    %2684 = vmatpush1.msra.mxu0 %v2666
    %2685 = vmatprep.subr.mxu0 0.0
    %2686 = vmatpush1.msra.mxu0 %v2665
    %2687 = vmatprep.subr.mxu0 0.0
    %2688 = vmatpush1.msra.mxu0 %v2664
    %2689 = vmatprep.subr.mxu0 0.0
    %2690 = vmatpush1.msra.mxu0 %v2663
    %2691 = vmatprep.subr.mxu0 0.0
    %2692 = vmatpush1.msra.mxu0 %v2662
    %2693 = vmatprep.subr.mxu0 0.0
    %2694 = vmatpush1.msra.mxu0 %v2661
    %2695 = vmatprep.subr.mxu0 0.0
    %2696 = vmatpush1.msra.mxu0 %v2660
    %2697 = vmatprep.subr.mxu0 0.0
    %2698 = vmatpush1.msra.mxu0 %v2659
    %2699 = vmatprep.subr.mxu0 0.0
    %2700 = vmatpush1.msra.mxu0 %v2658
    %2701 = vmatprep.subr.mxu0 0.0
    %2702 = vmatpush1.msra.mxu0 %v2657
    %2703 = vmatprep.subr.mxu0 0.0
    %2704 = vmatpush1.msra.mxu0 %v2656
    %2705 = vmatprep.subr.mxu0 0.0
    %2706 = vmatpush1.msra.mxu0 %v2655
    %2707 = vmatprep.subr.mxu0 0.0
    %2708 = vmatpush1.msra.mxu0 %v2654
    %2709 = vmatprep.subr.mxu0 0.0
    %2710 = vmatpush1.msra.mxu0 %v2653
    %2711 = vmatprep.subr.mxu0 0.0
    %2712 = vmatpush1.msra.mxu0 %v2652
    %2713 = vmatprep.subr.mxu0 0.0
    %2714 = vmatpush1.msra.mxu0 %v2651
    %2715 = vmatprep.subr.mxu0 0.0
    %2716 = vmatpush2.msra.mxu0 0.0
    %2717 = vmatprep.subr.mxu0 0.0
    %2718 = vmatpush2.msra.mxu0 0.0
    %2719 = vmatprep.subr.mxu0 0.0
    %2720 = vmatpush2.msra.mxu0 0.0
    %2721 = vmatprep.subr.mxu0 0.0
    %2722 = vmatpush2.msra.mxu0 0.0
    %2723 = vmatprep.subr.mxu0 0.0
    %2724 = vmatpush2.msra.mxu0 0.0
    %2725 = vmatprep.subr.mxu0 0.0
    %2726 = vmatpush2.msra.mxu0 0.0
    %2727 = vmatprep.subr.mxu0 0.0
    %2728 = vmatpush2.msra.mxu0 0.0
    %2729 = vmatprep.subr.mxu0 0.0
    %2730 = vmatpush2.msra.mxu0 0.0
    %2731 = vmatprep.subr.mxu0 0.0
    %2732 = vmatpush2.msra.mxu0 %v2674
    %2733 = vmatprep.subr.mxu0 0.0
    %2734 = vmatpush2.msra.mxu0 %v2673
    %2735 = vmatprep.subr.mxu0 0.0
    %2736 = vmatpush2.msra.mxu0 %v2672
    %2737 = vmatprep.subr.mxu0 0.0
    %2738 = vmatpush2.msra.mxu0 %v2671
    %2739 = vmatprep.subr.mxu0 0.0
    %2740 = vmatpush2.msra.mxu0 %v2670
    %2741 = vmatprep.subr.mxu0 0.0
    %2742 = vmatpush2.msra.mxu0 %v2669
    %2743 = vmatprep.subr.mxu0 0.0
    %2744 = vmatpush2.msra.mxu0 %v2668
    %2745 = vmatprep.subr.mxu0 0.0
    %2746 = vmatpush2.msra.mxu0 %v2667
    %2747 = vmatprep.mubr.f32.mxu0 %v2681
    %2748 = vmatmul.mubr.f32.gmra.mxu0 %v2650
    %v2749 = vpop.f32.mrf.mxu0
    %v2750 = vadd.f32 %v2679, %v2749
    %v2751 = vpop.f32.mrf.mxu0
    %2752 = vdwg.mxu0
    %v2753 = vld [vmem:[#allocation2 + $0x490] sm:$0xf]
    %v2754 = vld [vmem:[#allocation2 + $0x498] sm:$0xff]
    %v2755 = vld [vmem:[#allocation2 + $0x4a0] sm:$0xff]
    %v2756 = vld [vmem:[#allocation2 + $0x4a8] sm:$0xff]
    %v2757 = vld [vmem:[#allocation2 + $0x4b0] sm:$0xff]
    %v2758 = vld [vmem:[#allocation2 + $0x4b8] sm:$0xff]
    %v2759 = vld [vmem:[#allocation2 + $0x4c0] sm:$0xff]
    %v2760 = vld [vmem:[#allocation2 + $0x4c8] sm:$0xff]
    %v2761 = vld [vmem:[#allocation2 + $0x4d0] sm:$0xff]
    %vm2762 = vcmask 31744
    %v2764 = vsel %vm2762, %v2753, 0
    %vm2766 = vcmask 1043456
    %v2768 = vsel %vm2766, %v2750, 0
    %2770 = vmatprep.subr.mxu0 0.0
    %2771 = vmatpush1.msra.mxu0 0.0
    %2772 = vmatprep.subr.mxu0 0.0
    %2773 = vmatpush1.msra.mxu0 0.0
    %2774 = vmatprep.subr.mxu0 0.0
    %2775 = vmatpush1.msra.mxu0 0.0
    %2776 = vmatprep.subr.mxu0 0.0
    %2777 = vmatpush1.msra.mxu0 0.0
    %2778 = vmatprep.subr.mxu0 0.0
    %2779 = vmatpush1.msra.mxu0 0.0
    %2780 = vmatprep.subr.mxu0 0.0
    %2781 = vmatpush1.msra.mxu0 0.0
    %2782 = vmatprep.subr.mxu0 0.0
    %2783 = vmatpush1.msra.mxu0 0.0
    %2784 = vmatprep.subr.mxu0 0.0
    %2785 = vmatpush1.msra.mxu0 0.0
    %2786 = vmatprep.subr.mxu0 0.0
    %2787 = vmatpush1.msra.mxu0 0.0
    %2788 = vmatprep.subr.mxu0 0.0
    %2789 = vmatpush1.msra.mxu0 0.0
    %2790 = vmatprep.subr.mxu0 0.0
    %2791 = vmatpush1.msra.mxu0 0.0
    %2792 = vmatprep.subr.mxu0 0.0
    %2793 = vmatpush1.msra.mxu0 0.0
    %2794 = vmatprep.subr.mxu0 0.0
    %2795 = vmatpush1.msra.mxu0 0.0
    %2796 = vmatprep.subr.mxu0 0.0
    %2797 = vmatpush1.msra.mxu0 0.0
    %2798 = vmatprep.subr.mxu0 0.0
    %2799 = vmatpush1.msra.mxu0 0.0
    %2800 = vmatprep.subr.mxu0 0.0
    %2801 = vmatpush1.msra.mxu0 %v2768
    %2802 = vmatprep.subr.mxu0 0.0
    %2803 = vmatpush2.msra.mxu0 0.0
    %2804 = vmatprep.subr.mxu0 0.0
    %2805 = vmatpush2.msra.mxu0 0.0
    %2806 = vmatprep.subr.mxu0 0.0
    %2807 = vmatpush2.msra.mxu0 0.0
    %2808 = vmatprep.subr.mxu0 0.0
    %2809 = vmatpush2.msra.mxu0 0.0
    %2810 = vmatprep.subr.mxu0 0.0
    %2811 = vmatpush2.msra.mxu0 0.0
    %2812 = vmatprep.subr.mxu0 0.0
    %2813 = vmatpush2.msra.mxu0 0.0
    %2814 = vmatprep.subr.mxu0 0.0
    %2815 = vmatpush2.msra.mxu0 0.0
    %2816 = vmatprep.subr.mxu0 0.0
    %2817 = vmatpush2.msra.mxu0 0.0
    %2818 = vmatprep.subr.mxu0 0.0
    %2819 = vmatpush2.msra.mxu0 0.0
    %2820 = vmatprep.subr.mxu0 0.0
    %2821 = vmatpush2.msra.mxu0 0.0
    %2822 = vmatprep.subr.mxu0 0.0
    %2823 = vmatpush2.msra.mxu0 0.0
    %2824 = vmatprep.subr.mxu0 0.0
    %2825 = vmatpush2.msra.mxu0 0.0
    %2826 = vmatprep.subr.mxu0 0.0
    %2827 = vmatpush2.msra.mxu0 0.0
    %2828 = vmatprep.subr.mxu0 0.0
    %2829 = vmatpush2.msra.mxu0 0.0
    %2830 = vmatprep.subr.mxu0 0.0
    %2831 = vmatpush2.msra.mxu0 0.0
    %2832 = vmatprep.subr.mxu0 0.0
    %2833 = vmatpush2.msra.mxu0 0.0
    %2834 = vmatprep.mubr.f32.mxu0 0.0
    %2835 = vmatmul.mubr.f32.gmra.mxu0 %v2764
    %v2836 = vpop.f32.mrf.mxu0
    %v2837 = vadd.f32 0.0, %v2836
    %v2838 = vpop.f32.mrf.mxu0
    %2839 = vdwg.mxu0
    %v2841 = vsel %vm162, %v2837, 0
    %2843 = vmatprep.subr.mxu0 0.0
    %2844 = vmatpush1.msra.mxu0 0.0
    %2845 = vmatprep.subr.mxu0 0.0
    %2846 = vmatpush1.msra.mxu0 0.0
    %2847 = vmatprep.subr.mxu0 0.0
    %2848 = vmatpush1.msra.mxu0 0.0
    %2849 = vmatprep.subr.mxu0 0.0
    %2850 = vmatpush1.msra.mxu0 0.0
    %2851 = vmatprep.subr.mxu0 0.0
    %2852 = vmatpush1.msra.mxu0 0.0
    %2853 = vmatprep.subr.mxu0 0.0
    %2854 = vmatpush1.msra.mxu0 0.0
    %2855 = vmatprep.subr.mxu0 0.0
    %2856 = vmatpush1.msra.mxu0 0.0
    %2857 = vmatprep.subr.mxu0 0.0
    %2858 = vmatpush1.msra.mxu0 0.0
    %2859 = vmatprep.subr.mxu0 0.0
    %2860 = vmatpush1.msra.mxu0 %v2761
    %2861 = vmatprep.subr.mxu0 0.0
    %2862 = vmatpush1.msra.mxu0 %v2760
    %2863 = vmatprep.subr.mxu0 0.0
    %2864 = vmatpush1.msra.mxu0 %v2759
    %2865 = vmatprep.subr.mxu0 0.0
    %2866 = vmatpush1.msra.mxu0 %v2758
    %2867 = vmatprep.subr.mxu0 0.0
    %2868 = vmatpush1.msra.mxu0 %v2757
    %2869 = vmatprep.subr.mxu0 0.0
    %2870 = vmatpush1.msra.mxu0 %v2756
    %2871 = vmatprep.subr.mxu0 0.0
    %2872 = vmatpush1.msra.mxu0 %v2755
    %2873 = vmatprep.subr.mxu0 0.0
    %2874 = vmatpush1.msra.mxu0 %v2754
    %2875 = vmatprep.subr.mxu0 0.0
    %2876 = vmatpush2.msra.mxu0 0.0
    %2877 = vmatprep.subr.mxu0 0.0
    %2878 = vmatpush2.msra.mxu0 0.0
    %2879 = vmatprep.subr.mxu0 0.0
    %2880 = vmatpush2.msra.mxu0 0.0
    %2881 = vmatprep.subr.mxu0 0.0
    %2882 = vmatpush2.msra.mxu0 0.0
    %2883 = vmatprep.subr.mxu0 0.0
    %2884 = vmatpush2.msra.mxu0 0.0
    %2885 = vmatprep.subr.mxu0 0.0
    %2886 = vmatpush2.msra.mxu0 0.0
    %2887 = vmatprep.subr.mxu0 0.0
    %2888 = vmatpush2.msra.mxu0 0.0
    %2889 = vmatprep.subr.mxu0 0.0
    %2890 = vmatpush2.msra.mxu0 0.0
    %2891 = vmatprep.subr.mxu0 0.0
    %2892 = vmatpush2.msra.mxu0 0.0
    %2893 = vmatprep.subr.mxu0 0.0
    %2894 = vmatpush2.msra.mxu0 0.0
    %2895 = vmatprep.subr.mxu0 0.0
    %2896 = vmatpush2.msra.mxu0 0.0
    %2897 = vmatprep.subr.mxu0 0.0
    %2898 = vmatpush2.msra.mxu0 0.0
    %2899 = vmatprep.subr.mxu0 0.0
    %2900 = vmatpush2.msra.mxu0 0.0
    %2901 = vmatprep.subr.mxu0 0.0
    %2902 = vmatpush2.msra.mxu0 0.0
    %2903 = vmatprep.subr.mxu0 0.0
    %2904 = vmatpush2.msra.mxu0 0.0
    %2905 = vmatprep.subr.mxu0 0.0
    %2906 = vmatpush2.msra.mxu0 0.0
    %2907 = vmatprep.mubr.f32.mxu0 0.0
    %2908 = vmatmul.mubr.f32.gmra.mxu0 %v2841
    %v2909 = vpop.f32.mrf.mxu0
    %v2910 = vadd.f32 0.0, %v2909
    %v2911 = vpop.f32.mrf.mxu0
    %2912 = vdwg.mxu0
    %v2913 = vmul.f32 %v2750, %v2750
    %v2915 = vsel %vm2766, %v2913, 0
    %2917 = vmatprep.subr.mxu0 0.0
    %2918 = vmatpush1.msra.mxu0 0.0
    %2919 = vmatprep.subr.mxu0 0.0
    %2920 = vmatpush1.msra.mxu0 0.0
    %2921 = vmatprep.subr.mxu0 0.0
    %2922 = vmatpush1.msra.mxu0 0.0
    %2923 = vmatprep.subr.mxu0 0.0
    %2924 = vmatpush1.msra.mxu0 0.0
    %2925 = vmatprep.subr.mxu0 0.0
    %2926 = vmatpush1.msra.mxu0 0.0
    %2927 = vmatprep.subr.mxu0 0.0
    %2928 = vmatpush1.msra.mxu0 0.0
    %2929 = vmatprep.subr.mxu0 0.0
    %2930 = vmatpush1.msra.mxu0 0.0
    %2931 = vmatprep.subr.mxu0 0.0
    %2932 = vmatpush1.msra.mxu0 0.0
    %2933 = vmatprep.subr.mxu0 0.0
    %2934 = vmatpush1.msra.mxu0 0.0
    %2935 = vmatprep.subr.mxu0 0.0
    %2936 = vmatpush1.msra.mxu0 0.0
    %2937 = vmatprep.subr.mxu0 0.0
    %2938 = vmatpush1.msra.mxu0 0.0
    %2939 = vmatprep.subr.mxu0 0.0
    %2940 = vmatpush1.msra.mxu0 0.0
    %2941 = vmatprep.subr.mxu0 0.0
    %2942 = vmatpush1.msra.mxu0 0.0
    %2943 = vmatprep.subr.mxu0 0.0
    %2944 = vmatpush1.msra.mxu0 0.0
    %2945 = vmatprep.subr.mxu0 0.0
    %2946 = vmatpush1.msra.mxu0 0.0
    %2947 = vmatprep.subr.mxu0 0.0
    %2948 = vmatpush1.msra.mxu0 %v2915
    %2949 = vmatprep.subr.mxu0 0.0
    %2950 = vmatpush2.msra.mxu0 0.0
    %2951 = vmatprep.subr.mxu0 0.0
    %2952 = vmatpush2.msra.mxu0 0.0
    %2953 = vmatprep.subr.mxu0 0.0
    %2954 = vmatpush2.msra.mxu0 0.0
    %2955 = vmatprep.subr.mxu0 0.0
    %2956 = vmatpush2.msra.mxu0 0.0
    %2957 = vmatprep.subr.mxu0 0.0
    %2958 = vmatpush2.msra.mxu0 0.0
    %2959 = vmatprep.subr.mxu0 0.0
    %2960 = vmatpush2.msra.mxu0 0.0
    %2961 = vmatprep.subr.mxu0 0.0
    %2962 = vmatpush2.msra.mxu0 0.0
    %2963 = vmatprep.subr.mxu0 0.0
    %2964 = vmatpush2.msra.mxu0 0.0
    %2965 = vmatprep.subr.mxu0 0.0
    %2966 = vmatpush2.msra.mxu0 0.0
    %2967 = vmatprep.subr.mxu0 0.0
    %2968 = vmatpush2.msra.mxu0 0.0
    %2969 = vmatprep.subr.mxu0 0.0
    %2970 = vmatpush2.msra.mxu0 0.0
    %2971 = vmatprep.subr.mxu0 0.0
    %2972 = vmatpush2.msra.mxu0 0.0
    %2973 = vmatprep.subr.mxu0 0.0
    %2974 = vmatpush2.msra.mxu0 0.0
    %2975 = vmatprep.subr.mxu0 0.0
    %2976 = vmatpush2.msra.mxu0 0.0
    %2977 = vmatprep.subr.mxu0 0.0
    %2978 = vmatpush2.msra.mxu0 0.0
    %2979 = vmatprep.subr.mxu0 0.0
    %2980 = vmatpush2.msra.mxu0 0.0
    %2981 = vmatprep.mubr.f32.mxu0 0.0
    %2982 = vmatmul.mubr.f32.gmra.mxu0 %v2764
    %v2983 = vpop.f32.mrf.mxu0
    %v2984 = vadd.f32 0.0, %v2983
    %v2985 = vpop.f32.mrf.mxu0
    %2986 = vdwg.mxu0
    %v2988 = vsel %vm162, %v2984, 0
    %2990 = vmatprep.subr.mxu0 0.0
    %2991 = vmatpush1.msra.mxu0 0.0
    %2992 = vmatprep.subr.mxu0 0.0
    %2993 = vmatpush1.msra.mxu0 0.0
    %2994 = vmatprep.subr.mxu0 0.0
    %2995 = vmatpush1.msra.mxu0 0.0
    %2996 = vmatprep.subr.mxu0 0.0
    %2997 = vmatpush1.msra.mxu0 0.0
    %2998 = vmatprep.subr.mxu0 0.0
    %2999 = vmatpush1.msra.mxu0 0.0
    %3000 = vmatprep.subr.mxu0 0.0
    %3001 = vmatpush1.msra.mxu0 0.0
    %3002 = vmatprep.subr.mxu0 0.0
    %3003 = vmatpush1.msra.mxu0 0.0
    %3004 = vmatprep.subr.mxu0 0.0
    %3005 = vmatpush1.msra.mxu0 0.0
    %3006 = vmatprep.subr.mxu0 0.0
    %3007 = vmatpush1.msra.mxu0 %v2761
    %3008 = vmatprep.subr.mxu0 0.0
    %3009 = vmatpush1.msra.mxu0 %v2760
    %3010 = vmatprep.subr.mxu0 0.0
    %3011 = vmatpush1.msra.mxu0 %v2759
    %3012 = vmatprep.subr.mxu0 0.0
    %3013 = vmatpush1.msra.mxu0 %v2758
    %3014 = vmatprep.subr.mxu0 0.0
    %3015 = vmatpush1.msra.mxu0 %v2757
    %3016 = vmatprep.subr.mxu0 0.0
    %3017 = vmatpush1.msra.mxu0 %v2756
    %3018 = vmatprep.subr.mxu0 0.0
    %3019 = vmatpush1.msra.mxu0 %v2755
    %3020 = vmatprep.subr.mxu0 0.0
    %3021 = vmatpush1.msra.mxu0 %v2754
    %3022 = vmatprep.subr.mxu0 0.0
    %3023 = vmatpush2.msra.mxu0 0.0
    %3024 = vmatprep.subr.mxu0 0.0
    %3025 = vmatpush2.msra.mxu0 0.0
    %3026 = vmatprep.subr.mxu0 0.0
    %3027 = vmatpush2.msra.mxu0 0.0
    %3028 = vmatprep.subr.mxu0 0.0
    %3029 = vmatpush2.msra.mxu0 0.0
    %3030 = vmatprep.subr.mxu0 0.0
    %3031 = vmatpush2.msra.mxu0 0.0
    %3032 = vmatprep.subr.mxu0 0.0
    %3033 = vmatpush2.msra.mxu0 0.0
    %3034 = vmatprep.subr.mxu0 0.0
    %3035 = vmatpush2.msra.mxu0 0.0
    %3036 = vmatprep.subr.mxu0 0.0
    %3037 = vmatpush2.msra.mxu0 0.0
    %3038 = vmatprep.subr.mxu0 0.0
    %3039 = vmatpush2.msra.mxu0 0.0
    %3040 = vmatprep.subr.mxu0 0.0
    %3041 = vmatpush2.msra.mxu0 0.0
    %3042 = vmatprep.subr.mxu0 0.0
    %3043 = vmatpush2.msra.mxu0 0.0
    %3044 = vmatprep.subr.mxu0 0.0
    %3045 = vmatpush2.msra.mxu0 0.0
    %3046 = vmatprep.subr.mxu0 0.0
    %3047 = vmatpush2.msra.mxu0 0.0
    %3048 = vmatprep.subr.mxu0 0.0
    %3049 = vmatpush2.msra.mxu0 0.0
    %3050 = vmatprep.subr.mxu0 0.0
    %3051 = vmatpush2.msra.mxu0 0.0
    %3052 = vmatprep.subr.mxu0 0.0
    %3053 = vmatpush2.msra.mxu0 0.0
    %3054 = vmatprep.mubr.f32.mxu0 0.0
    %3055 = vmatmul.mubr.f32.gmra.mxu0 %v2988
    %v3056 = vpop.f32.mrf.mxu0
    %v3057 = vadd.f32 0.0, %v3056
    %v3058 = vpop.f32.mrf.mxu0
    %3059 = vdwg.mxu0
    %v3060 = vmul.f32 %v2910, %v2910
    %v3061 = vsub.f32 %v3057, %v3060
    %v3062 = vsub.f32 %v2750, %v2910
    %v3063 = vadd.f32 %v3061, 1e-05
    %v3064 = vrsqrt.pop %v3063
    %v3065 = vmul.f32 %v3062, %v3064
    %v3066 = vld [vmem:[#allocation2 + $0x4d8] sm:$0x1]
    %vm3067 = vcmp.ge.f32.partialorder %v3065, 0.0
    %s3069 = vtos %v3066
    %v3070 = vstv %s3069
    %v3072 = vmul.f32 %v3070, %v3065
    %v3073 = vsel %vm3067, %v3065, %v3072
    %s3074 = smul.u32 368, 1
    %s3075 = sshll.u32 %s3074, 4
    %3076 = dma.done %s79, %s3075
    %v3077 = vld [vmem:[#allocation2 + $0x4e0] sm:$0xf]
    %v3079 = vsel %vm2762, %v3077, 0
    %v3082 = vsel %vm2766, %v3073, 0
    %3084 = vmatprep.subr.mxu0 0.0
    %3085 = vmatpush1.msra.mxu0 0.0
    %3086 = vmatprep.subr.mxu0 0.0
    %3087 = vmatpush1.msra.mxu0 0.0
    %3088 = vmatprep.subr.mxu0 0.0
    %3089 = vmatpush1.msra.mxu0 0.0
    %3090 = vmatprep.subr.mxu0 0.0
    %3091 = vmatpush1.msra.mxu0 0.0
    %3092 = vmatprep.subr.mxu0 0.0
    %3093 = vmatpush1.msra.mxu0 0.0
    %3094 = vmatprep.subr.mxu0 0.0
    %3095 = vmatpush1.msra.mxu0 0.0
    %3096 = vmatprep.subr.mxu0 0.0
    %3097 = vmatpush1.msra.mxu0 0.0
    %3098 = vmatprep.subr.mxu0 0.0
    %3099 = vmatpush1.msra.mxu0 0.0
    %3100 = vmatprep.subr.mxu0 0.0
    %3101 = vmatpush1.msra.mxu0 0.0
    %3102 = vmatprep.subr.mxu0 0.0
    %3103 = vmatpush1.msra.mxu0 0.0
    %3104 = vmatprep.subr.mxu0 0.0
    %3105 = vmatpush1.msra.mxu0 0.0
    %3106 = vmatprep.subr.mxu0 0.0
    %3107 = vmatpush1.msra.mxu0 0.0
    %3108 = vmatprep.subr.mxu0 0.0
    %3109 = vmatpush1.msra.mxu0 0.0
    %3110 = vmatprep.subr.mxu0 0.0
    %3111 = vmatpush1.msra.mxu0 0.0
    %3112 = vmatprep.subr.mxu0 0.0
    %3113 = vmatpush1.msra.mxu0 0.0
    %3114 = vmatprep.subr.mxu0 0.0
    %3115 = vmatpush1.msra.mxu0 %v3082
    %3116 = vmatprep.subr.mxu0 0.0
    %3117 = vmatpush2.msra.mxu0 0.0
    %3118 = vmatprep.subr.mxu0 0.0
    %3119 = vmatpush2.msra.mxu0 0.0
    %3120 = vmatprep.subr.mxu0 0.0
    %3121 = vmatpush2.msra.mxu0 0.0
    %3122 = vmatprep.subr.mxu0 0.0
    %3123 = vmatpush2.msra.mxu0 0.0
    %3124 = vmatprep.subr.mxu0 0.0
    %3125 = vmatpush2.msra.mxu0 0.0
    %3126 = vmatprep.subr.mxu0 0.0
    %3127 = vmatpush2.msra.mxu0 0.0
    %3128 = vmatprep.subr.mxu0 0.0
    %3129 = vmatpush2.msra.mxu0 0.0
    %3130 = vmatprep.subr.mxu0 0.0
    %3131 = vmatpush2.msra.mxu0 0.0
    %3132 = vmatprep.subr.mxu0 0.0
    %3133 = vmatpush2.msra.mxu0 0.0
    %3134 = vmatprep.subr.mxu0 0.0
    %3135 = vmatpush2.msra.mxu0 0.0
    %3136 = vmatprep.subr.mxu0 0.0
    %3137 = vmatpush2.msra.mxu0 0.0
    %3138 = vmatprep.subr.mxu0 0.0
    %3139 = vmatpush2.msra.mxu0 0.0
    %3140 = vmatprep.subr.mxu0 0.0
    %3141 = vmatpush2.msra.mxu0 0.0
    %3142 = vmatprep.subr.mxu0 0.0
    %3143 = vmatpush2.msra.mxu0 0.0
    %3144 = vmatprep.subr.mxu0 0.0
    %3145 = vmatpush2.msra.mxu0 0.0
    %3146 = vmatprep.subr.mxu0 0.0
    %3147 = vmatpush2.msra.mxu0 0.0
    %3148 = vmatprep.mubr.f32.mxu0 0.0
    %3149 = vmatmul.mubr.f32.gmra.mxu0 %v3079
    %v3150 = vpop.f32.mrf.mxu0
    %v3151 = vadd.f32 0.0, %v3150
    %v3152 = vpop.f32.mrf.mxu0
    %3153 = vdwg.mxu0
    %v3154 = vld [vmem:[#allocation2 + $0x4e8] sm:$0xf]
    %v3156 = vsel %vm2762, %v3154, 0
    %3158 = vmatprep.subr.mxu0 0.0
    %3159 = vmatpush1.msra.mxu0 0.0
    %3160 = vmatprep.subr.mxu0 0.0
    %3161 = vmatpush1.msra.mxu0 0.0
    %3162 = vmatprep.subr.mxu0 0.0
    %3163 = vmatpush1.msra.mxu0 0.0
    %3164 = vmatprep.subr.mxu0 0.0
    %3165 = vmatpush1.msra.mxu0 0.0
    %3166 = vmatprep.subr.mxu0 0.0
    %3167 = vmatpush1.msra.mxu0 0.0
    %3168 = vmatprep.subr.mxu0 0.0
    %3169 = vmatpush1.msra.mxu0 0.0
    %3170 = vmatprep.subr.mxu0 0.0
    %3171 = vmatpush1.msra.mxu0 0.0
    %3172 = vmatprep.subr.mxu0 0.0
    %3173 = vmatpush1.msra.mxu0 0.0
    %3174 = vmatprep.subr.mxu0 0.0
    %3175 = vmatpush1.msra.mxu0 0.0
    %3176 = vmatprep.subr.mxu0 0.0
    %3177 = vmatpush1.msra.mxu0 0.0
    %3178 = vmatprep.subr.mxu0 0.0
    %3179 = vmatpush1.msra.mxu0 0.0
    %3180 = vmatprep.subr.mxu0 0.0
    %3181 = vmatpush1.msra.mxu0 0.0
    %3182 = vmatprep.subr.mxu0 0.0
    %3183 = vmatpush1.msra.mxu0 0.0
    %3184 = vmatprep.subr.mxu0 0.0
    %3185 = vmatpush1.msra.mxu0 0.0
    %3186 = vmatprep.subr.mxu0 0.0
    %3187 = vmatpush1.msra.mxu0 0.0
    %3188 = vmatprep.subr.mxu0 0.0
    %3189 = vmatpush1.msra.mxu0 %v3082
    %3190 = vmatprep.subr.mxu0 0.0
    %3191 = vmatpush2.msra.mxu0 0.0
    %3192 = vmatprep.subr.mxu0 0.0
    %3193 = vmatpush2.msra.mxu0 0.0
    %3194 = vmatprep.subr.mxu0 0.0
    %3195 = vmatpush2.msra.mxu0 0.0
    %3196 = vmatprep.subr.mxu0 0.0
    %3197 = vmatpush2.msra.mxu0 0.0
    %3198 = vmatprep.subr.mxu0 0.0
    %3199 = vmatpush2.msra.mxu0 0.0
    %3200 = vmatprep.subr.mxu0 0.0
    %3201 = vmatpush2.msra.mxu0 0.0
    %3202 = vmatprep.subr.mxu0 0.0
    %3203 = vmatpush2.msra.mxu0 0.0
    %3204 = vmatprep.subr.mxu0 0.0
    %3205 = vmatpush2.msra.mxu0 0.0
    %3206 = vmatprep.subr.mxu0 0.0
    %3207 = vmatpush2.msra.mxu0 0.0
    %3208 = vmatprep.subr.mxu0 0.0
    %3209 = vmatpush2.msra.mxu0 0.0
    %3210 = vmatprep.subr.mxu0 0.0
    %3211 = vmatpush2.msra.mxu0 0.0
    %3212 = vmatprep.subr.mxu0 0.0
    %3213 = vmatpush2.msra.mxu0 0.0
    %3214 = vmatprep.subr.mxu0 0.0
    %3215 = vmatpush2.msra.mxu0 0.0
    %3216 = vmatprep.subr.mxu0 0.0
    %3217 = vmatpush2.msra.mxu0 0.0
    %3218 = vmatprep.subr.mxu0 0.0
    %3219 = vmatpush2.msra.mxu0 0.0
    %3220 = vmatprep.subr.mxu0 0.0
    %3221 = vmatpush2.msra.mxu0 0.0
    %3222 = vmatprep.mubr.f32.mxu0 0.0
    %3223 = vmatmul.mubr.f32.gmra.mxu0 %v3156
    %v3224 = vpop.f32.mrf.mxu0
    %v3225 = vadd.f32 0.0, %v3224
    %v3226 = vpop.f32.mrf.mxu0
    %3227 = vdwg.mxu0
    %v3228 = vld [vmem:[#allocation2 + $0x4f0] sm:$0xf]
    %v3230 = vsel %vm2762, %v3228, 0
    %3232 = vmatprep.subr.mxu0 0.0
    %3233 = vmatpush1.msra.mxu0 0.0
    %3234 = vmatprep.subr.mxu0 0.0
    %3235 = vmatpush1.msra.mxu0 0.0
    %3236 = vmatprep.subr.mxu0 0.0
    %3237 = vmatpush1.msra.mxu0 0.0
    %3238 = vmatprep.subr.mxu0 0.0
    %3239 = vmatpush1.msra.mxu0 0.0
    %3240 = vmatprep.subr.mxu0 0.0
    %3241 = vmatpush1.msra.mxu0 0.0
    %3242 = vmatprep.subr.mxu0 0.0
    %3243 = vmatpush1.msra.mxu0 0.0
    %3244 = vmatprep.subr.mxu0 0.0
    %3245 = vmatpush1.msra.mxu0 0.0
    %3246 = vmatprep.subr.mxu0 0.0
    %3247 = vmatpush1.msra.mxu0 0.0
    %3248 = vmatprep.subr.mxu0 0.0
    %3249 = vmatpush1.msra.mxu0 0.0
    %3250 = vmatprep.subr.mxu0 0.0
    %3251 = vmatpush1.msra.mxu0 0.0
    %3252 = vmatprep.subr.mxu0 0.0
    %3253 = vmatpush1.msra.mxu0 0.0
    %3254 = vmatprep.subr.mxu0 0.0
    %3255 = vmatpush1.msra.mxu0 0.0
    %3256 = vmatprep.subr.mxu0 0.0
    %3257 = vmatpush1.msra.mxu0 0.0
    %3258 = vmatprep.subr.mxu0 0.0
    %3259 = vmatpush1.msra.mxu0 0.0
    %3260 = vmatprep.subr.mxu0 0.0
    %3261 = vmatpush1.msra.mxu0 0.0
    %3262 = vmatprep.subr.mxu0 0.0
    %3263 = vmatpush1.msra.mxu0 %v3082
    %3264 = vmatprep.subr.mxu0 0.0
    %3265 = vmatpush2.msra.mxu0 0.0
    %3266 = vmatprep.subr.mxu0 0.0
    %3267 = vmatpush2.msra.mxu0 0.0
    %3268 = vmatprep.subr.mxu0 0.0
    %3269 = vmatpush2.msra.mxu0 0.0
    %3270 = vmatprep.subr.mxu0 0.0
    %3271 = vmatpush2.msra.mxu0 0.0
    %3272 = vmatprep.subr.mxu0 0.0
    %3273 = vmatpush2.msra.mxu0 0.0
    %3274 = vmatprep.subr.mxu0 0.0
    %3275 = vmatpush2.msra.mxu0 0.0
    %3276 = vmatprep.subr.mxu0 0.0
    %3277 = vmatpush2.msra.mxu0 0.0
    %3278 = vmatprep.subr.mxu0 0.0
    %3279 = vmatpush2.msra.mxu0 0.0
    %3280 = vmatprep.subr.mxu0 0.0
    %3281 = vmatpush2.msra.mxu0 0.0
    %3282 = vmatprep.subr.mxu0 0.0
    %3283 = vmatpush2.msra.mxu0 0.0
    %3284 = vmatprep.subr.mxu0 0.0
    %3285 = vmatpush2.msra.mxu0 0.0
    %3286 = vmatprep.subr.mxu0 0.0
    %3287 = vmatpush2.msra.mxu0 0.0
    %3288 = vmatprep.subr.mxu0 0.0
    %3289 = vmatpush2.msra.mxu0 0.0
    %3290 = vmatprep.subr.mxu0 0.0
    %3291 = vmatpush2.msra.mxu0 0.0
    %3292 = vmatprep.subr.mxu0 0.0
    %3293 = vmatpush2.msra.mxu0 0.0
    %3294 = vmatprep.subr.mxu0 0.0
    %3295 = vmatpush2.msra.mxu0 0.0
    %3296 = vmatprep.mubr.f32.mxu0 0.0
    %3297 = vmatmul.mubr.f32.gmra.mxu0 %v3230
    %v3298 = vpop.f32.mrf.mxu0
    %v3299 = vadd.f32 0.0, %v3298
    %v3300 = vpop.f32.mrf.mxu0
    %3301 = vdwg.mxu0
    %3303 = vrot.lane.b32.xlu0 %v3225, 64
    %v3304 = vpop.permute.xlu0 %3303
    %v3306 = vsel %vm162, %v3151, %v3304
    %v3307 = vld [vmem:[#allocation2 + $0x4f8] sm:$0xff]
    %v3308 = vld [vmem:[#allocation2 + $0x500] sm:$0xff]
    %v3309 = vld [vmem:[#allocation2 + $0x508] sm:$0xff]
    %v3310 = vld [vmem:[#allocation2 + $0x510] sm:$0xff]
    %v3311 = vld [vmem:[#allocation2 + $0x518] sm:$0xff]
    %v3312 = vld [vmem:[#allocation2 + $0x520] sm:$0xff]
    %v3313 = vld [vmem:[#allocation2 + $0x528] sm:$0xff]
    %v3314 = vld [vmem:[#allocation2 + $0x530] sm:$0xff]
    %v3315 = vld [vmem:[#allocation2 + $0x538] sm:$0xff]
    %v3316 = vld [vmem:[#allocation2 + $0x540] sm:$0xff]
    %v3317 = vld [vmem:[#allocation2 + $0x548] sm:$0xff]
    %v3318 = vld [vmem:[#allocation2 + $0x550] sm:$0xff]
    %v3319 = vld [vmem:[#allocation2 + $0x558] sm:$0xff]
    %v3320 = vld [vmem:[#allocation2 + $0x560] sm:$0xff]
    %v3321 = vld [vmem:[#allocation2 + $0x568] sm:$0xff]
    %v3322 = vld [vmem:[#allocation2 + $0x570] sm:$0xff]
    %v3323 = vld [vmem:[#allocation2 + $0x578] sm:$0xff]
    %v3324 = vld [vmem:[#allocation2 + $0x580] sm:$0xff]
    %v3325 = vld [vmem:[#allocation2 + $0x588] sm:$0xff]
    %v3326 = vld [vmem:[#allocation2 + $0x590] sm:$0xff]
    %v3327 = vld [vmem:[#allocation2 + $0x598] sm:$0xff]
    %v3328 = vld [vmem:[#allocation2 + $0x5a0] sm:$0xff]
    %v3329 = vld [vmem:[#allocation2 + $0x5a8] sm:$0xff]
    %v3330 = vld [vmem:[#allocation2 + $0x5b0] sm:$0xff]
    %v3331 = vld [vmem:[#allocation2 + $0x5b8] sm:$0x1]
    %v3332 = vlaneseq
    %v3333 = vshrl.u32 %v3332, 7
    %v3334 = vsub.s32 0, %v3333
    %v3335 = vrot.slane %v3331, %v3334
    %v3337 = vsel %vm162, %v3299, 0
    %3339 = vmatprep.subr.mxu0 0.0
    %3340 = vmatpush1.msra.mxu0 %v3322
    %3341 = vmatprep.subr.mxu0 0.0
    %3342 = vmatpush1.msra.mxu0 %v3321
    %3343 = vmatprep.subr.mxu0 0.0
    %3344 = vmatpush1.msra.mxu0 %v3320
    %3345 = vmatprep.subr.mxu0 0.0
    %3346 = vmatpush1.msra.mxu0 %v3319
    %3347 = vmatprep.subr.mxu0 0.0
    %3348 = vmatpush1.msra.mxu0 %v3318
    %3349 = vmatprep.subr.mxu0 0.0
    %3350 = vmatpush1.msra.mxu0 %v3317
    %3351 = vmatprep.subr.mxu0 0.0
    %3352 = vmatpush1.msra.mxu0 %v3316
    %3353 = vmatprep.subr.mxu0 0.0
    %3354 = vmatpush1.msra.mxu0 %v3315
    %3355 = vmatprep.subr.mxu0 0.0
    %3356 = vmatpush1.msra.mxu0 %v3314
    %3357 = vmatprep.subr.mxu0 0.0
    %3358 = vmatpush1.msra.mxu0 %v3313
    %3359 = vmatprep.subr.mxu0 0.0
    %3360 = vmatpush1.msra.mxu0 %v3312
    %3361 = vmatprep.subr.mxu0 0.0
    %3362 = vmatpush1.msra.mxu0 %v3311
    %3363 = vmatprep.subr.mxu0 0.0
    %3364 = vmatpush1.msra.mxu0 %v3310
    %3365 = vmatprep.subr.mxu0 0.0
    %3366 = vmatpush1.msra.mxu0 %v3309
    %3367 = vmatprep.subr.mxu0 0.0
    %3368 = vmatpush1.msra.mxu0 %v3308
    %3369 = vmatprep.subr.mxu0 0.0
    %3370 = vmatpush1.msra.mxu0 %v3307
    %3371 = vmatprep.subr.mxu0 0.0
    %3372 = vmatpush2.msra.mxu0 0.0
    %3373 = vmatprep.subr.mxu0 0.0
    %3374 = vmatpush2.msra.mxu0 0.0
    %3375 = vmatprep.subr.mxu0 0.0
    %3376 = vmatpush2.msra.mxu0 0.0
    %3377 = vmatprep.subr.mxu0 0.0
    %3378 = vmatpush2.msra.mxu0 0.0
    %3379 = vmatprep.subr.mxu0 0.0
    %3380 = vmatpush2.msra.mxu0 0.0
    %3381 = vmatprep.subr.mxu0 0.0
    %3382 = vmatpush2.msra.mxu0 0.0
    %3383 = vmatprep.subr.mxu0 0.0
    %3384 = vmatpush2.msra.mxu0 0.0
    %3385 = vmatprep.subr.mxu0 0.0
    %3386 = vmatpush2.msra.mxu0 0.0
    %3387 = vmatprep.subr.mxu0 0.0
    %3388 = vmatpush2.msra.mxu0 %v3330
    %3389 = vmatprep.subr.mxu0 0.0
    %3390 = vmatpush2.msra.mxu0 %v3329
    %3391 = vmatprep.subr.mxu0 0.0
    %3392 = vmatpush2.msra.mxu0 %v3328
    %3393 = vmatprep.subr.mxu0 0.0
    %3394 = vmatpush2.msra.mxu0 %v3327
    %3395 = vmatprep.subr.mxu0 0.0
    %3396 = vmatpush2.msra.mxu0 %v3326
    %3397 = vmatprep.subr.mxu0 0.0
    %3398 = vmatpush2.msra.mxu0 %v3325
    %3399 = vmatprep.subr.mxu0 0.0
    %3400 = vmatpush2.msra.mxu0 %v3324
    %3401 = vmatprep.subr.mxu0 0.0
    %3402 = vmatpush2.msra.mxu0 %v3323
    %3403 = vmatprep.mubr.f32.mxu0 %v3337
    %3404 = vmatmul.mubr.f32.gmra.mxu0 %v3306
    %v3405 = vpop.f32.mrf.mxu0
    %v3406 = vadd.f32 %v3335, %v3405
    %v3407 = vpop.f32.mrf.mxu0
    %3408 = vdwg.mxu0
    %v3409 = vld [vmem:[#allocation2 + $0x5c0] sm:$0xf]
    %v3410 = vld [vmem:[#allocation2 + $0x5c8] sm:$0xff]
    %v3411 = vld [vmem:[#allocation2 + $0x5d0] sm:$0xff]
    %v3412 = vld [vmem:[#allocation2 + $0x5d8] sm:$0xff]
    %v3413 = vld [vmem:[#allocation2 + $0x5e0] sm:$0xff]
    %v3414 = vld [vmem:[#allocation2 + $0x5e8] sm:$0xff]
    %v3415 = vld [vmem:[#allocation2 + $0x5f0] sm:$0xff]
    %v3416 = vld [vmem:[#allocation2 + $0x5f8] sm:$0xff]
    %v3417 = vld [vmem:[#allocation2 + $0x600] sm:$0xff]
    %v3418 = vld [vmem:[#allocation2 + $0x608] sm:$0xff]
    %v3419 = vld [vmem:[#allocation2 + $0x610] sm:$0xff]
    %v3420 = vld [vmem:[#allocation2 + $0x618] sm:$0xff]
    %v3421 = vld [vmem:[#allocation2 + $0x620] sm:$0xff]
    %v3422 = vld [vmem:[#allocation2 + $0x628] sm:$0xff]
    %v3423 = vld [vmem:[#allocation2 + $0x630] sm:$0xff]
    %v3424 = vld [vmem:[#allocation2 + $0x638] sm:$0xff]
    %v3425 = vld [vmem:[#allocation2 + $0x640] sm:$0xff]
    %v3427 = vsel %vm2762, %v3409, 0
    %v3430 = vsel %vm2766, %v3406, 0
    %3432 = vmatprep.subr.mxu0 0.0
    %3433 = vmatpush1.msra.mxu0 0.0
    %3434 = vmatprep.subr.mxu0 0.0
    %3435 = vmatpush1.msra.mxu0 0.0
    %3436 = vmatprep.subr.mxu0 0.0
    %3437 = vmatpush1.msra.mxu0 0.0
    %3438 = vmatprep.subr.mxu0 0.0
    %3439 = vmatpush1.msra.mxu0 0.0
    %3440 = vmatprep.subr.mxu0 0.0
    %3441 = vmatpush1.msra.mxu0 0.0
    %3442 = vmatprep.subr.mxu0 0.0
    %3443 = vmatpush1.msra.mxu0 0.0
    %3444 = vmatprep.subr.mxu0 0.0
    %3445 = vmatpush1.msra.mxu0 0.0
    %3446 = vmatprep.subr.mxu0 0.0
    %3447 = vmatpush1.msra.mxu0 0.0
    %3448 = vmatprep.subr.mxu0 0.0
    %3449 = vmatpush1.msra.mxu0 0.0
    %3450 = vmatprep.subr.mxu0 0.0
    %3451 = vmatpush1.msra.mxu0 0.0
    %3452 = vmatprep.subr.mxu0 0.0
    %3453 = vmatpush1.msra.mxu0 0.0
    %3454 = vmatprep.subr.mxu0 0.0
    %3455 = vmatpush1.msra.mxu0 0.0
    %3456 = vmatprep.subr.mxu0 0.0
    %3457 = vmatpush1.msra.mxu0 0.0
    %3458 = vmatprep.subr.mxu0 0.0
    %3459 = vmatpush1.msra.mxu0 0.0
    %3460 = vmatprep.subr.mxu0 0.0
    %3461 = vmatpush1.msra.mxu0 0.0
    %3462 = vmatprep.subr.mxu0 0.0
    %3463 = vmatpush1.msra.mxu0 %v3430
    %3464 = vmatprep.subr.mxu0 0.0
    %3465 = vmatpush2.msra.mxu0 0.0
    %3466 = vmatprep.subr.mxu0 0.0
    %3467 = vmatpush2.msra.mxu0 0.0
    %3468 = vmatprep.subr.mxu0 0.0
    %3469 = vmatpush2.msra.mxu0 0.0
    %3470 = vmatprep.subr.mxu0 0.0
    %3471 = vmatpush2.msra.mxu0 0.0
    %3472 = vmatprep.subr.mxu0 0.0
    %3473 = vmatpush2.msra.mxu0 0.0
    %3474 = vmatprep.subr.mxu0 0.0
    %3475 = vmatpush2.msra.mxu0 0.0
    %3476 = vmatprep.subr.mxu0 0.0
    %3477 = vmatpush2.msra.mxu0 0.0
    %3478 = vmatprep.subr.mxu0 0.0
    %3479 = vmatpush2.msra.mxu0 0.0
    %3480 = vmatprep.subr.mxu0 0.0
    %3481 = vmatpush2.msra.mxu0 0.0
    %3482 = vmatprep.subr.mxu0 0.0
    %3483 = vmatpush2.msra.mxu0 0.0
    %3484 = vmatprep.subr.mxu0 0.0
    %3485 = vmatpush2.msra.mxu0 0.0
    %3486 = vmatprep.subr.mxu0 0.0
    %3487 = vmatpush2.msra.mxu0 0.0
    %3488 = vmatprep.subr.mxu0 0.0
    %3489 = vmatpush2.msra.mxu0 0.0
    %3490 = vmatprep.subr.mxu0 0.0
    %3491 = vmatpush2.msra.mxu0 0.0
    %3492 = vmatprep.subr.mxu0 0.0
    %3493 = vmatpush2.msra.mxu0 0.0
    %3494 = vmatprep.subr.mxu0 0.0
    %3495 = vmatpush2.msra.mxu0 0.0
    %3496 = vmatprep.mubr.f32.mxu0 0.0
    %3497 = vmatmul.mubr.f32.gmra.mxu0 %v3427
    %v3498 = vpop.f32.mrf.mxu0
    %v3499 = vadd.f32 0.0, %v3498
    %v3500 = vpop.f32.mrf.mxu0
    %3501 = vdwg.mxu0
    %3502 = vmatprep.subr.mxu0 0.0
    %3503 = vmatpush1.msra.mxu0 %v3425
    %3504 = vmatprep.subr.mxu0 0.0
    %3505 = vmatpush1.msra.mxu0 %v3424
    %3506 = vmatprep.subr.mxu0 0.0
    %3507 = vmatpush1.msra.mxu0 %v3423
    %3508 = vmatprep.subr.mxu0 0.0
    %3509 = vmatpush1.msra.mxu0 %v3422
    %3510 = vmatprep.subr.mxu0 0.0
    %3511 = vmatpush1.msra.mxu0 %v3421
    %3512 = vmatprep.subr.mxu0 0.0
    %3513 = vmatpush1.msra.mxu0 %v3420
    %3514 = vmatprep.subr.mxu0 0.0
    %3515 = vmatpush1.msra.mxu0 %v3419
    %3516 = vmatprep.subr.mxu0 0.0
    %3517 = vmatpush1.msra.mxu0 %v3418
    %3518 = vmatprep.subr.mxu0 0.0
    %3519 = vmatpush1.msra.mxu0 %v3417
    %3520 = vmatprep.subr.mxu0 0.0
    %3521 = vmatpush1.msra.mxu0 %v3416
    %3522 = vmatprep.subr.mxu0 0.0
    %3523 = vmatpush1.msra.mxu0 %v3415
    %3524 = vmatprep.subr.mxu0 0.0
    %3525 = vmatpush1.msra.mxu0 %v3414
    %3526 = vmatprep.subr.mxu0 0.0
    %3527 = vmatpush1.msra.mxu0 %v3413
    %3528 = vmatprep.subr.mxu0 0.0
    %3529 = vmatpush1.msra.mxu0 %v3412
    %3530 = vmatprep.subr.mxu0 0.0
    %3531 = vmatpush1.msra.mxu0 %v3411
    %3532 = vmatprep.subr.mxu0 0.0
    %3533 = vmatpush1.msra.mxu0 %v3410
    %3534 = vmatprep.subr.mxu0 0.0
    %3535 = vmatpush2.msra.mxu0 0.0
    %3536 = vmatprep.subr.mxu0 0.0
    %3537 = vmatpush2.msra.mxu0 0.0
    %3538 = vmatprep.subr.mxu0 0.0
    %3539 = vmatpush2.msra.mxu0 0.0
    %3540 = vmatprep.subr.mxu0 0.0
    %3541 = vmatpush2.msra.mxu0 0.0
    %3542 = vmatprep.subr.mxu0 0.0
    %3543 = vmatpush2.msra.mxu0 0.0
    %3544 = vmatprep.subr.mxu0 0.0
    %3545 = vmatpush2.msra.mxu0 0.0
    %3546 = vmatprep.subr.mxu0 0.0
    %3547 = vmatpush2.msra.mxu0 0.0
    %3548 = vmatprep.subr.mxu0 0.0
    %3549 = vmatpush2.msra.mxu0 0.0
    %3550 = vmatprep.subr.mxu0 0.0
    %3551 = vmatpush2.msra.mxu0 0.0
    %3552 = vmatprep.subr.mxu0 0.0
    %3553 = vmatpush2.msra.mxu0 0.0
    %3554 = vmatprep.subr.mxu0 0.0
    %3555 = vmatpush2.msra.mxu0 0.0
    %3556 = vmatprep.subr.mxu0 0.0
    %3557 = vmatpush2.msra.mxu0 0.0
    %3558 = vmatprep.subr.mxu0 0.0
    %3559 = vmatpush2.msra.mxu0 0.0
    %3560 = vmatprep.subr.mxu0 0.0
    %3561 = vmatpush2.msra.mxu0 0.0
    %3562 = vmatprep.subr.mxu0 0.0
    %3563 = vmatpush2.msra.mxu0 0.0
    %3564 = vmatprep.subr.mxu0 0.0
    %3565 = vmatpush2.msra.mxu0 0.0
    %3566 = vmatprep.mubr.f32.mxu0 0.0
    %3567 = vmatmul.mubr.f32.gmra.mxu0 %v3499
    %v3568 = vpop.f32.mrf.mxu0
    %v3569 = vadd.f32 0.0, %v3568
    %v3570 = vpop.f32.mrf.mxu0
    %3571 = vdwg.mxu0
    %v3572 = vmul.f32 %v3406, %v3406
    %v3574 = vsel %vm2766, %v3572, 0
    %3576 = vmatprep.subr.mxu0 0.0
    %3577 = vmatpush1.msra.mxu0 0.0
    %3578 = vmatprep.subr.mxu0 0.0
    %3579 = vmatpush1.msra.mxu0 0.0
    %3580 = vmatprep.subr.mxu0 0.0
    %3581 = vmatpush1.msra.mxu0 0.0
    %3582 = vmatprep.subr.mxu0 0.0
    %3583 = vmatpush1.msra.mxu0 0.0
    %3584 = vmatprep.subr.mxu0 0.0
    %3585 = vmatpush1.msra.mxu0 0.0
    %3586 = vmatprep.subr.mxu0 0.0
    %3587 = vmatpush1.msra.mxu0 0.0
    %3588 = vmatprep.subr.mxu0 0.0
    %3589 = vmatpush1.msra.mxu0 0.0
    %3590 = vmatprep.subr.mxu0 0.0
    %3591 = vmatpush1.msra.mxu0 0.0
    %3592 = vmatprep.subr.mxu0 0.0
    %3593 = vmatpush1.msra.mxu0 0.0
    %3594 = vmatprep.subr.mxu0 0.0
    %3595 = vmatpush1.msra.mxu0 0.0
    %3596 = vmatprep.subr.mxu0 0.0
    %3597 = vmatpush1.msra.mxu0 0.0
    %3598 = vmatprep.subr.mxu0 0.0
    %3599 = vmatpush1.msra.mxu0 0.0
    %3600 = vmatprep.subr.mxu0 0.0
    %3601 = vmatpush1.msra.mxu0 0.0
    %3602 = vmatprep.subr.mxu0 0.0
    %3603 = vmatpush1.msra.mxu0 0.0
    %3604 = vmatprep.subr.mxu0 0.0
    %3605 = vmatpush1.msra.mxu0 0.0
    %3606 = vmatprep.subr.mxu0 0.0
    %3607 = vmatpush1.msra.mxu0 %v3574
    %3608 = vmatprep.subr.mxu0 0.0
    %3609 = vmatpush2.msra.mxu0 0.0
    %3610 = vmatprep.subr.mxu0 0.0
    %3611 = vmatpush2.msra.mxu0 0.0
    %3612 = vmatprep.subr.mxu0 0.0
    %3613 = vmatpush2.msra.mxu0 0.0
    %3614 = vmatprep.subr.mxu0 0.0
    %3615 = vmatpush2.msra.mxu0 0.0
    %3616 = vmatprep.subr.mxu0 0.0
    %3617 = vmatpush2.msra.mxu0 0.0
    %3618 = vmatprep.subr.mxu0 0.0
    %3619 = vmatpush2.msra.mxu0 0.0
    %3620 = vmatprep.subr.mxu0 0.0
    %3621 = vmatpush2.msra.mxu0 0.0
    %3622 = vmatprep.subr.mxu0 0.0
    %3623 = vmatpush2.msra.mxu0 0.0
    %3624 = vmatprep.subr.mxu0 0.0
    %3625 = vmatpush2.msra.mxu0 0.0
    %3626 = vmatprep.subr.mxu0 0.0
    %3627 = vmatpush2.msra.mxu0 0.0
    %3628 = vmatprep.subr.mxu0 0.0
    %3629 = vmatpush2.msra.mxu0 0.0
    %3630 = vmatprep.subr.mxu0 0.0
    %3631 = vmatpush2.msra.mxu0 0.0
    %3632 = vmatprep.subr.mxu0 0.0
    %3633 = vmatpush2.msra.mxu0 0.0
    %3634 = vmatprep.subr.mxu0 0.0
    %3635 = vmatpush2.msra.mxu0 0.0
    %3636 = vmatprep.subr.mxu0 0.0
    %3637 = vmatpush2.msra.mxu0 0.0
    %3638 = vmatprep.subr.mxu0 0.0
    %3639 = vmatpush2.msra.mxu0 0.0
    %3640 = vmatprep.mubr.f32.mxu0 0.0
    %3641 = vmatmul.mubr.f32.gmra.mxu0 %v3427
    %v3642 = vpop.f32.mrf.mxu0
    %v3643 = vadd.f32 0.0, %v3642
    %v3644 = vpop.f32.mrf.mxu0
    %3645 = vdwg.mxu0
    %3646 = vmatprep.subr.mxu0 0.0
    %3647 = vmatpush1.msra.mxu0 %v3425
    %3648 = vmatprep.subr.mxu0 0.0
    %3649 = vmatpush1.msra.mxu0 %v3424
    %3650 = vmatprep.subr.mxu0 0.0
    %3651 = vmatpush1.msra.mxu0 %v3423
    %3652 = vmatprep.subr.mxu0 0.0
    %3653 = vmatpush1.msra.mxu0 %v3422
    %3654 = vmatprep.subr.mxu0 0.0
    %3655 = vmatpush1.msra.mxu0 %v3421
    %3656 = vmatprep.subr.mxu0 0.0
    %3657 = vmatpush1.msra.mxu0 %v3420
    %3658 = vmatprep.subr.mxu0 0.0
    %3659 = vmatpush1.msra.mxu0 %v3419
    %3660 = vmatprep.subr.mxu0 0.0
    %3661 = vmatpush1.msra.mxu0 %v3418
    %3662 = vmatprep.subr.mxu0 0.0
    %3663 = vmatpush1.msra.mxu0 %v3417
    %3664 = vmatprep.subr.mxu0 0.0
    %3665 = vmatpush1.msra.mxu0 %v3416
    %3666 = vmatprep.subr.mxu0 0.0
    %3667 = vmatpush1.msra.mxu0 %v3415
    %3668 = vmatprep.subr.mxu0 0.0
    %3669 = vmatpush1.msra.mxu0 %v3414
    %3670 = vmatprep.subr.mxu0 0.0
    %3671 = vmatpush1.msra.mxu0 %v3413
    %3672 = vmatprep.subr.mxu0 0.0
    %3673 = vmatpush1.msra.mxu0 %v3412
    %3674 = vmatprep.subr.mxu0 0.0
    %3675 = vmatpush1.msra.mxu0 %v3411
    %3676 = vmatprep.subr.mxu0 0.0
    %3677 = vmatpush1.msra.mxu0 %v3410
    %3678 = vmatprep.subr.mxu0 0.0
    %3679 = vmatpush2.msra.mxu0 0.0
    %3680 = vmatprep.subr.mxu0 0.0
    %3681 = vmatpush2.msra.mxu0 0.0
    %3682 = vmatprep.subr.mxu0 0.0
    %3683 = vmatpush2.msra.mxu0 0.0
    %3684 = vmatprep.subr.mxu0 0.0
    %3685 = vmatpush2.msra.mxu0 0.0
    %3686 = vmatprep.subr.mxu0 0.0
    %3687 = vmatpush2.msra.mxu0 0.0
    %3688 = vmatprep.subr.mxu0 0.0
    %3689 = vmatpush2.msra.mxu0 0.0
    %3690 = vmatprep.subr.mxu0 0.0
    %3691 = vmatpush2.msra.mxu0 0.0
    %3692 = vmatprep.subr.mxu0 0.0
    %3693 = vmatpush2.msra.mxu0 0.0
    %3694 = vmatprep.subr.mxu0 0.0
    %3695 = vmatpush2.msra.mxu0 0.0
    %3696 = vmatprep.subr.mxu0 0.0
    %3697 = vmatpush2.msra.mxu0 0.0
    %3698 = vmatprep.subr.mxu0 0.0
    %3699 = vmatpush2.msra.mxu0 0.0
    %3700 = vmatprep.subr.mxu0 0.0
    %3701 = vmatpush2.msra.mxu0 0.0
    %3702 = vmatprep.subr.mxu0 0.0
    %3703 = vmatpush2.msra.mxu0 0.0
    %3704 = vmatprep.subr.mxu0 0.0
    %3705 = vmatpush2.msra.mxu0 0.0
    %3706 = vmatprep.subr.mxu0 0.0
    %3707 = vmatpush2.msra.mxu0 0.0
    %3708 = vmatprep.subr.mxu0 0.0
    %3709 = vmatpush2.msra.mxu0 0.0
    %3710 = vmatprep.mubr.f32.mxu0 0.0
    %3711 = vmatmul.mubr.f32.gmra.mxu0 %v3643
    %v3712 = vpop.f32.mrf.mxu0
    %v3713 = vadd.f32 0.0, %v3712
    %v3714 = vpop.f32.mrf.mxu0
    %3715 = vdwg.mxu0
    %v3716 = vmul.f32 %v3569, %v3569
    %v3717 = vsub.f32 %v3713, %v3716
    %v3718 = vsub.f32 %v3406, %v3569
    %v3719 = vadd.f32 %v3717, 1e-05
    %v3720 = vrsqrt.pop %v3719
    %v3721 = vmul.f32 %v3718, %v3720
    %v3722 = vld [vmem:[#allocation2 + $0x648] sm:$0x1]
    %vm3723 = vcmp.ge.f32.partialorder %v3721, 0.0
    %s3725 = vtos %v3722
    %v3726 = vstv %s3725
    %v3728 = vmul.f32 %v3726, %v3721
    %v3729 = vsel %vm3723, %v3721, %v3728
    %s3730 = smul.u32 688, 1
    %s3731 = sshll.u32 %s3730, 4
    %3732 = dma.done %s93, %s3731
    %3734 = vrot.lane.b32.xlu0 %v3729, 64
    %v3735 = vpop.permute.xlu0 %3734
    %v3737 = vsel %vm162, %v3073, %v3735
    %v3738 = vld [vmem:[#allocation2 + $0x650] sm:$0xff]
    %v3740 = vsel %vm2762, %v3738, 0
    %v3743 = vsel %vm2766, %v3737, 0
    %v3745 = vsel %vm2766, %v3735, 0
    %3747 = vmatprep.subr.mxu0 0.0
    %3748 = vmatpush1.msra.mxu0 0.0
    %3749 = vmatprep.subr.mxu0 0.0
    %3750 = vmatpush1.msra.mxu0 0.0
    %3751 = vmatprep.subr.mxu0 0.0
    %3752 = vmatpush1.msra.mxu0 0.0
    %3753 = vmatprep.subr.mxu0 0.0
    %3754 = vmatpush1.msra.mxu0 0.0
    %3755 = vmatprep.subr.mxu0 0.0
    %3756 = vmatpush1.msra.mxu0 0.0
    %3757 = vmatprep.subr.mxu0 0.0
    %3758 = vmatpush1.msra.mxu0 0.0
    %3759 = vmatprep.subr.mxu0 0.0
    %3760 = vmatpush1.msra.mxu0 0.0
    %3761 = vmatprep.subr.mxu0 0.0
    %3762 = vmatpush1.msra.mxu0 0.0
    %3763 = vmatprep.subr.mxu0 0.0
    %3764 = vmatpush1.msra.mxu0 0.0
    %3765 = vmatprep.subr.mxu0 0.0
    %3766 = vmatpush1.msra.mxu0 0.0
    %3767 = vmatprep.subr.mxu0 0.0
    %3768 = vmatpush1.msra.mxu0 0.0
    %3769 = vmatprep.subr.mxu0 0.0
    %3770 = vmatpush1.msra.mxu0 0.0
    %3771 = vmatprep.subr.mxu0 0.0
    %3772 = vmatpush1.msra.mxu0 0.0
    %3773 = vmatprep.subr.mxu0 0.0
    %3774 = vmatpush1.msra.mxu0 0.0
    %3775 = vmatprep.subr.mxu0 0.0
    %3776 = vmatpush1.msra.mxu0 0.0
    %3777 = vmatprep.subr.mxu0 %v3745
    %3778 = vmatpush1.msra.mxu0 %v3743
    %3779 = vmatprep.subr.mxu0 0.0
    %3780 = vmatpush2.msra.mxu0 0.0
    %3781 = vmatprep.subr.mxu0 0.0
    %3782 = vmatpush2.msra.mxu0 0.0
    %3783 = vmatprep.subr.mxu0 0.0
    %3784 = vmatpush2.msra.mxu0 0.0
    %3785 = vmatprep.subr.mxu0 0.0
    %3786 = vmatpush2.msra.mxu0 0.0
    %3787 = vmatprep.subr.mxu0 0.0
    %3788 = vmatpush2.msra.mxu0 0.0
    %3789 = vmatprep.subr.mxu0 0.0
    %3790 = vmatpush2.msra.mxu0 0.0
    %3791 = vmatprep.subr.mxu0 0.0
    %3792 = vmatpush2.msra.mxu0 0.0
    %3793 = vmatprep.subr.mxu0 0.0
    %3794 = vmatpush2.msra.mxu0 0.0
    %3795 = vmatprep.subr.mxu0 0.0
    %3796 = vmatpush2.msra.mxu0 0.0
    %3797 = vmatprep.subr.mxu0 0.0
    %3798 = vmatpush2.msra.mxu0 0.0
    %3799 = vmatprep.subr.mxu0 0.0
    %3800 = vmatpush2.msra.mxu0 0.0
    %3801 = vmatprep.subr.mxu0 0.0
    %3802 = vmatpush2.msra.mxu0 0.0
    %3803 = vmatprep.subr.mxu0 0.0
    %3804 = vmatpush2.msra.mxu0 0.0
    %3805 = vmatprep.subr.mxu0 0.0
    %3806 = vmatpush2.msra.mxu0 0.0
    %3807 = vmatprep.subr.mxu0 0.0
    %3808 = vmatpush2.msra.mxu0 0.0
    %3809 = vmatprep.subr.mxu0 0.0
    %3810 = vmatpush2.msra.mxu0 0.0
    %3811 = vmatprep.mubr.f32.mxu0 0.0
    %3812 = vmatmul.mubr.f32.gmra.mxu0 %v3740
    %v3813 = vpop.f32.mrf.mxu0
    %v3814 = vadd.f32 0.0, %v3813
    %v3815 = vpop.f32.mrf.mxu0
    %v3816 = vadd.f32 0.0, %v3815
    %3817 = vdwg.mxu0
    %v3818 = vld [vmem:[#allocation2 + $0x658] sm:$0xff]
    %v3820 = vsel %vm2762, %v3818, 0
    %3822 = vmatprep.subr.mxu0 0.0
    %3823 = vmatpush1.msra.mxu0 0.0
    %3824 = vmatprep.subr.mxu0 0.0
    %3825 = vmatpush1.msra.mxu0 0.0
    %3826 = vmatprep.subr.mxu0 0.0
    %3827 = vmatpush1.msra.mxu0 0.0
    %3828 = vmatprep.subr.mxu0 0.0
    %3829 = vmatpush1.msra.mxu0 0.0
    %3830 = vmatprep.subr.mxu0 0.0
    %3831 = vmatpush1.msra.mxu0 0.0
    %3832 = vmatprep.subr.mxu0 0.0
    %3833 = vmatpush1.msra.mxu0 0.0
    %3834 = vmatprep.subr.mxu0 0.0
    %3835 = vmatpush1.msra.mxu0 0.0
    %3836 = vmatprep.subr.mxu0 0.0
    %3837 = vmatpush1.msra.mxu0 0.0
    %3838 = vmatprep.subr.mxu0 0.0
    %3839 = vmatpush1.msra.mxu0 0.0
    %3840 = vmatprep.subr.mxu0 0.0
    %3841 = vmatpush1.msra.mxu0 0.0
    %3842 = vmatprep.subr.mxu0 0.0
    %3843 = vmatpush1.msra.mxu0 0.0
    %3844 = vmatprep.subr.mxu0 0.0
    %3845 = vmatpush1.msra.mxu0 0.0
    %3846 = vmatprep.subr.mxu0 0.0
    %3847 = vmatpush1.msra.mxu0 0.0
    %3848 = vmatprep.subr.mxu0 0.0
    %3849 = vmatpush1.msra.mxu0 0.0
    %3850 = vmatprep.subr.mxu0 0.0
    %3851 = vmatpush1.msra.mxu0 0.0
    %3852 = vmatprep.subr.mxu0 %v3745
    %3853 = vmatpush1.msra.mxu0 %v3743
    %3854 = vmatprep.subr.mxu0 0.0
    %3855 = vmatpush2.msra.mxu0 0.0
    %3856 = vmatprep.subr.mxu0 0.0
    %3857 = vmatpush2.msra.mxu0 0.0
    %3858 = vmatprep.subr.mxu0 0.0
    %3859 = vmatpush2.msra.mxu0 0.0
    %3860 = vmatprep.subr.mxu0 0.0
    %3861 = vmatpush2.msra.mxu0 0.0
    %3862 = vmatprep.subr.mxu0 0.0
    %3863 = vmatpush2.msra.mxu0 0.0
    %3864 = vmatprep.subr.mxu0 0.0
    %3865 = vmatpush2.msra.mxu0 0.0
    %3866 = vmatprep.subr.mxu0 0.0
    %3867 = vmatpush2.msra.mxu0 0.0
    %3868 = vmatprep.subr.mxu0 0.0
    %3869 = vmatpush2.msra.mxu0 0.0
    %3870 = vmatprep.subr.mxu0 0.0
    %3871 = vmatpush2.msra.mxu0 0.0
    %3872 = vmatprep.subr.mxu0 0.0
    %3873 = vmatpush2.msra.mxu0 0.0
    %3874 = vmatprep.subr.mxu0 0.0
    %3875 = vmatpush2.msra.mxu0 0.0
    %3876 = vmatprep.subr.mxu0 0.0
    %3877 = vmatpush2.msra.mxu0 0.0
    %3878 = vmatprep.subr.mxu0 0.0
    %3879 = vmatpush2.msra.mxu0 0.0
    %3880 = vmatprep.subr.mxu0 0.0
    %3881 = vmatpush2.msra.mxu0 0.0
    %3882 = vmatprep.subr.mxu0 0.0
    %3883 = vmatpush2.msra.mxu0 0.0
    %3884 = vmatprep.subr.mxu0 0.0
    %3885 = vmatpush2.msra.mxu0 0.0
    %3886 = vmatprep.mubr.f32.mxu0 0.0
    %3887 = vmatmul.mubr.f32.gmra.mxu0 %v3820
    %v3888 = vpop.f32.mrf.mxu0
    %v3889 = vadd.f32 0.0, %v3888
    %v3890 = vpop.f32.mrf.mxu0
    %v3891 = vadd.f32 0.0, %v3890
    %3892 = vdwg.mxu0
    %v3893 = vld [vmem:[#allocation2 + $0x660] sm:$0xff]
    %v3895 = vsel %vm2762, %v3893, 0
    %3897 = vmatprep.subr.mxu0 0.0
    %3898 = vmatpush1.msra.mxu0 0.0
    %3899 = vmatprep.subr.mxu0 0.0
    %3900 = vmatpush1.msra.mxu0 0.0
    %3901 = vmatprep.subr.mxu0 0.0
    %3902 = vmatpush1.msra.mxu0 0.0
    %3903 = vmatprep.subr.mxu0 0.0
    %3904 = vmatpush1.msra.mxu0 0.0
    %3905 = vmatprep.subr.mxu0 0.0
    %3906 = vmatpush1.msra.mxu0 0.0
    %3907 = vmatprep.subr.mxu0 0.0
    %3908 = vmatpush1.msra.mxu0 0.0
    %3909 = vmatprep.subr.mxu0 0.0
    %3910 = vmatpush1.msra.mxu0 0.0
    %3911 = vmatprep.subr.mxu0 0.0
    %3912 = vmatpush1.msra.mxu0 0.0
    %3913 = vmatprep.subr.mxu0 0.0
    %3914 = vmatpush1.msra.mxu0 0.0
    %3915 = vmatprep.subr.mxu0 0.0
    %3916 = vmatpush1.msra.mxu0 0.0
    %3917 = vmatprep.subr.mxu0 0.0
    %3918 = vmatpush1.msra.mxu0 0.0
    %3919 = vmatprep.subr.mxu0 0.0
    %3920 = vmatpush1.msra.mxu0 0.0
    %3921 = vmatprep.subr.mxu0 0.0
    %3922 = vmatpush1.msra.mxu0 0.0
    %3923 = vmatprep.subr.mxu0 0.0
    %3924 = vmatpush1.msra.mxu0 0.0
    %3925 = vmatprep.subr.mxu0 0.0
    %3926 = vmatpush1.msra.mxu0 0.0
    %3927 = vmatprep.subr.mxu0 %v3745
    %3928 = vmatpush1.msra.mxu0 %v3743
    %3929 = vmatprep.subr.mxu0 0.0
    %3930 = vmatpush2.msra.mxu0 0.0
    %3931 = vmatprep.subr.mxu0 0.0
    %3932 = vmatpush2.msra.mxu0 0.0
    %3933 = vmatprep.subr.mxu0 0.0
    %3934 = vmatpush2.msra.mxu0 0.0
    %3935 = vmatprep.subr.mxu0 0.0
    %3936 = vmatpush2.msra.mxu0 0.0
    %3937 = vmatprep.subr.mxu0 0.0
    %3938 = vmatpush2.msra.mxu0 0.0
    %3939 = vmatprep.subr.mxu0 0.0
    %3940 = vmatpush2.msra.mxu0 0.0
    %3941 = vmatprep.subr.mxu0 0.0
    %3942 = vmatpush2.msra.mxu0 0.0
    %3943 = vmatprep.subr.mxu0 0.0
    %3944 = vmatpush2.msra.mxu0 0.0
    %3945 = vmatprep.subr.mxu0 0.0
    %3946 = vmatpush2.msra.mxu0 0.0
    %3947 = vmatprep.subr.mxu0 0.0
    %3948 = vmatpush2.msra.mxu0 0.0
    %3949 = vmatprep.subr.mxu0 0.0
    %3950 = vmatpush2.msra.mxu0 0.0
    %3951 = vmatprep.subr.mxu0 0.0
    %3952 = vmatpush2.msra.mxu0 0.0
    %3953 = vmatprep.subr.mxu0 0.0
    %3954 = vmatpush2.msra.mxu0 0.0
    %3955 = vmatprep.subr.mxu0 0.0
    %3956 = vmatpush2.msra.mxu0 0.0
    %3957 = vmatprep.subr.mxu0 0.0
    %3958 = vmatpush2.msra.mxu0 0.0
    %3959 = vmatprep.subr.mxu0 0.0
    %3960 = vmatpush2.msra.mxu0 0.0
    %3961 = vmatprep.mubr.f32.mxu0 0.0
    %3962 = vmatmul.mubr.f32.gmra.mxu0 %v3895
    %v3963 = vpop.f32.mrf.mxu0
    %v3964 = vadd.f32 0.0, %v3963
    %v3965 = vpop.f32.mrf.mxu0
    %v3966 = vadd.f32 0.0, %v3965
    %3967 = vdwg.mxu0
    %3970 = vrot.lane.b32.xlu0 %v3889, 64
    %v3971 = vpop.permute.xlu0 %3970
    %3972 = vrot.lane.b32.xlu0 %v3891, 64
    %v3973 = vpop.permute.xlu0 %3972
    %v3974 = vsel %vm162, %v3971, %v3973
    %v3977 = vsel %vm162, %v3816, %v3971
    %v3978 = vld [vmem:[#allocation2 + $0x668] sm:$0xff]
    %v3979 = vld [vmem:[#allocation2 + $0x670] sm:$0xff]
    %v3980 = vld [vmem:[#allocation2 + $0x678] sm:$0xff]
    %v3981 = vld [vmem:[#allocation2 + $0x680] sm:$0xff]
    %v3982 = vld [vmem:[#allocation2 + $0x688] sm:$0xff]
    %v3983 = vld [vmem:[#allocation2 + $0x690] sm:$0xff]
    %v3984 = vld [vmem:[#allocation2 + $0x698] sm:$0xff]
    %v3985 = vld [vmem:[#allocation2 + $0x6a0] sm:$0xff]
    %v3986 = vld [vmem:[#allocation2 + $0x6a8] sm:$0xff]
    %v3987 = vld [vmem:[#allocation2 + $0x6b0] sm:$0xff]
    %v3988 = vld [vmem:[#allocation2 + $0x6b8] sm:$0xff]
    %v3989 = vld [vmem:[#allocation2 + $0x6c0] sm:$0xff]
    %v3990 = vld [vmem:[#allocation2 + $0x6c8] sm:$0xff]
    %v3991 = vld [vmem:[#allocation2 + $0x6d0] sm:$0xff]
    %v3992 = vld [vmem:[#allocation2 + $0x6d8] sm:$0xff]
    %v3993 = vld [vmem:[#allocation2 + $0x6e0] sm:$0xff]
    %v3994 = vld [vmem:[#allocation2 + $0x6e8] sm:$0xff]
    %v3995 = vld [vmem:[#allocation2 + $0x6f0] sm:$0xff]
    %v3996 = vld [vmem:[#allocation2 + $0x6f8] sm:$0xff]
    %v3997 = vld [vmem:[#allocation2 + $0x700] sm:$0xff]
    %v3998 = vld [vmem:[#allocation2 + $0x708] sm:$0xff]
    %v3999 = vld [vmem:[#allocation2 + $0x710] sm:$0xff]
    %v4000 = vld [vmem:[#allocation2 + $0x718] sm:$0xff]
    %v4001 = vld [vmem:[#allocation2 + $0x720] sm:$0xff]
    %v4002 = vld [vmem:[#allocation2 + $0x728] sm:$0xff]
    %v4003 = vld [vmem:[#allocation2 + $0x730] sm:$0xff]
    %v4004 = vld [vmem:[#allocation2 + $0x738] sm:$0xff]
    %v4005 = vld [vmem:[#allocation2 + $0x740] sm:$0xff]
    %v4006 = vld [vmem:[#allocation2 + $0x748] sm:$0xff]
    %v4007 = vld [vmem:[#allocation2 + $0x750] sm:$0xff]
    %v4008 = vld [vmem:[#allocation2 + $0x758] sm:$0xff]
    %v4009 = vld [vmem:[#allocation2 + $0x760] sm:$0xff]
    %v4010 = vld [vmem:[#allocation2 + $0x768] sm:$0xff]
    %v4011 = vld [vmem:[#allocation2 + $0x770] sm:$0xff]
    %v4012 = vld [vmem:[#allocation2 + $0x778] sm:$0xff]
    %v4013 = vld [vmem:[#allocation2 + $0x780] sm:$0xff]
    %v4014 = vld [vmem:[#allocation2 + $0x788] sm:$0xff]
    %v4015 = vld [vmem:[#allocation2 + $0x790] sm:$0xff]
    %v4016 = vld [vmem:[#allocation2 + $0x798] sm:$0xff]
    %v4017 = vld [vmem:[#allocation2 + $0x7a0] sm:$0xff]
    %v4018 = vld [vmem:[#allocation2 + $0x7a8] sm:$0xff]
    %v4019 = vld [vmem:[#allocation2 + $0x7b0] sm:$0xff]
    %v4020 = vld [vmem:[#allocation2 + $0x7b8] sm:$0xff]
    %v4021 = vld [vmem:[#allocation2 + $0x7c0] sm:$0xff]
    %v4022 = vld [vmem:[#allocation2 + $0x7c8] sm:$0xff]
    %v4023 = vld [vmem:[#allocation2 + $0x7d0] sm:$0xff]
    %v4024 = vld [vmem:[#allocation2 + $0x7d8] sm:$0xff]
    %v4025 = vld [vmem:[#allocation2 + $0x7e0] sm:$0xff]
    %v4026 = vld [vmem:[#allocation2 + $0x7e8] sm:$0xff]
    %v4027 = vld [vmem:[#allocation2 + $0x7f0] sm:$0xff]
    %v4028 = vld [vmem:[#allocation2 + $0x7f8] sm:$0xff]
    %v4029 = vld [vmem:[#allocation2 + $0x800] sm:$0xff]
    %v4030 = vld [vmem:[#allocation2 + $0x808] sm:$0xff]
    %v4031 = vld [vmem:[#allocation2 + $0x810] sm:$0xff]
    %v4032 = vld [vmem:[#allocation2 + $0x818] sm:$0xff]
    %v4033 = vld [vmem:[#allocation2 + $0x820] sm:$0xff]
    %v4034 = vld [vmem:[#allocation2 + $0x828] sm:$0xff]
    %v4035 = vld [vmem:[#allocation2 + $0x830] sm:$0xff]
    %v4036 = vld [vmem:[#allocation2 + $0x838] sm:$0xff]
    %v4037 = vld [vmem:[#allocation2 + $0x840] sm:$0xff]
    %v4038 = vld [vmem:[#allocation2 + $0x848] sm:$0xff]
    %v4039 = vld [vmem:[#allocation2 + $0x850] sm:$0xff]
    %v4040 = vld [vmem:[#allocation2 + $0x858] sm:$0xff]
    %v4041 = vld [vmem:[#allocation2 + $0x860] sm:$0xff]
    %v4042 = vld [vmem:[#allocation2 + $0x868] sm:$0xff]
    %v4043 = vld [vmem:[#allocation2 + $0x870] sm:$0xff]
    %v4044 = vld [vmem:[#allocation2 + $0x878] sm:$0xff]
    %v4045 = vld [vmem:[#allocation2 + $0x880] sm:$0xff]
    %v4046 = vld [vmem:[#allocation2 + $0x888] sm:$0xff]
    %v4047 = vld [vmem:[#allocation2 + $0x890] sm:$0xff]
    %v4048 = vld [vmem:[#allocation2 + $0x898] sm:$0xff]
    %v4049 = vld [vmem:[#allocation2 + $0x8a0] sm:$0xff]
    %v4050 = vld [vmem:[#allocation2 + $0x8a8] sm:$0x1]
    %v4051 = vlaneseq
    %v4052 = vshrl.u32 %v4051, 7
    %v4053 = vsub.s32 0, %v4052
    %v4054 = vrot.slane %v4050, %v4053
    %v4056 = vsel %vm162, %v3966, 0
    %4058 = vmatprep.subr.mxu0 0.0
    %4059 = vmatpush1.msra.mxu0 %v3993
    %4060 = vmatprep.subr.mxu0 0.0
    %4061 = vmatpush1.msra.mxu0 %v3992
    %4062 = vmatprep.subr.mxu0 0.0
    %4063 = vmatpush1.msra.mxu0 %v3991
    %4064 = vmatprep.subr.mxu0 0.0
    %4065 = vmatpush1.msra.mxu0 %v3990
    %4066 = vmatprep.subr.mxu0 0.0
    %4067 = vmatpush1.msra.mxu0 %v3989
    %4068 = vmatprep.subr.mxu0 0.0
    %4069 = vmatpush1.msra.mxu0 %v3988
    %4070 = vmatprep.subr.mxu0 0.0
    %4071 = vmatpush1.msra.mxu0 %v3987
    %4072 = vmatprep.subr.mxu0 0.0
    %4073 = vmatpush1.msra.mxu0 %v3986
    %4074 = vmatprep.subr.mxu0 0.0
    %4075 = vmatpush1.msra.mxu0 %v3985
    %4076 = vmatprep.subr.mxu0 0.0
    %4077 = vmatpush1.msra.mxu0 %v3984
    %4078 = vmatprep.subr.mxu0 0.0
    %4079 = vmatpush1.msra.mxu0 %v3983
    %4080 = vmatprep.subr.mxu0 0.0
    %4081 = vmatpush1.msra.mxu0 %v3982
    %4082 = vmatprep.subr.mxu0 0.0
    %4083 = vmatpush1.msra.mxu0 %v3981
    %4084 = vmatprep.subr.mxu0 0.0
    %4085 = vmatpush1.msra.mxu0 %v3980
    %4086 = vmatprep.subr.mxu0 0.0
    %4087 = vmatpush1.msra.mxu0 %v3979
    %4088 = vmatprep.subr.mxu0 0.0
    %4089 = vmatpush1.msra.mxu0 %v3978
    %4090 = vmatprep.subr.mxu0 0.0
    %4091 = vmatpush2.msra.mxu0 %v4009
    %4092 = vmatprep.subr.mxu0 0.0
    %4093 = vmatpush2.msra.mxu0 %v4008
    %4094 = vmatprep.subr.mxu0 0.0
    %4095 = vmatpush2.msra.mxu0 %v4007
    %4096 = vmatprep.subr.mxu0 0.0
    %4097 = vmatpush2.msra.mxu0 %v4006
    %4098 = vmatprep.subr.mxu0 0.0
    %4099 = vmatpush2.msra.mxu0 %v4005
    %4100 = vmatprep.subr.mxu0 0.0
    %4101 = vmatpush2.msra.mxu0 %v4004
    %4102 = vmatprep.subr.mxu0 0.0
    %4103 = vmatpush2.msra.mxu0 %v4003
    %4104 = vmatprep.subr.mxu0 0.0
    %4105 = vmatpush2.msra.mxu0 %v4002
    %4106 = vmatprep.subr.mxu0 0.0
    %4107 = vmatpush2.msra.mxu0 %v4001
    %4108 = vmatprep.subr.mxu0 0.0
    %4109 = vmatpush2.msra.mxu0 %v4000
    %4110 = vmatprep.subr.mxu0 0.0
    %4111 = vmatpush2.msra.mxu0 %v3999
    %4112 = vmatprep.subr.mxu0 0.0
    %4113 = vmatpush2.msra.mxu0 %v3998
    %4114 = vmatprep.subr.mxu0 0.0
    %4115 = vmatpush2.msra.mxu0 %v3997
    %4116 = vmatprep.subr.mxu0 0.0
    %4117 = vmatpush2.msra.mxu0 %v3996
    %4118 = vmatprep.subr.mxu0 0.0
    %4119 = vmatpush2.msra.mxu0 %v3995
    %4120 = vmatprep.subr.mxu0 0.0
    %4121 = vmatpush2.msra.mxu0 %v3994
    %4122 = vmatprep.mubr.f32.mxu0 %v3977
    %4123 = vmatmul.mubr.f32.gmra.mxu0 %v3814
    %v4124 = vpop.f32.mrf.mxu0
    %v4125 = vadd.f32 %v4054, %v4124
    %v4126 = vpop.f32.mrf.mxu0
    %4127 = vdwg.mxu0
    %4128 = vmatprep.subr.mxu0 0.0
    %4129 = vmatpush1.msra.mxu0 %v4025
    %4130 = vmatprep.subr.mxu0 0.0
    %4131 = vmatpush1.msra.mxu0 %v4024
    %4132 = vmatprep.subr.mxu0 0.0
    %4133 = vmatpush1.msra.mxu0 %v4023
    %4134 = vmatprep.subr.mxu0 0.0
    %4135 = vmatpush1.msra.mxu0 %v4022
    %4136 = vmatprep.subr.mxu0 0.0
    %4137 = vmatpush1.msra.mxu0 %v4021
    %4138 = vmatprep.subr.mxu0 0.0
    %4139 = vmatpush1.msra.mxu0 %v4020
    %4140 = vmatprep.subr.mxu0 0.0
    %4141 = vmatpush1.msra.mxu0 %v4019
    %4142 = vmatprep.subr.mxu0 0.0
    %4143 = vmatpush1.msra.mxu0 %v4018
    %4144 = vmatprep.subr.mxu0 0.0
    %4145 = vmatpush1.msra.mxu0 %v4017
    %4146 = vmatprep.subr.mxu0 0.0
    %4147 = vmatpush1.msra.mxu0 %v4016
    %4148 = vmatprep.subr.mxu0 0.0
    %4149 = vmatpush1.msra.mxu0 %v4015
    %4150 = vmatprep.subr.mxu0 0.0
    %4151 = vmatpush1.msra.mxu0 %v4014
    %4152 = vmatprep.subr.mxu0 0.0
    %4153 = vmatpush1.msra.mxu0 %v4013
    %4154 = vmatprep.subr.mxu0 0.0
    %4155 = vmatpush1.msra.mxu0 %v4012
    %4156 = vmatprep.subr.mxu0 0.0
    %4157 = vmatpush1.msra.mxu0 %v4011
    %4158 = vmatprep.subr.mxu0 0.0
    %4159 = vmatpush1.msra.mxu0 %v4010
    %4160 = vmatprep.subr.mxu0 0.0
    %4161 = vmatpush2.msra.mxu0 %v4041
    %4162 = vmatprep.subr.mxu0 0.0
    %4163 = vmatpush2.msra.mxu0 %v4040
    %4164 = vmatprep.subr.mxu0 0.0
    %4165 = vmatpush2.msra.mxu0 %v4039
    %4166 = vmatprep.subr.mxu0 0.0
    %4167 = vmatpush2.msra.mxu0 %v4038
    %4168 = vmatprep.subr.mxu0 0.0
    %4169 = vmatpush2.msra.mxu0 %v4037
    %4170 = vmatprep.subr.mxu0 0.0
    %4171 = vmatpush2.msra.mxu0 %v4036
    %4172 = vmatprep.subr.mxu0 0.0
    %4173 = vmatpush2.msra.mxu0 %v4035
    %4174 = vmatprep.subr.mxu0 0.0
    %4175 = vmatpush2.msra.mxu0 %v4034
    %4176 = vmatprep.subr.mxu0 0.0
    %4177 = vmatpush2.msra.mxu0 %v4033
    %4178 = vmatprep.subr.mxu0 0.0
    %4179 = vmatpush2.msra.mxu0 %v4032
    %4180 = vmatprep.subr.mxu0 0.0
    %4181 = vmatpush2.msra.mxu0 %v4031
    %4182 = vmatprep.subr.mxu0 0.0
    %4183 = vmatpush2.msra.mxu0 %v4030
    %4184 = vmatprep.subr.mxu0 0.0
    %4185 = vmatpush2.msra.mxu0 %v4029
    %4186 = vmatprep.subr.mxu0 0.0
    %4187 = vmatpush2.msra.mxu0 %v4028
    %4188 = vmatprep.subr.mxu0 0.0
    %4189 = vmatpush2.msra.mxu0 %v4027
    %4190 = vmatprep.subr.mxu0 0.0
    %4191 = vmatpush2.msra.mxu0 %v4026
    %4192 = vmatprep.mubr.f32.mxu0 %v3964
    %4193 = vmatmul.mubr.f32.gmra.mxu0 %v3974
    %v4194 = vpop.f32.mrf.mxu0
    %v4195 = vadd.f32 %v4125, %v4194
    %v4196 = vpop.f32.mrf.mxu0
    %4197 = vdwg.mxu0
    %4198 = vmatprep.subr.mxu0 0.0
    %4199 = vmatpush1.msra.mxu0 0.0
    %4200 = vmatprep.subr.mxu0 0.0
    %4201 = vmatpush1.msra.mxu0 0.0
    %4202 = vmatprep.subr.mxu0 0.0
    %4203 = vmatpush1.msra.mxu0 0.0
    %4204 = vmatprep.subr.mxu0 0.0
    %4205 = vmatpush1.msra.mxu0 0.0
    %4206 = vmatprep.subr.mxu0 0.0
    %4207 = vmatpush1.msra.mxu0 0.0
    %4208 = vmatprep.subr.mxu0 0.0
    %4209 = vmatpush1.msra.mxu0 0.0
    %4210 = vmatprep.subr.mxu0 0.0
    %4211 = vmatpush1.msra.mxu0 0.0
    %4212 = vmatprep.subr.mxu0 0.0
    %4213 = vmatpush1.msra.mxu0 0.0
    %4214 = vmatprep.subr.mxu0 0.0
    %4215 = vmatpush1.msra.mxu0 %v4049
    %4216 = vmatprep.subr.mxu0 0.0
    %4217 = vmatpush1.msra.mxu0 %v4048
    %4218 = vmatprep.subr.mxu0 0.0
    %4219 = vmatpush1.msra.mxu0 %v4047
    %4220 = vmatprep.subr.mxu0 0.0
    %4221 = vmatpush1.msra.mxu0 %v4046
    %4222 = vmatprep.subr.mxu0 0.0
    %4223 = vmatpush1.msra.mxu0 %v4045
    %4224 = vmatprep.subr.mxu0 0.0
    %4225 = vmatpush1.msra.mxu0 %v4044
    %4226 = vmatprep.subr.mxu0 0.0
    %4227 = vmatpush1.msra.mxu0 %v4043
    %4228 = vmatprep.subr.mxu0 0.0
    %4229 = vmatpush1.msra.mxu0 %v4042
    %4230 = vmatprep.subr.mxu0 0.0
    %4231 = vmatpush2.msra.mxu0 0.0
    %4232 = vmatprep.subr.mxu0 0.0
    %4233 = vmatpush2.msra.mxu0 0.0
    %4234 = vmatprep.subr.mxu0 0.0
    %4235 = vmatpush2.msra.mxu0 0.0
    %4236 = vmatprep.subr.mxu0 0.0
    %4237 = vmatpush2.msra.mxu0 0.0
    %4238 = vmatprep.subr.mxu0 0.0
    %4239 = vmatpush2.msra.mxu0 0.0
    %4240 = vmatprep.subr.mxu0 0.0
    %4241 = vmatpush2.msra.mxu0 0.0
    %4242 = vmatprep.subr.mxu0 0.0
    %4243 = vmatpush2.msra.mxu0 0.0
    %4244 = vmatprep.subr.mxu0 0.0
    %4245 = vmatpush2.msra.mxu0 0.0
    %4246 = vmatprep.subr.mxu0 0.0
    %4247 = vmatpush2.msra.mxu0 0.0
    %4248 = vmatprep.subr.mxu0 0.0
    %4249 = vmatpush2.msra.mxu0 0.0
    %4250 = vmatprep.subr.mxu0 0.0
    %4251 = vmatpush2.msra.mxu0 0.0
    %4252 = vmatprep.subr.mxu0 0.0
    %4253 = vmatpush2.msra.mxu0 0.0
    %4254 = vmatprep.subr.mxu0 0.0
    %4255 = vmatpush2.msra.mxu0 0.0
    %4256 = vmatprep.subr.mxu0 0.0
    %4257 = vmatpush2.msra.mxu0 0.0
    %4258 = vmatprep.subr.mxu0 0.0
    %4259 = vmatpush2.msra.mxu0 0.0
    %4260 = vmatprep.subr.mxu0 0.0
    %4261 = vmatpush2.msra.mxu0 0.0
    %4262 = vmatprep.mubr.f32.mxu0 0.0
    %4263 = vmatmul.mubr.f32.gmra.mxu0 %v4056
    %v4264 = vpop.f32.mrf.mxu0
    %v4265 = vadd.f32 %v4195, %v4264
    %v4266 = vpop.f32.mrf.mxu0
    %4267 = vdwg.mxu0
    %v4268 = vld [vmem:[#allocation2 + $0x8b0] sm:$0xff]
    %v4269 = vld [vmem:[#allocation2 + $0x8b8] sm:$0xff]
    %v4270 = vld [vmem:[#allocation2 + $0x8c0] sm:$0xff]
    %v4271 = vld [vmem:[#allocation2 + $0x8c8] sm:$0xff]
    %v4272 = vld [vmem:[#allocation2 + $0x8d0] sm:$0xff]
    %v4273 = vld [vmem:[#allocation2 + $0x8d8] sm:$0xff]
    %v4274 = vld [vmem:[#allocation2 + $0x8e0] sm:$0xff]
    %v4275 = vld [vmem:[#allocation2 + $0x8e8] sm:$0xff]
    %v4276 = vld [vmem:[#allocation2 + $0x8f0] sm:$0xff]
    %v4278 = vsel %vm2117, %v4268, 0
    %4280 = vmatprep.subr.mxu0 0.0
    %4281 = vmatpush1.msra.mxu0 0.0
    %4282 = vmatprep.subr.mxu0 0.0
    %4283 = vmatpush1.msra.mxu0 0.0
    %4284 = vmatprep.subr.mxu0 0.0
    %4285 = vmatpush1.msra.mxu0 0.0
    %4286 = vmatprep.subr.mxu0 0.0
    %4287 = vmatpush1.msra.mxu0 0.0
    %4288 = vmatprep.subr.mxu0 0.0
    %4289 = vmatpush1.msra.mxu0 0.0
    %4290 = vmatprep.subr.mxu0 0.0
    %4291 = vmatpush1.msra.mxu0 0.0
    %4292 = vmatprep.subr.mxu0 0.0
    %4293 = vmatpush1.msra.mxu0 0.0
    %4294 = vmatprep.subr.mxu0 0.0
    %4295 = vmatpush1.msra.mxu0 0.0
    %4296 = vmatprep.subr.mxu0 0.0
    %4297 = vmatpush1.msra.mxu0 0.0
    %4298 = vmatprep.subr.mxu0 0.0
    %4299 = vmatpush1.msra.mxu0 0.0
    %4300 = vmatprep.subr.mxu0 0.0
    %4301 = vmatpush1.msra.mxu0 0.0
    %4302 = vmatprep.subr.mxu0 0.0
    %4303 = vmatpush1.msra.mxu0 0.0
    %4304 = vmatprep.subr.mxu0 0.0
    %4305 = vmatpush1.msra.mxu0 0.0
    %4306 = vmatprep.subr.mxu0 0.0
    %4307 = vmatpush1.msra.mxu0 0.0
    %4308 = vmatprep.subr.mxu0 0.0
    %4309 = vmatpush1.msra.mxu0 0.0
    %4310 = vmatprep.subr.mxu0 0.0
    %4311 = vmatpush1.msra.mxu0 %v4265
    %4312 = vmatprep.subr.mxu0 0.0
    %4313 = vmatpush2.msra.mxu0 0.0
    %4314 = vmatprep.subr.mxu0 0.0
    %4315 = vmatpush2.msra.mxu0 0.0
    %4316 = vmatprep.subr.mxu0 0.0
    %4317 = vmatpush2.msra.mxu0 0.0
    %4318 = vmatprep.subr.mxu0 0.0
    %4319 = vmatpush2.msra.mxu0 0.0
    %4320 = vmatprep.subr.mxu0 0.0
    %4321 = vmatpush2.msra.mxu0 0.0
    %4322 = vmatprep.subr.mxu0 0.0
    %4323 = vmatpush2.msra.mxu0 0.0
    %4324 = vmatprep.subr.mxu0 0.0
    %4325 = vmatpush2.msra.mxu0 0.0
    %4326 = vmatprep.subr.mxu0 0.0
    %4327 = vmatpush2.msra.mxu0 0.0
    %4328 = vmatprep.subr.mxu0 0.0
    %4329 = vmatpush2.msra.mxu0 0.0
    %4330 = vmatprep.subr.mxu0 0.0
    %4331 = vmatpush2.msra.mxu0 0.0
    %4332 = vmatprep.subr.mxu0 0.0
    %4333 = vmatpush2.msra.mxu0 0.0
    %4334 = vmatprep.subr.mxu0 0.0
    %4335 = vmatpush2.msra.mxu0 0.0
    %4336 = vmatprep.subr.mxu0 0.0
    %4337 = vmatpush2.msra.mxu0 0.0
    %4338 = vmatprep.subr.mxu0 0.0
    %4339 = vmatpush2.msra.mxu0 0.0
    %4340 = vmatprep.subr.mxu0 0.0
    %4341 = vmatpush2.msra.mxu0 0.0
    %4342 = vmatprep.subr.mxu0 0.0
    %4343 = vmatpush2.msra.mxu0 0.0
    %4344 = vmatprep.mubr.f32.mxu0 0.0
    %4345 = vmatmul.mubr.f32.gmra.mxu0 %v4278
    %v4346 = vpop.f32.mrf.mxu0
    %v4347 = vadd.f32 0.0, %v4346
    %v4348 = vpop.f32.mrf.mxu0
    %4349 = vdwg.mxu0
    %v4351 = vsel %vm162, %v4347, 0
    %4353 = vmatprep.subr.mxu0 0.0
    %4354 = vmatpush1.msra.mxu0 0.0
    %4355 = vmatprep.subr.mxu0 0.0
    %4356 = vmatpush1.msra.mxu0 0.0
    %4357 = vmatprep.subr.mxu0 0.0
    %4358 = vmatpush1.msra.mxu0 0.0
    %4359 = vmatprep.subr.mxu0 0.0
    %4360 = vmatpush1.msra.mxu0 0.0
    %4361 = vmatprep.subr.mxu0 0.0
    %4362 = vmatpush1.msra.mxu0 0.0
    %4363 = vmatprep.subr.mxu0 0.0
    %4364 = vmatpush1.msra.mxu0 0.0
    %4365 = vmatprep.subr.mxu0 0.0
    %4366 = vmatpush1.msra.mxu0 0.0
    %4367 = vmatprep.subr.mxu0 0.0
    %4368 = vmatpush1.msra.mxu0 0.0
    %4369 = vmatprep.subr.mxu0 0.0
    %4370 = vmatpush1.msra.mxu0 %v4276
    %4371 = vmatprep.subr.mxu0 0.0
    %4372 = vmatpush1.msra.mxu0 %v4275
    %4373 = vmatprep.subr.mxu0 0.0
    %4374 = vmatpush1.msra.mxu0 %v4274
    %4375 = vmatprep.subr.mxu0 0.0
    %4376 = vmatpush1.msra.mxu0 %v4273
    %4377 = vmatprep.subr.mxu0 0.0
    %4378 = vmatpush1.msra.mxu0 %v4272
    %4379 = vmatprep.subr.mxu0 0.0
    %4380 = vmatpush1.msra.mxu0 %v4271
    %4381 = vmatprep.subr.mxu0 0.0
    %4382 = vmatpush1.msra.mxu0 %v4270
    %4383 = vmatprep.subr.mxu0 0.0
    %4384 = vmatpush1.msra.mxu0 %v4269
    %4385 = vmatprep.subr.mxu0 0.0
    %4386 = vmatpush2.msra.mxu0 0.0
    %4387 = vmatprep.subr.mxu0 0.0
    %4388 = vmatpush2.msra.mxu0 0.0
    %4389 = vmatprep.subr.mxu0 0.0
    %4390 = vmatpush2.msra.mxu0 0.0
    %4391 = vmatprep.subr.mxu0 0.0
    %4392 = vmatpush2.msra.mxu0 0.0
    %4393 = vmatprep.subr.mxu0 0.0
    %4394 = vmatpush2.msra.mxu0 0.0
    %4395 = vmatprep.subr.mxu0 0.0
    %4396 = vmatpush2.msra.mxu0 0.0
    %4397 = vmatprep.subr.mxu0 0.0
    %4398 = vmatpush2.msra.mxu0 0.0
    %4399 = vmatprep.subr.mxu0 0.0
    %4400 = vmatpush2.msra.mxu0 0.0
    %4401 = vmatprep.subr.mxu0 0.0
    %4402 = vmatpush2.msra.mxu0 0.0
    %4403 = vmatprep.subr.mxu0 0.0
    %4404 = vmatpush2.msra.mxu0 0.0
    %4405 = vmatprep.subr.mxu0 0.0
    %4406 = vmatpush2.msra.mxu0 0.0
    %4407 = vmatprep.subr.mxu0 0.0
    %4408 = vmatpush2.msra.mxu0 0.0
    %4409 = vmatprep.subr.mxu0 0.0
    %4410 = vmatpush2.msra.mxu0 0.0
    %4411 = vmatprep.subr.mxu0 0.0
    %4412 = vmatpush2.msra.mxu0 0.0
    %4413 = vmatprep.subr.mxu0 0.0
    %4414 = vmatpush2.msra.mxu0 0.0
    %4415 = vmatprep.subr.mxu0 0.0
    %4416 = vmatpush2.msra.mxu0 0.0
    %4417 = vmatprep.mubr.f32.mxu0 0.0
    %4418 = vmatmul.mubr.f32.gmra.mxu0 %v4351
    %v4419 = vpop.f32.mrf.mxu0
    %v4420 = vadd.f32 0.0, %v4419
    %v4421 = vpop.f32.mrf.mxu0
    %4422 = vdwg.mxu0
    %v4423 = vmul.f32 %v4265, %v4265
    %4424 = vmatprep.subr.mxu0 0.0
    %4425 = vmatpush1.msra.mxu0 0.0
    %4426 = vmatprep.subr.mxu0 0.0
    %4427 = vmatpush1.msra.mxu0 0.0
    %4428 = vmatprep.subr.mxu0 0.0
    %4429 = vmatpush1.msra.mxu0 0.0
    %4430 = vmatprep.subr.mxu0 0.0
    %4431 = vmatpush1.msra.mxu0 0.0
    %4432 = vmatprep.subr.mxu0 0.0
    %4433 = vmatpush1.msra.mxu0 0.0
    %4434 = vmatprep.subr.mxu0 0.0
    %4435 = vmatpush1.msra.mxu0 0.0
    %4436 = vmatprep.subr.mxu0 0.0
    %4437 = vmatpush1.msra.mxu0 0.0
    %4438 = vmatprep.subr.mxu0 0.0
    %4439 = vmatpush1.msra.mxu0 0.0
    %4440 = vmatprep.subr.mxu0 0.0
    %4441 = vmatpush1.msra.mxu0 0.0
    %4442 = vmatprep.subr.mxu0 0.0
    %4443 = vmatpush1.msra.mxu0 0.0
    %4444 = vmatprep.subr.mxu0 0.0
    %4445 = vmatpush1.msra.mxu0 0.0
    %4446 = vmatprep.subr.mxu0 0.0
    %4447 = vmatpush1.msra.mxu0 0.0
    %4448 = vmatprep.subr.mxu0 0.0
    %4449 = vmatpush1.msra.mxu0 0.0
    %4450 = vmatprep.subr.mxu0 0.0
    %4451 = vmatpush1.msra.mxu0 0.0
    %4452 = vmatprep.subr.mxu0 0.0
    %4453 = vmatpush1.msra.mxu0 0.0
    %4454 = vmatprep.subr.mxu0 0.0
    %4455 = vmatpush1.msra.mxu0 %v4423
    %4456 = vmatprep.subr.mxu0 0.0
    %4457 = vmatpush2.msra.mxu0 0.0
    %4458 = vmatprep.subr.mxu0 0.0
    %4459 = vmatpush2.msra.mxu0 0.0
    %4460 = vmatprep.subr.mxu0 0.0
    %4461 = vmatpush2.msra.mxu0 0.0
    %4462 = vmatprep.subr.mxu0 0.0
    %4463 = vmatpush2.msra.mxu0 0.0
    %4464 = vmatprep.subr.mxu0 0.0
    %4465 = vmatpush2.msra.mxu0 0.0
    %4466 = vmatprep.subr.mxu0 0.0
    %4467 = vmatpush2.msra.mxu0 0.0
    %4468 = vmatprep.subr.mxu0 0.0
    %4469 = vmatpush2.msra.mxu0 0.0
    %4470 = vmatprep.subr.mxu0 0.0
    %4471 = vmatpush2.msra.mxu0 0.0
    %4472 = vmatprep.subr.mxu0 0.0
    %4473 = vmatpush2.msra.mxu0 0.0
    %4474 = vmatprep.subr.mxu0 0.0
    %4475 = vmatpush2.msra.mxu0 0.0
    %4476 = vmatprep.subr.mxu0 0.0
    %4477 = vmatpush2.msra.mxu0 0.0
    %4478 = vmatprep.subr.mxu0 0.0
    %4479 = vmatpush2.msra.mxu0 0.0
    %4480 = vmatprep.subr.mxu0 0.0
    %4481 = vmatpush2.msra.mxu0 0.0
    %4482 = vmatprep.subr.mxu0 0.0
    %4483 = vmatpush2.msra.mxu0 0.0
    %4484 = vmatprep.subr.mxu0 0.0
    %4485 = vmatpush2.msra.mxu0 0.0
    %4486 = vmatprep.subr.mxu0 0.0
    %4487 = vmatpush2.msra.mxu0 0.0
    %4488 = vmatprep.mubr.f32.mxu0 0.0
    %4489 = vmatmul.mubr.f32.gmra.mxu0 %v4278
    %v4490 = vpop.f32.mrf.mxu0
    %v4491 = vadd.f32 0.0, %v4490
    %v4492 = vpop.f32.mrf.mxu0
    %4493 = vdwg.mxu0
    %v4495 = vsel %vm162, %v4491, 0
    %4497 = vmatprep.subr.mxu0 0.0
    %4498 = vmatpush1.msra.mxu0 0.0
    %4499 = vmatprep.subr.mxu0 0.0
    %4500 = vmatpush1.msra.mxu0 0.0
    %4501 = vmatprep.subr.mxu0 0.0
    %4502 = vmatpush1.msra.mxu0 0.0
    %4503 = vmatprep.subr.mxu0 0.0
    %4504 = vmatpush1.msra.mxu0 0.0
    %4505 = vmatprep.subr.mxu0 0.0
    %4506 = vmatpush1.msra.mxu0 0.0
    %4507 = vmatprep.subr.mxu0 0.0
    %4508 = vmatpush1.msra.mxu0 0.0
    %4509 = vmatprep.subr.mxu0 0.0
    %4510 = vmatpush1.msra.mxu0 0.0
    %4511 = vmatprep.subr.mxu0 0.0
    %4512 = vmatpush1.msra.mxu0 0.0
    %4513 = vmatprep.subr.mxu0 0.0
    %4514 = vmatpush1.msra.mxu0 %v4276
    %4515 = vmatprep.subr.mxu0 0.0
    %4516 = vmatpush1.msra.mxu0 %v4275
    %4517 = vmatprep.subr.mxu0 0.0
    %4518 = vmatpush1.msra.mxu0 %v4274
    %4519 = vmatprep.subr.mxu0 0.0
    %4520 = vmatpush1.msra.mxu0 %v4273
    %4521 = vmatprep.subr.mxu0 0.0
    %4522 = vmatpush1.msra.mxu0 %v4272
    %4523 = vmatprep.subr.mxu0 0.0
    %4524 = vmatpush1.msra.mxu0 %v4271
    %4525 = vmatprep.subr.mxu0 0.0
    %4526 = vmatpush1.msra.mxu0 %v4270
    %4527 = vmatprep.subr.mxu0 0.0
    %4528 = vmatpush1.msra.mxu0 %v4269
    %4529 = vmatprep.subr.mxu0 0.0
    %4530 = vmatpush2.msra.mxu0 0.0
    %4531 = vmatprep.subr.mxu0 0.0
    %4532 = vmatpush2.msra.mxu0 0.0
    %4533 = vmatprep.subr.mxu0 0.0
    %4534 = vmatpush2.msra.mxu0 0.0
    %4535 = vmatprep.subr.mxu0 0.0
    %4536 = vmatpush2.msra.mxu0 0.0
    %4537 = vmatprep.subr.mxu0 0.0
    %4538 = vmatpush2.msra.mxu0 0.0
    %4539 = vmatprep.subr.mxu0 0.0
    %4540 = vmatpush2.msra.mxu0 0.0
    %4541 = vmatprep.subr.mxu0 0.0
    %4542 = vmatpush2.msra.mxu0 0.0
    %4543 = vmatprep.subr.mxu0 0.0
    %4544 = vmatpush2.msra.mxu0 0.0
    %4545 = vmatprep.subr.mxu0 0.0
    %4546 = vmatpush2.msra.mxu0 0.0
    %4547 = vmatprep.subr.mxu0 0.0
    %4548 = vmatpush2.msra.mxu0 0.0
    %4549 = vmatprep.subr.mxu0 0.0
    %4550 = vmatpush2.msra.mxu0 0.0
    %4551 = vmatprep.subr.mxu0 0.0
    %4552 = vmatpush2.msra.mxu0 0.0
    %4553 = vmatprep.subr.mxu0 0.0
    %4554 = vmatpush2.msra.mxu0 0.0
    %4555 = vmatprep.subr.mxu0 0.0
    %4556 = vmatpush2.msra.mxu0 0.0
    %4557 = vmatprep.subr.mxu0 0.0
    %4558 = vmatpush2.msra.mxu0 0.0
    %4559 = vmatprep.subr.mxu0 0.0
    %4560 = vmatpush2.msra.mxu0 0.0
    %4561 = vmatprep.mubr.f32.mxu0 0.0
    %4562 = vmatmul.mubr.f32.gmra.mxu0 %v4495
    %v4563 = vpop.f32.mrf.mxu0
    %v4564 = vadd.f32 0.0, %v4563
    %v4565 = vpop.f32.mrf.mxu0
    %4566 = vdwg.mxu0
    %v4567 = vmul.f32 %v4420, %v4420
    %v4568 = vsub.f32 %v4564, %v4567
    %v4569 = vsub.f32 %v4265, %v4420
    %v4570 = vadd.f32 %v4568, 1e-05
    %v4571 = vrsqrt.pop %v4570
    %v4572 = vmul.f32 %v4569, %v4571
    %v4573 = vld [vmem:[#allocation2 + $0x8f8] sm:$0x1]
    %vm4574 = vcmp.ge.f32.partialorder %v4572, 0.0
    %s4576 = vtos %v4573
    %v4577 = vstv %s4576
    %v4579 = vmul.f32 %v4577, %v4572
    %v4580 = vsel %vm4574, %v4572, %v4579
    %s4581 = smul.u32 528, 1
    %s4582 = sshll.u32 %s4581, 4
    %4583 = dma.done %s107, %s4582
    %4585 = vrot.lane.b32.xlu0 %v2421, 64
    %v4586 = vpop.permute.xlu0 %4585
    %v4588 = vsel %vm162, %v4580, %v4586
    %v4589 = vld [vmem:[#allocation2 + $0x900] sm:$0xff]
    %v4590 = vld [vmem:[#allocation2 + $0x908] sm:$0xff]
    %v4592 = vsel %vm2117, %v4589, 0
    %v4595 = vsel %vm2117, %v4590, 0
    %4597 = vmatprep.subr.mxu0 0.0
    %4598 = vmatpush1.msra.mxu0 0.0
    %4599 = vmatprep.subr.mxu0 0.0
    %4600 = vmatpush1.msra.mxu0 0.0
    %4601 = vmatprep.subr.mxu0 0.0
    %4602 = vmatpush1.msra.mxu0 0.0
    %4603 = vmatprep.subr.mxu0 0.0
    %4604 = vmatpush1.msra.mxu0 0.0
    %4605 = vmatprep.subr.mxu0 0.0
    %4606 = vmatpush1.msra.mxu0 0.0
    %4607 = vmatprep.subr.mxu0 0.0
    %4608 = vmatpush1.msra.mxu0 0.0
    %4609 = vmatprep.subr.mxu0 0.0
    %4610 = vmatpush1.msra.mxu0 0.0
    %4611 = vmatprep.subr.mxu0 0.0
    %4612 = vmatpush1.msra.mxu0 0.0
    %4613 = vmatprep.subr.mxu0 0.0
    %4614 = vmatpush1.msra.mxu0 0.0
    %4615 = vmatprep.subr.mxu0 0.0
    %4616 = vmatpush1.msra.mxu0 0.0
    %4617 = vmatprep.subr.mxu0 0.0
    %4618 = vmatpush1.msra.mxu0 0.0
    %4619 = vmatprep.subr.mxu0 0.0
    %4620 = vmatpush1.msra.mxu0 0.0
    %4621 = vmatprep.subr.mxu0 0.0
    %4622 = vmatpush1.msra.mxu0 0.0
    %4623 = vmatprep.subr.mxu0 0.0
    %4624 = vmatpush1.msra.mxu0 0.0
    %4625 = vmatprep.subr.mxu0 0.0
    %4626 = vmatpush1.msra.mxu0 0.0
    %4627 = vmatprep.subr.mxu0 0.0
    %4628 = vmatpush1.msra.mxu0 %v4588
    %4629 = vmatprep.subr.mxu0 0.0
    %4630 = vmatpush2.msra.mxu0 0.0
    %4631 = vmatprep.subr.mxu0 0.0
    %4632 = vmatpush2.msra.mxu0 0.0
    %4633 = vmatprep.subr.mxu0 0.0
    %4634 = vmatpush2.msra.mxu0 0.0
    %4635 = vmatprep.subr.mxu0 0.0
    %4636 = vmatpush2.msra.mxu0 0.0
    %4637 = vmatprep.subr.mxu0 0.0
    %4638 = vmatpush2.msra.mxu0 0.0
    %4639 = vmatprep.subr.mxu0 0.0
    %4640 = vmatpush2.msra.mxu0 0.0
    %4641 = vmatprep.subr.mxu0 0.0
    %4642 = vmatpush2.msra.mxu0 0.0
    %4643 = vmatprep.subr.mxu0 0.0
    %4644 = vmatpush2.msra.mxu0 0.0
    %4645 = vmatprep.subr.mxu0 0.0
    %4646 = vmatpush2.msra.mxu0 0.0
    %4647 = vmatprep.subr.mxu0 0.0
    %4648 = vmatpush2.msra.mxu0 0.0
    %4649 = vmatprep.subr.mxu0 0.0
    %4650 = vmatpush2.msra.mxu0 0.0
    %4651 = vmatprep.subr.mxu0 0.0
    %4652 = vmatpush2.msra.mxu0 0.0
    %4653 = vmatprep.subr.mxu0 0.0
    %4654 = vmatpush2.msra.mxu0 0.0
    %4655 = vmatprep.subr.mxu0 0.0
    %4656 = vmatpush2.msra.mxu0 0.0
    %4657 = vmatprep.subr.mxu0 0.0
    %4658 = vmatpush2.msra.mxu0 0.0
    %4659 = vmatprep.subr.mxu0 0.0
    %4660 = vmatpush2.msra.mxu0 0.0
    %4661 = vmatprep.mubr.f32.mxu0 0.0
    %4662 = vmatmul.mubr.f32.gmra.mxu0 %v4592
    %v4663 = vpop.f32.mrf.mxu0
    %v4664 = vadd.f32 0.0, %v4663
    %v4665 = vpop.f32.mrf.mxu0
    %4666 = vmatprep.mubr.f32.mxu0 0.0
    %4667 = vmatmul.mubr.f32.gmra.mxu0 %v4595
    %v4668 = vpop.f32.mrf.mxu0
    %v4669 = vadd.f32 0.0, %v4668
    %v4670 = vpop.f32.mrf.mxu0
    %4671 = vdwg.mxu0
    %v4672 = vld [vmem:[#allocation2 + $0x910] sm:$0xff]
    %v4673 = vld [vmem:[#allocation2 + $0x918] sm:$0xff]
    %v4675 = vsel %vm2117, %v4672, 0
    %v4678 = vsel %vm2117, %v4673, 0
    %4680 = vmatprep.subr.mxu0 0.0
    %4681 = vmatpush1.msra.mxu0 0.0
    %4682 = vmatprep.subr.mxu0 0.0
    %4683 = vmatpush1.msra.mxu0 0.0
    %4684 = vmatprep.subr.mxu0 0.0
    %4685 = vmatpush1.msra.mxu0 0.0
    %4686 = vmatprep.subr.mxu0 0.0
    %4687 = vmatpush1.msra.mxu0 0.0
    %4688 = vmatprep.subr.mxu0 0.0
    %4689 = vmatpush1.msra.mxu0 0.0
    %4690 = vmatprep.subr.mxu0 0.0
    %4691 = vmatpush1.msra.mxu0 0.0
    %4692 = vmatprep.subr.mxu0 0.0
    %4693 = vmatpush1.msra.mxu0 0.0
    %4694 = vmatprep.subr.mxu0 0.0
    %4695 = vmatpush1.msra.mxu0 0.0
    %4696 = vmatprep.subr.mxu0 0.0
    %4697 = vmatpush1.msra.mxu0 0.0
    %4698 = vmatprep.subr.mxu0 0.0
    %4699 = vmatpush1.msra.mxu0 0.0
    %4700 = vmatprep.subr.mxu0 0.0
    %4701 = vmatpush1.msra.mxu0 0.0
    %4702 = vmatprep.subr.mxu0 0.0
    %4703 = vmatpush1.msra.mxu0 0.0
    %4704 = vmatprep.subr.mxu0 0.0
    %4705 = vmatpush1.msra.mxu0 0.0
    %4706 = vmatprep.subr.mxu0 0.0
    %4707 = vmatpush1.msra.mxu0 0.0
    %4708 = vmatprep.subr.mxu0 0.0
    %4709 = vmatpush1.msra.mxu0 0.0
    %4710 = vmatprep.subr.mxu0 0.0
    %4711 = vmatpush1.msra.mxu0 %v4588
    %4712 = vmatprep.subr.mxu0 0.0
    %4713 = vmatpush2.msra.mxu0 0.0
    %4714 = vmatprep.subr.mxu0 0.0
    %4715 = vmatpush2.msra.mxu0 0.0
    %4716 = vmatprep.subr.mxu0 0.0
    %4717 = vmatpush2.msra.mxu0 0.0
    %4718 = vmatprep.subr.mxu0 0.0
    %4719 = vmatpush2.msra.mxu0 0.0
    %4720 = vmatprep.subr.mxu0 0.0
    %4721 = vmatpush2.msra.mxu0 0.0
    %4722 = vmatprep.subr.mxu0 0.0
    %4723 = vmatpush2.msra.mxu0 0.0
    %4724 = vmatprep.subr.mxu0 0.0
    %4725 = vmatpush2.msra.mxu0 0.0
    %4726 = vmatprep.subr.mxu0 0.0
    %4727 = vmatpush2.msra.mxu0 0.0
    %4728 = vmatprep.subr.mxu0 0.0
    %4729 = vmatpush2.msra.mxu0 0.0
    %4730 = vmatprep.subr.mxu0 0.0
    %4731 = vmatpush2.msra.mxu0 0.0
    %4732 = vmatprep.subr.mxu0 0.0
    %4733 = vmatpush2.msra.mxu0 0.0
    %4734 = vmatprep.subr.mxu0 0.0
    %4735 = vmatpush2.msra.mxu0 0.0
    %4736 = vmatprep.subr.mxu0 0.0
    %4737 = vmatpush2.msra.mxu0 0.0
    %4738 = vmatprep.subr.mxu0 0.0
    %4739 = vmatpush2.msra.mxu0 0.0
    %4740 = vmatprep.subr.mxu0 0.0
    %4741 = vmatpush2.msra.mxu0 0.0
    %4742 = vmatprep.subr.mxu0 0.0
    %4743 = vmatpush2.msra.mxu0 0.0
    %4744 = vmatprep.mubr.f32.mxu0 0.0
    %4745 = vmatmul.mubr.f32.gmra.mxu0 %v4675
    %v4746 = vpop.f32.mrf.mxu0
    %v4747 = vadd.f32 0.0, %v4746
    %v4748 = vpop.f32.mrf.mxu0
    %4749 = vmatprep.mubr.f32.mxu0 0.0
    %4750 = vmatmul.mubr.f32.gmra.mxu0 %v4678
    %v4751 = vpop.f32.mrf.mxu0
    %v4752 = vadd.f32 0.0, %v4751
    %v4753 = vpop.f32.mrf.mxu0
    %4754 = vdwg.mxu0
    %v4755 = vld [vmem:[#allocation2 + $0x920] sm:$0xff]
    %v4756 = vld [vmem:[#allocation2 + $0x928] sm:$0xff]
    %v4758 = vsel %vm2117, %v4755, 0
    %v4761 = vsel %vm2117, %v4756, 0
    %4763 = vmatprep.subr.mxu0 0.0
    %4764 = vmatpush1.msra.mxu0 0.0
    %4765 = vmatprep.subr.mxu0 0.0
    %4766 = vmatpush1.msra.mxu0 0.0
    %4767 = vmatprep.subr.mxu0 0.0
    %4768 = vmatpush1.msra.mxu0 0.0
    %4769 = vmatprep.subr.mxu0 0.0
    %4770 = vmatpush1.msra.mxu0 0.0
    %4771 = vmatprep.subr.mxu0 0.0
    %4772 = vmatpush1.msra.mxu0 0.0
    %4773 = vmatprep.subr.mxu0 0.0
    %4774 = vmatpush1.msra.mxu0 0.0
    %4775 = vmatprep.subr.mxu0 0.0
    %4776 = vmatpush1.msra.mxu0 0.0
    %4777 = vmatprep.subr.mxu0 0.0
    %4778 = vmatpush1.msra.mxu0 0.0
    %4779 = vmatprep.subr.mxu0 0.0
    %4780 = vmatpush1.msra.mxu0 0.0
    %4781 = vmatprep.subr.mxu0 0.0
    %4782 = vmatpush1.msra.mxu0 0.0
    %4783 = vmatprep.subr.mxu0 0.0
    %4784 = vmatpush1.msra.mxu0 0.0
    %4785 = vmatprep.subr.mxu0 0.0
    %4786 = vmatpush1.msra.mxu0 0.0
    %4787 = vmatprep.subr.mxu0 0.0
    %4788 = vmatpush1.msra.mxu0 0.0
    %4789 = vmatprep.subr.mxu0 0.0
    %4790 = vmatpush1.msra.mxu0 0.0
    %4791 = vmatprep.subr.mxu0 0.0
    %4792 = vmatpush1.msra.mxu0 0.0
    %4793 = vmatprep.subr.mxu0 0.0
    %4794 = vmatpush1.msra.mxu0 %v4588
    %4795 = vmatprep.subr.mxu0 0.0
    %4796 = vmatpush2.msra.mxu0 0.0
    %4797 = vmatprep.subr.mxu0 0.0
    %4798 = vmatpush2.msra.mxu0 0.0
    %4799 = vmatprep.subr.mxu0 0.0
    %4800 = vmatpush2.msra.mxu0 0.0
    %4801 = vmatprep.subr.mxu0 0.0
    %4802 = vmatpush2.msra.mxu0 0.0
    %4803 = vmatprep.subr.mxu0 0.0
    %4804 = vmatpush2.msra.mxu0 0.0
    %4805 = vmatprep.subr.mxu0 0.0
    %4806 = vmatpush2.msra.mxu0 0.0
    %4807 = vmatprep.subr.mxu0 0.0
    %4808 = vmatpush2.msra.mxu0 0.0
    %4809 = vmatprep.subr.mxu0 0.0
    %4810 = vmatpush2.msra.mxu0 0.0
    %4811 = vmatprep.subr.mxu0 0.0
    %4812 = vmatpush2.msra.mxu0 0.0
    %4813 = vmatprep.subr.mxu0 0.0
    %4814 = vmatpush2.msra.mxu0 0.0
    %4815 = vmatprep.subr.mxu0 0.0
    %4816 = vmatpush2.msra.mxu0 0.0
    %4817 = vmatprep.subr.mxu0 0.0
    %4818 = vmatpush2.msra.mxu0 0.0
    %4819 = vmatprep.subr.mxu0 0.0
    %4820 = vmatpush2.msra.mxu0 0.0
    %4821 = vmatprep.subr.mxu0 0.0
    %4822 = vmatpush2.msra.mxu0 0.0
    %4823 = vmatprep.subr.mxu0 0.0
    %4824 = vmatpush2.msra.mxu0 0.0
    %4825 = vmatprep.subr.mxu0 0.0
    %4826 = vmatpush2.msra.mxu0 0.0
    %4827 = vmatprep.mubr.f32.mxu0 0.0
    %4828 = vmatmul.mubr.f32.gmra.mxu0 %v4758
    %v4829 = vpop.f32.mrf.mxu0
    %v4830 = vadd.f32 0.0, %v4829
    %v4831 = vpop.f32.mrf.mxu0
    %4832 = vmatprep.mubr.f32.mxu0 0.0
    %4833 = vmatmul.mubr.f32.gmra.mxu0 %v4761
    %v4834 = vpop.f32.mrf.mxu0
    %v4835 = vadd.f32 0.0, %v4834
    %v4836 = vpop.f32.mrf.mxu0
    %4837 = vdwg.mxu0
    %v4838 = vld [vmem:[#allocation2 + $0x930] sm:$0xff]
    %v4839 = vld [vmem:[#allocation2 + $0x938] sm:$0xff]
    %v4840 = vld [vmem:[#allocation2 + $0x940] sm:$0xff]
    %v4841 = vld [vmem:[#allocation2 + $0x948] sm:$0xff]
    %v4842 = vld [vmem:[#allocation2 + $0x950] sm:$0xff]
    %v4843 = vld [vmem:[#allocation2 + $0x958] sm:$0xff]
    %v4844 = vld [vmem:[#allocation2 + $0x960] sm:$0xff]
    %v4845 = vld [vmem:[#allocation2 + $0x968] sm:$0xff]
    %v4846 = vld [vmem:[#allocation2 + $0x970] sm:$0xff]
    %v4847 = vld [vmem:[#allocation2 + $0x978] sm:$0xff]
    %v4848 = vld [vmem:[#allocation2 + $0x980] sm:$0xff]
    %v4849 = vld [vmem:[#allocation2 + $0x988] sm:$0xff]
    %v4850 = vld [vmem:[#allocation2 + $0x990] sm:$0xff]
    %v4851 = vld [vmem:[#allocation2 + $0x998] sm:$0xff]
    %v4852 = vld [vmem:[#allocation2 + $0x9a0] sm:$0xff]
    %v4853 = vld [vmem:[#allocation2 + $0x9a8] sm:$0xff]
    %v4854 = vld [vmem:[#allocation2 + $0x9b0] sm:$0xff]
    %v4855 = vld [vmem:[#allocation2 + $0x9b8] sm:$0xff]
    %v4856 = vld [vmem:[#allocation2 + $0x9c0] sm:$0xff]
    %v4857 = vld [vmem:[#allocation2 + $0x9c8] sm:$0xff]
    %v4858 = vld [vmem:[#allocation2 + $0x9d0] sm:$0xff]
    %v4859 = vld [vmem:[#allocation2 + $0x9d8] sm:$0xff]
    %v4860 = vld [vmem:[#allocation2 + $0x9e0] sm:$0xff]
    %v4861 = vld [vmem:[#allocation2 + $0x9e8] sm:$0xff]
    %v4862 = vld [vmem:[#allocation2 + $0x9f0] sm:$0xff]
    %v4863 = vld [vmem:[#allocation2 + $0x9f8] sm:$0xff]
    %v4864 = vld [vmem:[#allocation2 + $0xa00] sm:$0xff]
    %v4865 = vld [vmem:[#allocation2 + $0xa08] sm:$0xff]
    %v4866 = vld [vmem:[#allocation2 + $0xa10] sm:$0xff]
    %v4867 = vld [vmem:[#allocation2 + $0xa18] sm:$0xff]
    %v4868 = vld [vmem:[#allocation2 + $0xa20] sm:$0xff]
    %v4869 = vld [vmem:[#allocation2 + $0xa28] sm:$0xff]
    %v4870 = vld [vmem:[#allocation2 + $0xa30] sm:$0xff]
    %v4871 = vld [vmem:[#allocation2 + $0xa38] sm:$0xff]
    %v4872 = vld [vmem:[#allocation2 + $0xa40] sm:$0xff]
    %v4873 = vld [vmem:[#allocation2 + $0xa48] sm:$0xff]
    %v4874 = vld [vmem:[#allocation2 + $0xa50] sm:$0xff]
    %v4875 = vld [vmem:[#allocation2 + $0xa58] sm:$0xff]
    %v4876 = vld [vmem:[#allocation2 + $0xa60] sm:$0xff]
    %v4877 = vld [vmem:[#allocation2 + $0xa68] sm:$0xff]
    %v4878 = vld [vmem:[#allocation2 + $0xa70] sm:$0xff]
    %v4879 = vld [vmem:[#allocation2 + $0xa78] sm:$0xff]
    %v4880 = vld [vmem:[#allocation2 + $0xa80] sm:$0xff]
    %v4881 = vld [vmem:[#allocation2 + $0xa88] sm:$0xff]
    %v4882 = vld [vmem:[#allocation2 + $0xa90] sm:$0xff]
    %v4883 = vld [vmem:[#allocation2 + $0xa98] sm:$0xff]
    %v4884 = vld [vmem:[#allocation2 + $0xaa0] sm:$0xff]
    %v4885 = vld [vmem:[#allocation2 + $0xaa8] sm:$0xff]
    %v4886 = vld [vmem:[#allocation2 + $0xab0] sm:$0x1]
    %v4887 = vlaneseq
    %v4888 = vshrl.u32 %v4887, 7
    %v4889 = vsub.s32 0, %v4888
    %v4890 = vrot.slane %v4886, %v4889
    %4891 = vmatprep.subr.mxu0 0.0
    %4892 = vmatpush1.msra.mxu0 %v4853
    %4893 = vmatprep.subr.mxu0 0.0
    %4894 = vmatpush1.msra.mxu0 %v4852
    %4895 = vmatprep.subr.mxu0 0.0
    %4896 = vmatpush1.msra.mxu0 %v4851
    %4897 = vmatprep.subr.mxu0 0.0
    %4898 = vmatpush1.msra.mxu0 %v4850
    %4899 = vmatprep.subr.mxu0 0.0
    %4900 = vmatpush1.msra.mxu0 %v4849
    %4901 = vmatprep.subr.mxu0 0.0
    %4902 = vmatpush1.msra.mxu0 %v4848
    %4903 = vmatprep.subr.mxu0 0.0
    %4904 = vmatpush1.msra.mxu0 %v4847
    %4905 = vmatprep.subr.mxu0 0.0
    %4906 = vmatpush1.msra.mxu0 %v4846
    %4907 = vmatprep.subr.mxu0 0.0
    %4908 = vmatpush1.msra.mxu0 %v4845
    %4909 = vmatprep.subr.mxu0 0.0
    %4910 = vmatpush1.msra.mxu0 %v4844
    %4911 = vmatprep.subr.mxu0 0.0
    %4912 = vmatpush1.msra.mxu0 %v4843
    %4913 = vmatprep.subr.mxu0 0.0
    %4914 = vmatpush1.msra.mxu0 %v4842
    %4915 = vmatprep.subr.mxu0 0.0
    %4916 = vmatpush1.msra.mxu0 %v4841
    %4917 = vmatprep.subr.mxu0 0.0
    %4918 = vmatpush1.msra.mxu0 %v4840
    %4919 = vmatprep.subr.mxu0 0.0
    %4920 = vmatpush1.msra.mxu0 %v4839
    %4921 = vmatprep.subr.mxu0 0.0
    %4922 = vmatpush1.msra.mxu0 %v4838
    %4923 = vmatprep.subr.mxu0 0.0
    %4924 = vmatpush2.msra.mxu0 %v4869
    %4925 = vmatprep.subr.mxu0 0.0
    %4926 = vmatpush2.msra.mxu0 %v4868
    %4927 = vmatprep.subr.mxu0 0.0
    %4928 = vmatpush2.msra.mxu0 %v4867
    %4929 = vmatprep.subr.mxu0 0.0
    %4930 = vmatpush2.msra.mxu0 %v4866
    %4931 = vmatprep.subr.mxu0 0.0
    %4932 = vmatpush2.msra.mxu0 %v4865
    %4933 = vmatprep.subr.mxu0 0.0
    %4934 = vmatpush2.msra.mxu0 %v4864
    %4935 = vmatprep.subr.mxu0 0.0
    %4936 = vmatpush2.msra.mxu0 %v4863
    %4937 = vmatprep.subr.mxu0 0.0
    %4938 = vmatpush2.msra.mxu0 %v4862
    %4939 = vmatprep.subr.mxu0 0.0
    %4940 = vmatpush2.msra.mxu0 %v4861
    %4941 = vmatprep.subr.mxu0 0.0
    %4942 = vmatpush2.msra.mxu0 %v4860
    %4943 = vmatprep.subr.mxu0 0.0
    %4944 = vmatpush2.msra.mxu0 %v4859
    %4945 = vmatprep.subr.mxu0 0.0
    %4946 = vmatpush2.msra.mxu0 %v4858
    %4947 = vmatprep.subr.mxu0 0.0
    %4948 = vmatpush2.msra.mxu0 %v4857
    %4949 = vmatprep.subr.mxu0 0.0
    %4950 = vmatpush2.msra.mxu0 %v4856
    %4951 = vmatprep.subr.mxu0 0.0
    %4952 = vmatpush2.msra.mxu0 %v4855
    %4953 = vmatprep.subr.mxu0 0.0
    %4954 = vmatpush2.msra.mxu0 %v4854
    %4955 = vmatprep.mubr.f32.mxu0 %v4747
    %4956 = vmatmul.mubr.f32.gmra.mxu0 %v4664
    %v4957 = vpop.f32.mrf.mxu0
    %v4958 = vadd.f32 %v4890, %v4957
    %v4959 = vpop.f32.mrf.mxu0
    %4960 = vmatprep.mubr.f32.mxu0 %v4752
    %4961 = vmatmul.mubr.f32.gmra.mxu0 %v4669
    %v4962 = vpop.f32.mrf.mxu0
    %v4963 = vadd.f32 %v4890, %v4962
    %v4964 = vpop.f32.mrf.mxu0
    %4965 = vdwg.mxu0
    %4966 = vmatprep.subr.mxu0 0.0
    %4967 = vmatpush1.msra.mxu0 %v4885
    %4968 = vmatprep.subr.mxu0 0.0
    %4969 = vmatpush1.msra.mxu0 %v4884
    %4970 = vmatprep.subr.mxu0 0.0
    %4971 = vmatpush1.msra.mxu0 %v4883
    %4972 = vmatprep.subr.mxu0 0.0
    %4973 = vmatpush1.msra.mxu0 %v4882
    %4974 = vmatprep.subr.mxu0 0.0
    %4975 = vmatpush1.msra.mxu0 %v4881
    %4976 = vmatprep.subr.mxu0 0.0
    %4977 = vmatpush1.msra.mxu0 %v4880
    %4978 = vmatprep.subr.mxu0 0.0
    %4979 = vmatpush1.msra.mxu0 %v4879
    %4980 = vmatprep.subr.mxu0 0.0
    %4981 = vmatpush1.msra.mxu0 %v4878
    %4982 = vmatprep.subr.mxu0 0.0
    %4983 = vmatpush1.msra.mxu0 %v4877
    %4984 = vmatprep.subr.mxu0 0.0
    %4985 = vmatpush1.msra.mxu0 %v4876
    %4986 = vmatprep.subr.mxu0 0.0
    %4987 = vmatpush1.msra.mxu0 %v4875
    %4988 = vmatprep.subr.mxu0 0.0
    %4989 = vmatpush1.msra.mxu0 %v4874
    %4990 = vmatprep.subr.mxu0 0.0
    %4991 = vmatpush1.msra.mxu0 %v4873
    %4992 = vmatprep.subr.mxu0 0.0
    %4993 = vmatpush1.msra.mxu0 %v4872
    %4994 = vmatprep.subr.mxu0 0.0
    %4995 = vmatpush1.msra.mxu0 %v4871
    %4996 = vmatprep.subr.mxu0 0.0
    %4997 = vmatpush1.msra.mxu0 %v4870
    %4998 = vmatprep.subr.mxu0 0.0
    %4999 = vmatpush2.msra.mxu0 0.0
    %5000 = vmatprep.subr.mxu0 0.0
    %5001 = vmatpush2.msra.mxu0 0.0
    %5002 = vmatprep.subr.mxu0 0.0
    %5003 = vmatpush2.msra.mxu0 0.0
    %5004 = vmatprep.subr.mxu0 0.0
    %5005 = vmatpush2.msra.mxu0 0.0
    %5006 = vmatprep.subr.mxu0 0.0
    %5007 = vmatpush2.msra.mxu0 0.0
    %5008 = vmatprep.subr.mxu0 0.0
    %5009 = vmatpush2.msra.mxu0 0.0
    %5010 = vmatprep.subr.mxu0 0.0
    %5011 = vmatpush2.msra.mxu0 0.0
    %5012 = vmatprep.subr.mxu0 0.0
    %5013 = vmatpush2.msra.mxu0 0.0
    %5014 = vmatprep.subr.mxu0 0.0
    %5015 = vmatpush2.msra.mxu0 0.0
    %5016 = vmatprep.subr.mxu0 0.0
    %5017 = vmatpush2.msra.mxu0 0.0
    %5018 = vmatprep.subr.mxu0 0.0
    %5019 = vmatpush2.msra.mxu0 0.0
    %5020 = vmatprep.subr.mxu0 0.0
    %5021 = vmatpush2.msra.mxu0 0.0
    %5022 = vmatprep.subr.mxu0 0.0
    %5023 = vmatpush2.msra.mxu0 0.0
    %5024 = vmatprep.subr.mxu0 0.0
    %5025 = vmatpush2.msra.mxu0 0.0
    %5026 = vmatprep.subr.mxu0 0.0
    %5027 = vmatpush2.msra.mxu0 0.0
    %5028 = vmatprep.subr.mxu0 0.0
    %5029 = vmatpush2.msra.mxu0 0.0
    %5030 = vmatprep.mubr.f32.mxu0 0.0
    %5031 = vmatmul.mubr.f32.gmra.mxu0 %v4830
    %v5032 = vpop.f32.mrf.mxu0
    %v5033 = vadd.f32 %v4958, %v5032
    %v5034 = vpop.f32.mrf.mxu0
    %5035 = vmatprep.mubr.f32.mxu0 0.0
    %5036 = vmatmul.mubr.f32.gmra.mxu0 %v4835
    %v5037 = vpop.f32.mrf.mxu0
    %v5038 = vadd.f32 %v4963, %v5037
    %v5039 = vpop.f32.mrf.mxu0
    %5040 = vdwg.mxu0
    %v5041 = vld [vmem:[#allocation2 + $0xab8] sm:$0xff]
    %v5042 = vld [vmem:[#allocation2 + $0xac0] sm:$0xff]
    %v5043 = vld [vmem:[#allocation2 + $0xac8] sm:$0xff]
    %v5044 = vld [vmem:[#allocation2 + $0xad0] sm:$0xff]
    %v5045 = vld [vmem:[#allocation2 + $0xad8] sm:$0xff]
    %v5046 = vld [vmem:[#allocation2 + $0xae0] sm:$0xff]
    %v5047 = vld [vmem:[#allocation2 + $0xae8] sm:$0xff]
    %v5048 = vld [vmem:[#allocation2 + $0xaf0] sm:$0xff]
    %v5049 = vld [vmem:[#allocation2 + $0xaf8] sm:$0xff]
    %v5050 = vld [vmem:[#allocation2 + $0xb00] sm:$0xff]
    %v5052 = vsel %vm1433, %v5041, 0
    %v5055 = vsel %vm1433, %v5042, 0
    %5057 = vmatprep.subr.mxu0 0.0
    %5058 = vmatpush1.msra.mxu0 0.0
    %5059 = vmatprep.subr.mxu0 0.0
    %5060 = vmatpush1.msra.mxu0 0.0
    %5061 = vmatprep.subr.mxu0 0.0
    %5062 = vmatpush1.msra.mxu0 0.0
    %5063 = vmatprep.subr.mxu0 0.0
    %5064 = vmatpush1.msra.mxu0 0.0
    %5065 = vmatprep.subr.mxu0 0.0
    %5066 = vmatpush1.msra.mxu0 0.0
    %5067 = vmatprep.subr.mxu0 0.0
    %5068 = vmatpush1.msra.mxu0 0.0
    %5069 = vmatprep.subr.mxu0 0.0
    %5070 = vmatpush1.msra.mxu0 0.0
    %5071 = vmatprep.subr.mxu0 0.0
    %5072 = vmatpush1.msra.mxu0 0.0
    %5073 = vmatprep.subr.mxu0 0.0
    %5074 = vmatpush1.msra.mxu0 0.0
    %5075 = vmatprep.subr.mxu0 0.0
    %5076 = vmatpush1.msra.mxu0 0.0
    %5077 = vmatprep.subr.mxu0 0.0
    %5078 = vmatpush1.msra.mxu0 0.0
    %5079 = vmatprep.subr.mxu0 0.0
    %5080 = vmatpush1.msra.mxu0 0.0
    %5081 = vmatprep.subr.mxu0 0.0
    %5082 = vmatpush1.msra.mxu0 0.0
    %5083 = vmatprep.subr.mxu0 0.0
    %5084 = vmatpush1.msra.mxu0 0.0
    %5085 = vmatprep.subr.mxu0 0.0
    %5086 = vmatpush1.msra.mxu0 %v5038
    %5087 = vmatprep.subr.mxu0 0.0
    %5088 = vmatpush1.msra.mxu0 %v5033
    %5089 = vmatprep.subr.mxu0 0.0
    %5090 = vmatpush2.msra.mxu0 0.0
    %5091 = vmatprep.subr.mxu0 0.0
    %5092 = vmatpush2.msra.mxu0 0.0
    %5093 = vmatprep.subr.mxu0 0.0
    %5094 = vmatpush2.msra.mxu0 0.0
    %5095 = vmatprep.subr.mxu0 0.0
    %5096 = vmatpush2.msra.mxu0 0.0
    %5097 = vmatprep.subr.mxu0 0.0
    %5098 = vmatpush2.msra.mxu0 0.0
    %5099 = vmatprep.subr.mxu0 0.0
    %5100 = vmatpush2.msra.mxu0 0.0
    %5101 = vmatprep.subr.mxu0 0.0
    %5102 = vmatpush2.msra.mxu0 0.0
    %5103 = vmatprep.subr.mxu0 0.0
    %5104 = vmatpush2.msra.mxu0 0.0
    %5105 = vmatprep.subr.mxu0 0.0
    %5106 = vmatpush2.msra.mxu0 0.0
    %5107 = vmatprep.subr.mxu0 0.0
    %5108 = vmatpush2.msra.mxu0 0.0
    %5109 = vmatprep.subr.mxu0 0.0
    %5110 = vmatpush2.msra.mxu0 0.0
    %5111 = vmatprep.subr.mxu0 0.0
    %5112 = vmatpush2.msra.mxu0 0.0
    %5113 = vmatprep.subr.mxu0 0.0
    %5114 = vmatpush2.msra.mxu0 0.0
    %5115 = vmatprep.subr.mxu0 0.0
    %5116 = vmatpush2.msra.mxu0 0.0
    %5117 = vmatprep.subr.mxu0 0.0
    %5118 = vmatpush2.msra.mxu0 0.0
    %5119 = vmatprep.subr.mxu0 0.0
    %5120 = vmatpush2.msra.mxu0 0.0
    %5121 = vmatprep.mubr.f32.mxu0 0.0
    %5122 = vmatmul.mubr.f32.gmra.mxu0 %v5052
    %v5123 = vpop.f32.mrf.mxu0
    %v5124 = vadd.f32 0.0, %v5123
    %v5125 = vpop.f32.mrf.mxu0
    %5126 = vmatprep.mubr.f32.mxu0 0.0
    %5127 = vmatmul.mubr.f32.gmra.mxu0 %v5055
    %v5128 = vpop.f32.mrf.mxu0
    %v5129 = vadd.f32 0.0, %v5128
    %v5130 = vpop.f32.mrf.mxu0
    %5131 = vdwg.mxu0
    %v5133 = vsel %vm162, %v5124, 0
    %v5136 = vsel %vm162, %v5129, 0
    %5138 = vmatprep.subr.mxu0 0.0
    %5139 = vmatpush1.msra.mxu0 0.0
    %5140 = vmatprep.subr.mxu0 0.0
    %5141 = vmatpush1.msra.mxu0 0.0
    %5142 = vmatprep.subr.mxu0 0.0
    %5143 = vmatpush1.msra.mxu0 0.0
    %5144 = vmatprep.subr.mxu0 0.0
    %5145 = vmatpush1.msra.mxu0 0.0
    %5146 = vmatprep.subr.mxu0 0.0
    %5147 = vmatpush1.msra.mxu0 0.0
    %5148 = vmatprep.subr.mxu0 0.0
    %5149 = vmatpush1.msra.mxu0 0.0
    %5150 = vmatprep.subr.mxu0 0.0
    %5151 = vmatpush1.msra.mxu0 0.0
    %5152 = vmatprep.subr.mxu0 0.0
    %5153 = vmatpush1.msra.mxu0 0.0
    %5154 = vmatprep.subr.mxu0 0.0
    %5155 = vmatpush1.msra.mxu0 %v5050
    %5156 = vmatprep.subr.mxu0 0.0
    %5157 = vmatpush1.msra.mxu0 %v5049
    %5158 = vmatprep.subr.mxu0 0.0
    %5159 = vmatpush1.msra.mxu0 %v5048
    %5160 = vmatprep.subr.mxu0 0.0
    %5161 = vmatpush1.msra.mxu0 %v5047
    %5162 = vmatprep.subr.mxu0 0.0
    %5163 = vmatpush1.msra.mxu0 %v5046
    %5164 = vmatprep.subr.mxu0 0.0
    %5165 = vmatpush1.msra.mxu0 %v5045
    %5166 = vmatprep.subr.mxu0 0.0
    %5167 = vmatpush1.msra.mxu0 %v5044
    %5168 = vmatprep.subr.mxu0 0.0
    %5169 = vmatpush1.msra.mxu0 %v5043
    %5170 = vmatprep.subr.mxu0 0.0
    %5171 = vmatpush2.msra.mxu0 0.0
    %5172 = vmatprep.subr.mxu0 0.0
    %5173 = vmatpush2.msra.mxu0 0.0
    %5174 = vmatprep.subr.mxu0 0.0
    %5175 = vmatpush2.msra.mxu0 0.0
    %5176 = vmatprep.subr.mxu0 0.0
    %5177 = vmatpush2.msra.mxu0 0.0
    %5178 = vmatprep.subr.mxu0 0.0
    %5179 = vmatpush2.msra.mxu0 0.0
    %5180 = vmatprep.subr.mxu0 0.0
    %5181 = vmatpush2.msra.mxu0 0.0
    %5182 = vmatprep.subr.mxu0 0.0
    %5183 = vmatpush2.msra.mxu0 0.0
    %5184 = vmatprep.subr.mxu0 0.0
    %5185 = vmatpush2.msra.mxu0 0.0
    %5186 = vmatprep.subr.mxu0 0.0
    %5187 = vmatpush2.msra.mxu0 0.0
    %5188 = vmatprep.subr.mxu0 0.0
    %5189 = vmatpush2.msra.mxu0 0.0
    %5190 = vmatprep.subr.mxu0 0.0
    %5191 = vmatpush2.msra.mxu0 0.0
    %5192 = vmatprep.subr.mxu0 0.0
    %5193 = vmatpush2.msra.mxu0 0.0
    %5194 = vmatprep.subr.mxu0 0.0
    %5195 = vmatpush2.msra.mxu0 0.0
    %5196 = vmatprep.subr.mxu0 0.0
    %5197 = vmatpush2.msra.mxu0 0.0
    %5198 = vmatprep.subr.mxu0 0.0
    %5199 = vmatpush2.msra.mxu0 0.0
    %5200 = vmatprep.subr.mxu0 0.0
    %5201 = vmatpush2.msra.mxu0 0.0
    %5202 = vmatprep.mubr.f32.mxu0 0.0
    %5203 = vmatmul.mubr.f32.gmra.mxu0 %v5133
    %v5204 = vpop.f32.mrf.mxu0
    %v5205 = vadd.f32 0.0, %v5204
    %v5206 = vpop.f32.mrf.mxu0
    %5207 = vmatprep.mubr.f32.mxu0 0.0
    %5208 = vmatmul.mubr.f32.gmra.mxu0 %v5136
    %v5209 = vpop.f32.mrf.mxu0
    %v5210 = vadd.f32 0.0, %v5209
    %v5211 = vpop.f32.mrf.mxu0
    %5212 = vdwg.mxu0
    %v5213 = vmul.f32 %v5033, %v5033
    %v5214 = vmul.f32 %v5038, %v5038
    %5215 = vmatprep.subr.mxu0 0.0
    %5216 = vmatpush1.msra.mxu0 0.0
    %5217 = vmatprep.subr.mxu0 0.0
    %5218 = vmatpush1.msra.mxu0 0.0
    %5219 = vmatprep.subr.mxu0 0.0
    %5220 = vmatpush1.msra.mxu0 0.0
    %5221 = vmatprep.subr.mxu0 0.0
    %5222 = vmatpush1.msra.mxu0 0.0
    %5223 = vmatprep.subr.mxu0 0.0
    %5224 = vmatpush1.msra.mxu0 0.0
    %5225 = vmatprep.subr.mxu0 0.0
    %5226 = vmatpush1.msra.mxu0 0.0
    %5227 = vmatprep.subr.mxu0 0.0
    %5228 = vmatpush1.msra.mxu0 0.0
    %5229 = vmatprep.subr.mxu0 0.0
    %5230 = vmatpush1.msra.mxu0 0.0
    %5231 = vmatprep.subr.mxu0 0.0
    %5232 = vmatpush1.msra.mxu0 0.0
    %5233 = vmatprep.subr.mxu0 0.0
    %5234 = vmatpush1.msra.mxu0 0.0
    %5235 = vmatprep.subr.mxu0 0.0
    %5236 = vmatpush1.msra.mxu0 0.0
    %5237 = vmatprep.subr.mxu0 0.0
    %5238 = vmatpush1.msra.mxu0 0.0
    %5239 = vmatprep.subr.mxu0 0.0
    %5240 = vmatpush1.msra.mxu0 0.0
    %5241 = vmatprep.subr.mxu0 0.0
    %5242 = vmatpush1.msra.mxu0 0.0
    %5243 = vmatprep.subr.mxu0 0.0
    %5244 = vmatpush1.msra.mxu0 %v5214
    %5245 = vmatprep.subr.mxu0 0.0
    %5246 = vmatpush1.msra.mxu0 %v5213
    %5247 = vmatprep.subr.mxu0 0.0
    %5248 = vmatpush2.msra.mxu0 0.0
    %5249 = vmatprep.subr.mxu0 0.0
    %5250 = vmatpush2.msra.mxu0 0.0
    %5251 = vmatprep.subr.mxu0 0.0
    %5252 = vmatpush2.msra.mxu0 0.0
    %5253 = vmatprep.subr.mxu0 0.0
    %5254 = vmatpush2.msra.mxu0 0.0
    %5255 = vmatprep.subr.mxu0 0.0
    %5256 = vmatpush2.msra.mxu0 0.0
    %5257 = vmatprep.subr.mxu0 0.0
    %5258 = vmatpush2.msra.mxu0 0.0
    %5259 = vmatprep.subr.mxu0 0.0
    %5260 = vmatpush2.msra.mxu0 0.0
    %5261 = vmatprep.subr.mxu0 0.0
    %5262 = vmatpush2.msra.mxu0 0.0
    %5263 = vmatprep.subr.mxu0 0.0
    %5264 = vmatpush2.msra.mxu0 0.0
    %5265 = vmatprep.subr.mxu0 0.0
    %5266 = vmatpush2.msra.mxu0 0.0
    %5267 = vmatprep.subr.mxu0 0.0
    %5268 = vmatpush2.msra.mxu0 0.0
    %5269 = vmatprep.subr.mxu0 0.0
    %5270 = vmatpush2.msra.mxu0 0.0
    %5271 = vmatprep.subr.mxu0 0.0
    %5272 = vmatpush2.msra.mxu0 0.0
    %5273 = vmatprep.subr.mxu0 0.0
    %5274 = vmatpush2.msra.mxu0 0.0
    %5275 = vmatprep.subr.mxu0 0.0
    %5276 = vmatpush2.msra.mxu0 0.0
    %5277 = vmatprep.subr.mxu0 0.0
    %5278 = vmatpush2.msra.mxu0 0.0
    %5279 = vmatprep.mubr.f32.mxu0 0.0
    %5280 = vmatmul.mubr.f32.gmra.mxu0 %v5052
    %v5281 = vpop.f32.mrf.mxu0
    %v5282 = vadd.f32 0.0, %v5281
    %v5283 = vpop.f32.mrf.mxu0
    %5284 = vmatprep.mubr.f32.mxu0 0.0
    %5285 = vmatmul.mubr.f32.gmra.mxu0 %v5055
    %v5286 = vpop.f32.mrf.mxu0
    %v5287 = vadd.f32 0.0, %v5286
    %v5288 = vpop.f32.mrf.mxu0
    %5289 = vdwg.mxu0
    %v5291 = vsel %vm162, %v5282, 0
    %v5294 = vsel %vm162, %v5287, 0
    %5296 = vmatprep.subr.mxu0 0.0
    %5297 = vmatpush1.msra.mxu0 0.0
    %5298 = vmatprep.subr.mxu0 0.0
    %5299 = vmatpush1.msra.mxu0 0.0
    %5300 = vmatprep.subr.mxu0 0.0
    %5301 = vmatpush1.msra.mxu0 0.0
    %5302 = vmatprep.subr.mxu0 0.0
    %5303 = vmatpush1.msra.mxu0 0.0
    %5304 = vmatprep.subr.mxu0 0.0
    %5305 = vmatpush1.msra.mxu0 0.0
    %5306 = vmatprep.subr.mxu0 0.0
    %5307 = vmatpush1.msra.mxu0 0.0
    %5308 = vmatprep.subr.mxu0 0.0
    %5309 = vmatpush1.msra.mxu0 0.0
    %5310 = vmatprep.subr.mxu0 0.0
    %5311 = vmatpush1.msra.mxu0 0.0
    %5312 = vmatprep.subr.mxu0 0.0
    %5313 = vmatpush1.msra.mxu0 %v5050
    %5314 = vmatprep.subr.mxu0 0.0
    %5315 = vmatpush1.msra.mxu0 %v5049
    %5316 = vmatprep.subr.mxu0 0.0
    %5317 = vmatpush1.msra.mxu0 %v5048
    %5318 = vmatprep.subr.mxu0 0.0
    %5319 = vmatpush1.msra.mxu0 %v5047
    %5320 = vmatprep.subr.mxu0 0.0
    %5321 = vmatpush1.msra.mxu0 %v5046
    %5322 = vmatprep.subr.mxu0 0.0
    %5323 = vmatpush1.msra.mxu0 %v5045
    %5324 = vmatprep.subr.mxu0 0.0
    %5325 = vmatpush1.msra.mxu0 %v5044
    %5326 = vmatprep.subr.mxu0 0.0
    %5327 = vmatpush1.msra.mxu0 %v5043
    %5328 = vmatprep.subr.mxu0 0.0
    %5329 = vmatpush2.msra.mxu0 0.0
    %5330 = vmatprep.subr.mxu0 0.0
    %5331 = vmatpush2.msra.mxu0 0.0
    %5332 = vmatprep.subr.mxu0 0.0
    %5333 = vmatpush2.msra.mxu0 0.0
    %5334 = vmatprep.subr.mxu0 0.0
    %5335 = vmatpush2.msra.mxu0 0.0
    %5336 = vmatprep.subr.mxu0 0.0
    %5337 = vmatpush2.msra.mxu0 0.0
    %5338 = vmatprep.subr.mxu0 0.0
    %5339 = vmatpush2.msra.mxu0 0.0
    %5340 = vmatprep.subr.mxu0 0.0
    %5341 = vmatpush2.msra.mxu0 0.0
    %5342 = vmatprep.subr.mxu0 0.0
    %5343 = vmatpush2.msra.mxu0 0.0
    %5344 = vmatprep.subr.mxu0 0.0
    %5345 = vmatpush2.msra.mxu0 0.0
    %5346 = vmatprep.subr.mxu0 0.0
    %5347 = vmatpush2.msra.mxu0 0.0
    %5348 = vmatprep.subr.mxu0 0.0
    %5349 = vmatpush2.msra.mxu0 0.0
    %5350 = vmatprep.subr.mxu0 0.0
    %5351 = vmatpush2.msra.mxu0 0.0
    %5352 = vmatprep.subr.mxu0 0.0
    %5353 = vmatpush2.msra.mxu0 0.0
    %5354 = vmatprep.subr.mxu0 0.0
    %5355 = vmatpush2.msra.mxu0 0.0
    %5356 = vmatprep.subr.mxu0 0.0
    %5357 = vmatpush2.msra.mxu0 0.0
    %5358 = vmatprep.subr.mxu0 0.0
    %5359 = vmatpush2.msra.mxu0 0.0
    %5360 = vmatprep.mubr.f32.mxu0 0.0
    %5361 = vmatmul.mubr.f32.gmra.mxu0 %v5291
    %v5362 = vpop.f32.mrf.mxu0
    %v5363 = vadd.f32 0.0, %v5362
    %v5364 = vpop.f32.mrf.mxu0
    %5365 = vmatprep.mubr.f32.mxu0 0.0
    %5366 = vmatmul.mubr.f32.gmra.mxu0 %v5294
    %v5367 = vpop.f32.mrf.mxu0
    %v5368 = vadd.f32 0.0, %v5367
    %v5369 = vpop.f32.mrf.mxu0
    %5370 = vdwg.mxu0
    %v5371 = vmul.f32 %v5205, %v5205
    %v5372 = vmul.f32 %v5210, %v5210
    %v5373 = vsub.f32 %v5363, %v5371
    %v5374 = vsub.f32 %v5368, %v5372
    %v5375 = vsub.f32 %v5033, %v5205
    %v5376 = vsub.f32 %v5038, %v5210
    %v5377 = vadd.f32 %v5373, 1e-05
    %v5378 = vadd.f32 %v5374, 1e-05
    %v5379 = vrsqrt.pop %v5377
    %v5380 = vrsqrt.pop %v5378
    %v5381 = vmul.f32 %v5375, %v5379
    %v5382 = vmul.f32 %v5376, %v5380
    %v5383 = vld [vmem:[#allocation2 + $0xb08] sm:$0x1]
    %vm5384 = vcmp.ge.f32.partialorder %v5381, 0.0
    %vm5385 = vcmp.ge.f32.partialorder %v5382, 0.0
    %s5387 = vtos %v5383
    %v5388 = vstv %s5387
    %v5390 = vmul.f32 %v5388, %v5381
    %v5391 = vmul.f32 %v5388, %v5382
    %v5392 = vsel %vm5384, %v5381, %v5390
    %v5393 = vsel %vm5385, %v5382, %v5391
    %s5394 = smul.u32 592, 1
    %s5395 = sshll.u32 %s5394, 4
    %5396 = dma.done %s121, %s5395
    %5399 = vrot.lane.b32.xlu0 %v1775, 64
    %v5400 = vpop.permute.xlu0 %5399
    %5401 = vrot.lane.b32.xlu0 %v1776, 64
    %v5402 = vpop.permute.xlu0 %5401
    %v5405 = vsel %vm162, %v5392, %v5400
    %v5406 = vsel %vm162, %v5393, %v5402
    %v5407 = vld [vmem:[#allocation2 + $0xb10] sm:$0xff]
    %v5408 = vld [vmem:[#allocation2 + $0xb18] sm:$0xff]
    %v5409 = vld [vmem:[#allocation2 + $0xb20] sm:$0xff]
    %v5410 = vld [vmem:[#allocation2 + $0xb28] sm:$0xff]
    %v5412 = vsel %vm1433, %v5407, 0
    %v5415 = vsel %vm1433, %v5408, 0
    %v5418 = vsel %vm1433, %v5409, 0
    %v5421 = vsel %vm1433, %v5410, 0
    %5423 = vmatprep.subr.mxu0 0.0
    %5424 = vmatpush1.msra.mxu0 0.0
    %5425 = vmatprep.subr.mxu0 0.0
    %5426 = vmatpush1.msra.mxu0 0.0
    %5427 = vmatprep.subr.mxu0 0.0
    %5428 = vmatpush1.msra.mxu0 0.0
    %5429 = vmatprep.subr.mxu0 0.0
    %5430 = vmatpush1.msra.mxu0 0.0
    %5431 = vmatprep.subr.mxu0 0.0
    %5432 = vmatpush1.msra.mxu0 0.0
    %5433 = vmatprep.subr.mxu0 0.0
    %5434 = vmatpush1.msra.mxu0 0.0
    %5435 = vmatprep.subr.mxu0 0.0
    %5436 = vmatpush1.msra.mxu0 0.0
    %5437 = vmatprep.subr.mxu0 0.0
    %5438 = vmatpush1.msra.mxu0 0.0
    %5439 = vmatprep.subr.mxu0 0.0
    %5440 = vmatpush1.msra.mxu0 0.0
    %5441 = vmatprep.subr.mxu0 0.0
    %5442 = vmatpush1.msra.mxu0 0.0
    %5443 = vmatprep.subr.mxu0 0.0
    %5444 = vmatpush1.msra.mxu0 0.0
    %5445 = vmatprep.subr.mxu0 0.0
    %5446 = vmatpush1.msra.mxu0 0.0
    %5447 = vmatprep.subr.mxu0 0.0
    %5448 = vmatpush1.msra.mxu0 0.0
    %5449 = vmatprep.subr.mxu0 0.0
    %5450 = vmatpush1.msra.mxu0 0.0
    %5451 = vmatprep.subr.mxu0 0.0
    %5452 = vmatpush1.msra.mxu0 %v5406
    %5453 = vmatprep.subr.mxu0 0.0
    %5454 = vmatpush1.msra.mxu0 %v5405
    %5455 = vmatprep.subr.mxu0 0.0
    %5456 = vmatpush2.msra.mxu0 0.0
    %5457 = vmatprep.subr.mxu0 0.0
    %5458 = vmatpush2.msra.mxu0 0.0
    %5459 = vmatprep.subr.mxu0 0.0
    %5460 = vmatpush2.msra.mxu0 0.0
    %5461 = vmatprep.subr.mxu0 0.0
    %5462 = vmatpush2.msra.mxu0 0.0
    %5463 = vmatprep.subr.mxu0 0.0
    %5464 = vmatpush2.msra.mxu0 0.0
    %5465 = vmatprep.subr.mxu0 0.0
    %5466 = vmatpush2.msra.mxu0 0.0
    %5467 = vmatprep.subr.mxu0 0.0
    %5468 = vmatpush2.msra.mxu0 0.0
    %5469 = vmatprep.subr.mxu0 0.0
    %5470 = vmatpush2.msra.mxu0 0.0
    %5471 = vmatprep.subr.mxu0 0.0
    %5472 = vmatpush2.msra.mxu0 0.0
    %5473 = vmatprep.subr.mxu0 0.0
    %5474 = vmatpush2.msra.mxu0 0.0
    %5475 = vmatprep.subr.mxu0 0.0
    %5476 = vmatpush2.msra.mxu0 0.0
    %5477 = vmatprep.subr.mxu0 0.0
    %5478 = vmatpush2.msra.mxu0 0.0
    %5479 = vmatprep.subr.mxu0 0.0
    %5480 = vmatpush2.msra.mxu0 0.0
    %5481 = vmatprep.subr.mxu0 0.0
    %5482 = vmatpush2.msra.mxu0 0.0
    %5483 = vmatprep.subr.mxu0 0.0
    %5484 = vmatpush2.msra.mxu0 0.0
    %5485 = vmatprep.subr.mxu0 0.0
    %5486 = vmatpush2.msra.mxu0 0.0
    %5487 = vmatprep.mubr.f32.mxu0 0.0
    %5488 = vmatmul.mubr.f32.gmra.mxu0 %v5412
    %v5489 = vpop.f32.mrf.mxu0
    %v5490 = vadd.f32 0.0, %v5489
    %v5491 = vpop.f32.mrf.mxu0
    %5492 = vmatprep.mubr.f32.mxu0 0.0
    %5493 = vmatmul.mubr.f32.gmra.mxu0 %v5415
    %v5494 = vpop.f32.mrf.mxu0
    %v5495 = vadd.f32 0.0, %v5494
    %v5496 = vpop.f32.mrf.mxu0
    %5497 = vmatprep.mubr.f32.mxu0 0.0
    %5498 = vmatmul.mubr.f32.gmra.mxu0 %v5418
    %v5499 = vpop.f32.mrf.mxu0
    %v5500 = vadd.f32 0.0, %v5499
    %v5501 = vpop.f32.mrf.mxu0
    %5502 = vmatprep.mubr.f32.mxu0 0.0
    %5503 = vmatmul.mubr.f32.gmra.mxu0 %v5421
    %v5504 = vpop.f32.mrf.mxu0
    %v5505 = vadd.f32 0.0, %v5504
    %v5506 = vpop.f32.mrf.mxu0
    %5507 = vdwg.mxu0
    %v5508 = vld [vmem:[#allocation2 + $0xb30] sm:$0xff]
    %v5509 = vld [vmem:[#allocation2 + $0xb38] sm:$0xff]
    %v5510 = vld [vmem:[#allocation2 + $0xb40] sm:$0xff]
    %v5511 = vld [vmem:[#allocation2 + $0xb48] sm:$0xff]
    %v5513 = vsel %vm1433, %v5508, 0
    %v5516 = vsel %vm1433, %v5509, 0
    %v5519 = vsel %vm1433, %v5510, 0
    %v5522 = vsel %vm1433, %v5511, 0
    %5524 = vmatprep.subr.mxu0 0.0
    %5525 = vmatpush1.msra.mxu0 0.0
    %5526 = vmatprep.subr.mxu0 0.0
    %5527 = vmatpush1.msra.mxu0 0.0
    %5528 = vmatprep.subr.mxu0 0.0
    %5529 = vmatpush1.msra.mxu0 0.0
    %5530 = vmatprep.subr.mxu0 0.0
    %5531 = vmatpush1.msra.mxu0 0.0
    %5532 = vmatprep.subr.mxu0 0.0
    %5533 = vmatpush1.msra.mxu0 0.0
    %5534 = vmatprep.subr.mxu0 0.0
    %5535 = vmatpush1.msra.mxu0 0.0
    %5536 = vmatprep.subr.mxu0 0.0
    %5537 = vmatpush1.msra.mxu0 0.0
    %5538 = vmatprep.subr.mxu0 0.0
    %5539 = vmatpush1.msra.mxu0 0.0
    %5540 = vmatprep.subr.mxu0 0.0
    %5541 = vmatpush1.msra.mxu0 0.0
    %5542 = vmatprep.subr.mxu0 0.0
    %5543 = vmatpush1.msra.mxu0 0.0
    %5544 = vmatprep.subr.mxu0 0.0
    %5545 = vmatpush1.msra.mxu0 0.0
    %5546 = vmatprep.subr.mxu0 0.0
    %5547 = vmatpush1.msra.mxu0 0.0
    %5548 = vmatprep.subr.mxu0 0.0
    %5549 = vmatpush1.msra.mxu0 0.0
    %5550 = vmatprep.subr.mxu0 0.0
    %5551 = vmatpush1.msra.mxu0 0.0
    %5552 = vmatprep.subr.mxu0 0.0
    %5553 = vmatpush1.msra.mxu0 %v5406
    %5554 = vmatprep.subr.mxu0 0.0
    %5555 = vmatpush1.msra.mxu0 %v5405
    %5556 = vmatprep.subr.mxu0 0.0
    %5557 = vmatpush2.msra.mxu0 0.0
    %5558 = vmatprep.subr.mxu0 0.0
    %5559 = vmatpush2.msra.mxu0 0.0
    %5560 = vmatprep.subr.mxu0 0.0
    %5561 = vmatpush2.msra.mxu0 0.0
    %5562 = vmatprep.subr.mxu0 0.0
    %5563 = vmatpush2.msra.mxu0 0.0
    %5564 = vmatprep.subr.mxu0 0.0
    %5565 = vmatpush2.msra.mxu0 0.0
    %5566 = vmatprep.subr.mxu0 0.0
    %5567 = vmatpush2.msra.mxu0 0.0
    %5568 = vmatprep.subr.mxu0 0.0
    %5569 = vmatpush2.msra.mxu0 0.0
    %5570 = vmatprep.subr.mxu0 0.0
    %5571 = vmatpush2.msra.mxu0 0.0
    %5572 = vmatprep.subr.mxu0 0.0
    %5573 = vmatpush2.msra.mxu0 0.0
    %5574 = vmatprep.subr.mxu0 0.0
    %5575 = vmatpush2.msra.mxu0 0.0
    %5576 = vmatprep.subr.mxu0 0.0
    %5577 = vmatpush2.msra.mxu0 0.0
    %5578 = vmatprep.subr.mxu0 0.0
    %5579 = vmatpush2.msra.mxu0 0.0
    %5580 = vmatprep.subr.mxu0 0.0
    %5581 = vmatpush2.msra.mxu0 0.0
    %5582 = vmatprep.subr.mxu0 0.0
    %5583 = vmatpush2.msra.mxu0 0.0
    %5584 = vmatprep.subr.mxu0 0.0
    %5585 = vmatpush2.msra.mxu0 0.0
    %5586 = vmatprep.subr.mxu0 0.0
    %5587 = vmatpush2.msra.mxu0 0.0
    %5588 = vmatprep.mubr.f32.mxu0 0.0
    %5589 = vmatmul.mubr.f32.gmra.mxu0 %v5513
    %v5590 = vpop.f32.mrf.mxu0
    %v5591 = vadd.f32 0.0, %v5590
    %v5592 = vpop.f32.mrf.mxu0
    %5593 = vmatprep.mubr.f32.mxu0 0.0
    %5594 = vmatmul.mubr.f32.gmra.mxu0 %v5516
    %v5595 = vpop.f32.mrf.mxu0
    %v5596 = vadd.f32 0.0, %v5595
    %v5597 = vpop.f32.mrf.mxu0
    %5598 = vmatprep.mubr.f32.mxu0 0.0
    %5599 = vmatmul.mubr.f32.gmra.mxu0 %v5519
    %v5600 = vpop.f32.mrf.mxu0
    %v5601 = vadd.f32 0.0, %v5600
    %v5602 = vpop.f32.mrf.mxu0
    %5603 = vmatprep.mubr.f32.mxu0 0.0
    %5604 = vmatmul.mubr.f32.gmra.mxu0 %v5522
    %v5605 = vpop.f32.mrf.mxu0
    %v5606 = vadd.f32 0.0, %v5605
    %v5607 = vpop.f32.mrf.mxu0
    %5608 = vdwg.mxu0
    %v5609 = vld [vmem:[#allocation2 + $0xb50] sm:$0xff]
    %v5610 = vld [vmem:[#allocation2 + $0xb58] sm:$0xff]
    %v5611 = vld [vmem:[#allocation2 + $0xb60] sm:$0xff]
    %v5612 = vld [vmem:[#allocation2 + $0xb68] sm:$0xff]
    %v5614 = vsel %vm1433, %v5609, 0
    %v5617 = vsel %vm1433, %v5610, 0
    %v5620 = vsel %vm1433, %v5611, 0
    %v5623 = vsel %vm1433, %v5612, 0
    %5625 = vmatprep.subr.mxu0 0.0
    %5626 = vmatpush1.msra.mxu0 0.0
    %5627 = vmatprep.subr.mxu0 0.0
    %5628 = vmatpush1.msra.mxu0 0.0
    %5629 = vmatprep.subr.mxu0 0.0
    %5630 = vmatpush1.msra.mxu0 0.0
    %5631 = vmatprep.subr.mxu0 0.0
    %5632 = vmatpush1.msra.mxu0 0.0
    %5633 = vmatprep.subr.mxu0 0.0
    %5634 = vmatpush1.msra.mxu0 0.0
    %5635 = vmatprep.subr.mxu0 0.0
    %5636 = vmatpush1.msra.mxu0 0.0
    %5637 = vmatprep.subr.mxu0 0.0
    %5638 = vmatpush1.msra.mxu0 0.0
    %5639 = vmatprep.subr.mxu0 0.0
    %5640 = vmatpush1.msra.mxu0 0.0
    %5641 = vmatprep.subr.mxu0 0.0
    %5642 = vmatpush1.msra.mxu0 0.0
    %5643 = vmatprep.subr.mxu0 0.0
    %5644 = vmatpush1.msra.mxu0 0.0
    %5645 = vmatprep.subr.mxu0 0.0
    %5646 = vmatpush1.msra.mxu0 0.0
    %5647 = vmatprep.subr.mxu0 0.0
    %5648 = vmatpush1.msra.mxu0 0.0
    %5649 = vmatprep.subr.mxu0 0.0
    %5650 = vmatpush1.msra.mxu0 0.0
    %5651 = vmatprep.subr.mxu0 0.0
    %5652 = vmatpush1.msra.mxu0 0.0
    %5653 = vmatprep.subr.mxu0 0.0
    %5654 = vmatpush1.msra.mxu0 %v5406
    %5655 = vmatprep.subr.mxu0 0.0
    %5656 = vmatpush1.msra.mxu0 %v5405
    %5657 = vmatprep.subr.mxu0 0.0
    %5658 = vmatpush2.msra.mxu0 0.0
    %5659 = vmatprep.subr.mxu0 0.0
    %5660 = vmatpush2.msra.mxu0 0.0
    %5661 = vmatprep.subr.mxu0 0.0
    %5662 = vmatpush2.msra.mxu0 0.0
    %5663 = vmatprep.subr.mxu0 0.0
    %5664 = vmatpush2.msra.mxu0 0.0
    %5665 = vmatprep.subr.mxu0 0.0
    %5666 = vmatpush2.msra.mxu0 0.0
    %5667 = vmatprep.subr.mxu0 0.0
    %5668 = vmatpush2.msra.mxu0 0.0
    %5669 = vmatprep.subr.mxu0 0.0
    %5670 = vmatpush2.msra.mxu0 0.0
    %5671 = vmatprep.subr.mxu0 0.0
    %5672 = vmatpush2.msra.mxu0 0.0
    %5673 = vmatprep.subr.mxu0 0.0
    %5674 = vmatpush2.msra.mxu0 0.0
    %5675 = vmatprep.subr.mxu0 0.0
    %5676 = vmatpush2.msra.mxu0 0.0
    %5677 = vmatprep.subr.mxu0 0.0
    %5678 = vmatpush2.msra.mxu0 0.0
    %5679 = vmatprep.subr.mxu0 0.0
    %5680 = vmatpush2.msra.mxu0 0.0
    %5681 = vmatprep.subr.mxu0 0.0
    %5682 = vmatpush2.msra.mxu0 0.0
    %5683 = vmatprep.subr.mxu0 0.0
    %5684 = vmatpush2.msra.mxu0 0.0
    %5685 = vmatprep.subr.mxu0 0.0
    %5686 = vmatpush2.msra.mxu0 0.0
    %5687 = vmatprep.subr.mxu0 0.0
    %5688 = vmatpush2.msra.mxu0 0.0
    %5689 = vmatprep.mubr.f32.mxu0 0.0
    %5690 = vmatmul.mubr.f32.gmra.mxu0 %v5614
    %v5691 = vpop.f32.mrf.mxu0
    %v5692 = vadd.f32 0.0, %v5691
    %v5693 = vpop.f32.mrf.mxu0
    %5694 = vmatprep.mubr.f32.mxu0 0.0
    %5695 = vmatmul.mubr.f32.gmra.mxu0 %v5617
    %v5696 = vpop.f32.mrf.mxu0
    %v5697 = vadd.f32 0.0, %v5696
    %v5698 = vpop.f32.mrf.mxu0
    %5699 = vmatprep.mubr.f32.mxu0 0.0
    %5700 = vmatmul.mubr.f32.gmra.mxu0 %v5620
    %v5701 = vpop.f32.mrf.mxu0
    %v5702 = vadd.f32 0.0, %v5701
    %v5703 = vpop.f32.mrf.mxu0
    %5704 = vmatprep.mubr.f32.mxu0 0.0
    %5705 = vmatmul.mubr.f32.gmra.mxu0 %v5623
    %v5706 = vpop.f32.mrf.mxu0
    %v5707 = vadd.f32 0.0, %v5706
    %v5708 = vpop.f32.mrf.mxu0
    %5709 = vdwg.mxu0
    %v5710 = vld [vmem:[#allocation2 + $0xb70] sm:$0xff]
    %v5711 = vld [vmem:[#allocation2 + $0xb78] sm:$0xff]
    %v5712 = vld [vmem:[#allocation2 + $0xb80] sm:$0xff]
    %v5713 = vld [vmem:[#allocation2 + $0xb88] sm:$0xff]
    %v5714 = vld [vmem:[#allocation2 + $0xb90] sm:$0xff]
    %v5715 = vld [vmem:[#allocation2 + $0xb98] sm:$0xff]
    %v5716 = vld [vmem:[#allocation2 + $0xba0] sm:$0xff]
    %v5717 = vld [vmem:[#allocation2 + $0xba8] sm:$0xff]
    %v5718 = vld [vmem:[#allocation2 + $0xbb0] sm:$0xff]
    %v5719 = vld [vmem:[#allocation2 + $0xbb8] sm:$0xff]
    %v5720 = vld [vmem:[#allocation2 + $0xbc0] sm:$0xff]
    %v5721 = vld [vmem:[#allocation2 + $0xbc8] sm:$0xff]
    %v5722 = vld [vmem:[#allocation2 + $0xbd0] sm:$0xff]
    %v5723 = vld [vmem:[#allocation2 + $0xbd8] sm:$0xff]
    %v5724 = vld [vmem:[#allocation2 + $0xbe0] sm:$0xff]
    %v5725 = vld [vmem:[#allocation2 + $0xbe8] sm:$0xff]
    %v5726 = vld [vmem:[#allocation2 + $0xbf0] sm:$0xff]
    %v5727 = vld [vmem:[#allocation2 + $0xbf8] sm:$0xff]
    %v5728 = vld [vmem:[#allocation2 + $0xc00] sm:$0xff]
    %v5729 = vld [vmem:[#allocation2 + $0xc08] sm:$0xff]
    %v5730 = vld [vmem:[#allocation2 + $0xc10] sm:$0xff]
    %v5731 = vld [vmem:[#allocation2 + $0xc18] sm:$0xff]
    %v5732 = vld [vmem:[#allocation2 + $0xc20] sm:$0xff]
    %v5733 = vld [vmem:[#allocation2 + $0xc28] sm:$0xff]
    %v5734 = vld [vmem:[#allocation2 + $0xc30] sm:$0xff]
    %v5735 = vld [vmem:[#allocation2 + $0xc38] sm:$0xff]
    %v5736 = vld [vmem:[#allocation2 + $0xc40] sm:$0xff]
    %v5737 = vld [vmem:[#allocation2 + $0xc48] sm:$0xff]
    %v5738 = vld [vmem:[#allocation2 + $0xc50] sm:$0xff]
    %v5739 = vld [vmem:[#allocation2 + $0xc58] sm:$0xff]
    %v5740 = vld [vmem:[#allocation2 + $0xc60] sm:$0xff]
    %v5741 = vld [vmem:[#allocation2 + $0xc68] sm:$0xff]
    %v5742 = vld [vmem:[#allocation2 + $0xc70] sm:$0xff]
    %v5743 = vld [vmem:[#allocation2 + $0xc78] sm:$0xff]
    %v5744 = vld [vmem:[#allocation2 + $0xc80] sm:$0xff]
    %v5745 = vld [vmem:[#allocation2 + $0xc88] sm:$0xff]
    %v5746 = vld [vmem:[#allocation2 + $0xc90] sm:$0xff]
    %v5747 = vld [vmem:[#allocation2 + $0xc98] sm:$0xff]
    %v5748 = vld [vmem:[#allocation2 + $0xca0] sm:$0xff]
    %v5749 = vld [vmem:[#allocation2 + $0xca8] sm:$0xff]
    %v5750 = vld [vmem:[#allocation2 + $0xcb0] sm:$0xff]
    %v5751 = vld [vmem:[#allocation2 + $0xcb8] sm:$0xff]
    %v5752 = vld [vmem:[#allocation2 + $0xcc0] sm:$0xff]
    %v5753 = vld [vmem:[#allocation2 + $0xcc8] sm:$0xff]
    %v5754 = vld [vmem:[#allocation2 + $0xcd0] sm:$0xff]
    %v5755 = vld [vmem:[#allocation2 + $0xcd8] sm:$0xff]
    %v5756 = vld [vmem:[#allocation2 + $0xce0] sm:$0xff]
    %v5757 = vld [vmem:[#allocation2 + $0xce8] sm:$0xff]
    %v5758 = vld [vmem:[#allocation2 + $0xcf0] sm:$0x1]
    %v5759 = vlaneseq
    %v5760 = vshrl.u32 %v5759, 7
    %v5761 = vsub.s32 0, %v5760
    %v5762 = vrot.slane %v5758, %v5761
    %5763 = vmatprep.subr.mxu0 0.0
    %5764 = vmatpush1.msra.mxu0 %v5725
    %5765 = vmatprep.subr.mxu0 0.0
    %5766 = vmatpush1.msra.mxu0 %v5724
    %5767 = vmatprep.subr.mxu0 0.0
    %5768 = vmatpush1.msra.mxu0 %v5723
    %5769 = vmatprep.subr.mxu0 0.0
    %5770 = vmatpush1.msra.mxu0 %v5722
    %5771 = vmatprep.subr.mxu0 0.0
    %5772 = vmatpush1.msra.mxu0 %v5721
    %5773 = vmatprep.subr.mxu0 0.0
    %5774 = vmatpush1.msra.mxu0 %v5720
    %5775 = vmatprep.subr.mxu0 0.0
    %5776 = vmatpush1.msra.mxu0 %v5719
    %5777 = vmatprep.subr.mxu0 0.0
    %5778 = vmatpush1.msra.mxu0 %v5718
    %5779 = vmatprep.subr.mxu0 0.0
    %5780 = vmatpush1.msra.mxu0 %v5717
    %5781 = vmatprep.subr.mxu0 0.0
    %5782 = vmatpush1.msra.mxu0 %v5716
    %5783 = vmatprep.subr.mxu0 0.0
    %5784 = vmatpush1.msra.mxu0 %v5715
    %5785 = vmatprep.subr.mxu0 0.0
    %5786 = vmatpush1.msra.mxu0 %v5714
    %5787 = vmatprep.subr.mxu0 0.0
    %5788 = vmatpush1.msra.mxu0 %v5713
    %5789 = vmatprep.subr.mxu0 0.0
    %5790 = vmatpush1.msra.mxu0 %v5712
    %5791 = vmatprep.subr.mxu0 0.0
    %5792 = vmatpush1.msra.mxu0 %v5711
    %5793 = vmatprep.subr.mxu0 0.0
    %5794 = vmatpush1.msra.mxu0 %v5710
    %5795 = vmatprep.subr.mxu0 0.0
    %5796 = vmatpush2.msra.mxu0 %v5741
    %5797 = vmatprep.subr.mxu0 0.0
    %5798 = vmatpush2.msra.mxu0 %v5740
    %5799 = vmatprep.subr.mxu0 0.0
    %5800 = vmatpush2.msra.mxu0 %v5739
    %5801 = vmatprep.subr.mxu0 0.0
    %5802 = vmatpush2.msra.mxu0 %v5738
    %5803 = vmatprep.subr.mxu0 0.0
    %5804 = vmatpush2.msra.mxu0 %v5737
    %5805 = vmatprep.subr.mxu0 0.0
    %5806 = vmatpush2.msra.mxu0 %v5736
    %5807 = vmatprep.subr.mxu0 0.0
    %5808 = vmatpush2.msra.mxu0 %v5735
    %5809 = vmatprep.subr.mxu0 0.0
    %5810 = vmatpush2.msra.mxu0 %v5734
    %5811 = vmatprep.subr.mxu0 0.0
    %5812 = vmatpush2.msra.mxu0 %v5733
    %5813 = vmatprep.subr.mxu0 0.0
    %5814 = vmatpush2.msra.mxu0 %v5732
    %5815 = vmatprep.subr.mxu0 0.0
    %5816 = vmatpush2.msra.mxu0 %v5731
    %5817 = vmatprep.subr.mxu0 0.0
    %5818 = vmatpush2.msra.mxu0 %v5730
    %5819 = vmatprep.subr.mxu0 0.0
    %5820 = vmatpush2.msra.mxu0 %v5729
    %5821 = vmatprep.subr.mxu0 0.0
    %5822 = vmatpush2.msra.mxu0 %v5728
    %5823 = vmatprep.subr.mxu0 0.0
    %5824 = vmatpush2.msra.mxu0 %v5727
    %5825 = vmatprep.subr.mxu0 0.0
    %5826 = vmatpush2.msra.mxu0 %v5726
    %5827 = vmatprep.mubr.f32.mxu0 %v5591
    %5828 = vmatmul.mubr.f32.gmra.mxu0 %v5490
    %v5829 = vpop.f32.mrf.mxu0
    %v5830 = vadd.f32 %v5762, %v5829
    %v5831 = vpop.f32.mrf.mxu0
    %5832 = vmatprep.mubr.f32.mxu0 %v5596
    %5833 = vmatmul.mubr.f32.gmra.mxu0 %v5495
    %v5834 = vpop.f32.mrf.mxu0
    %v5835 = vadd.f32 %v5762, %v5834
    %v5836 = vpop.f32.mrf.mxu0
    %5837 = vmatprep.mubr.f32.mxu0 %v5601
    %5838 = vmatmul.mubr.f32.gmra.mxu0 %v5500
    %v5839 = vpop.f32.mrf.mxu0
    %v5840 = vadd.f32 %v5762, %v5839
    %v5841 = vpop.f32.mrf.mxu0
    %5842 = vmatprep.mubr.f32.mxu0 %v5606
    %5843 = vmatmul.mubr.f32.gmra.mxu0 %v5505
    %v5844 = vpop.f32.mrf.mxu0
    %v5845 = vadd.f32 %v5762, %v5844
    %v5846 = vpop.f32.mrf.mxu0
    %5847 = vdwg.mxu0
    %5848 = vmatprep.subr.mxu0 0.0
    %5849 = vmatpush1.msra.mxu0 %v5757
    %5850 = vmatprep.subr.mxu0 0.0
    %5851 = vmatpush1.msra.mxu0 %v5756
    %5852 = vmatprep.subr.mxu0 0.0
    %5853 = vmatpush1.msra.mxu0 %v5755
    %5854 = vmatprep.subr.mxu0 0.0
    %5855 = vmatpush1.msra.mxu0 %v5754
    %5856 = vmatprep.subr.mxu0 0.0
    %5857 = vmatpush1.msra.mxu0 %v5753
    %5858 = vmatprep.subr.mxu0 0.0
    %5859 = vmatpush1.msra.mxu0 %v5752
    %5860 = vmatprep.subr.mxu0 0.0
    %5861 = vmatpush1.msra.mxu0 %v5751
    %5862 = vmatprep.subr.mxu0 0.0
    %5863 = vmatpush1.msra.mxu0 %v5750
    %5864 = vmatprep.subr.mxu0 0.0
    %5865 = vmatpush1.msra.mxu0 %v5749
    %5866 = vmatprep.subr.mxu0 0.0
    %5867 = vmatpush1.msra.mxu0 %v5748
    %5868 = vmatprep.subr.mxu0 0.0
    %5869 = vmatpush1.msra.mxu0 %v5747
    %5870 = vmatprep.subr.mxu0 0.0
    %5871 = vmatpush1.msra.mxu0 %v5746
    %5872 = vmatprep.subr.mxu0 0.0
    %5873 = vmatpush1.msra.mxu0 %v5745
    %5874 = vmatprep.subr.mxu0 0.0
    %5875 = vmatpush1.msra.mxu0 %v5744
    %5876 = vmatprep.subr.mxu0 0.0
    %5877 = vmatpush1.msra.mxu0 %v5743
    %5878 = vmatprep.subr.mxu0 0.0
    %5879 = vmatpush1.msra.mxu0 %v5742
    %5880 = vmatprep.subr.mxu0 0.0
    %5881 = vmatpush2.msra.mxu0 0.0
    %5882 = vmatprep.subr.mxu0 0.0
    %5883 = vmatpush2.msra.mxu0 0.0
    %5884 = vmatprep.subr.mxu0 0.0
    %5885 = vmatpush2.msra.mxu0 0.0
    %5886 = vmatprep.subr.mxu0 0.0
    %5887 = vmatpush2.msra.mxu0 0.0
    %5888 = vmatprep.subr.mxu0 0.0
    %5889 = vmatpush2.msra.mxu0 0.0
    %5890 = vmatprep.subr.mxu0 0.0
    %5891 = vmatpush2.msra.mxu0 0.0
    %5892 = vmatprep.subr.mxu0 0.0
    %5893 = vmatpush2.msra.mxu0 0.0
    %5894 = vmatprep.subr.mxu0 0.0
    %5895 = vmatpush2.msra.mxu0 0.0
    %5896 = vmatprep.subr.mxu0 0.0
    %5897 = vmatpush2.msra.mxu0 0.0
    %5898 = vmatprep.subr.mxu0 0.0
    %5899 = vmatpush2.msra.mxu0 0.0
    %5900 = vmatprep.subr.mxu0 0.0
    %5901 = vmatpush2.msra.mxu0 0.0
    %5902 = vmatprep.subr.mxu0 0.0
    %5903 = vmatpush2.msra.mxu0 0.0
    %5904 = vmatprep.subr.mxu0 0.0
    %5905 = vmatpush2.msra.mxu0 0.0
    %5906 = vmatprep.subr.mxu0 0.0
    %5907 = vmatpush2.msra.mxu0 0.0
    %5908 = vmatprep.subr.mxu0 0.0
    %5909 = vmatpush2.msra.mxu0 0.0
    %5910 = vmatprep.subr.mxu0 0.0
    %5911 = vmatpush2.msra.mxu0 0.0
    %5912 = vmatprep.mubr.f32.mxu0 0.0
    %5913 = vmatmul.mubr.f32.gmra.mxu0 %v5692
    %v5914 = vpop.f32.mrf.mxu0
    %v5915 = vadd.f32 %v5830, %v5914
    %v5916 = vpop.f32.mrf.mxu0
    %5917 = vmatprep.mubr.f32.mxu0 0.0
    %5918 = vmatmul.mubr.f32.gmra.mxu0 %v5697
    %v5919 = vpop.f32.mrf.mxu0
    %v5920 = vadd.f32 %v5835, %v5919
    %v5921 = vpop.f32.mrf.mxu0
    %5922 = vmatprep.mubr.f32.mxu0 0.0
    %5923 = vmatmul.mubr.f32.gmra.mxu0 %v5702
    %v5924 = vpop.f32.mrf.mxu0
    %v5925 = vadd.f32 %v5840, %v5924
    %v5926 = vpop.f32.mrf.mxu0
    %5927 = vmatprep.mubr.f32.mxu0 0.0
    %5928 = vmatmul.mubr.f32.gmra.mxu0 %v5707
    %v5929 = vpop.f32.mrf.mxu0
    %v5930 = vadd.f32 %v5845, %v5929
    %v5931 = vpop.f32.mrf.mxu0
    %5932 = vdwg.mxu0
    %v5933 = vld [vmem:[#allocation2 + $0xcf8] sm:$0xff]
    %v5934 = vld [vmem:[#allocation2 + $0xd00] sm:$0xff]
    %v5935 = vld [vmem:[#allocation2 + $0xd08] sm:$0xff]
    %v5936 = vld [vmem:[#allocation2 + $0xd10] sm:$0xff]
    %v5937 = vld [vmem:[#allocation2 + $0xd18] sm:$0xff]
    %v5938 = vld [vmem:[#allocation2 + $0xd20] sm:$0xff]
    %v5939 = vld [vmem:[#allocation2 + $0xd28] sm:$0xff]
    %v5940 = vld [vmem:[#allocation2 + $0xd30] sm:$0xff]
    %v5941 = vld [vmem:[#allocation2 + $0xd38] sm:$0xff]
    %v5942 = vld [vmem:[#allocation2 + $0xd40] sm:$0xff]
    %v5943 = vld [vmem:[#allocation2 + $0xd48] sm:$0xff]
    %v5944 = vld [vmem:[#allocation2 + $0xd50] sm:$0xff]
    %v5946 = vsel %vm494, %v5933, 0
    %v5949 = vsel %vm494, %v5934, 0
    %v5952 = vsel %vm494, %v5935, 0
    %v5955 = vsel %vm494, %v5936, 0
    %5957 = vmatprep.subr.mxu0 0.0
    %5958 = vmatpush1.msra.mxu0 0.0
    %5959 = vmatprep.subr.mxu0 0.0
    %5960 = vmatpush1.msra.mxu0 0.0
    %5961 = vmatprep.subr.mxu0 0.0
    %5962 = vmatpush1.msra.mxu0 0.0
    %5963 = vmatprep.subr.mxu0 0.0
    %5964 = vmatpush1.msra.mxu0 0.0
    %5965 = vmatprep.subr.mxu0 0.0
    %5966 = vmatpush1.msra.mxu0 0.0
    %5967 = vmatprep.subr.mxu0 0.0
    %5968 = vmatpush1.msra.mxu0 0.0
    %5969 = vmatprep.subr.mxu0 0.0
    %5970 = vmatpush1.msra.mxu0 0.0
    %5971 = vmatprep.subr.mxu0 0.0
    %5972 = vmatpush1.msra.mxu0 0.0
    %5973 = vmatprep.subr.mxu0 0.0
    %5974 = vmatpush1.msra.mxu0 0.0
    %5975 = vmatprep.subr.mxu0 0.0
    %5976 = vmatpush1.msra.mxu0 0.0
    %5977 = vmatprep.subr.mxu0 0.0
    %5978 = vmatpush1.msra.mxu0 0.0
    %5979 = vmatprep.subr.mxu0 0.0
    %5980 = vmatpush1.msra.mxu0 0.0
    %5981 = vmatprep.subr.mxu0 0.0
    %5982 = vmatpush1.msra.mxu0 %v5930
    %5983 = vmatprep.subr.mxu0 0.0
    %5984 = vmatpush1.msra.mxu0 %v5925
    %5985 = vmatprep.subr.mxu0 0.0
    %5986 = vmatpush1.msra.mxu0 %v5920
    %5987 = vmatprep.subr.mxu0 0.0
    %5988 = vmatpush1.msra.mxu0 %v5915
    %5989 = vmatprep.subr.mxu0 0.0
    %5990 = vmatpush2.msra.mxu0 0.0
    %5991 = vmatprep.subr.mxu0 0.0
    %5992 = vmatpush2.msra.mxu0 0.0
    %5993 = vmatprep.subr.mxu0 0.0
    %5994 = vmatpush2.msra.mxu0 0.0
    %5995 = vmatprep.subr.mxu0 0.0
    %5996 = vmatpush2.msra.mxu0 0.0
    %5997 = vmatprep.subr.mxu0 0.0
    %5998 = vmatpush2.msra.mxu0 0.0
    %5999 = vmatprep.subr.mxu0 0.0
    %6000 = vmatpush2.msra.mxu0 0.0
    %6001 = vmatprep.subr.mxu0 0.0
    %6002 = vmatpush2.msra.mxu0 0.0
    %6003 = vmatprep.subr.mxu0 0.0
    %6004 = vmatpush2.msra.mxu0 0.0
    %6005 = vmatprep.subr.mxu0 0.0
    %6006 = vmatpush2.msra.mxu0 0.0
    %6007 = vmatprep.subr.mxu0 0.0
    %6008 = vmatpush2.msra.mxu0 0.0
    %6009 = vmatprep.subr.mxu0 0.0
    %6010 = vmatpush2.msra.mxu0 0.0
    %6011 = vmatprep.subr.mxu0 0.0
    %6012 = vmatpush2.msra.mxu0 0.0
    %6013 = vmatprep.subr.mxu0 0.0
    %6014 = vmatpush2.msra.mxu0 0.0
    %6015 = vmatprep.subr.mxu0 0.0
    %6016 = vmatpush2.msra.mxu0 0.0
    %6017 = vmatprep.subr.mxu0 0.0
    %6018 = vmatpush2.msra.mxu0 0.0
    %6019 = vmatprep.subr.mxu0 0.0
    %6020 = vmatpush2.msra.mxu0 0.0
    %6021 = vmatprep.mubr.f32.mxu0 0.0
    %6022 = vmatmul.mubr.f32.gmra.mxu0 %v5946
    %v6023 = vpop.f32.mrf.mxu0
    %v6024 = vadd.f32 0.0, %v6023
    %v6025 = vpop.f32.mrf.mxu0
    %6026 = vmatprep.mubr.f32.mxu0 0.0
    %6027 = vmatmul.mubr.f32.gmra.mxu0 %v5949
    %v6028 = vpop.f32.mrf.mxu0
    %v6029 = vadd.f32 0.0, %v6028
    %v6030 = vpop.f32.mrf.mxu0
    %6031 = vmatprep.mubr.f32.mxu0 0.0
    %6032 = vmatmul.mubr.f32.gmra.mxu0 %v5952
    %v6033 = vpop.f32.mrf.mxu0
    %v6034 = vadd.f32 0.0, %v6033
    %v6035 = vpop.f32.mrf.mxu0
    %6036 = vmatprep.mubr.f32.mxu0 0.0
    %6037 = vmatmul.mubr.f32.gmra.mxu0 %v5955
    %v6038 = vpop.f32.mrf.mxu0
    %v6039 = vadd.f32 0.0, %v6038
    %v6040 = vpop.f32.mrf.mxu0
    %6041 = vdwg.mxu0
    %v6043 = vsel %vm162, %v6024, 0
    %v6046 = vsel %vm162, %v6029, 0
    %v6049 = vsel %vm162, %v6034, 0
    %v6052 = vsel %vm162, %v6039, 0
    %6054 = vmatprep.subr.mxu0 0.0
    %6055 = vmatpush1.msra.mxu0 0.0
    %6056 = vmatprep.subr.mxu0 0.0
    %6057 = vmatpush1.msra.mxu0 0.0
    %6058 = vmatprep.subr.mxu0 0.0
    %6059 = vmatpush1.msra.mxu0 0.0
    %6060 = vmatprep.subr.mxu0 0.0
    %6061 = vmatpush1.msra.mxu0 0.0
    %6062 = vmatprep.subr.mxu0 0.0
    %6063 = vmatpush1.msra.mxu0 0.0
    %6064 = vmatprep.subr.mxu0 0.0
    %6065 = vmatpush1.msra.mxu0 0.0
    %6066 = vmatprep.subr.mxu0 0.0
    %6067 = vmatpush1.msra.mxu0 0.0
    %6068 = vmatprep.subr.mxu0 0.0
    %6069 = vmatpush1.msra.mxu0 0.0
    %6070 = vmatprep.subr.mxu0 0.0
    %6071 = vmatpush1.msra.mxu0 %v5944
    %6072 = vmatprep.subr.mxu0 0.0
    %6073 = vmatpush1.msra.mxu0 %v5943
    %6074 = vmatprep.subr.mxu0 0.0
    %6075 = vmatpush1.msra.mxu0 %v5942
    %6076 = vmatprep.subr.mxu0 0.0
    %6077 = vmatpush1.msra.mxu0 %v5941
    %6078 = vmatprep.subr.mxu0 0.0
    %6079 = vmatpush1.msra.mxu0 %v5940
    %6080 = vmatprep.subr.mxu0 0.0
    %6081 = vmatpush1.msra.mxu0 %v5939
    %6082 = vmatprep.subr.mxu0 0.0
    %6083 = vmatpush1.msra.mxu0 %v5938
    %6084 = vmatprep.subr.mxu0 0.0
    %6085 = vmatpush1.msra.mxu0 %v5937
    %6086 = vmatprep.subr.mxu0 0.0
    %6087 = vmatpush2.msra.mxu0 0.0
    %6088 = vmatprep.subr.mxu0 0.0
    %6089 = vmatpush2.msra.mxu0 0.0
    %6090 = vmatprep.subr.mxu0 0.0
    %6091 = vmatpush2.msra.mxu0 0.0
    %6092 = vmatprep.subr.mxu0 0.0
    %6093 = vmatpush2.msra.mxu0 0.0
    %6094 = vmatprep.subr.mxu0 0.0
    %6095 = vmatpush2.msra.mxu0 0.0
    %6096 = vmatprep.subr.mxu0 0.0
    %6097 = vmatpush2.msra.mxu0 0.0
    %6098 = vmatprep.subr.mxu0 0.0
    %6099 = vmatpush2.msra.mxu0 0.0
    %6100 = vmatprep.subr.mxu0 0.0
    %6101 = vmatpush2.msra.mxu0 0.0
    %6102 = vmatprep.subr.mxu0 0.0
    %6103 = vmatpush2.msra.mxu0 0.0
    %6104 = vmatprep.subr.mxu0 0.0
    %6105 = vmatpush2.msra.mxu0 0.0
    %6106 = vmatprep.subr.mxu0 0.0
    %6107 = vmatpush2.msra.mxu0 0.0
    %6108 = vmatprep.subr.mxu0 0.0
    %6109 = vmatpush2.msra.mxu0 0.0
    %6110 = vmatprep.subr.mxu0 0.0
    %6111 = vmatpush2.msra.mxu0 0.0
    %6112 = vmatprep.subr.mxu0 0.0
    %6113 = vmatpush2.msra.mxu0 0.0
    %6114 = vmatprep.subr.mxu0 0.0
    %6115 = vmatpush2.msra.mxu0 0.0
    %6116 = vmatprep.subr.mxu0 0.0
    %6117 = vmatpush2.msra.mxu0 0.0
    %6118 = vmatprep.mubr.f32.mxu0 0.0
    %6119 = vmatmul.mubr.f32.gmra.mxu0 %v6043
    %v6120 = vpop.f32.mrf.mxu0
    %v6121 = vadd.f32 0.0, %v6120
    %v6122 = vpop.f32.mrf.mxu0
    %6123 = vmatprep.mubr.f32.mxu0 0.0
    %6124 = vmatmul.mubr.f32.gmra.mxu0 %v6046
    %v6125 = vpop.f32.mrf.mxu0
    %v6126 = vadd.f32 0.0, %v6125
    %v6127 = vpop.f32.mrf.mxu0
    %6128 = vmatprep.mubr.f32.mxu0 0.0
    %6129 = vmatmul.mubr.f32.gmra.mxu0 %v6049
    %v6130 = vpop.f32.mrf.mxu0
    %v6131 = vadd.f32 0.0, %v6130
    %v6132 = vpop.f32.mrf.mxu0
    %6133 = vmatprep.mubr.f32.mxu0 0.0
    %6134 = vmatmul.mubr.f32.gmra.mxu0 %v6052
    %v6135 = vpop.f32.mrf.mxu0
    %v6136 = vadd.f32 0.0, %v6135
    %v6137 = vpop.f32.mrf.mxu0
    %6138 = vdwg.mxu0
    %v6139 = vmul.f32 %v5915, %v5915
    %v6140 = vmul.f32 %v5920, %v5920
    %v6141 = vmul.f32 %v5925, %v5925
    %v6142 = vmul.f32 %v5930, %v5930
    %6143 = vmatprep.subr.mxu0 0.0
    %6144 = vmatpush1.msra.mxu0 0.0
    %6145 = vmatprep.subr.mxu0 0.0
    %6146 = vmatpush1.msra.mxu0 0.0
    %6147 = vmatprep.subr.mxu0 0.0
    %6148 = vmatpush1.msra.mxu0 0.0
    %6149 = vmatprep.subr.mxu0 0.0
    %6150 = vmatpush1.msra.mxu0 0.0
    %6151 = vmatprep.subr.mxu0 0.0
    %6152 = vmatpush1.msra.mxu0 0.0
    %6153 = vmatprep.subr.mxu0 0.0
    %6154 = vmatpush1.msra.mxu0 0.0
    %6155 = vmatprep.subr.mxu0 0.0
    %6156 = vmatpush1.msra.mxu0 0.0
    %6157 = vmatprep.subr.mxu0 0.0
    %6158 = vmatpush1.msra.mxu0 0.0
    %6159 = vmatprep.subr.mxu0 0.0
    %6160 = vmatpush1.msra.mxu0 0.0
    %6161 = vmatprep.subr.mxu0 0.0
    %6162 = vmatpush1.msra.mxu0 0.0
    %6163 = vmatprep.subr.mxu0 0.0
    %6164 = vmatpush1.msra.mxu0 0.0
    %6165 = vmatprep.subr.mxu0 0.0
    %6166 = vmatpush1.msra.mxu0 0.0
    %6167 = vmatprep.subr.mxu0 0.0
    %6168 = vmatpush1.msra.mxu0 %v6142
    %6169 = vmatprep.subr.mxu0 0.0
    %6170 = vmatpush1.msra.mxu0 %v6141
    %6171 = vmatprep.subr.mxu0 0.0
    %6172 = vmatpush1.msra.mxu0 %v6140
    %6173 = vmatprep.subr.mxu0 0.0
    %6174 = vmatpush1.msra.mxu0 %v6139
    %6175 = vmatprep.subr.mxu0 0.0
    %6176 = vmatpush2.msra.mxu0 0.0
    %6177 = vmatprep.subr.mxu0 0.0
    %6178 = vmatpush2.msra.mxu0 0.0
    %6179 = vmatprep.subr.mxu0 0.0
    %6180 = vmatpush2.msra.mxu0 0.0
    %6181 = vmatprep.subr.mxu0 0.0
    %6182 = vmatpush2.msra.mxu0 0.0
    %6183 = vmatprep.subr.mxu0 0.0
    %6184 = vmatpush2.msra.mxu0 0.0
    %6185 = vmatprep.subr.mxu0 0.0
    %6186 = vmatpush2.msra.mxu0 0.0
    %6187 = vmatprep.subr.mxu0 0.0
    %6188 = vmatpush2.msra.mxu0 0.0
    %6189 = vmatprep.subr.mxu0 0.0
    %6190 = vmatpush2.msra.mxu0 0.0
    %6191 = vmatprep.subr.mxu0 0.0
    %6192 = vmatpush2.msra.mxu0 0.0
    %6193 = vmatprep.subr.mxu0 0.0
    %6194 = vmatpush2.msra.mxu0 0.0
    %6195 = vmatprep.subr.mxu0 0.0
    %6196 = vmatpush2.msra.mxu0 0.0
    %6197 = vmatprep.subr.mxu0 0.0
    %6198 = vmatpush2.msra.mxu0 0.0
    %6199 = vmatprep.subr.mxu0 0.0
    %6200 = vmatpush2.msra.mxu0 0.0
    %6201 = vmatprep.subr.mxu0 0.0
    %6202 = vmatpush2.msra.mxu0 0.0
    %6203 = vmatprep.subr.mxu0 0.0
    %6204 = vmatpush2.msra.mxu0 0.0
    %6205 = vmatprep.subr.mxu0 0.0
    %6206 = vmatpush2.msra.mxu0 0.0
    %6207 = vmatprep.mubr.f32.mxu0 0.0
    %6208 = vmatmul.mubr.f32.gmra.mxu0 %v5946
    %v6209 = vpop.f32.mrf.mxu0
    %v6210 = vadd.f32 0.0, %v6209
    %v6211 = vpop.f32.mrf.mxu0
    %6212 = vmatprep.mubr.f32.mxu0 0.0
    %6213 = vmatmul.mubr.f32.gmra.mxu0 %v5949
    %v6214 = vpop.f32.mrf.mxu0
    %v6215 = vadd.f32 0.0, %v6214
    %v6216 = vpop.f32.mrf.mxu0
    %6217 = vmatprep.mubr.f32.mxu0 0.0
    %6218 = vmatmul.mubr.f32.gmra.mxu0 %v5952
    %v6219 = vpop.f32.mrf.mxu0
    %v6220 = vadd.f32 0.0, %v6219
    %v6221 = vpop.f32.mrf.mxu0
    %6222 = vmatprep.mubr.f32.mxu0 0.0
    %6223 = vmatmul.mubr.f32.gmra.mxu0 %v5955
    %v6224 = vpop.f32.mrf.mxu0
    %v6225 = vadd.f32 0.0, %v6224
    %v6226 = vpop.f32.mrf.mxu0
    %6227 = vdwg.mxu0
    %v6229 = vsel %vm162, %v6210, 0
    %v6232 = vsel %vm162, %v6215, 0
    %v6235 = vsel %vm162, %v6220, 0
    %v6238 = vsel %vm162, %v6225, 0
    %6240 = vmatprep.subr.mxu0 0.0
    %6241 = vmatpush1.msra.mxu0 0.0
    %6242 = vmatprep.subr.mxu0 0.0
    %6243 = vmatpush1.msra.mxu0 0.0
    %6244 = vmatprep.subr.mxu0 0.0
    %6245 = vmatpush1.msra.mxu0 0.0
    %6246 = vmatprep.subr.mxu0 0.0
    %6247 = vmatpush1.msra.mxu0 0.0
    %6248 = vmatprep.subr.mxu0 0.0
    %6249 = vmatpush1.msra.mxu0 0.0
    %6250 = vmatprep.subr.mxu0 0.0
    %6251 = vmatpush1.msra.mxu0 0.0
    %6252 = vmatprep.subr.mxu0 0.0
    %6253 = vmatpush1.msra.mxu0 0.0
    %6254 = vmatprep.subr.mxu0 0.0
    %6255 = vmatpush1.msra.mxu0 0.0
    %6256 = vmatprep.subr.mxu0 0.0
    %6257 = vmatpush1.msra.mxu0 %v5944
    %6258 = vmatprep.subr.mxu0 0.0
    %6259 = vmatpush1.msra.mxu0 %v5943
    %6260 = vmatprep.subr.mxu0 0.0
    %6261 = vmatpush1.msra.mxu0 %v5942
    %6262 = vmatprep.subr.mxu0 0.0
    %6263 = vmatpush1.msra.mxu0 %v5941
    %6264 = vmatprep.subr.mxu0 0.0
    %6265 = vmatpush1.msra.mxu0 %v5940
    %6266 = vmatprep.subr.mxu0 0.0
    %6267 = vmatpush1.msra.mxu0 %v5939
    %6268 = vmatprep.subr.mxu0 0.0
    %6269 = vmatpush1.msra.mxu0 %v5938
    %6270 = vmatprep.subr.mxu0 0.0
    %6271 = vmatpush1.msra.mxu0 %v5937
    %6272 = vmatprep.subr.mxu0 0.0
    %6273 = vmatpush2.msra.mxu0 0.0
    %6274 = vmatprep.subr.mxu0 0.0
    %6275 = vmatpush2.msra.mxu0 0.0
    %6276 = vmatprep.subr.mxu0 0.0
    %6277 = vmatpush2.msra.mxu0 0.0
    %6278 = vmatprep.subr.mxu0 0.0
    %6279 = vmatpush2.msra.mxu0 0.0
    %6280 = vmatprep.subr.mxu0 0.0
    %6281 = vmatpush2.msra.mxu0 0.0
    %6282 = vmatprep.subr.mxu0 0.0
    %6283 = vmatpush2.msra.mxu0 0.0
    %6284 = vmatprep.subr.mxu0 0.0
    %6285 = vmatpush2.msra.mxu0 0.0
    %6286 = vmatprep.subr.mxu0 0.0
    %6287 = vmatpush2.msra.mxu0 0.0
    %6288 = vmatprep.subr.mxu0 0.0
    %6289 = vmatpush2.msra.mxu0 0.0
    %6290 = vmatprep.subr.mxu0 0.0
    %6291 = vmatpush2.msra.mxu0 0.0
    %6292 = vmatprep.subr.mxu0 0.0
    %6293 = vmatpush2.msra.mxu0 0.0
    %6294 = vmatprep.subr.mxu0 0.0
    %6295 = vmatpush2.msra.mxu0 0.0
    %6296 = vmatprep.subr.mxu0 0.0
    %6297 = vmatpush2.msra.mxu0 0.0
    %6298 = vmatprep.subr.mxu0 0.0
    %6299 = vmatpush2.msra.mxu0 0.0
    %6300 = vmatprep.subr.mxu0 0.0
    %6301 = vmatpush2.msra.mxu0 0.0
    %6302 = vmatprep.subr.mxu0 0.0
    %6303 = vmatpush2.msra.mxu0 0.0
    %6304 = vmatprep.mubr.f32.mxu0 0.0
    %6305 = vmatmul.mubr.f32.gmra.mxu0 %v6229
    %v6306 = vpop.f32.mrf.mxu0
    %v6307 = vadd.f32 0.0, %v6306
    %v6308 = vpop.f32.mrf.mxu0
    %6309 = vmatprep.mubr.f32.mxu0 0.0
    %6310 = vmatmul.mubr.f32.gmra.mxu0 %v6232
    %v6311 = vpop.f32.mrf.mxu0
    %v6312 = vadd.f32 0.0, %v6311
    %v6313 = vpop.f32.mrf.mxu0
    %6314 = vmatprep.mubr.f32.mxu0 0.0
    %6315 = vmatmul.mubr.f32.gmra.mxu0 %v6235
    %v6316 = vpop.f32.mrf.mxu0
    %v6317 = vadd.f32 0.0, %v6316
    %v6318 = vpop.f32.mrf.mxu0
    %6319 = vmatprep.mubr.f32.mxu0 0.0
    %6320 = vmatmul.mubr.f32.gmra.mxu0 %v6238
    %v6321 = vpop.f32.mrf.mxu0
    %v6322 = vadd.f32 0.0, %v6321
    %v6323 = vpop.f32.mrf.mxu0
    %6324 = vdwg.mxu0
    %v6325 = vmul.f32 %v6121, %v6121
    %v6326 = vmul.f32 %v6126, %v6126
    %v6327 = vmul.f32 %v6131, %v6131
    %v6328 = vmul.f32 %v6136, %v6136
    %v6329 = vsub.f32 %v6307, %v6325
    %v6330 = vsub.f32 %v6312, %v6326
    %v6331 = vsub.f32 %v6317, %v6327
    %v6332 = vsub.f32 %v6322, %v6328
    %v6333 = vsub.f32 %v5915, %v6121
    %v6334 = vsub.f32 %v5920, %v6126
    %v6335 = vsub.f32 %v5925, %v6131
    %v6336 = vsub.f32 %v5930, %v6136
    %v6337 = vadd.f32 %v6329, 1e-05
    %v6338 = vadd.f32 %v6330, 1e-05
    %v6339 = vadd.f32 %v6331, 1e-05
    %v6340 = vadd.f32 %v6332, 1e-05
    %v6341 = vrsqrt.pop %v6337
    %v6342 = vrsqrt.pop %v6338
    %v6343 = vrsqrt.pop %v6339
    %v6344 = vrsqrt.pop %v6340
    %v6345 = vmul.f32 %v6333, %v6341
    %v6346 = vmul.f32 %v6334, %v6342
    %v6347 = vmul.f32 %v6335, %v6343
    %v6348 = vmul.f32 %v6336, %v6344
    %v6349 = vld [vmem:[#allocation2 + $0xd58] sm:$0x1]
    %vm6350 = vcmp.ge.f32.partialorder %v6345, 0.0
    %vm6351 = vcmp.ge.f32.partialorder %v6346, 0.0
    %vm6352 = vcmp.ge.f32.partialorder %v6347, 0.0
    %vm6353 = vcmp.ge.f32.partialorder %v6348, 0.0
    %s6355 = vtos %v6349
    %v6356 = vstv %s6355
    %v6358 = vmul.f32 %v6356, %v6345
    %v6359 = vmul.f32 %v6356, %v6346
    %v6360 = vmul.f32 %v6356, %v6347
    %v6361 = vmul.f32 %v6356, %v6348
    %v6362 = vsel %vm6350, %v6345, %v6358
    %v6363 = vsel %vm6351, %v6346, %v6359
    %v6364 = vsel %vm6352, %v6347, %v6360
    %v6365 = vsel %vm6353, %v6348, %v6361
    %s6366 = smul.u32 584, 1
    %s6367 = sshll.u32 %s6366, 4
    %6368 = dma.done %s135, %s6367
    %6373 = vrot.lane.b32.xlu0 %v1047, 64
    %v6374 = vpop.permute.xlu0 %6373
    %6375 = vrot.lane.b32.xlu0 %v1048, 64
    %v6376 = vpop.permute.xlu0 %6375
    %6377 = vrot.lane.b32.xlu0 %v1049, 64
    %v6378 = vpop.permute.xlu0 %6377
    %6379 = vrot.lane.b32.xlu0 %v1050, 64
    %v6380 = vpop.permute.xlu0 %6379
    %v6385 = vsel %vm162, %v6362, %v6374
    %v6386 = vsel %vm162, %v6363, %v6376
    %v6387 = vsel %vm162, %v6364, %v6378
    %v6388 = vsel %vm162, %v6365, %v6380
    %v6389 = vld [vmem:[#allocation2 + $0xd60] sm:$0xff]
    %v6390 = vld [vmem:[#allocation2 + $0xd68] sm:$0xff]
    %v6391 = vld [vmem:[#allocation2 + $0xd70] sm:$0xff]
    %v6392 = vld [vmem:[#allocation2 + $0xd78] sm:$0xff]
    %v6393 = vld [vmem:[#allocation2 + $0xd80] sm:$0xff]
    %v6394 = vld [vmem:[#allocation2 + $0xd88] sm:$0xff]
    %v6395 = vld [vmem:[#allocation2 + $0xd90] sm:$0xff]
    %v6396 = vld [vmem:[#allocation2 + $0xd98] sm:$0xff]
    %v6398 = vsel %vm494, %v6389, 0
    %v6401 = vsel %vm494, %v6390, 0
    %v6404 = vsel %vm494, %v6391, 0
    %v6407 = vsel %vm494, %v6392, 0
    %v6410 = vsel %vm494, %v6393, 0
    %v6413 = vsel %vm494, %v6394, 0
    %v6416 = vsel %vm494, %v6395, 0
    %v6419 = vsel %vm494, %v6396, 0
    %6421 = vmatprep.subr.mxu0 0.0
    %6422 = vmatpush1.msra.mxu0 0.0
    %6423 = vmatprep.subr.mxu0 0.0
    %6424 = vmatpush1.msra.mxu0 0.0
    %6425 = vmatprep.subr.mxu0 0.0
    %6426 = vmatpush1.msra.mxu0 0.0
    %6427 = vmatprep.subr.mxu0 0.0
    %6428 = vmatpush1.msra.mxu0 0.0
    %6429 = vmatprep.subr.mxu0 0.0
    %6430 = vmatpush1.msra.mxu0 0.0
    %6431 = vmatprep.subr.mxu0 0.0
    %6432 = vmatpush1.msra.mxu0 0.0
    %6433 = vmatprep.subr.mxu0 0.0
    %6434 = vmatpush1.msra.mxu0 0.0
    %6435 = vmatprep.subr.mxu0 0.0
    %6436 = vmatpush1.msra.mxu0 0.0
    %6437 = vmatprep.subr.mxu0 0.0
    %6438 = vmatpush1.msra.mxu0 0.0
    %6439 = vmatprep.subr.mxu0 0.0
    %6440 = vmatpush1.msra.mxu0 0.0
    %6441 = vmatprep.subr.mxu0 0.0
    %6442 = vmatpush1.msra.mxu0 0.0
    %6443 = vmatprep.subr.mxu0 0.0
    %6444 = vmatpush1.msra.mxu0 0.0
    %6445 = vmatprep.subr.mxu0 0.0
    %6446 = vmatpush1.msra.mxu0 %v6388
    %6447 = vmatprep.subr.mxu0 0.0
    %6448 = vmatpush1.msra.mxu0 %v6387
    %6449 = vmatprep.subr.mxu0 0.0
    %6450 = vmatpush1.msra.mxu0 %v6386
    %6451 = vmatprep.subr.mxu0 0.0
    %6452 = vmatpush1.msra.mxu0 %v6385
    %6453 = vmatprep.subr.mxu0 0.0
    %6454 = vmatpush2.msra.mxu0 0.0
    %6455 = vmatprep.subr.mxu0 0.0
    %6456 = vmatpush2.msra.mxu0 0.0
    %6457 = vmatprep.subr.mxu0 0.0
    %6458 = vmatpush2.msra.mxu0 0.0
    %6459 = vmatprep.subr.mxu0 0.0
    %6460 = vmatpush2.msra.mxu0 0.0
    %6461 = vmatprep.subr.mxu0 0.0
    %6462 = vmatpush2.msra.mxu0 0.0
    %6463 = vmatprep.subr.mxu0 0.0
    %6464 = vmatpush2.msra.mxu0 0.0
    %6465 = vmatprep.subr.mxu0 0.0
    %6466 = vmatpush2.msra.mxu0 0.0
    %6467 = vmatprep.subr.mxu0 0.0
    %6468 = vmatpush2.msra.mxu0 0.0
    %6469 = vmatprep.subr.mxu0 0.0
    %6470 = vmatpush2.msra.mxu0 0.0
    %6471 = vmatprep.subr.mxu0 0.0
    %6472 = vmatpush2.msra.mxu0 0.0
    %6473 = vmatprep.subr.mxu0 0.0
    %6474 = vmatpush2.msra.mxu0 0.0
    %6475 = vmatprep.subr.mxu0 0.0
    %6476 = vmatpush2.msra.mxu0 0.0
    %6477 = vmatprep.subr.mxu0 0.0
    %6478 = vmatpush2.msra.mxu0 0.0
    %6479 = vmatprep.subr.mxu0 0.0
    %6480 = vmatpush2.msra.mxu0 0.0
    %6481 = vmatprep.subr.mxu0 0.0
    %6482 = vmatpush2.msra.mxu0 0.0
    %6483 = vmatprep.subr.mxu0 0.0
    %6484 = vmatpush2.msra.mxu0 0.0
    %6485 = vmatprep.mubr.f32.mxu0 0.0
    %6486 = vmatmul.mubr.f32.gmra.mxu0 %v6398
    %v6487 = vpop.f32.mrf.mxu0
    %v6488 = vadd.f32 0.0, %v6487
    %v6489 = vpop.f32.mrf.mxu0
    %6490 = vmatprep.mubr.f32.mxu0 0.0
    %6491 = vmatmul.mubr.f32.gmra.mxu0 %v6401
    %v6492 = vpop.f32.mrf.mxu0
    %v6493 = vadd.f32 0.0, %v6492
    %v6494 = vpop.f32.mrf.mxu0
    %6495 = vmatprep.mubr.f32.mxu0 0.0
    %6496 = vmatmul.mubr.f32.gmra.mxu0 %v6404
    %v6497 = vpop.f32.mrf.mxu0
    %v6498 = vadd.f32 0.0, %v6497
    %v6499 = vpop.f32.mrf.mxu0
    %6500 = vmatprep.mubr.f32.mxu0 0.0
    %6501 = vmatmul.mubr.f32.gmra.mxu0 %v6407
    %v6502 = vpop.f32.mrf.mxu0
    %v6503 = vadd.f32 0.0, %v6502
    %v6504 = vpop.f32.mrf.mxu0
    %6505 = vmatprep.mubr.f32.mxu0 0.0
    %6506 = vmatmul.mubr.f32.gmra.mxu0 %v6410
    %v6507 = vpop.f32.mrf.mxu0
    %v6508 = vadd.f32 0.0, %v6507
    %v6509 = vpop.f32.mrf.mxu0
    %6510 = vmatprep.mubr.f32.mxu0 0.0
    %6511 = vmatmul.mubr.f32.gmra.mxu0 %v6413
    %v6512 = vpop.f32.mrf.mxu0
    %v6513 = vadd.f32 0.0, %v6512
    %v6514 = vpop.f32.mrf.mxu0
    %6515 = vmatprep.mubr.f32.mxu0 0.0
    %6516 = vmatmul.mubr.f32.gmra.mxu0 %v6416
    %v6517 = vpop.f32.mrf.mxu0
    %v6518 = vadd.f32 0.0, %v6517
    %v6519 = vpop.f32.mrf.mxu0
    %6520 = vmatprep.mubr.f32.mxu0 0.0
    %6521 = vmatmul.mubr.f32.gmra.mxu0 %v6419
    %v6522 = vpop.f32.mrf.mxu0
    %v6523 = vadd.f32 0.0, %v6522
    %v6524 = vpop.f32.mrf.mxu0
    %6525 = vdwg.mxu0
    %v6526 = vld [vmem:[#allocation2 + $0xda0] sm:$0xff]
    %v6527 = vld [vmem:[#allocation2 + $0xda8] sm:$0xff]
    %v6528 = vld [vmem:[#allocation2 + $0xdb0] sm:$0xff]
    %v6529 = vld [vmem:[#allocation2 + $0xdb8] sm:$0xff]
    %v6530 = vld [vmem:[#allocation2 + $0xdc0] sm:$0xff]
    %v6531 = vld [vmem:[#allocation2 + $0xdc8] sm:$0xff]
    %v6532 = vld [vmem:[#allocation2 + $0xdd0] sm:$0xff]
    %v6533 = vld [vmem:[#allocation2 + $0xdd8] sm:$0xff]
    %v6535 = vsel %vm494, %v6526, 0
    %v6538 = vsel %vm494, %v6527, 0
    %v6541 = vsel %vm494, %v6528, 0
    %v6544 = vsel %vm494, %v6529, 0
    %v6547 = vsel %vm494, %v6530, 0
    %v6550 = vsel %vm494, %v6531, 0
    %v6553 = vsel %vm494, %v6532, 0
    %v6556 = vsel %vm494, %v6533, 0
    %6558 = vmatprep.subr.mxu0 0.0
    %6559 = vmatpush1.msra.mxu0 0.0
    %6560 = vmatprep.subr.mxu0 0.0
    %6561 = vmatpush1.msra.mxu0 0.0
    %6562 = vmatprep.subr.mxu0 0.0
    %6563 = vmatpush1.msra.mxu0 0.0
    %6564 = vmatprep.subr.mxu0 0.0
    %6565 = vmatpush1.msra.mxu0 0.0
    %6566 = vmatprep.subr.mxu0 0.0
    %6567 = vmatpush1.msra.mxu0 0.0
    %6568 = vmatprep.subr.mxu0 0.0
    %6569 = vmatpush1.msra.mxu0 0.0
    %6570 = vmatprep.subr.mxu0 0.0
    %6571 = vmatpush1.msra.mxu0 0.0
    %6572 = vmatprep.subr.mxu0 0.0
    %6573 = vmatpush1.msra.mxu0 0.0
    %6574 = vmatprep.subr.mxu0 0.0
    %6575 = vmatpush1.msra.mxu0 0.0
    %6576 = vmatprep.subr.mxu0 0.0
    %6577 = vmatpush1.msra.mxu0 0.0
    %6578 = vmatprep.subr.mxu0 0.0
    %6579 = vmatpush1.msra.mxu0 0.0
    %6580 = vmatprep.subr.mxu0 0.0
    %6581 = vmatpush1.msra.mxu0 0.0
    %6582 = vmatprep.subr.mxu0 0.0
    %6583 = vmatpush1.msra.mxu0 %v6388
    %6584 = vmatprep.subr.mxu0 0.0
    %6585 = vmatpush1.msra.mxu0 %v6387
    %6586 = vmatprep.subr.mxu0 0.0
    %6587 = vmatpush1.msra.mxu0 %v6386
    %6588 = vmatprep.subr.mxu0 0.0
    %6589 = vmatpush1.msra.mxu0 %v6385
    %6590 = vmatprep.subr.mxu0 0.0
    %6591 = vmatpush2.msra.mxu0 0.0
    %6592 = vmatprep.subr.mxu0 0.0
    %6593 = vmatpush2.msra.mxu0 0.0
    %6594 = vmatprep.subr.mxu0 0.0
    %6595 = vmatpush2.msra.mxu0 0.0
    %6596 = vmatprep.subr.mxu0 0.0
    %6597 = vmatpush2.msra.mxu0 0.0
    %6598 = vmatprep.subr.mxu0 0.0
    %6599 = vmatpush2.msra.mxu0 0.0
    %6600 = vmatprep.subr.mxu0 0.0
    %6601 = vmatpush2.msra.mxu0 0.0
    %6602 = vmatprep.subr.mxu0 0.0
    %6603 = vmatpush2.msra.mxu0 0.0
    %6604 = vmatprep.subr.mxu0 0.0
    %6605 = vmatpush2.msra.mxu0 0.0
    %6606 = vmatprep.subr.mxu0 0.0
    %6607 = vmatpush2.msra.mxu0 0.0
    %6608 = vmatprep.subr.mxu0 0.0
    %6609 = vmatpush2.msra.mxu0 0.0
    %6610 = vmatprep.subr.mxu0 0.0
    %6611 = vmatpush2.msra.mxu0 0.0
    %6612 = vmatprep.subr.mxu0 0.0
    %6613 = vmatpush2.msra.mxu0 0.0
    %6614 = vmatprep.subr.mxu0 0.0
    %6615 = vmatpush2.msra.mxu0 0.0
    %6616 = vmatprep.subr.mxu0 0.0
    %6617 = vmatpush2.msra.mxu0 0.0
    %6618 = vmatprep.subr.mxu0 0.0
    %6619 = vmatpush2.msra.mxu0 0.0
    %6620 = vmatprep.subr.mxu0 0.0
    %6621 = vmatpush2.msra.mxu0 0.0
    %6622 = vmatprep.mubr.f32.mxu0 0.0
    %6623 = vmatmul.mubr.f32.gmra.mxu0 %v6535
    %v6624 = vpop.f32.mrf.mxu0
    %v6625 = vadd.f32 0.0, %v6624
    %v6626 = vpop.f32.mrf.mxu0
    %6627 = vmatprep.mubr.f32.mxu0 0.0
    %6628 = vmatmul.mubr.f32.gmra.mxu0 %v6538
    %v6629 = vpop.f32.mrf.mxu0
    %v6630 = vadd.f32 0.0, %v6629
    %v6631 = vpop.f32.mrf.mxu0
    %6632 = vmatprep.mubr.f32.mxu0 0.0
    %6633 = vmatmul.mubr.f32.gmra.mxu0 %v6541
    %v6634 = vpop.f32.mrf.mxu0
    %v6635 = vadd.f32 0.0, %v6634
    %v6636 = vpop.f32.mrf.mxu0
    %6637 = vmatprep.mubr.f32.mxu0 0.0
    %6638 = vmatmul.mubr.f32.gmra.mxu0 %v6544
    %v6639 = vpop.f32.mrf.mxu0
    %v6640 = vadd.f32 0.0, %v6639
    %v6641 = vpop.f32.mrf.mxu0
    %6642 = vmatprep.mubr.f32.mxu0 0.0
    %6643 = vmatmul.mubr.f32.gmra.mxu0 %v6547
    %v6644 = vpop.f32.mrf.mxu0
    %v6645 = vadd.f32 0.0, %v6644
    %v6646 = vpop.f32.mrf.mxu0
    %6647 = vmatprep.mubr.f32.mxu0 0.0
    %6648 = vmatmul.mubr.f32.gmra.mxu0 %v6550
    %v6649 = vpop.f32.mrf.mxu0
    %v6650 = vadd.f32 0.0, %v6649
    %v6651 = vpop.f32.mrf.mxu0
    %6652 = vmatprep.mubr.f32.mxu0 0.0
    %6653 = vmatmul.mubr.f32.gmra.mxu0 %v6553
    %v6654 = vpop.f32.mrf.mxu0
    %v6655 = vadd.f32 0.0, %v6654
    %v6656 = vpop.f32.mrf.mxu0
    %6657 = vmatprep.mubr.f32.mxu0 0.0
    %6658 = vmatmul.mubr.f32.gmra.mxu0 %v6556
    %v6659 = vpop.f32.mrf.mxu0
    %v6660 = vadd.f32 0.0, %v6659
    %v6661 = vpop.f32.mrf.mxu0
    %6662 = vdwg.mxu0
    %v6663 = vld [vmem:[#allocation2 + $0xde0] sm:$0xff]
    %v6664 = vld [vmem:[#allocation2 + $0xde8] sm:$0xff]
    %v6665 = vld [vmem:[#allocation2 + $0xdf0] sm:$0xff]
    %v6666 = vld [vmem:[#allocation2 + $0xdf8] sm:$0xff]
    %v6667 = vld [vmem:[#allocation2 + $0xe00] sm:$0xff]
    %v6668 = vld [vmem:[#allocation2 + $0xe08] sm:$0xff]
    %v6669 = vld [vmem:[#allocation2 + $0xe10] sm:$0xff]
    %v6670 = vld [vmem:[#allocation2 + $0xe18] sm:$0xff]
    %v6672 = vsel %vm494, %v6663, 0
    %v6675 = vsel %vm494, %v6664, 0
    %v6678 = vsel %vm494, %v6665, 0
    %v6681 = vsel %vm494, %v6666, 0
    %v6684 = vsel %vm494, %v6667, 0
    %v6687 = vsel %vm494, %v6668, 0
    %v6690 = vsel %vm494, %v6669, 0
    %v6693 = vsel %vm494, %v6670, 0
    %6695 = vmatprep.subr.mxu0 0.0
    %6696 = vmatpush1.msra.mxu0 0.0
    %6697 = vmatprep.subr.mxu0 0.0
    %6698 = vmatpush1.msra.mxu0 0.0
    %6699 = vmatprep.subr.mxu0 0.0
    %6700 = vmatpush1.msra.mxu0 0.0
    %6701 = vmatprep.subr.mxu0 0.0
    %6702 = vmatpush1.msra.mxu0 0.0
    %6703 = vmatprep.subr.mxu0 0.0
    %6704 = vmatpush1.msra.mxu0 0.0
    %6705 = vmatprep.subr.mxu0 0.0
    %6706 = vmatpush1.msra.mxu0 0.0
    %6707 = vmatprep.subr.mxu0 0.0
    %6708 = vmatpush1.msra.mxu0 0.0
    %6709 = vmatprep.subr.mxu0 0.0
    %6710 = vmatpush1.msra.mxu0 0.0
    %6711 = vmatprep.subr.mxu0 0.0
    %6712 = vmatpush1.msra.mxu0 0.0
    %6713 = vmatprep.subr.mxu0 0.0
    %6714 = vmatpush1.msra.mxu0 0.0
    %6715 = vmatprep.subr.mxu0 0.0
    %6716 = vmatpush1.msra.mxu0 0.0
    %6717 = vmatprep.subr.mxu0 0.0
    %6718 = vmatpush1.msra.mxu0 0.0
    %6719 = vmatprep.subr.mxu0 0.0
    %6720 = vmatpush1.msra.mxu0 %v6388
    %6721 = vmatprep.subr.mxu0 0.0
    %6722 = vmatpush1.msra.mxu0 %v6387
    %6723 = vmatprep.subr.mxu0 0.0
    %6724 = vmatpush1.msra.mxu0 %v6386
    %6725 = vmatprep.subr.mxu0 0.0
    %6726 = vmatpush1.msra.mxu0 %v6385
    %6727 = vmatprep.subr.mxu0 0.0
    %6728 = vmatpush2.msra.mxu0 0.0
    %6729 = vmatprep.subr.mxu0 0.0
    %6730 = vmatpush2.msra.mxu0 0.0
    %6731 = vmatprep.subr.mxu0 0.0
    %6732 = vmatpush2.msra.mxu0 0.0
    %6733 = vmatprep.subr.mxu0 0.0
    %6734 = vmatpush2.msra.mxu0 0.0
    %6735 = vmatprep.subr.mxu0 0.0
    %6736 = vmatpush2.msra.mxu0 0.0
    %6737 = vmatprep.subr.mxu0 0.0
    %6738 = vmatpush2.msra.mxu0 0.0
    %6739 = vmatprep.subr.mxu0 0.0
    %6740 = vmatpush2.msra.mxu0 0.0
    %6741 = vmatprep.subr.mxu0 0.0
    %6742 = vmatpush2.msra.mxu0 0.0
    %6743 = vmatprep.subr.mxu0 0.0
    %6744 = vmatpush2.msra.mxu0 0.0
    %6745 = vmatprep.subr.mxu0 0.0
    %6746 = vmatpush2.msra.mxu0 0.0
    %6747 = vmatprep.subr.mxu0 0.0
    %6748 = vmatpush2.msra.mxu0 0.0
    %6749 = vmatprep.subr.mxu0 0.0
    %6750 = vmatpush2.msra.mxu0 0.0
    %6751 = vmatprep.subr.mxu0 0.0
    %6752 = vmatpush2.msra.mxu0 0.0
    %6753 = vmatprep.subr.mxu0 0.0
    %6754 = vmatpush2.msra.mxu0 0.0
    %6755 = vmatprep.subr.mxu0 0.0
    %6756 = vmatpush2.msra.mxu0 0.0
    %6757 = vmatprep.subr.mxu0 0.0
    %6758 = vmatpush2.msra.mxu0 0.0
    %6759 = vmatprep.mubr.f32.mxu0 0.0
    %6760 = vmatmul.mubr.f32.gmra.mxu0 %v6672
    %v6761 = vpop.f32.mrf.mxu0
    %v6762 = vadd.f32 0.0, %v6761
    %v6763 = vpop.f32.mrf.mxu0
    %6764 = vmatprep.mubr.f32.mxu0 0.0
    %6765 = vmatmul.mubr.f32.gmra.mxu0 %v6675
    %v6766 = vpop.f32.mrf.mxu0
    %v6767 = vadd.f32 0.0, %v6766
    %v6768 = vpop.f32.mrf.mxu0
    %6769 = vmatprep.mubr.f32.mxu0 0.0
    %6770 = vmatmul.mubr.f32.gmra.mxu0 %v6678
    %v6771 = vpop.f32.mrf.mxu0
    %v6772 = vadd.f32 0.0, %v6771
    %v6773 = vpop.f32.mrf.mxu0
    %6774 = vmatprep.mubr.f32.mxu0 0.0
    %6775 = vmatmul.mubr.f32.gmra.mxu0 %v6681
    %v6776 = vpop.f32.mrf.mxu0
    %v6777 = vadd.f32 0.0, %v6776
    %v6778 = vpop.f32.mrf.mxu0
    %6779 = vmatprep.mubr.f32.mxu0 0.0
    %6780 = vmatmul.mubr.f32.gmra.mxu0 %v6684
    %v6781 = vpop.f32.mrf.mxu0
    %v6782 = vadd.f32 0.0, %v6781
    %v6783 = vpop.f32.mrf.mxu0
    %6784 = vmatprep.mubr.f32.mxu0 0.0
    %6785 = vmatmul.mubr.f32.gmra.mxu0 %v6687
    %v6786 = vpop.f32.mrf.mxu0
    %v6787 = vadd.f32 0.0, %v6786
    %v6788 = vpop.f32.mrf.mxu0
    %6789 = vmatprep.mubr.f32.mxu0 0.0
    %6790 = vmatmul.mubr.f32.gmra.mxu0 %v6690
    %v6791 = vpop.f32.mrf.mxu0
    %v6792 = vadd.f32 0.0, %v6791
    %v6793 = vpop.f32.mrf.mxu0
    %6794 = vmatprep.mubr.f32.mxu0 0.0
    %6795 = vmatmul.mubr.f32.gmra.mxu0 %v6693
    %v6796 = vpop.f32.mrf.mxu0
    %v6797 = vadd.f32 0.0, %v6796
    %v6798 = vpop.f32.mrf.mxu0
    %6799 = vdwg.mxu0
    %v6800 = vld [vmem:[#allocation2 + $0xe20] sm:$0xff]
    %v6801 = vld [vmem:[#allocation2 + $0xe28] sm:$0xff]
    %v6802 = vld [vmem:[#allocation2 + $0xe30] sm:$0xff]
    %v6803 = vld [vmem:[#allocation2 + $0xe38] sm:$0xff]
    %v6804 = vld [vmem:[#allocation2 + $0xe40] sm:$0xff]
    %v6805 = vld [vmem:[#allocation2 + $0xe48] sm:$0xff]
    %v6806 = vld [vmem:[#allocation2 + $0xe50] sm:$0xff]
    %v6807 = vld [vmem:[#allocation2 + $0xe58] sm:$0xff]
    %v6808 = vld [vmem:[#allocation2 + $0xe60] sm:$0xff]
    %v6809 = vld [vmem:[#allocation2 + $0xe68] sm:$0xff]
    %v6810 = vld [vmem:[#allocation2 + $0xe70] sm:$0xff]
    %v6811 = vld [vmem:[#allocation2 + $0xe78] sm:$0xff]
    %v6812 = vld [vmem:[#allocation2 + $0xe80] sm:$0xff]
    %v6813 = vld [vmem:[#allocation2 + $0xe88] sm:$0xff]
    %v6814 = vld [vmem:[#allocation2 + $0xe90] sm:$0xff]
    %v6815 = vld [vmem:[#allocation2 + $0xe98] sm:$0xff]
    %v6816 = vld [vmem:[#allocation2 + $0xea0] sm:$0xff]
    %v6817 = vld [vmem:[#allocation2 + $0xea8] sm:$0xff]
    %v6818 = vld [vmem:[#allocation2 + $0xeb0] sm:$0xff]
    %v6819 = vld [vmem:[#allocation2 + $0xeb8] sm:$0xff]
    %v6820 = vld [vmem:[#allocation2 + $0xec0] sm:$0xff]
    %v6821 = vld [vmem:[#allocation2 + $0xec8] sm:$0xff]
    %v6822 = vld [vmem:[#allocation2 + $0xed0] sm:$0xff]
    %v6823 = vld [vmem:[#allocation2 + $0xed8] sm:$0xff]
    %v6824 = vld [vmem:[#allocation2 + $0xee0] sm:$0xff]
    %v6825 = vld [vmem:[#allocation2 + $0xee8] sm:$0xff]
    %v6826 = vld [vmem:[#allocation2 + $0xef0] sm:$0xff]
    %v6827 = vld [vmem:[#allocation2 + $0xef8] sm:$0xff]
    %v6828 = vld [vmem:[#allocation2 + $0xf00] sm:$0xff]
    %v6829 = vld [vmem:[#allocation2 + $0xf08] sm:$0xff]
    %v6830 = vld [vmem:[#allocation2 + $0xf10] sm:$0xff]
    %v6831 = vld [vmem:[#allocation2 + $0xf18] sm:$0xff]
    %v6832 = vld [vmem:[#allocation2 + $0xf20] sm:$0xff]
    %v6833 = vld [vmem:[#allocation2 + $0xf28] sm:$0xff]
    %v6834 = vld [vmem:[#allocation2 + $0xf30] sm:$0xff]
    %v6835 = vld [vmem:[#allocation2 + $0xf38] sm:$0xff]
    %v6836 = vld [vmem:[#allocation2 + $0xf40] sm:$0xff]
    %v6837 = vld [vmem:[#allocation2 + $0xf48] sm:$0xff]
    %v6838 = vld [vmem:[#allocation2 + $0xf50] sm:$0xff]
    %v6839 = vld [vmem:[#allocation2 + $0xf58] sm:$0xff]
    %v6840 = vld [vmem:[#allocation2 + $0xf60] sm:$0xff]
    %v6841 = vld [vmem:[#allocation2 + $0xf68] sm:$0xff]
    %v6842 = vld [vmem:[#allocation2 + $0xf70] sm:$0xff]
    %v6843 = vld [vmem:[#allocation2 + $0xf78] sm:$0xff]
    %v6844 = vld [vmem:[#allocation2 + $0xf80] sm:$0xff]
    %v6845 = vld [vmem:[#allocation2 + $0xf88] sm:$0xff]
    %v6846 = vld [vmem:[#allocation2 + $0xf90] sm:$0xff]
    %v6847 = vld [vmem:[#allocation2 + $0xf98] sm:$0xff]
    %v6848 = vld [vmem:[#allocation2 + $0xfa0] sm:$0x1]
    %v6849 = vlaneseq
    %v6850 = vshrl.u32 %v6849, 7
    %v6851 = vsub.s32 0, %v6850
    %v6852 = vrot.slane %v6848, %v6851
    %6853 = vmatprep.subr.mxu0 0.0
    %6854 = vmatpush1.msra.mxu0 %v6815
    %6855 = vmatprep.subr.mxu0 0.0
    %6856 = vmatpush1.msra.mxu0 %v6814
    %6857 = vmatprep.subr.mxu0 0.0
    %6858 = vmatpush1.msra.mxu0 %v6813
    %6859 = vmatprep.subr.mxu0 0.0
    %6860 = vmatpush1.msra.mxu0 %v6812
    %6861 = vmatprep.subr.mxu0 0.0
    %6862 = vmatpush1.msra.mxu0 %v6811
    %6863 = vmatprep.subr.mxu0 0.0
    %6864 = vmatpush1.msra.mxu0 %v6810
    %6865 = vmatprep.subr.mxu0 0.0
    %6866 = vmatpush1.msra.mxu0 %v6809
    %6867 = vmatprep.subr.mxu0 0.0
    %6868 = vmatpush1.msra.mxu0 %v6808
    %6869 = vmatprep.subr.mxu0 0.0
    %6870 = vmatpush1.msra.mxu0 %v6807
    %6871 = vmatprep.subr.mxu0 0.0
    %6872 = vmatpush1.msra.mxu0 %v6806
    %6873 = vmatprep.subr.mxu0 0.0
    %6874 = vmatpush1.msra.mxu0 %v6805
    %6875 = vmatprep.subr.mxu0 0.0
    %6876 = vmatpush1.msra.mxu0 %v6804
    %6877 = vmatprep.subr.mxu0 0.0
    %6878 = vmatpush1.msra.mxu0 %v6803
    %6879 = vmatprep.subr.mxu0 0.0
    %6880 = vmatpush1.msra.mxu0 %v6802
    %6881 = vmatprep.subr.mxu0 0.0
    %6882 = vmatpush1.msra.mxu0 %v6801
    %6883 = vmatprep.subr.mxu0 0.0
    %6884 = vmatpush1.msra.mxu0 %v6800
    %6885 = vmatprep.subr.mxu0 0.0
    %6886 = vmatpush2.msra.mxu0 %v6831
    %6887 = vmatprep.subr.mxu0 0.0
    %6888 = vmatpush2.msra.mxu0 %v6830
    %6889 = vmatprep.subr.mxu0 0.0
    %6890 = vmatpush2.msra.mxu0 %v6829
    %6891 = vmatprep.subr.mxu0 0.0
    %6892 = vmatpush2.msra.mxu0 %v6828
    %6893 = vmatprep.subr.mxu0 0.0
    %6894 = vmatpush2.msra.mxu0 %v6827
    %6895 = vmatprep.subr.mxu0 0.0
    %6896 = vmatpush2.msra.mxu0 %v6826
    %6897 = vmatprep.subr.mxu0 0.0
    %6898 = vmatpush2.msra.mxu0 %v6825
    %6899 = vmatprep.subr.mxu0 0.0
    %6900 = vmatpush2.msra.mxu0 %v6824
    %6901 = vmatprep.subr.mxu0 0.0
    %6902 = vmatpush2.msra.mxu0 %v6823
    %6903 = vmatprep.subr.mxu0 0.0
    %6904 = vmatpush2.msra.mxu0 %v6822
    %6905 = vmatprep.subr.mxu0 0.0
    %6906 = vmatpush2.msra.mxu0 %v6821
    %6907 = vmatprep.subr.mxu0 0.0
    %6908 = vmatpush2.msra.mxu0 %v6820
    %6909 = vmatprep.subr.mxu0 0.0
    %6910 = vmatpush2.msra.mxu0 %v6819
    %6911 = vmatprep.subr.mxu0 0.0
    %6912 = vmatpush2.msra.mxu0 %v6818
    %6913 = vmatprep.subr.mxu0 0.0
    %6914 = vmatpush2.msra.mxu0 %v6817
    %6915 = vmatprep.subr.mxu0 0.0
    %6916 = vmatpush2.msra.mxu0 %v6816
    %6917 = vmatprep.mubr.f32.mxu0 %v6625
    %6918 = vmatmul.mubr.f32.gmra.mxu0 %v6488
    %v6919 = vpop.f32.mrf.mxu0
    %v6920 = vadd.f32 %v6852, %v6919
    %v6921 = vpop.f32.mrf.mxu0
    %6922 = vmatprep.mubr.f32.mxu0 %v6630
    %6923 = vmatmul.mubr.f32.gmra.mxu0 %v6493
    %v6924 = vpop.f32.mrf.mxu0
    %v6925 = vadd.f32 %v6852, %v6924
    %v6926 = vpop.f32.mrf.mxu0
    %6927 = vmatprep.mubr.f32.mxu0 %v6635
    %6928 = vmatmul.mubr.f32.gmra.mxu0 %v6498
    %v6929 = vpop.f32.mrf.mxu0
    %v6930 = vadd.f32 %v6852, %v6929
    %v6931 = vpop.f32.mrf.mxu0
    %6932 = vmatprep.mubr.f32.mxu0 %v6640
    %6933 = vmatmul.mubr.f32.gmra.mxu0 %v6503
    %v6934 = vpop.f32.mrf.mxu0
    %v6935 = vadd.f32 %v6852, %v6934
    %v6936 = vpop.f32.mrf.mxu0
    %6937 = vmatprep.mubr.f32.mxu0 %v6645
    %6938 = vmatmul.mubr.f32.gmra.mxu0 %v6508
    %v6939 = vpop.f32.mrf.mxu0
    %v6940 = vadd.f32 %v6852, %v6939
    %v6941 = vpop.f32.mrf.mxu0
    %6942 = vmatprep.mubr.f32.mxu0 %v6650
    %6943 = vmatmul.mubr.f32.gmra.mxu0 %v6513
    %v6944 = vpop.f32.mrf.mxu0
    %v6945 = vadd.f32 %v6852, %v6944
    %v6946 = vpop.f32.mrf.mxu0
    %6947 = vmatprep.mubr.f32.mxu0 %v6655
    %6948 = vmatmul.mubr.f32.gmra.mxu0 %v6518
    %v6949 = vpop.f32.mrf.mxu0
    %v6950 = vadd.f32 %v6852, %v6949
    %v6951 = vpop.f32.mrf.mxu0
    %6952 = vmatprep.mubr.f32.mxu0 %v6660
    %6953 = vmatmul.mubr.f32.gmra.mxu0 %v6523
    %v6954 = vpop.f32.mrf.mxu0
    %v6955 = vadd.f32 %v6852, %v6954
    %v6956 = vpop.f32.mrf.mxu0
    %6957 = vdwg.mxu0
    %6958 = vmatprep.subr.mxu0 0.0
    %6959 = vmatpush1.msra.mxu0 %v6847
    %6960 = vmatprep.subr.mxu0 0.0
    %6961 = vmatpush1.msra.mxu0 %v6846
    %6962 = vmatprep.subr.mxu0 0.0
    %6963 = vmatpush1.msra.mxu0 %v6845
    %6964 = vmatprep.subr.mxu0 0.0
    %6965 = vmatpush1.msra.mxu0 %v6844
    %6966 = vmatprep.subr.mxu0 0.0
    %6967 = vmatpush1.msra.mxu0 %v6843
    %6968 = vmatprep.subr.mxu0 0.0
    %6969 = vmatpush1.msra.mxu0 %v6842
    %6970 = vmatprep.subr.mxu0 0.0
    %6971 = vmatpush1.msra.mxu0 %v6841
    %6972 = vmatprep.subr.mxu0 0.0
    %6973 = vmatpush1.msra.mxu0 %v6840
    %6974 = vmatprep.subr.mxu0 0.0
    %6975 = vmatpush1.msra.mxu0 %v6839
    %6976 = vmatprep.subr.mxu0 0.0
    %6977 = vmatpush1.msra.mxu0 %v6838
    %6978 = vmatprep.subr.mxu0 0.0
    %6979 = vmatpush1.msra.mxu0 %v6837
    %6980 = vmatprep.subr.mxu0 0.0
    %6981 = vmatpush1.msra.mxu0 %v6836
    %6982 = vmatprep.subr.mxu0 0.0
    %6983 = vmatpush1.msra.mxu0 %v6835
    %6984 = vmatprep.subr.mxu0 0.0
    %6985 = vmatpush1.msra.mxu0 %v6834
    %6986 = vmatprep.subr.mxu0 0.0
    %6987 = vmatpush1.msra.mxu0 %v6833
    %6988 = vmatprep.subr.mxu0 0.0
    %6989 = vmatpush1.msra.mxu0 %v6832
    %6990 = vmatprep.subr.mxu0 0.0
    %6991 = vmatpush2.msra.mxu0 0.0
    %6992 = vmatprep.subr.mxu0 0.0
    %6993 = vmatpush2.msra.mxu0 0.0
    %6994 = vmatprep.subr.mxu0 0.0
    %6995 = vmatpush2.msra.mxu0 0.0
    %6996 = vmatprep.subr.mxu0 0.0
    %6997 = vmatpush2.msra.mxu0 0.0
    %6998 = vmatprep.subr.mxu0 0.0
    %6999 = vmatpush2.msra.mxu0 0.0
    %7000 = vmatprep.subr.mxu0 0.0
    %7001 = vmatpush2.msra.mxu0 0.0
    %7002 = vmatprep.subr.mxu0 0.0
    %7003 = vmatpush2.msra.mxu0 0.0
    %7004 = vmatprep.subr.mxu0 0.0
    %7005 = vmatpush2.msra.mxu0 0.0
    %7006 = vmatprep.subr.mxu0 0.0
    %7007 = vmatpush2.msra.mxu0 0.0
    %7008 = vmatprep.subr.mxu0 0.0
    %7009 = vmatpush2.msra.mxu0 0.0
    %7010 = vmatprep.subr.mxu0 0.0
    %7011 = vmatpush2.msra.mxu0 0.0
    %7012 = vmatprep.subr.mxu0 0.0
    %7013 = vmatpush2.msra.mxu0 0.0
    %7014 = vmatprep.subr.mxu0 0.0
    %7015 = vmatpush2.msra.mxu0 0.0
    %7016 = vmatprep.subr.mxu0 0.0
    %7017 = vmatpush2.msra.mxu0 0.0
    %7018 = vmatprep.subr.mxu0 0.0
    %7019 = vmatpush2.msra.mxu0 0.0
    %7020 = vmatprep.subr.mxu0 0.0
    %7021 = vmatpush2.msra.mxu0 0.0
    %7022 = vmatprep.mubr.f32.mxu0 0.0
    %7023 = vmatmul.mubr.f32.gmra.mxu0 %v6762
    %v7024 = vpop.f32.mrf.mxu0
    %v7025 = vadd.f32 %v6920, %v7024
    %v7026 = vpop.f32.mrf.mxu0
    %7027 = vmatprep.mubr.f32.mxu0 0.0
    %7028 = vmatmul.mubr.f32.gmra.mxu0 %v6767
    %v7029 = vpop.f32.mrf.mxu0
    %v7030 = vadd.f32 %v6925, %v7029
    %v7031 = vpop.f32.mrf.mxu0
    %7032 = vmatprep.mubr.f32.mxu0 0.0
    %7033 = vmatmul.mubr.f32.gmra.mxu0 %v6772
    %v7034 = vpop.f32.mrf.mxu0
    %v7035 = vadd.f32 %v6930, %v7034
    %v7036 = vpop.f32.mrf.mxu0
    %7037 = vmatprep.mubr.f32.mxu0 0.0
    %7038 = vmatmul.mubr.f32.gmra.mxu0 %v6777
    %v7039 = vpop.f32.mrf.mxu0
    %v7040 = vadd.f32 %v6935, %v7039
    %v7041 = vpop.f32.mrf.mxu0
    %7042 = vmatprep.mubr.f32.mxu0 0.0
    %7043 = vmatmul.mubr.f32.gmra.mxu0 %v6782
    %v7044 = vpop.f32.mrf.mxu0
    %v7045 = vadd.f32 %v6940, %v7044
    %v7046 = vpop.f32.mrf.mxu0
    %7047 = vmatprep.mubr.f32.mxu0 0.0
    %7048 = vmatmul.mubr.f32.gmra.mxu0 %v6787
    %v7049 = vpop.f32.mrf.mxu0
    %v7050 = vadd.f32 %v6945, %v7049
    %v7051 = vpop.f32.mrf.mxu0
    %7052 = vmatprep.mubr.f32.mxu0 0.0
    %7053 = vmatmul.mubr.f32.gmra.mxu0 %v6792
    %v7054 = vpop.f32.mrf.mxu0
    %v7055 = vadd.f32 %v6950, %v7054
    %v7056 = vpop.f32.mrf.mxu0
    %7057 = vmatprep.mubr.f32.mxu0 0.0
    %7058 = vmatmul.mubr.f32.gmra.mxu0 %v6797
    %v7059 = vpop.f32.mrf.mxu0
    %v7060 = vadd.f32 %v6955, %v7059
    %v7061 = vpop.f32.mrf.mxu0
    %7062 = vdwg.mxu0
    %7063 = vst.msk [vmem:[#allocation7] sm:$0xff] %vm494, %v7025
    %7064 = vst.msk [vmem:[#allocation7 + $0x8] sm:$0xff] %vm494, %v7030
    %7065 = vst.msk [vmem:[#allocation7 + $0x10] sm:$0xff] %vm494, %v7035
    %7066 = vst.msk [vmem:[#allocation7 + $0x18] sm:$0xff] %vm494, %v7040
    %7067 = vst.msk [vmem:[#allocation7 + $0x20] sm:$0xff] %vm494, %v7045
    %7068 = vst.msk [vmem:[#allocation7 + $0x28] sm:$0xff] %vm494, %v7050
    %7069 = vst.msk [vmem:[#allocation7 + $0x30] sm:$0xff] %vm494, %v7055
    %7070 = vst.msk [vmem:[#allocation7 + $0x38] sm:$0xff] %vm494, %v7060
    // Predicated region
    $region46: #{forward.1} parent=1 // pred_check
      _
    $region47: #{forward.1} parent=1 // pred_check_branch
      %7072 = sbr.rel (0) target = $region49
    $region48: #{forward.1} parent=1 // pred_region
      %s7074 = ssub.s32 1024, 1024
      %7075 = vsyncadd [#allocation6], %s7074
      %s7076 = sshll.u32 [#allocation7], 4
      %s7077 = int_to_ptr.vmem [resolvable:$true] %s7076
      %7082 = dma.vmem_to_hbm [thread:$0]  %s7077, 1024, %s2, [#allocation6], 128, 128, 8
    $region49: #{forward.1} parent=1 // pred_fallthru
      _
    // Predicated region
    $region50: #{forward.1} parent=1 // pred_check
      _
    $region51: #{forward.1} parent=1 // pred_check_branch
      %7084 = sbr.rel (0) target = $region53
    $region52: #{forward.1} parent=1 // pred_region
      %7085 = dma.done [#allocation6], 1024
    $region53: #{forward.1} parent=1 // pred_fallthru
      _
    %7086 = vsyncpa [#allocation5], 1
    %7087 = vsyncpa [#allocation6], 1
  %7088 = vsyncmov [#allocation3]
  %s7089 = vpop.sfrf %7088
  %p7090 = scmp.eq.s32.totalorder %s7089, 0
  %p7091 = pneg %p7090
  %7093 = shalt.err (%p7091)
  %s7094 = scalar_lea.sflag [#allocation3], 1
  %7095 = vsyncmov %s7094
  %s7096 = vpop.sfrf %7095
  %p7097 = scmp.eq.s32.totalorder %s7096, 0
  %p7098 = pneg %p7097
  %7100 = shalt.err (%p7098)
  %s7101 = scalar_lea.sflag [#allocation3], 2
  %7102 = vsyncmov %s7101
  %s7103 = vpop.sfrf %7102
  %p7104 = scmp.eq.s32.totalorder %s7103, 0
  %p7105 = pneg %p7104
  %7107 = shalt.err (%p7105)
  %s7108 = scalar_lea.sflag [#allocation3], 3
  %7109 = vsyncmov %s7108
  %s7110 = vpop.sfrf %7109
  %p7111 = scmp.eq.s32.totalorder %s7110, 0
  %p7112 = pneg %p7111
  %7114 = shalt.err (%p7112)
  %s7115 = scalar_lea.sflag [#allocation3], 4
  %7116 = vsyncmov %s7115
  %s7117 = vpop.sfrf %7116
  %p7118 = scmp.eq.s32.totalorder %s7117, 0
  %p7119 = pneg %p7118
  %7121 = shalt.err (%p7119)
  %s7122 = scalar_lea.sflag [#allocation3], 5
  %7123 = vsyncmov %s7122
  %s7124 = vpop.sfrf %7123
  %p7125 = scmp.eq.s32.totalorder %s7124, 0
  %p7126 = pneg %p7125
  %7128 = shalt.err (%p7126)
  %s7129 = scalar_lea.sflag [#allocation3], 6
  %7130 = vsyncmov %s7129
  %s7131 = vpop.sfrf %7130
  %p7132 = scmp.eq.s32.totalorder %s7131, 0
  %p7133 = pneg %p7132
  %7135 = shalt.err (%p7133)
  %s7136 = scalar_lea.sflag [#allocation3], 7
  %7137 = vsyncmov %s7136
  %s7138 = vpop.sfrf %7137
  %p7139 = scmp.eq.s32.totalorder %s7138, 0
  %p7140 = pneg %p7139
  %7142 = shalt.err (%p7140)
  %s7143 = scalar_lea.sflag [#allocation3], 8
  %7144 = vsyncmov %s7143
  %s7145 = vpop.sfrf %7144
  %p7146 = scmp.eq.s32.totalorder %s7145, 0
  %p7147 = pneg %p7146
  %7149 = shalt.err (%p7147)

</llo_original>
